<compile_context>
chip_gen: v7x
topology: tpu7x:2x2x1
jax: 0.10.0
libtpu: 0.0.40
codegen_flags: <defaults>
</compile_context>

<pallas_src>
import functools
import math

import jax
import jax.numpy as jnp
from jax.experimental import pallas as pl
from jax.experimental.pallas import tpu as pltpu


def _cab_kernel(xp_ref, w1_ref, sb1_ref, w2_ref, sb2_ref, e_ref,
                o_ref, h1p_ref, *, H, W, C, compute_dtype):
    """Fused ECABasicBlock forward for one batch image.

    xp_ref : (1, H+2, W+2, C) f32   zero-padded input (also holds the residual)
    w1_ref : (9, C, C)  compute_dtype   conv1 taps, tap k = (ky*3 + kx)
    sb1_ref: (2, C) f32  [folded BN1 scale; bias]
    w2_ref : (9, C, C)  compute_dtype   conv2 taps
    sb2_ref: (2, C) f32  [folded BN2 scale; bias]
    e_ref  : (C, C) f32  ECA band matrix (attn_lin = pooled @ E)
    o_ref  : (1, H, W, C) f32  output
    h1p_ref: (H+2, W+2, C) f32 VMEM scratch (zero-padded conv1 activation)
    """
    HW = H * W

    # ---- conv1 (3x3, pad 1, no bias) + folded BN1 + ReLU -------------------
    acc1 = jnp.zeros((HW, C), jnp.float32)
    for k in range(9):
        dy, dx = k // 3, k % 3
        patch = xp_ref[0, dy:dy + H, dx:dx + W, :].astype(compute_dtype)
        acc1 = acc1 + jnp.dot(patch.reshape(HW, C), w1_ref[k],
                              preferred_element_type=jnp.float32)
    h1 = jnp.maximum(acc1 * sb1_ref[0:1, :] + sb1_ref[1:2, :], 0.0)

    # ---- zero-padded copy of h1 in VMEM for conv2 --------------------------
    h1p_ref[...] = jnp.zeros_like(h1p_ref)
    h1p_ref[1:H + 1, 1:W + 1, :] = h1.reshape(H, W, C)

    # ---- conv2 (3x3, pad 1, no bias) + folded BN2 --------------------------
    acc2 = jnp.zeros((HW, C), jnp.float32)
    for k in range(9):
        dy, dx = k // 3, k % 3
        patch = h1p_ref[dy:dy + H, dx:dx + W, :].astype(compute_dtype)
        acc2 = acc2 + jnp.dot(patch.reshape(HW, C), w2_ref[k],
                              preferred_element_type=jnp.float32)
    out2 = acc2 * sb2_ref[0:1, :] + sb2_ref[1:2, :]          # (HW, C) f32

    # ---- ECA: global average pool -> 1D conv over channels -> sigmoid ------
    pooled = jnp.mean(out2, axis=0, keepdims=True)           # (1, C)
    attn = jax.nn.sigmoid(
        jnp.dot(pooled, e_ref[...], preferred_element_type=jnp.float32))

    # ---- channel reweight + residual + final ReLU --------------------------
    residual = xp_ref[0, 1:H + 1, 1:W + 1, :].astype(jnp.float32)
    out = jnp.maximum(out2 * attn + residual.reshape(HW, C), 0.0)
    o_ref[0] = out.reshape(H, W, C).astype(o_ref.dtype)


def cab_pallas(x_nchw, params, *, compute_dtype=jnp.bfloat16, eps=1e-5):
    """x_nchw: (B, C, H, W) float32, PyTorch layout. Returns (B, C, H, W)."""
    B, C, H, W = x_nchw.shape

    # Channels-last + spatial zero padding (layout plumbing, done by XLA).
    x = jnp.transpose(x_nchw, (0, 2, 3, 1)).astype(jnp.float32)
    xp = jnp.pad(x, ((0, 0), (1, 1), (1, 1), (0, 0)))

    # Conv weights (Cout, Cin, 3, 3) -> (9, Cin, Cout), tap k = ky*3 + kx.
    w1 = jnp.transpose(params["conv1_w"], (2, 3, 1, 0)).reshape(9, C, C)
    w2 = jnp.transpose(params["conv2_w"], (2, 3, 1, 0)).reshape(9, C, C)
    w1 = w1.astype(compute_dtype)
    w2 = w2.astype(compute_dtype)

    # Fold eval-mode BatchNorm into per-channel scale/bias.
    s1 = params["bn1_gamma"] / jnp.sqrt(params["bn1_var"] + eps)
    b1 = params["bn1_beta"] - params["bn1_mean"] * s1
    s2 = params["bn2_gamma"] / jnp.sqrt(params["bn2_var"] + eps)
    b2 = params["bn2_beta"] - params["bn2_mean"] * s2
    sb1 = jnp.stack([s1, b1]).astype(jnp.float32)            # (2, C)
    sb2 = jnp.stack([s2, b2]).astype(jnp.float32)            # (2, C)

    # ECA conv1d(k=3, pad=1, no bias) over channels as a band matrix:
    # attn_lin[c] = k0*y[c-1] + k1*y[c] + k2*y[c+1]  ==  (y @ E)[c]
    k = params["eca_w"].astype(jnp.float32)                  # (3,)
    E = (k[0] * jnp.eye(C, k=1, dtype=jnp.float32)
         + k[1] * jnp.eye(C, k=0, dtype=jnp.float32)
         + k[2] * jnp.eye(C, k=-1, dtype=jnp.float32))       # (C, C)

    cbytes = jnp.dtype(compute_dtype).itemsize
    est = (2 * (H + 2) * (W + 2) * C * 4                     # dbl-buffered input blocks
           + 2 * H * W * C * 4                               # dbl-buffered output blocks
           + 2 * (2 * 9 * C * C * cbytes + 4 * C * 4 + C * C * 4)  # resident weights
           + (H + 2) * (W + 2) * C * 4                       # scratch
           + 4 * H * W * C * 4)                              # f32 intermediates headroom
    vmem_limit = int(min(max(2 * est, 32 * 1024 * 1024), 48 * 1024 * 1024))

    kernel = functools.partial(_cab_kernel, H=H, W=W, C=C,
                               compute_dtype=compute_dtype)

    out_nhwc = pl.pallas_call(
        kernel,
        out_shape=jax.ShapeDtypeStruct((B, H, W, C), jnp.float32),
        grid_spec=pltpu.PrefetchScalarGridSpec(
            num_scalar_prefetch=0,
            grid=(B,),
            in_specs=[
                pl.BlockSpec((1, H + 2, W + 2, C), lambda b: (b, 0, 0, 0)),
                pl.BlockSpec((9, C, C), lambda b: (0, 0, 0)),   # conv1 taps (resident)
                pl.BlockSpec((2, C), lambda b: (0, 0)),         # BN1 scale/bias
                pl.BlockSpec((9, C, C), lambda b: (0, 0, 0)),   # conv2 taps (resident)
                pl.BlockSpec((2, C), lambda b: (0, 0)),         # BN2 scale/bias
                pl.BlockSpec((C, C), lambda b: (0, 0)),         # ECA band matrix
            ],
            out_specs=pl.BlockSpec((1, H, W, C), lambda b: (b, 0, 0, 0)),
            scratch_shapes=[pltpu.VMEM((H + 2, W + 2, C), jnp.float32)],
        ),
        compiler_params=pltpu.CompilerParams(
            dimension_semantics=("parallel",),
            vmem_limit_bytes=vmem_limit,
        ),
    )(xp, w1, sb1, w2, sb2, E)

    return jnp.transpose(out_nhwc, (0, 3, 1, 2)).astype(x_nchw.dtype)


def init_cab_params(key, num_feat, dtype=jnp.float32):
    """Deterministic params mimicking PyTorch defaults (conv: U(+-1/sqrt(fan_in));
    BN with non-trivial running stats so the folding path is exercised)."""
    ks = jax.random.split(key, 11)
    lim = 1.0 / math.sqrt(9 * num_feat)
    lim_e = 1.0 / math.sqrt(3.0)
    return {
        "conv1_w": jax.random.uniform(ks[0], (num_feat, num_feat, 3, 3), dtype, -lim, lim),
        "conv2_w": jax.random.uniform(ks[1], (num_feat, num_feat, 3, 3), dtype, -lim, lim),
        "bn1_gamma": 1.0 + 0.1 * jax.random.normal(ks[2], (num_feat,), dtype),
        "bn1_beta": 0.1 * jax.random.normal(ks[3], (num_feat,), dtype),
        "bn1_mean": 0.1 * jax.random.normal(ks[4], (num_feat,), dtype),
        "bn1_var": 0.5 + jax.random.uniform(ks[5], (num_feat,), dtype),
        "bn2_gamma": 1.0 + 0.1 * jax.random.normal(ks[6], (num_feat,), dtype),
        "bn2_beta": 0.1 * jax.random.normal(ks[7], (num_feat,), dtype),
        "bn2_mean": 0.1 * jax.random.normal(ks[8], (num_feat,), dtype),
        "bn2_var": 0.5 + jax.random.uniform(ks[9], (num_feat,), dtype),
        "eca_w": jax.random.uniform(ks[10], (3,), dtype, -lim_e, lim_e),
    }


def cab_reference(x_nchw, params, eps=1e-5):
    """Pure-JAX f32 reference of ECABasicBlock forward (eval-mode BN)."""
    x = jnp.transpose(x_nchw, (0, 2, 3, 1)).astype(jnp.float32)

    def conv3x3(inp, w):
        return jax.lax.conv_general_dilated(
            inp, jnp.transpose(w, (2, 3, 1, 0)).astype(jnp.float32),
            window_strides=(1, 1), padding="SAME",
            dimension_numbers=("NHWC", "HWIO", "NHWC"),
            precision=jax.lax.Precision.HIGHEST)

    s1 = params["bn1_gamma"] / jnp.sqrt(params["bn1_var"] + eps)
    b1 = params["bn1_beta"] - params["bn1_mean"] * s1
    s2 = params["bn2_gamma"] / jnp.sqrt(params["bn2_var"] + eps)
    b2 = params["bn2_beta"] - params["bn2_mean"] * s2

    h = jnp.maximum(conv3x3(x, params["conv1_w"]) * s1 + b1, 0.0)
    o2 = conv3x3(h, params["conv2_w"]) * s2 + b2

    pooled = jnp.mean(o2, axis=(1, 2))                       # (B, C)
    kw = params["eca_w"]
    pp = jnp.pad(pooled, ((0, 0), (1, 1)))
    attn = jax.nn.sigmoid(kw[0] * pp[:, :-2] + kw[1] * pp[:, 1:-1] + kw[2] * pp[:, 2:])

    out = jnp.maximum(o2 * attn[:, None, None, :] + x, 0.0)
    return jnp.transpose(out, (0, 3, 1, 2)).astype(x_nchw.dtype)


if __name__ == "__main__":
    key = jax.random.PRNGKey(0)
    kx, kp = jax.random.split(key)

    B, C, H, W = 2, 64, 16, 16                  # small demo shape (num_feat=64)
    x = jax.random.normal(kx, (B, C, H, W), dtype=jnp.float32)
    params = init_cab_params(kp, C)

    out = cab_pallas(x, params, compute_dtype=jnp.bfloat16)
    out = jax.block_until_ready(out)

    ref = cab_reference(x, params)
    assert out.shape == (B, C, H, W)
    # bf16 MXU operands with f32 accumulation -> ~1e-3 typical abs error.
    assert jnp.allclose(out, ref, atol=2e-2, rtol=2e-2), (
        "mismatch vs reference, max abs diff = "
        f"{float(jnp.max(jnp.abs(out - ref)))}")

    print("KERNEL_OK")
</pallas_src>

<mosaic_0001>
module attributes {stable_mosaic.version = 11 : i64} {
  func.func @_cab_kernel(%arg0: i32, %arg1: memref<1x18x18x64xf32, #tpu.memory_space<vmem>>, %arg2: memref<9x64x64xbf16, #tpu.memory_space<vmem>>, %arg3: memref<2x64xf32, #tpu.memory_space<vmem>>, %arg4: memref<9x64x64xbf16, #tpu.memory_space<vmem>>, %arg5: memref<2x64xf32, #tpu.memory_space<vmem>>, %arg6: memref<64x64xf32, #tpu.memory_space<vmem>>, %arg7: memref<1x16x16x64xf32, #tpu.memory_space<vmem>>, %arg8: memref<18x18x64xf32, #tpu.memory_space<vmem>>) attributes {dimension_semantics = [#tpu.dimension_semantics<parallel>], iteration_bounds = array<i64: 2>, scalar_prefetch = 0 : i64, scratch_operands = 1 : i64, tpu.core_type = #tpu.core_type<tc>, window_params = [{transform_indices = @transform_0, window_bounds = array<i64: 1, 18, 18, 64>}, {pipeline_mode = #tpu.pipeline_mode<synchronous>, transform_indices = @transform_1, window_bounds = array<i64: 9, 64, 64>}, {pipeline_mode = #tpu.pipeline_mode<synchronous>, transform_indices = @transform_2, window_bounds = array<i64: 2, 64>}, {pipeline_mode = #tpu.pipeline_mode<synchronous>, transform_indices = @transform_3, window_bounds = array<i64: 9, 64, 64>}, {pipeline_mode = #tpu.pipeline_mode<synchronous>, transform_indices = @transform_4, window_bounds = array<i64: 2, 64>}, {pipeline_mode = #tpu.pipeline_mode<synchronous>, transform_indices = @transform_5, window_bounds = array<i64: 64, 64>}, {transform_indices = @transform_6, window_bounds = array<i64: 1, 16, 16, 64>}]} {
    %cst = arith.constant 0.000000e+00 : f32
    %0 = vector.broadcast %cst : f32 to vector<256x64xf32>
    %c0 = arith.constant 0 : index
    %c0_0 = arith.constant 0 : index
    %c0_1 = arith.constant 0 : index
    %c0_2 = arith.constant 0 : index
    %1 = vector.load %arg1[%c0, %c0_0, %c0_1, %c0_2] : memref<1x18x18x64xf32, #tpu.memory_space<vmem>>, vector<1x16x16x64xf32>
    %2 = vector.shape_cast %1 : vector<1x16x16x64xf32> to vector<16x16x64xf32>
    %3 = arith.truncf %2 : vector<16x16x64xf32> to vector<16x16x64xbf16>
    %4 = vector.shape_cast %3 : vector<16x16x64xbf16> to vector<256x64xbf16>
    %c0_3 = arith.constant 0 : index
    %c0_4 = arith.constant 0 : index
    %c0_5 = arith.constant 0 : index
    %5 = vector.load %arg2[%c0_3, %c0_4, %c0_5] : memref<9x64x64xbf16, #tpu.memory_space<vmem>>, vector<1x64x64xbf16>
    %6 = vector.shape_cast %5 : vector<1x64x64xbf16> to vector<64x64xbf16>
    %cst_6 = arith.constant dense<0.000000e+00> : vector<256x64xf32>
    %7 = tpu.matmul %4, %6, %cst_6 {dimension_numbers = #tpu.dot_dimension_numbers<[1], [0], [0], [1], [0, 0, 1, 1], [], []>} : vector<256x64xbf16>, vector<64x64xbf16>, vector<256x64xf32> -> vector<256x64xf32>
    %8 = arith.addf %0, %7 : vector<256x64xf32>
    %c0_7 = arith.constant 0 : index
    %c0_8 = arith.constant 0 : index
    %c1 = arith.constant 1 : index
    %c0_9 = arith.constant 0 : index
    %9 = vector.load %arg1[%c0_7, %c0_8, %c1, %c0_9] : memref<1x18x18x64xf32, #tpu.memory_space<vmem>>, vector<1x16x16x64xf32>
    %10 = vector.shape_cast %9 : vector<1x16x16x64xf32> to vector<16x16x64xf32>
    %11 = arith.truncf %10 : vector<16x16x64xf32> to vector<16x16x64xbf16>
    %12 = vector.shape_cast %11 : vector<16x16x64xbf16> to vector<256x64xbf16>
    %c1_10 = arith.constant 1 : index
    %c0_11 = arith.constant 0 : index
    %c0_12 = arith.constant 0 : index
    %13 = vector.load %arg2[%c1_10, %c0_11, %c0_12] : memref<9x64x64xbf16, #tpu.memory_space<vmem>>, vector<1x64x64xbf16>
    %14 = vector.shape_cast %13 : vector<1x64x64xbf16> to vector<64x64xbf16>
    %cst_13 = arith.constant dense<0.000000e+00> : vector<256x64xf32>
    %15 = tpu.matmul %12, %14, %cst_13 {dimension_numbers = #tpu.dot_dimension_numbers<[1], [0], [0], [1], [0, 0, 1, 1], [], []>} : vector<256x64xbf16>, vector<64x64xbf16>, vector<256x64xf32> -> vector<256x64xf32>
    %16 = arith.addf %8, %15 : vector<256x64xf32>
    %c0_14 = arith.constant 0 : index
    %c0_15 = arith.constant 0 : index
    %c2 = arith.constant 2 : index
    %c0_16 = arith.constant 0 : index
    %17 = vector.load %arg1[%c0_14, %c0_15, %c2, %c0_16] : memref<1x18x18x64xf32, #tpu.memory_space<vmem>>, vector<1x16x16x64xf32>
    %18 = vector.shape_cast %17 : vector<1x16x16x64xf32> to vector<16x16x64xf32>
    %19 = arith.truncf %18 : vector<16x16x64xf32> to vector<16x16x64xbf16>
    %20 = vector.shape_cast %19 : vector<16x16x64xbf16> to vector<256x64xbf16>
    %c2_17 = arith.constant 2 : index
    %c0_18 = arith.constant 0 : index
    %c0_19 = arith.constant 0 : index
    %21 = vector.load %arg2[%c2_17, %c0_18, %c0_19] : memref<9x64x64xbf16, #tpu.memory_space<vmem>>, vector<1x64x64xbf16>
    %22 = vector.shape_cast %21 : vector<1x64x64xbf16> to vector<64x64xbf16>
    %cst_20 = arith.constant dense<0.000000e+00> : vector<256x64xf32>
    %23 = tpu.matmul %20, %22, %cst_20 {dimension_numbers = #tpu.dot_dimension_numbers<[1], [0], [0], [1], [0, 0, 1, 1], [], []>} : vector<256x64xbf16>, vector<64x64xbf16>, vector<256x64xf32> -> vector<256x64xf32>
    %24 = arith.addf %16, %23 : vector<256x64xf32>
    %c0_21 = arith.constant 0 : index
    %c1_22 = arith.constant 1 : index
    %c0_23 = arith.constant 0 : index
    %c0_24 = arith.constant 0 : index
    %25 = vector.load %arg1[%c0_21, %c1_22, %c0_23, %c0_24] : memref<1x18x18x64xf32, #tpu.memory_space<vmem>>, vector<1x16x16x64xf32>
    %26 = vector.shape_cast %25 : vector<1x16x16x64xf32> to vector<16x16x64xf32>
    %27 = arith.truncf %26 : vector<16x16x64xf32> to vector<16x16x64xbf16>
    %28 = vector.shape_cast %27 : vector<16x16x64xbf16> to vector<256x64xbf16>
    %c3 = arith.constant 3 : index
    %c0_25 = arith.constant 0 : index
    %c0_26 = arith.constant 0 : index
    %29 = vector.load %arg2[%c3, %c0_25, %c0_26] : memref<9x64x64xbf16, #tpu.memory_space<vmem>>, vector<1x64x64xbf16>
    %30 = vector.shape_cast %29 : vector<1x64x64xbf16> to vector<64x64xbf16>
    %cst_27 = arith.constant dense<0.000000e+00> : vector<256x64xf32>
    %31 = tpu.matmul %28, %30, %cst_27 {dimension_numbers = #tpu.dot_dimension_numbers<[1], [0], [0], [1], [0, 0, 1, 1], [], []>} : vector<256x64xbf16>, vector<64x64xbf16>, vector<256x64xf32> -> vector<256x64xf32>
    %32 = arith.addf %24, %31 : vector<256x64xf32>
    %c0_28 = arith.constant 0 : index
    %c1_29 = arith.constant 1 : index
    %c1_30 = arith.constant 1 : index
    %c0_31 = arith.constant 0 : index
    %33 = vector.load %arg1[%c0_28, %c1_29, %c1_30, %c0_31] : memref<1x18x18x64xf32, #tpu.memory_space<vmem>>, vector<1x16x16x64xf32>
    %34 = vector.shape_cast %33 : vector<1x16x16x64xf32> to vector<16x16x64xf32>
    %35 = arith.truncf %34 : vector<16x16x64xf32> to vector<16x16x64xbf16>
    %36 = vector.shape_cast %35 : vector<16x16x64xbf16> to vector<256x64xbf16>
    %c4 = arith.constant 4 : index
    %c0_32 = arith.constant 0 : index
    %c0_33 = arith.constant 0 : index
    %37 = vector.load %arg2[%c4, %c0_32, %c0_33] : memref<9x64x64xbf16, #tpu.memory_space<vmem>>, vector<1x64x64xbf16>
    %38 = vector.shape_cast %37 : vector<1x64x64xbf16> to vector<64x64xbf16>
    %cst_34 = arith.constant dense<0.000000e+00> : vector<256x64xf32>
    %39 = tpu.matmul %36, %38, %cst_34 {dimension_numbers = #tpu.dot_dimension_numbers<[1], [0], [0], [1], [0, 0, 1, 1], [], []>} : vector<256x64xbf16>, vector<64x64xbf16>, vector<256x64xf32> -> vector<256x64xf32>
    %40 = arith.addf %32, %39 : vector<256x64xf32>
    %c0_35 = arith.constant 0 : index
    %c1_36 = arith.constant 1 : index
    %c2_37 = arith.constant 2 : index
    %c0_38 = arith.constant 0 : index
    %41 = vector.load %arg1[%c0_35, %c1_36, %c2_37, %c0_38] : memref<1x18x18x64xf32, #tpu.memory_space<vmem>>, vector<1x16x16x64xf32>
    %42 = vector.shape_cast %41 : vector<1x16x16x64xf32> to vector<16x16x64xf32>
    %43 = arith.truncf %42 : vector<16x16x64xf32> to vector<16x16x64xbf16>
    %44 = vector.shape_cast %43 : vector<16x16x64xbf16> to vector<256x64xbf16>
    %c5 = arith.constant 5 : index
    %c0_39 = arith.constant 0 : index
    %c0_40 = arith.constant 0 : index
    %45 = vector.load %arg2[%c5, %c0_39, %c0_40] : memref<9x64x64xbf16, #tpu.memory_space<vmem>>, vector<1x64x64xbf16>
    %46 = vector.shape_cast %45 : vector<1x64x64xbf16> to vector<64x64xbf16>
    %cst_41 = arith.constant dense<0.000000e+00> : vector<256x64xf32>
    %47 = tpu.matmul %44, %46, %cst_41 {dimension_numbers = #tpu.dot_dimension_numbers<[1], [0], [0], [1], [0, 0, 1, 1], [], []>} : vector<256x64xbf16>, vector<64x64xbf16>, vector<256x64xf32> -> vector<256x64xf32>
    %48 = arith.addf %40, %47 : vector<256x64xf32>
    %c0_42 = arith.constant 0 : index
    %c2_43 = arith.constant 2 : index
    %c0_44 = arith.constant 0 : index
    %c0_45 = arith.constant 0 : index
    %49 = vector.load %arg1[%c0_42, %c2_43, %c0_44, %c0_45] : memref<1x18x18x64xf32, #tpu.memory_space<vmem>>, vector<1x16x16x64xf32>
    %50 = vector.shape_cast %49 : vector<1x16x16x64xf32> to vector<16x16x64xf32>
    %51 = arith.truncf %50 : vector<16x16x64xf32> to vector<16x16x64xbf16>
    %52 = vector.shape_cast %51 : vector<16x16x64xbf16> to vector<256x64xbf16>
    %c6 = arith.constant 6 : index
    %c0_46 = arith.constant 0 : index
    %c0_47 = arith.constant 0 : index
    %53 = vector.load %arg2[%c6, %c0_46, %c0_47] : memref<9x64x64xbf16, #tpu.memory_space<vmem>>, vector<1x64x64xbf16>
    %54 = vector.shape_cast %53 : vector<1x64x64xbf16> to vector<64x64xbf16>
    %cst_48 = arith.constant dense<0.000000e+00> : vector<256x64xf32>
    %55 = tpu.matmul %52, %54, %cst_48 {dimension_numbers = #tpu.dot_dimension_numbers<[1], [0], [0], [1], [0, 0, 1, 1], [], []>} : vector<256x64xbf16>, vector<64x64xbf16>, vector<256x64xf32> -> vector<256x64xf32>
    %56 = arith.addf %48, %55 : vector<256x64xf32>
    %c0_49 = arith.constant 0 : index
    %c2_50 = arith.constant 2 : index
    %c1_51 = arith.constant 1 : index
    %c0_52 = arith.constant 0 : index
    %57 = vector.load %arg1[%c0_49, %c2_50, %c1_51, %c0_52] : memref<1x18x18x64xf32, #tpu.memory_space<vmem>>, vector<1x16x16x64xf32>
    %58 = vector.shape_cast %57 : vector<1x16x16x64xf32> to vector<16x16x64xf32>
    %59 = arith.truncf %58 : vector<16x16x64xf32> to vector<16x16x64xbf16>
    %60 = vector.shape_cast %59 : vector<16x16x64xbf16> to vector<256x64xbf16>
    %c7 = arith.constant 7 : index
    %c0_53 = arith.constant 0 : index
    %c0_54 = arith.constant 0 : index
    %61 = vector.load %arg2[%c7, %c0_53, %c0_54] : memref<9x64x64xbf16, #tpu.memory_space<vmem>>, vector<1x64x64xbf16>
    %62 = vector.shape_cast %61 : vector<1x64x64xbf16> to vector<64x64xbf16>
    %cst_55 = arith.constant dense<0.000000e+00> : vector<256x64xf32>
    %63 = tpu.matmul %60, %62, %cst_55 {dimension_numbers = #tpu.dot_dimension_numbers<[1], [0], [0], [1], [0, 0, 1, 1], [], []>} : vector<256x64xbf16>, vector<64x64xbf16>, vector<256x64xf32> -> vector<256x64xf32>
    %64 = arith.addf %56, %63 : vector<256x64xf32>
    %c0_56 = arith.constant 0 : index
    %c2_57 = arith.constant 2 : index
    %c2_58 = arith.constant 2 : index
    %c0_59 = arith.constant 0 : index
    %65 = vector.load %arg1[%c0_56, %c2_57, %c2_58, %c0_59] : memref<1x18x18x64xf32, #tpu.memory_space<vmem>>, vector<1x16x16x64xf32>
    %66 = vector.shape_cast %65 : vector<1x16x16x64xf32> to vector<16x16x64xf32>
    %67 = arith.truncf %66 : vector<16x16x64xf32> to vector<16x16x64xbf16>
    %68 = vector.shape_cast %67 : vector<16x16x64xbf16> to vector<256x64xbf16>
    %c8 = arith.constant 8 : index
    %c0_60 = arith.constant 0 : index
    %c0_61 = arith.constant 0 : index
    %69 = vector.load %arg2[%c8, %c0_60, %c0_61] : memref<9x64x64xbf16, #tpu.memory_space<vmem>>, vector<1x64x64xbf16>
    %70 = vector.shape_cast %69 : vector<1x64x64xbf16> to vector<64x64xbf16>
    %cst_62 = arith.constant dense<0.000000e+00> : vector<256x64xf32>
    %71 = tpu.matmul %68, %70, %cst_62 {dimension_numbers = #tpu.dot_dimension_numbers<[1], [0], [0], [1], [0, 0, 1, 1], [], []>} : vector<256x64xbf16>, vector<64x64xbf16>, vector<256x64xf32> -> vector<256x64xf32>
    %72 = arith.addf %64, %71 : vector<256x64xf32>
    %c0_63 = arith.constant 0 : index
    %c0_64 = arith.constant 0 : index
    %73 = vector.load %arg3[%c0_63, %c0_64] : memref<2x64xf32, #tpu.memory_space<vmem>>, vector<1x64xf32>
    %74 = vector.broadcast %73 : vector<1x64xf32> to vector<256x64xf32>
    %75 = arith.mulf %72, %74 : vector<256x64xf32>
    %c1_65 = arith.constant 1 : index
    %c0_66 = arith.constant 0 : index
    %76 = vector.load %arg3[%c1_65, %c0_66] : memref<2x64xf32, #tpu.memory_space<vmem>>, vector<1x64xf32>
    %77 = vector.broadcast %76 : vector<1x64xf32> to vector<256x64xf32>
    %78 = arith.addf %75, %77 : vector<256x64xf32>
    %cst_67 = arith.constant 0.000000e+00 : f32
    %79 = vector.broadcast %cst_67 : f32 to vector<256x64xf32>
    %80 = arith.maximumf %78, %79 : vector<256x64xf32>
    %cst_68 = arith.constant 0.000000e+00 : f32
    %81 = vector.broadcast %cst_68 : f32 to vector<18x18x64xf32>
    %c0_69 = arith.constant 0 : index
    %c0_70 = arith.constant 0 : index
    %c0_71 = arith.constant 0 : index
    %82 = vector.load %arg8[%c0_69, %c0_70, %c0_71] : memref<18x18x64xf32, #tpu.memory_space<vmem>>, vector<18x18x64xf32>
    tpu.vector_store %arg8[%c0_69, %c0_70, %c0_71], %81 {strides = array<i32>} : memref<18x18x64xf32, #tpu.memory_space<vmem>>, vector<18x18x64xf32>,
    %83 = vector.shape_cast %80 : vector<256x64xf32> to vector<16x16x64xf32>
    %c1_72 = arith.constant 1 : index
    %c1_73 = arith.constant 1 : index
    %c0_74 = arith.constant 0 : index
    %84 = vector.load %arg8[%c1_72, %c1_73, %c0_74] : memref<18x18x64xf32, #tpu.memory_space<vmem>>, vector<16x16x64xf32>
    tpu.vector_store %arg8[%c1_72, %c1_73, %c0_74], %83 {strides = array<i32>} : memref<18x18x64xf32, #tpu.memory_space<vmem>>, vector<16x16x64xf32>,
    %cst_75 = arith.constant 0.000000e+00 : f32
    %85 = vector.broadcast %cst_75 : f32 to vector<256x64xf32>
    %c0_76 = arith.constant 0 : index
    %c0_77 = arith.constant 0 : index
    %c0_78 = arith.constant 0 : index
    %86 = vector.load %arg8[%c0_76, %c0_77, %c0_78] : memref<18x18x64xf32, #tpu.memory_space<vmem>>, vector<16x16x64xf32>
    %87 = arith.truncf %86 : vector<16x16x64xf32> to vector<16x16x64xbf16>
    %88 = vector.shape_cast %87 : vector<16x16x64xbf16> to vector<256x64xbf16>
    %c0_79 = arith.constant 0 : index
    %c0_80 = arith.constant 0 : index
    %c0_81 = arith.constant 0 : index
    %89 = vector.load %arg4[%c0_79, %c0_80, %c0_81] : memref<9x64x64xbf16, #tpu.memory_space<vmem>>, vector<1x64x64xbf16>
    %90 = vector.shape_cast %89 : vector<1x64x64xbf16> to vector<64x64xbf16>
    %cst_82 = arith.constant dense<0.000000e+00> : vector<256x64xf32>
    %91 = tpu.matmul %88, %90, %cst_82 {dimension_numbers = #tpu.dot_dimension_numbers<[1], [0], [0], [1], [0, 0, 1, 1], [], []>} : vector<256x64xbf16>, vector<64x64xbf16>, vector<256x64xf32> -> vector<256x64xf32>
    %92 = arith.addf %85, %91 : vector<256x64xf32>
    %c0_83 = arith.constant 0 : index
    %c1_84 = arith.constant 1 : index
    %c0_85 = arith.constant 0 : index
    %93 = vector.load %arg8[%c0_83, %c1_84, %c0_85] : memref<18x18x64xf32, #tpu.memory_space<vmem>>, vector<16x16x64xf32>
    %94 = arith.truncf %93 : vector<16x16x64xf32> to vector<16x16x64xbf16>
    %95 = vector.shape_cast %94 : vector<16x16x64xbf16> to vector<256x64xbf16>
    %c1_86 = arith.constant 1 : index
    %c0_87 = arith.constant 0 : index
    %c0_88 = arith.constant 0 : index
    %96 = vector.load %arg4[%c1_86, %c0_87, %c0_88] : memref<9x64x64xbf16, #tpu.memory_space<vmem>>, vector<1x64x64xbf16>
    %97 = vector.shape_cast %96 : vector<1x64x64xbf16> to vector<64x64xbf16>
    %cst_89 = arith.constant dense<0.000000e+00> : vector<256x64xf32>
    %98 = tpu.matmul %95, %97, %cst_89 {dimension_numbers = #tpu.dot_dimension_numbers<[1], [0], [0], [1], [0, 0, 1, 1], [], []>} : vector<256x64xbf16>, vector<64x64xbf16>, vector<256x64xf32> -> vector<256x64xf32>
    %99 = arith.addf %92, %98 : vector<256x64xf32>
    %c0_90 = arith.constant 0 : index
    %c2_91 = arith.constant 2 : index
    %c0_92 = arith.constant 0 : index
    %100 = vector.load %arg8[%c0_90, %c2_91, %c0_92] : memref<18x18x64xf32, #tpu.memory_space<vmem>>, vector<16x16x64xf32>
    %101 = arith.truncf %100 : vector<16x16x64xf32> to vector<16x16x64xbf16>
    %102 = vector.shape_cast %101 : vector<16x16x64xbf16> to vector<256x64xbf16>
    %c2_93 = arith.constant 2 : index
    %c0_94 = arith.constant 0 : index
    %c0_95 = arith.constant 0 : index
    %103 = vector.load %arg4[%c2_93, %c0_94, %c0_95] : memref<9x64x64xbf16, #tpu.memory_space<vmem>>, vector<1x64x64xbf16>
    %104 = vector.shape_cast %103 : vector<1x64x64xbf16> to vector<64x64xbf16>
    %cst_96 = arith.constant dense<0.000000e+00> : vector<256x64xf32>
    %105 = tpu.matmul %102, %104, %cst_96 {dimension_numbers = #tpu.dot_dimension_numbers<[1], [0], [0], [1], [0, 0, 1, 1], [], []>} : vector<256x64xbf16>, vector<64x64xbf16>, vector<256x64xf32> -> vector<256x64xf32>
    %106 = arith.addf %99, %105 : vector<256x64xf32>
    %c1_97 = arith.constant 1 : index
    %c0_98 = arith.constant 0 : index
    %c0_99 = arith.constant 0 : index
    %107 = vector.load %arg8[%c1_97, %c0_98, %c0_99] : memref<18x18x64xf32, #tpu.memory_space<vmem>>, vector<16x16x64xf32>
    %108 = arith.truncf %107 : vector<16x16x64xf32> to vector<16x16x64xbf16>
    %109 = vector.shape_cast %108 : vector<16x16x64xbf16> to vector<256x64xbf16>
    %c3_100 = arith.constant 3 : index
    %c0_101 = arith.constant 0 : index
    %c0_102 = arith.constant 0 : index
    %110 = vector.load %arg4[%c3_100, %c0_101, %c0_102] : memref<9x64x64xbf16, #tpu.memory_space<vmem>>, vector<1x64x64xbf16>
    %111 = vector.shape_cast %110 : vector<1x64x64xbf16> to vector<64x64xbf16>
    %cst_103 = arith.constant dense<0.000000e+00> : vector<256x64xf32>
    %112 = tpu.matmul %109, %111, %cst_103 {dimension_numbers = #tpu.dot_dimension_numbers<[1], [0], [0], [1], [0, 0, 1, 1], [], []>} : vector<256x64xbf16>, vector<64x64xbf16>, vector<256x64xf32> -> vector<256x64xf32>
    %113 = arith.addf %106, %112 : vector<256x64xf32>
    %c1_104 = arith.constant 1 : index
    %c1_105 = arith.constant 1 : index
    %c0_106 = arith.constant 0 : index
    %114 = vector.load %arg8[%c1_104, %c1_105, %c0_106] : memref<18x18x64xf32, #tpu.memory_space<vmem>>, vector<16x16x64xf32>
    %115 = arith.truncf %114 : vector<16x16x64xf32> to vector<16x16x64xbf16>
    %116 = vector.shape_cast %115 : vector<16x16x64xbf16> to vector<256x64xbf16>
    %c4_107 = arith.constant 4 : index
    %c0_108 = arith.constant 0 : index
    %c0_109 = arith.constant 0 : index
    %117 = vector.load %arg4[%c4_107, %c0_108, %c0_109] : memref<9x64x64xbf16, #tpu.memory_space<vmem>>, vector<1x64x64xbf16>
    %118 = vector.shape_cast %117 : vector<1x64x64xbf16> to vector<64x64xbf16>
    %cst_110 = arith.constant dense<0.000000e+00> : vector<256x64xf32>
    %119 = tpu.matmul %116, %118, %cst_110 {dimension_numbers = #tpu.dot_dimension_numbers<[1], [0], [0], [1], [0, 0, 1, 1], [], []>} : vector<256x64xbf16>, vector<64x64xbf16>, vector<256x64xf32> -> vector<256x64xf32>
    %120 = arith.addf %113, %119 : vector<256x64xf32>
    %c1_111 = arith.constant 1 : index
    %c2_112 = arith.constant 2 : index
    %c0_113 = arith.constant 0 : index
    %121 = vector.load %arg8[%c1_111, %c2_112, %c0_113] : memref<18x18x64xf32, #tpu.memory_space<vmem>>, vector<16x16x64xf32>
    %122 = arith.truncf %121 : vector<16x16x64xf32> to vector<16x16x64xbf16>
    %123 = vector.shape_cast %122 : vector<16x16x64xbf16> to vector<256x64xbf16>
    %c5_114 = arith.constant 5 : index
    %c0_115 = arith.constant 0 : index
    %c0_116 = arith.constant 0 : index
    %124 = vector.load %arg4[%c5_114, %c0_115, %c0_116] : memref<9x64x64xbf16, #tpu.memory_space<vmem>>, vector<1x64x64xbf16>
    %125 = vector.shape_cast %124 : vector<1x64x64xbf16> to vector<64x64xbf16>
    %cst_117 = arith.constant dense<0.000000e+00> : vector<256x64xf32>
    %126 = tpu.matmul %123, %125, %cst_117 {dimension_numbers = #tpu.dot_dimension_numbers<[1], [0], [0], [1], [0, 0, 1, 1], [], []>} : vector<256x64xbf16>, vector<64x64xbf16>, vector<256x64xf32> -> vector<256x64xf32>
    %127 = arith.addf %120, %126 : vector<256x64xf32>
    %c2_118 = arith.constant 2 : index
    %c0_119 = arith.constant 0 : index
    %c0_120 = arith.constant 0 : index
    %128 = vector.load %arg8[%c2_118, %c0_119, %c0_120] : memref<18x18x64xf32, #tpu.memory_space<vmem>>, vector<16x16x64xf32>
    %129 = arith.truncf %128 : vector<16x16x64xf32> to vector<16x16x64xbf16>
    %130 = vector.shape_cast %129 : vector<16x16x64xbf16> to vector<256x64xbf16>
    %c6_121 = arith.constant 6 : index
    %c0_122 = arith.constant 0 : index
    %c0_123 = arith.constant 0 : index
    %131 = vector.load %arg4[%c6_121, %c0_122, %c0_123] : memref<9x64x64xbf16, #tpu.memory_space<vmem>>, vector<1x64x64xbf16>
    %132 = vector.shape_cast %131 : vector<1x64x64xbf16> to vector<64x64xbf16>
    %cst_124 = arith.constant dense<0.000000e+00> : vector<256x64xf32>
    %133 = tpu.matmul %130, %132, %cst_124 {dimension_numbers = #tpu.dot_dimension_numbers<[1], [0], [0], [1], [0, 0, 1, 1], [], []>} : vector<256x64xbf16>, vector<64x64xbf16>, vector<256x64xf32> -> vector<256x64xf32>
    %134 = arith.addf %127, %133 : vector<256x64xf32>
    %c2_125 = arith.constant 2 : index
    %c1_126 = arith.constant 1 : index
    %c0_127 = arith.constant 0 : index
    %135 = vector.load %arg8[%c2_125, %c1_126, %c0_127] : memref<18x18x64xf32, #tpu.memory_space<vmem>>, vector<16x16x64xf32>
    %136 = arith.truncf %135 : vector<16x16x64xf32> to vector<16x16x64xbf16>
    %137 = vector.shape_cast %136 : vector<16x16x64xbf16> to vector<256x64xbf16>
    %c7_128 = arith.constant 7 : index
    %c0_129 = arith.constant 0 : index
    %c0_130 = arith.constant 0 : index
    %138 = vector.load %arg4[%c7_128, %c0_129, %c0_130] : memref<9x64x64xbf16, #tpu.memory_space<vmem>>, vector<1x64x64xbf16>
    %139 = vector.shape_cast %138 : vector<1x64x64xbf16> to vector<64x64xbf16>
    %cst_131 = arith.constant dense<0.000000e+00> : vector<256x64xf32>
    %140 = tpu.matmul %137, %139, %cst_131 {dimension_numbers = #tpu.dot_dimension_numbers<[1], [0], [0], [1], [0, 0, 1, 1], [], []>} : vector<256x64xbf16>, vector<64x64xbf16>, vector<256x64xf32> -> vector<256x64xf32>
    %141 = arith.addf %134, %140 : vector<256x64xf32>
    %c2_132 = arith.constant 2 : index
    %c2_133 = arith.constant 2 : index
    %c0_134 = arith.constant 0 : index
    %142 = vector.load %arg8[%c2_132, %c2_133, %c0_134] : memref<18x18x64xf32, #tpu.memory_space<vmem>>, vector<16x16x64xf32>
    %143 = arith.truncf %142 : vector<16x16x64xf32> to vector<16x16x64xbf16>
    %144 = vector.shape_cast %143 : vector<16x16x64xbf16> to vector<256x64xbf16>
    %c8_135 = arith.constant 8 : index
    %c0_136 = arith.constant 0 : index
    %c0_137 = arith.constant 0 : index
    %145 = vector.load %arg4[%c8_135, %c0_136, %c0_137] : memref<9x64x64xbf16, #tpu.memory_space<vmem>>, vector<1x64x64xbf16>
    %146 = vector.shape_cast %145 : vector<1x64x64xbf16> to vector<64x64xbf16>
    %cst_138 = arith.constant dense<0.000000e+00> : vector<256x64xf32>
    %147 = tpu.matmul %144, %146, %cst_138 {dimension_numbers = #tpu.dot_dimension_numbers<[1], [0], [0], [1], [0, 0, 1, 1], [], []>} : vector<256x64xbf16>, vector<64x64xbf16>, vector<256x64xf32> -> vector<256x64xf32>
    %148 = arith.addf %141, %147 : vector<256x64xf32>
    %c0_139 = arith.constant 0 : index
    %c0_140 = arith.constant 0 : index
    %149 = vector.load %arg5[%c0_139, %c0_140] : memref<2x64xf32, #tpu.memory_space<vmem>>, vector<1x64xf32>
    %150 = vector.broadcast %149 : vector<1x64xf32> to vector<256x64xf32>
    %151 = arith.mulf %148, %150 : vector<256x64xf32>
    %c1_141 = arith.constant 1 : index
    %c0_142 = arith.constant 0 : index
    %152 = vector.load %arg5[%c1_141, %c0_142] : memref<2x64xf32, #tpu.memory_space<vmem>>, vector<1x64xf32>
    %153 = vector.broadcast %152 : vector<1x64xf32> to vector<256x64xf32>
    %154 = arith.addf %151, %153 : vector<256x64xf32>
    %cst_143 = arith.constant dense<0.000000e+00> : vector<64xf32>
    %155 = vector.multi_reduction <add>, %154, %cst_143 [0] : vector<256x64xf32> to vector<64xf32>
    %156 = vector.shape_cast %155 : vector<64xf32> to vector<1x64xf32>
    %cst_144 = arith.constant 2.560000e+02 : f32
    %157 = vector.broadcast %cst_144 : f32 to vector<1x64xf32>
    %158 = arith.divf %156, %157 : vector<1x64xf32>
    %c0_145 = arith.constant 0 : index
    %c0_146 = arith.constant 0 : index
    %159 = vector.load %arg6[%c0_145, %c0_146] : memref<64x64xf32, #tpu.memory_space<vmem>>, vector<64x64xf32>
    %cst_147 = arith.constant dense<0.000000e+00> : vector<1x64xf32>
    %160 = tpu.matmul %158, %159, %cst_147 {dimension_numbers = #tpu.dot_dimension_numbers<[1], [0], [0], [1], [0, 0, 1, 1], [], []>} : vector<1x64xf32>, vector<64x64xf32>, vector<1x64xf32> -> vector<1x64xf32>
    %161 = arith.negf %160 : vector<1x64xf32>
    %162 = math.exp %161 : vector<1x64xf32>
    %cst_148 = arith.constant 1.000000e+00 : f32
    %163 = vector.broadcast %cst_148 : f32 to vector<1x64xf32>
    %164 = arith.addf %163, %162 : vector<1x64xf32>
    %165 = arith.divf %163, %164 : vector<1x64xf32>
    %c0_149 = arith.constant 0 : index
    %c1_150 = arith.constant 1 : index
    %c1_151 = arith.constant 1 : index
    %c0_152 = arith.constant 0 : index
    %166 = vector.load %arg1[%c0_149, %c1_150, %c1_151, %c0_152] : memref<1x18x18x64xf32, #tpu.memory_space<vmem>>, vector<1x16x16x64xf32>
    %167 = vector.shape_cast %166 : vector<1x16x16x64xf32> to vector<16x16x64xf32>
    %168 = vector.broadcast %165 : vector<1x64xf32> to vector<256x64xf32>
    %169 = arith.mulf %154, %168 : vector<256x64xf32>
    %170 = vector.shape_cast %167 : vector<16x16x64xf32> to vector<256x64xf32>
    %171 = arith.addf %169, %170 : vector<256x64xf32>
    %cst_153 = arith.constant 0.000000e+00 : f32
    %172 = vector.broadcast %cst_153 : f32 to vector<256x64xf32>
    %173 = arith.maximumf %171, %172 : vector<256x64xf32>
    %174 = vector.shape_cast %173 : vector<256x64xf32> to vector<16x16x64xf32>
    %c0_154 = arith.constant 0 : index
    %c0_155 = arith.constant 0 : index
    %c0_156 = arith.constant 0 : index
    %c0_157 = arith.constant 0 : index
    %175 = vector.load %arg7[%c0_154, %c0_155, %c0_156, %c0_157] : memref<1x16x16x64xf32, #tpu.memory_space<vmem>>, vector<1x16x16x64xf32>
    %176 = vector.shape_cast %175 : vector<1x16x16x64xf32> to vector<16x16x64xf32>
    %177 = vector.shape_cast %174 : vector<16x16x64xf32> to vector<1x16x16x64xf32>
    tpu.vector_store %arg7[%c0_154, %c0_155, %c0_156, %c0_157], %177 {strides = array<i32>} : memref<1x16x16x64xf32, #tpu.memory_space<vmem>>, vector<1x16x16x64xf32>,
    return
  }
  func.func @transform_0(%arg0: i32) -> (i32, i32, i32, i32) {
    %c0_i32 = arith.constant 0 : i32
    %c0_i32_0 = arith.constant 0 : i32
    %c0_i32_1 = arith.constant 0 : i32
    %c0_i32_2 = arith.constant 0 : i32
    return %arg0, %c0_i32, %c0_i32_0, %c0_i32_1 : i32, i32, i32, i32
  }
  func.func @transform_1(%arg0: i32) -> (i32, i32, i32) {
    %c0_i32 = arith.constant 0 : i32
    %c0_i32_0 = arith.constant 0 : i32
    %c0_i32_1 = arith.constant 0 : i32
    %c0_i32_2 = arith.constant 0 : i32
    return %c0_i32, %c0_i32_0, %c0_i32_1 : i32, i32, i32
  }
  func.func @transform_2(%arg0: i32) -> (i32, i32) {
    %c0_i32 = arith.constant 0 : i32
    %c0_i32_0 = arith.constant 0 : i32
    %c0_i32_1 = arith.constant 0 : i32
    return %c0_i32, %c0_i32_0 : i32, i32
  }
  func.func @transform_3(%arg0: i32) -> (i32, i32, i32) {
    %c0_i32 = arith.constant 0 : i32
    %c0_i32_0 = arith.constant 0 : i32
    %c0_i32_1 = arith.constant 0 : i32
    %c0_i32_2 = arith.constant 0 : i32
    return %c0_i32, %c0_i32_0, %c0_i32_1 : i32, i32, i32
  }
  func.func @transform_4(%arg0: i32) -> (i32, i32) {
    %c0_i32 = arith.constant 0 : i32
    %c0_i32_0 = arith.constant 0 : i32
    %c0_i32_1 = arith.constant 0 : i32
    return %c0_i32, %c0_i32_0 : i32, i32
  }
  func.func @transform_5(%arg0: i32) -> (i32, i32) {
    %c0_i32 = arith.constant 0 : i32
    %c0_i32_0 = arith.constant 0 : i32
    %c0_i32_1 = arith.constant 0 : i32
    return %c0_i32, %c0_i32_0 : i32, i32
  }
  func.func @transform_6(%arg0: i32) -> (i32, i32, i32, i32) {
    %c0_i32 = arith.constant 0 : i32
    %c0_i32_0 = arith.constant 0 : i32
    %c0_i32_1 = arith.constant 0 : i32
    %c0_i32_2 = arith.constant 0 : i32
    return %arg0, %c0_i32, %c0_i32_0, %c0_i32_1 : i32, i32, i32, i32
  }
}

</mosaic_0001>

<llo_original>
// kernel: tpu_custom_call.1
$region0: #{tpu_custom_call.1}
  #allocation0 [shape = 'u32[]', space=smem, size = 0x4, offset = 0x4, fixed_abs, tag = 'smem constant byte address 0x4 - core index']
  #allocation1 [shape = 'u32[144,128]{1,0:T(1,128)}', space=vmem, size = 0x12000, scoped, tag = 'internal scratch']
  #allocation2 [shape = 'f32[18,18,64]{2,1,0:T(8,128)}', space=vmem, size = 0x36000, scoped, tag = 'scratch operand']
  %s0 = inlined_call_operand.vmem [shape: f32[2,18,18,64], index: 0, kind: input, shape index: {}]
  %s1 = inlined_call_operand.vmem [shape: bf16[9,64,64], index: 1, kind: input, shape index: {}]
  %s2 = inlined_call_operand.vmem [shape: f32[2,64], index: 2, kind: input, shape index: {}]
  %s3 = inlined_call_operand.vmem [shape: bf16[9,64,64], index: 3, kind: input, shape index: {}]
  %s4 = inlined_call_operand.vmem [shape: f32[2,64], index: 4, kind: input, shape index: {}]
  %s5 = inlined_call_operand.vmem [shape: f32[64,64], index: 5, kind: input, shape index: {}]
  %s6 = inlined_call_operand.hbm [shape: f32[2,16,16,64], index: 6, kind: output, shape index: {}]
  %s7 = sld [smem:[#allocation0]]
  $region57: #{tpu_custom_call.1} parent=0
    _
  %s9 = ssub.s32 1, %s7
  %s10 = scalar_select 0, %s9, %s7
  $region1: #{tpu_custom_call.1} parent=0
    #allocation3 [shape = 'u8[262144]{0}', space=vmem, size = 0x40000, scoped, tag = 'output window, operand 0']
    #allocation4 [shape = 's32[2]{0}', space=sflag, size = 0x8, scoped, tag = 'scoped memory for tpu_custom_call.1']
    %11 = vsyncpa [#allocation4], 0
    %s12 = scalar_lea.sflag [#allocation4], 1
    %13 = vsyncpa %s12, 0
    loop: start=0, step=1, limit=4
    $region2: #{tpu_custom_call.1} parent=1 // loop_pre_header
      _
    $region3: #{tpu_custom_call.1} parent=1 // loop_header
      %s15 = sphi 0, %s19
      %p16 = scmp.ge.s32.totalorder %s15, 4
      %s25 = sphi 0, %s27
      %s28 = sphi 0, %s25
      %s29 = sphi 0, %s28
      %s45 = sphi 0, %s29
      %s49 = sphi 0, %s49
      %s51 = sphi 0, %s49
      %s52 = sphi 0, %s51
      %s66 = sphi 0, %s52
      %s70 = sphi 0, %s70
      %s72 = sphi 0, %s70
      %s73 = sphi 0, %s72
      %s87 = sphi 0, %s73
      %s91 = sphi 0, %s91
      %s93 = sphi 0, %s91
      %s94 = sphi 0, %s93
      %s108 = sphi 0, %s94
      %s112 = sphi 0, %s112
      %s114 = sphi 0, %s112
      %s115 = sphi 0, %s114
      %s129 = sphi 0, %s115
      %s133 = sphi 0, %s133
      %s135 = sphi 0, %s133
      %s136 = sphi 0, %s135
      %s150 = sphi 0, %s136
      %s156 = sphi 0, %s158
      %s159 = sphi 0, %s156
      %s160 = sphi 0, %s159
      %s176 = sphi 0, %s160
    $region4: #{tpu_custom_call.1} parent=1 // loop_header_branch
      %18 = sbr.rel (%p16) target = $region8
    $region5: #{tpu_custom_call.1} parent=1 // loop_body
      %s20 = ssub.s32 %s15, 1
      %s21 = ssub.s32 %s15, 2
      %s22 = sadd.s32 %s15, 1
      %s23 = ssub.s32 %s15, %s22
      %p24 = scmp.eq.s32.totalorder %s23, 0
      %s26 = sadd.s32 %s25, 1
      %s27 = scalar_select %p24, %s25, %s26
      %p30 = pneg %p24
      %p31 = scmp.eq.s32.totalorder %s15, 1
      %p32 = por %p30, %p31
      %p33 = scmp.ne.s32.totalorder %s25, %s28
      %p34 = scmp.eq.s32.totalorder %s15, 0
      %p35 = por %p33, %p34
      %p36 = scmp.ne.s32.totalorder %s25, %s28
      %p37 = scmp.eq.s32.totalorder %s20, 1
      %p38 = por %p36, %p37
      %p39 = scmp.ne.s32.totalorder %s28, %s29
      %p40 = scmp.eq.s32.totalorder %s20, 0
      %p41 = por %p39, %p40
      %p42 = scmp.ne.s32.totalorder %s28, %s29
      %p43 = scmp.eq.s32.totalorder %s21, 1
      %p44 = por %p42, %p43
      %p46 = scmp.ne.s32.totalorder %s29, %s45
      %p47 = scmp.eq.s32.totalorder %s21, 0
      %p48 = por %p46, %p47
      %s50 = sadd.s32 %s49, 1
      %p53 = scmp.eq.s32.totalorder %s15, 1
      %p54 = scmp.ne.s32.totalorder %s49, %s51
      %p55 = scmp.eq.s32.totalorder %s15, 0
      %p56 = por %p54, %p55
      %p57 = scmp.ne.s32.totalorder %s49, %s51
      %p58 = scmp.eq.s32.totalorder %s20, 1
      %p59 = por %p57, %p58
      %p60 = scmp.ne.s32.totalorder %s51, %s52
      %p61 = scmp.eq.s32.totalorder %s20, 0
      %p62 = por %p60, %p61
      %p63 = scmp.ne.s32.totalorder %s51, %s52
      %p64 = scmp.eq.s32.totalorder %s21, 1
      %p65 = por %p63, %p64
      %p67 = scmp.ne.s32.totalorder %s52, %s66
      %p68 = scmp.eq.s32.totalorder %s21, 0
      %p69 = por %p67, %p68
      %s71 = sadd.s32 %s70, 1
      %p74 = scmp.eq.s32.totalorder %s15, 1
      %p75 = scmp.ne.s32.totalorder %s70, %s72
      %p76 = scmp.eq.s32.totalorder %s15, 0
      %p77 = por %p75, %p76
      %p78 = scmp.ne.s32.totalorder %s70, %s72
      %p79 = scmp.eq.s32.totalorder %s20, 1
      %p80 = por %p78, %p79
      %p81 = scmp.ne.s32.totalorder %s72, %s73
      %p82 = scmp.eq.s32.totalorder %s20, 0
      %p83 = por %p81, %p82
      %p84 = scmp.ne.s32.totalorder %s72, %s73
      %p85 = scmp.eq.s32.totalorder %s21, 1
      %p86 = por %p84, %p85
      %p88 = scmp.ne.s32.totalorder %s73, %s87
      %p89 = scmp.eq.s32.totalorder %s21, 0
      %p90 = por %p88, %p89
      %s92 = sadd.s32 %s91, 1
      %p95 = scmp.eq.s32.totalorder %s15, 1
      %p96 = scmp.ne.s32.totalorder %s91, %s93
      %p97 = scmp.eq.s32.totalorder %s15, 0
      %p98 = por %p96, %p97
      %p99 = scmp.ne.s32.totalorder %s91, %s93
      %p100 = scmp.eq.s32.totalorder %s20, 1
      %p101 = por %p99, %p100
      %p102 = scmp.ne.s32.totalorder %s93, %s94
      %p103 = scmp.eq.s32.totalorder %s20, 0
      %p104 = por %p102, %p103
      %p105 = scmp.ne.s32.totalorder %s93, %s94
      %p106 = scmp.eq.s32.totalorder %s21, 1
      %p107 = por %p105, %p106
      %p109 = scmp.ne.s32.totalorder %s94, %s108
      %p110 = scmp.eq.s32.totalorder %s21, 0
      %p111 = por %p109, %p110
      %s113 = sadd.s32 %s112, 1
      %p116 = scmp.eq.s32.totalorder %s15, 1
      %p117 = scmp.ne.s32.totalorder %s112, %s114
      %p118 = scmp.eq.s32.totalorder %s15, 0
      %p119 = por %p117, %p118
      %p120 = scmp.ne.s32.totalorder %s112, %s114
      %p121 = scmp.eq.s32.totalorder %s20, 1
      %p122 = por %p120, %p121
      %p123 = scmp.ne.s32.totalorder %s114, %s115
      %p124 = scmp.eq.s32.totalorder %s20, 0
      %p125 = por %p123, %p124
      %p126 = scmp.ne.s32.totalorder %s114, %s115
      %p127 = scmp.eq.s32.totalorder %s21, 1
      %p128 = por %p126, %p127
      %p130 = scmp.ne.s32.totalorder %s115, %s129
      %p131 = scmp.eq.s32.totalorder %s21, 0
      %p132 = por %p130, %p131
      %s134 = sadd.s32 %s133, 1
      %p137 = scmp.eq.s32.totalorder %s15, 1
      %p138 = scmp.ne.s32.totalorder %s133, %s135
      %p139 = scmp.eq.s32.totalorder %s15, 0
      %p140 = por %p138, %p139
      %p141 = scmp.ne.s32.totalorder %s133, %s135
      %p142 = scmp.eq.s32.totalorder %s20, 1
      %p143 = por %p141, %p142
      %p144 = scmp.ne.s32.totalorder %s135, %s136
      %p145 = scmp.eq.s32.totalorder %s20, 0
      %p146 = por %p144, %p145
      %p147 = scmp.ne.s32.totalorder %s135, %s136
      %p148 = scmp.eq.s32.totalorder %s21, 1
      %p149 = por %p147, %p148
      %p151 = scmp.ne.s32.totalorder %s136, %s150
      %p152 = scmp.eq.s32.totalorder %s21, 0
      %p153 = por %p151, %p152
      %s154 = ssub.s32 %s15, %s22
      %p155 = scmp.eq.s32.totalorder %s154, 0
      %s157 = sadd.s32 %s156, 1
      %s158 = scalar_select %p155, %s156, %s157
      %p161 = pneg %p155
      %p162 = scmp.eq.s32.totalorder %s15, 1
      %p163 = por %p161, %p162
      %p164 = scmp.ne.s32.totalorder %s156, %s159
      %p165 = scmp.eq.s32.totalorder %s15, 0
      %p166 = por %p164, %p165
      %p167 = scmp.ne.s32.totalorder %s156, %s159
      %p168 = scmp.eq.s32.totalorder %s20, 1
      %p169 = por %p167, %p168
      %p170 = scmp.ne.s32.totalorder %s159, %s160
      %p171 = scmp.eq.s32.totalorder %s20, 0
      %p172 = por %p170, %p171
      %p173 = scmp.ne.s32.totalorder %s159, %s160
      %p174 = scmp.eq.s32.totalorder %s21, 1
      %p175 = por %p173, %p174
      %p177 = scmp.ne.s32.totalorder %s160, %s176
      %p178 = scmp.eq.s32.totalorder %s21, 0
      %p179 = por %p177, %p178
      %p180 = scmp.le.s32.totalorder 1, %s15
      %p181 = scmp.lt.s32.totalorder %s15, 3
      %p182 = pnand %p180, %p181
      %p183 = pneg %p182
      // Predicated region
      $region9: #{tpu_custom_call.1} parent=5 // pred_check
        _
      $region10: #{tpu_custom_call.1} parent=5 // pred_check_branch
        %185 = sbr.rel (%p182) target = $region12
      $region11: #{tpu_custom_call.1} parent=5 // pred_region
        %s186 = ssub.s32 %s15, 1
        // Predicated region
        $region13: #{tpu_custom_call.1} parent=11 // pred_check
          %p187 = pneg %p62
        $region14: #{tpu_custom_call.1} parent=11 // pred_check_branch
          %189 = sbr.rel (%p187) target = $region16
        $region15: #{tpu_custom_call.1} parent=11 // pred_region
          _
        $region16: #{tpu_custom_call.1} parent=11 // pred_fallthru
          _
        // Predicated region
        $region17: #{tpu_custom_call.1} parent=11 // pred_check
          %p190 = pneg %p83
        $region18: #{tpu_custom_call.1} parent=11 // pred_check_branch
          %192 = sbr.rel (%p190) target = $region20
        $region19: #{tpu_custom_call.1} parent=11 // pred_region
          _
        $region20: #{tpu_custom_call.1} parent=11 // pred_fallthru
          _
        // Predicated region
        $region21: #{tpu_custom_call.1} parent=11 // pred_check
          %p193 = pneg %p104
        $region22: #{tpu_custom_call.1} parent=11 // pred_check_branch
          %195 = sbr.rel (%p193) target = $region24
        $region23: #{tpu_custom_call.1} parent=11 // pred_region
          _
        $region24: #{tpu_custom_call.1} parent=11 // pred_fallthru
          _
        // Predicated region
        $region25: #{tpu_custom_call.1} parent=11 // pred_check
          %p196 = pneg %p125
        $region26: #{tpu_custom_call.1} parent=11 // pred_check_branch
          %198 = sbr.rel (%p196) target = $region28
        $region27: #{tpu_custom_call.1} parent=11 // pred_region
          _
        $region28: #{tpu_custom_call.1} parent=11 // pred_fallthru
          _
        // Predicated region
        $region29: #{tpu_custom_call.1} parent=11 // pred_check
          %p199 = pneg %p146
        $region30: #{tpu_custom_call.1} parent=11 // pred_check_branch
          %201 = sbr.rel (%p199) target = $region32
        $region31: #{tpu_custom_call.1} parent=11 // pred_region
          _
        $region32: #{tpu_custom_call.1} parent=11 // pred_fallthru
          _
      $region12: #{tpu_custom_call.1} parent=5 // pred_fallthru
        _
      %p202 = scmp.lt.s32.totalorder %s15, 2
      // Predicated region
      $region33: #{tpu_custom_call.1} parent=5 // pred_check
        %p203 = pneg %p202
      $region34: #{tpu_custom_call.1} parent=5 // pred_check_branch
        %205 = sbr.rel (%p203) target = $region36
      $region35: #{tpu_custom_call.1} parent=5 // pred_region
        // Predicated region
        $region37: #{tpu_custom_call.1} parent=35 // pred_check
          %p206 = pneg %p35
        $region38: #{tpu_custom_call.1} parent=35 // pred_check_branch
          %208 = sbr.rel (%p206) target = $region40
        $region39: #{tpu_custom_call.1} parent=35 // pred_region
          %p209 = scmp.lt.s32.totalorder %s15, 1
          %s210 = scalar_select %p209, %s15, 1
          %s211 = smul.addr %s210, 54
          %s212 = smul.addr %s211, 8
          %s213 = scalar_lea.vmem %s0, %s212
        $region40: #{tpu_custom_call.1} parent=35 // pred_fallthru
          _
      $region36: #{tpu_custom_call.1} parent=5 // pred_fallthru
        _
      %p214 = scmp.le.s32.totalorder 1, %s15
      %p215 = scmp.lt.s32.totalorder %s15, 3
      %p216 = pnand %p214, %p215
      %p217 = pneg %p216
      // Predicated region
      $region41: #{tpu_custom_call.1} parent=5 // pred_check
        _
      $region42: #{tpu_custom_call.1} parent=5 // pred_check_branch
        %219 = sbr.rel (%p216) target = $region44
      $region43: #{tpu_custom_call.1} parent=5 // pred_region
        %s220 = ssub.s32 %s15, 1
        %p221 = scmp.lt.s32.totalorder %s20, 1
        %s222 = scalar_select %p221, %s20, 1
        %s223 = smul.addr %s222, 54
        %s224 = smul.addr %s223, 8
        %s225 = scalar_lea.vmem %s0, %s224
        %p226 = pneg %p41
        %p227 = pneg %p38
        %p228 = pneg %p62
        %p229 = pneg %p59
        %p230 = pneg %p83
        %p231 = pneg %p80
        %p232 = pneg %p104
        %p233 = pneg %p101
        %p234 = pneg %p125
        %p235 = pneg %p122
        %p236 = pneg %p146
        %p237 = pneg %p143
        %p238 = pneg %p172
        %p239 = pneg %p169
        %s240 = sand.u32 %s159, 1
        %s241 = scalar_lea.sflag [#allocation4], %s240
        %s242 = sand.u32 %s159, 1
        %s243 = smul.addr %s242, 256
        %s244 = scalar_lea.vmem [#allocation3], %s243
        %p245 = scmp.lt.s32.totalorder %s20, 1
        %s246 = scalar_select %p245, %s20, 1
        %s247 = smul.addr %s246, 54
        %s248 = smul.addr %s247, 8
        %s249 = scalar_lea.vmem %s0, %s248
        %v251 = vld [vmem:[%s249] sm:$0xff]
        %v252 = vld [vmem:[%s249 + $0x8] sm:$0xff]
        %v253 = vld [vmem:[%s249 + $0x18] sm:$0xff]
        %v254 = vld [vmem:[%s249 + $0x20] sm:$0xff]
        %v255 = vld [vmem:[%s249 + $0x30] sm:$0xff]
        %v256 = vld [vmem:[%s249 + $0x38] sm:$0xff]
        %v257 = vld [vmem:[%s249 + $0x48] sm:$0xff]
        %v258 = vld [vmem:[%s249 + $0x50] sm:$0xff]
        %v259 = vld [vmem:[%s249 + $0x60] sm:$0xff]
        %v260 = vld [vmem:[%s249 + $0x68] sm:$0xff]
        %v261 = vld [vmem:[%s249 + $0x78] sm:$0xff]
        %v262 = vld [vmem:[%s249 + $0x80] sm:$0xff]
        %v263 = vld [vmem:[%s249 + $0x90] sm:$0xff]
        %v264 = vld [vmem:[%s249 + $0x98] sm:$0xff]
        %v265 = vld [vmem:[%s249 + $0xa8] sm:$0xff]
        %v266 = vld [vmem:[%s249 + $0xb0] sm:$0xff]
        %v267 = vld [vmem:[%s249 + $0xc0] sm:$0xff]
        %v268 = vld [vmem:[%s249 + $0xc8] sm:$0xff]
        %v269 = vld [vmem:[%s249 + $0xd8] sm:$0xff]
        %v270 = vld [vmem:[%s249 + $0xe0] sm:$0xff]
        %v271 = vld [vmem:[%s249 + $0xf0] sm:$0xff]
        %v272 = vld [vmem:[%s249 + $0xf8] sm:$0xff]
        %v273 = vld [vmem:[%s249 + $0x108] sm:$0xff]
        %v274 = vld [vmem:[%s249 + $0x110] sm:$0xff]
        %v275 = vld [vmem:[%s249 + $0x120] sm:$0xff]
        %v276 = vld [vmem:[%s249 + $0x128] sm:$0xff]
        %v277 = vld [vmem:[%s249 + $0x138] sm:$0xff]
        %v278 = vld [vmem:[%s249 + $0x140] sm:$0xff]
        %v279 = vld [vmem:[%s249 + $0x150] sm:$0xff]
        %v280 = vld [vmem:[%s249 + $0x158] sm:$0xff]
        %v281 = vld [vmem:[%s249 + $0x168] sm:$0xff]
        %v282 = vld [vmem:[%s249 + $0x170] sm:$0xff]
        %v283 = vpack.c.bf16 %v252, %v251
        %v284 = vpack.c.bf16 %v254, %v253
        %v285 = vpack.c.bf16 %v256, %v255
        %v286 = vpack.c.bf16 %v258, %v257
        %v287 = vpack.c.bf16 %v260, %v259
        %v288 = vpack.c.bf16 %v262, %v261
        %v289 = vpack.c.bf16 %v264, %v263
        %v290 = vpack.c.bf16 %v266, %v265
        %v291 = vpack.c.bf16 %v268, %v267
        %v292 = vpack.c.bf16 %v270, %v269
        %v293 = vpack.c.bf16 %v272, %v271
        %v294 = vpack.c.bf16 %v274, %v273
        %v295 = vpack.c.bf16 %v276, %v275
        %v296 = vpack.c.bf16 %v278, %v277
        %v297 = vpack.c.bf16 %v280, %v279
        %v298 = vpack.c.bf16 %v282, %v281
        %v299 = vld [vmem:[%s1] sm:$0xf]
        %v300 = vld [vmem:[%s1 + $0x4] sm:$0xf]
        %v301 = vld [vmem:[%s1 + $0x8] sm:$0xf]
        %v302 = vld [vmem:[%s1 + $0xc] sm:$0xf]
        %v303 = vld [vmem:[%s1 + $0x10] sm:$0xf]
        %v304 = vld [vmem:[%s1 + $0x14] sm:$0xf]
        %v305 = vld [vmem:[%s1 + $0x18] sm:$0xf]
        %v306 = vld [vmem:[%s1 + $0x1c] sm:$0xf]
        %v307 = vld [vmem:[%s249 + $0x1] sm:$0xff]
        %v308 = vld [vmem:[%s249 + $0x9] sm:$0xff]
        %v309 = vld [vmem:[%s249 + $0x19] sm:$0xff]
        %v310 = vld [vmem:[%s249 + $0x21] sm:$0xff]
        %v311 = vld [vmem:[%s249 + $0x31] sm:$0xff]
        %v312 = vld [vmem:[%s249 + $0x39] sm:$0xff]
        %v313 = vld [vmem:[%s249 + $0x49] sm:$0xff]
        %v314 = vld [vmem:[%s249 + $0x51] sm:$0xff]
        %v315 = vld [vmem:[%s249 + $0x61] sm:$0xff]
        %v316 = vld [vmem:[%s249 + $0x69] sm:$0xff]
        %v317 = vld [vmem:[%s249 + $0x79] sm:$0xff]
        %v318 = vld [vmem:[%s249 + $0x81] sm:$0xff]
        %v319 = vld [vmem:[%s249 + $0x91] sm:$0xff]
        %v320 = vld [vmem:[%s249 + $0x99] sm:$0xff]
        %v321 = vld [vmem:[%s249 + $0xa9] sm:$0xff]
        %v322 = vld [vmem:[%s249 + $0xb1] sm:$0xff]
        %v323 = vld [vmem:[%s249 + $0xc1] sm:$0xff]
        %v324 = vld [vmem:[%s249 + $0xc9] sm:$0xff]
        %v325 = vld [vmem:[%s249 + $0xd9] sm:$0xff]
        %v326 = vld [vmem:[%s249 + $0xe1] sm:$0xff]
        %v327 = vld [vmem:[%s249 + $0xf1] sm:$0xff]
        %v328 = vld [vmem:[%s249 + $0xf9] sm:$0xff]
        %v329 = vld [vmem:[%s249 + $0x109] sm:$0xff]
        %v330 = vld [vmem:[%s249 + $0x111] sm:$0xff]
        %v331 = vld [vmem:[%s249 + $0x121] sm:$0xff]
        %v332 = vld [vmem:[%s249 + $0x129] sm:$0xff]
        %v333 = vld [vmem:[%s249 + $0x139] sm:$0xff]
        %v334 = vld [vmem:[%s249 + $0x141] sm:$0xff]
        %v335 = vld [vmem:[%s249 + $0x151] sm:$0xff]
        %v336 = vld [vmem:[%s249 + $0x159] sm:$0xff]
        %v337 = vld [vmem:[%s249 + $0x169] sm:$0xff]
        %v338 = vld [vmem:[%s249 + $0x171] sm:$0xff]
        %v339 = vpack.c.bf16 %v308, %v307
        %v340 = vpack.c.bf16 %v310, %v309
        %v341 = vpack.c.bf16 %v312, %v311
        %v342 = vpack.c.bf16 %v314, %v313
        %v343 = vpack.c.bf16 %v316, %v315
        %v344 = vpack.c.bf16 %v318, %v317
        %v345 = vpack.c.bf16 %v320, %v319
        %v346 = vpack.c.bf16 %v322, %v321
        %v347 = vpack.c.bf16 %v324, %v323
        %v348 = vpack.c.bf16 %v326, %v325
        %v349 = vpack.c.bf16 %v328, %v327
        %v350 = vpack.c.bf16 %v330, %v329
        %v351 = vpack.c.bf16 %v332, %v331
        %v352 = vpack.c.bf16 %v334, %v333
        %v353 = vpack.c.bf16 %v336, %v335
        %v354 = vpack.c.bf16 %v338, %v337
        %s355 = scalar_lea.vmem %s1, 32
        %v356 = vld [vmem:[%s355] sm:$0xf]
        %v357 = vld [vmem:[%s355 + $0x4] sm:$0xf]
        %v358 = vld [vmem:[%s355 + $0x8] sm:$0xf]
        %v359 = vld [vmem:[%s355 + $0xc] sm:$0xf]
        %v360 = vld [vmem:[%s355 + $0x10] sm:$0xf]
        %v361 = vld [vmem:[%s355 + $0x14] sm:$0xf]
        %v362 = vld [vmem:[%s355 + $0x18] sm:$0xf]
        %v363 = vld [vmem:[%s355 + $0x1c] sm:$0xf]
        %v372 = vunpack.c.l.b16 %v356
        %v373 = vunpack.c.l.b16 %v357
        %v374 = vunpack.c.l.b16 %v358
        %v375 = vunpack.c.l.b16 %v359
        %v376 = vunpack.c.l.b16 %v360
        %v377 = vunpack.c.l.b16 %v361
        %v378 = vunpack.c.l.b16 %v362
        %v379 = vunpack.c.l.b16 %v363
        %v380 = vpack.c.b16 %v373, %v372
        %v381 = vpack.c.b16 %v375, %v374
        %v382 = vpack.c.b16 %v377, %v376
        %v383 = vpack.c.b16 %v379, %v378
        %vm388 = vcmask 523264
        %v390 = vsel %vm388, %v339, 0
        %v393 = vsel %vm388, %v340, 0
        %v396 = vsel %vm388, %v341, 0
        %v399 = vsel %vm388, %v342, 0
        %v402 = vsel %vm388, %v343, 0
        %v405 = vsel %vm388, %v344, 0
        %v408 = vsel %vm388, %v345, 0
        %v411 = vsel %vm388, %v346, 0
        %v414 = vsel %vm388, %v347, 0
        %v417 = vsel %vm388, %v348, 0
        %v420 = vsel %vm388, %v349, 0
        %v423 = vsel %vm388, %v350, 0
        %v426 = vsel %vm388, %v351, 0
        %v429 = vsel %vm388, %v352, 0
        %v432 = vsel %vm388, %v353, 0
        %v435 = vsel %vm388, %v354, 0
        %437 = vmatprep.subr.bf16.mxu0 0
        %438 = vmatpush1.bf16.msra.mxu0 %v380
        %439 = vmatprep.subr.bf16.mxu0 0
        %440 = vmatpush1.bf16.msra.mxu0 %v381
        %441 = vmatprep.subr.bf16.mxu0 0
        %442 = vmatpush1.bf16.msra.mxu0 %v382
        %443 = vmatprep.subr.bf16.mxu0 0
        %444 = vmatpush1.bf16.msra.mxu0 %v383
        %445 = vmatprep.subr.bf16.mxu0 0
        %446 = vmatpush1.bf16.msra.mxu0 0
        %447 = vmatprep.subr.bf16.mxu0 0
        %448 = vmatpush1.bf16.msra.mxu0 0
        %449 = vmatprep.subr.bf16.mxu0 0
        %450 = vmatpush1.bf16.msra.mxu0 0
        %451 = vmatprep.subr.bf16.mxu0 0
        %452 = vmatpush1.bf16.msra.mxu0 0
        %453 = vmatprep.subr.bf16.mxu0 0
        %454 = vmatpush1.bf16.msra.mxu0 0
        %455 = vmatprep.subr.bf16.mxu0 0
        %456 = vmatpush1.bf16.msra.mxu0 0
        %457 = vmatprep.subr.bf16.mxu0 0
        %458 = vmatpush1.bf16.msra.mxu0 0
        %459 = vmatprep.subr.bf16.mxu0 0
        %460 = vmatpush1.bf16.msra.mxu0 0
        %461 = vmatprep.subr.bf16.mxu0 0
        %462 = vmatpush1.bf16.msra.mxu0 0
        %463 = vmatprep.subr.bf16.mxu0 0
        %464 = vmatpush1.bf16.msra.mxu0 0
        %465 = vmatprep.subr.bf16.mxu0 0
        %466 = vmatpush1.bf16.msra.mxu0 0
        %467 = vmatprep.subr.bf16.mxu0 0
        %468 = vmatpush1.bf16.msra.mxu0 0
        %469 = vmatprep.mubr.bf16.mxu0 0
        %470 = vmatmul.mubr.bf16.gmra.mrb[0].mxu0 %v390
        %v471 = vpop.f32.mrb[0].mxu0
        %v472 = vadd.f32 0.0, %v471
        %v473 = vpop.f32.mrb[0].mxu0
        %v474 = vpop.f32.mrb[0].mxu0
        %v475 = vadd.f32 0.0, %v474
        %v476 = vpop.f32.mrb[0].mxu0
        %477 = vmatprep.mubr.bf16.mxu0 0
        %478 = vmatmul.mubr.bf16.gmra.mrb[0].mxu0 %v393
        %v479 = vpop.f32.mrb[0].mxu0
        %v480 = vadd.f32 0.0, %v479
        %v481 = vpop.f32.mrb[0].mxu0
        %v482 = vpop.f32.mrb[0].mxu0
        %v483 = vadd.f32 0.0, %v482
        %v484 = vpop.f32.mrb[0].mxu0
        %485 = vmatprep.mubr.bf16.mxu0 0
        %486 = vmatmul.mubr.bf16.gmra.mrb[0].mxu0 %v396
        %v487 = vpop.f32.mrb[0].mxu0
        %v488 = vadd.f32 0.0, %v487
        %v489 = vpop.f32.mrb[0].mxu0
        %v490 = vpop.f32.mrb[0].mxu0
        %v491 = vadd.f32 0.0, %v490
        %v492 = vpop.f32.mrb[0].mxu0
        %493 = vmatprep.mubr.bf16.mxu0 0
        %494 = vmatmul.mubr.bf16.gmra.mrb[0].mxu0 %v399
        %v495 = vpop.f32.mrb[0].mxu0
        %v496 = vadd.f32 0.0, %v495
        %v497 = vpop.f32.mrb[0].mxu0
        %v498 = vpop.f32.mrb[0].mxu0
        %v499 = vadd.f32 0.0, %v498
        %v500 = vpop.f32.mrb[0].mxu0
        %501 = vmatprep.mubr.bf16.mxu0 0
        %502 = vmatmul.mubr.bf16.gmra.mrb[0].mxu0 %v402
        %v503 = vpop.f32.mrb[0].mxu0
        %v504 = vadd.f32 0.0, %v503
        %v505 = vpop.f32.mrb[0].mxu0
        %v506 = vpop.f32.mrb[0].mxu0
        %v507 = vadd.f32 0.0, %v506
        %v508 = vpop.f32.mrb[0].mxu0
        %509 = vmatprep.mubr.bf16.mxu0 0
        %510 = vmatmul.mubr.bf16.gmra.mrb[0].mxu0 %v405
        %v511 = vpop.f32.mrb[0].mxu0
        %v512 = vadd.f32 0.0, %v511
        %v513 = vpop.f32.mrb[0].mxu0
        %v514 = vpop.f32.mrb[0].mxu0
        %v515 = vadd.f32 0.0, %v514
        %v516 = vpop.f32.mrb[0].mxu0
        %517 = vmatprep.mubr.bf16.mxu0 0
        %518 = vmatmul.mubr.bf16.gmra.mrb[0].mxu0 %v408
        %v519 = vpop.f32.mrb[0].mxu0
        %v520 = vadd.f32 0.0, %v519
        %v521 = vpop.f32.mrb[0].mxu0
        %v522 = vpop.f32.mrb[0].mxu0
        %v523 = vadd.f32 0.0, %v522
        %v524 = vpop.f32.mrb[0].mxu0
        %525 = vmatprep.mubr.bf16.mxu0 0
        %526 = vmatmul.mubr.bf16.gmra.mrb[0].mxu0 %v411
        %v527 = vpop.f32.mrb[0].mxu0
        %v528 = vadd.f32 0.0, %v527
        %v529 = vpop.f32.mrb[0].mxu0
        %v530 = vpop.f32.mrb[0].mxu0
        %v531 = vadd.f32 0.0, %v530
        %v532 = vpop.f32.mrb[0].mxu0
        %533 = vmatprep.mubr.bf16.mxu0 0
        %534 = vmatmul.mubr.bf16.gmra.mrb[0].mxu0 %v414
        %v535 = vpop.f32.mrb[0].mxu0
        %v536 = vadd.f32 0.0, %v535
        %v537 = vpop.f32.mrb[0].mxu0
        %v538 = vpop.f32.mrb[0].mxu0
        %v539 = vadd.f32 0.0, %v538
        %v540 = vpop.f32.mrb[0].mxu0
        %541 = vmatprep.mubr.bf16.mxu0 0
        %542 = vmatmul.mubr.bf16.gmra.mrb[0].mxu0 %v417
        %v543 = vpop.f32.mrb[0].mxu0
        %v544 = vadd.f32 0.0, %v543
        %v545 = vpop.f32.mrb[0].mxu0
        %v546 = vpop.f32.mrb[0].mxu0
        %v547 = vadd.f32 0.0, %v546
        %v548 = vpop.f32.mrb[0].mxu0
        %549 = vmatprep.mubr.bf16.mxu0 0
        %550 = vmatmul.mubr.bf16.gmra.mrb[0].mxu0 %v420
        %v551 = vpop.f32.mrb[0].mxu0
        %v552 = vadd.f32 0.0, %v551
        %v553 = vpop.f32.mrb[0].mxu0
        %v554 = vpop.f32.mrb[0].mxu0
        %v555 = vadd.f32 0.0, %v554
        %v556 = vpop.f32.mrb[0].mxu0
        %557 = vmatprep.mubr.bf16.mxu0 0
        %558 = vmatmul.mubr.bf16.gmra.mrb[0].mxu0 %v423
        %v559 = vpop.f32.mrb[0].mxu0
        %v560 = vadd.f32 0.0, %v559
        %v561 = vpop.f32.mrb[0].mxu0
        %v562 = vpop.f32.mrb[0].mxu0
        %v563 = vadd.f32 0.0, %v562
        %v564 = vpop.f32.mrb[0].mxu0
        %565 = vmatprep.mubr.bf16.mxu0 0
        %566 = vmatmul.mubr.bf16.gmra.mrb[0].mxu0 %v426
        %v567 = vpop.f32.mrb[0].mxu0
        %v568 = vadd.f32 0.0, %v567
        %v569 = vpop.f32.mrb[0].mxu0
        %v570 = vpop.f32.mrb[0].mxu0
        %v571 = vadd.f32 0.0, %v570
        %v572 = vpop.f32.mrb[0].mxu0
        %573 = vmatprep.mubr.bf16.mxu0 0
        %574 = vmatmul.mubr.bf16.gmra.mrb[0].mxu0 %v429
        %v575 = vpop.f32.mrb[0].mxu0
        %v576 = vadd.f32 0.0, %v575
        %v577 = vpop.f32.mrb[0].mxu0
        %v578 = vpop.f32.mrb[0].mxu0
        %v579 = vadd.f32 0.0, %v578
        %v580 = vpop.f32.mrb[0].mxu0
        %581 = vmatprep.mubr.bf16.mxu0 0
        %582 = vmatmul.mubr.bf16.gmra.mrb[0].mxu0 %v432
        %v583 = vpop.f32.mrb[0].mxu0
        %v584 = vadd.f32 0.0, %v583
        %v585 = vpop.f32.mrb[0].mxu0
        %v586 = vpop.f32.mrb[0].mxu0
        %v587 = vadd.f32 0.0, %v586
        %v588 = vpop.f32.mrb[0].mxu0
        %589 = vmatprep.mubr.bf16.mxu0 0
        %590 = vmatmul.mubr.bf16.gmra.mrb[0].mxu0 %v435
        %v591 = vpop.f32.mrb[0].mxu0
        %v592 = vadd.f32 0.0, %v591
        %v593 = vpop.f32.mrb[0].mxu0
        %v594 = vpop.f32.mrb[0].mxu0
        %v595 = vadd.f32 0.0, %v594
        %v596 = vpop.f32.mrb[0].mxu0
        %597 = vdwg.mxu0
        %v606 = vunpack.c.l.b16 %v299
        %v607 = vunpack.c.l.b16 %v300
        %v608 = vunpack.c.l.b16 %v301
        %v609 = vunpack.c.l.b16 %v302
        %v610 = vunpack.c.l.b16 %v303
        %v611 = vunpack.c.l.b16 %v304
        %v612 = vunpack.c.l.b16 %v305
        %v613 = vunpack.c.l.b16 %v306
        %v614 = vpack.c.b16 %v607, %v606
        %v615 = vpack.c.b16 %v609, %v608
        %v616 = vpack.c.b16 %v611, %v610
        %v617 = vpack.c.b16 %v613, %v612
        %v623 = vsel %vm388, %v283, 0
        %v626 = vsel %vm388, %v284, 0
        %v629 = vsel %vm388, %v285, 0
        %v632 = vsel %vm388, %v286, 0
        %v635 = vsel %vm388, %v287, 0
        %v638 = vsel %vm388, %v288, 0
        %v641 = vsel %vm388, %v289, 0
        %v644 = vsel %vm388, %v290, 0
        %v647 = vsel %vm388, %v291, 0
        %v650 = vsel %vm388, %v292, 0
        %v653 = vsel %vm388, %v293, 0
        %v656 = vsel %vm388, %v294, 0
        %v659 = vsel %vm388, %v295, 0
        %v662 = vsel %vm388, %v296, 0
        %v665 = vsel %vm388, %v297, 0
        %v668 = vsel %vm388, %v298, 0
        %670 = vmatprep.subr.bf16.mxu0 0
        %671 = vmatpush1.bf16.msra.mxu0 %v614
        %672 = vmatprep.subr.bf16.mxu0 0
        %673 = vmatpush1.bf16.msra.mxu0 %v615
        %674 = vmatprep.subr.bf16.mxu0 0
        %675 = vmatpush1.bf16.msra.mxu0 %v616
        %676 = vmatprep.subr.bf16.mxu0 0
        %677 = vmatpush1.bf16.msra.mxu0 %v617
        %678 = vmatprep.subr.bf16.mxu0 0
        %679 = vmatpush1.bf16.msra.mxu0 0
        %680 = vmatprep.subr.bf16.mxu0 0
        %681 = vmatpush1.bf16.msra.mxu0 0
        %682 = vmatprep.subr.bf16.mxu0 0
        %683 = vmatpush1.bf16.msra.mxu0 0
        %684 = vmatprep.subr.bf16.mxu0 0
        %685 = vmatpush1.bf16.msra.mxu0 0
        %686 = vmatprep.subr.bf16.mxu0 0
        %687 = vmatpush1.bf16.msra.mxu0 0
        %688 = vmatprep.subr.bf16.mxu0 0
        %689 = vmatpush1.bf16.msra.mxu0 0
        %690 = vmatprep.subr.bf16.mxu0 0
        %691 = vmatpush1.bf16.msra.mxu0 0
        %692 = vmatprep.subr.bf16.mxu0 0
        %693 = vmatpush1.bf16.msra.mxu0 0
        %694 = vmatprep.subr.bf16.mxu0 0
        %695 = vmatpush1.bf16.msra.mxu0 0
        %696 = vmatprep.subr.bf16.mxu0 0
        %697 = vmatpush1.bf16.msra.mxu0 0
        %698 = vmatprep.subr.bf16.mxu0 0
        %699 = vmatpush1.bf16.msra.mxu0 0
        %700 = vmatprep.subr.bf16.mxu0 0
        %701 = vmatpush1.bf16.msra.mxu0 0
        %702 = vmatprep.mubr.bf16.mxu0 0
        %703 = vmatmul.mubr.bf16.gmra.mrb[0].mxu0 %v623
        %v704 = vpop.f32.mrb[0].mxu0
        %v705 = vadd.f32 %v472, %v704
        %v706 = vpop.f32.mrb[0].mxu0
        %v707 = vpop.f32.mrb[0].mxu0
        %v708 = vadd.f32 %v475, %v707
        %v709 = vpop.f32.mrb[0].mxu0
        %710 = vmatprep.mubr.bf16.mxu0 0
        %711 = vmatmul.mubr.bf16.gmra.mrb[0].mxu0 %v626
        %v712 = vpop.f32.mrb[0].mxu0
        %v713 = vadd.f32 %v480, %v712
        %v714 = vpop.f32.mrb[0].mxu0
        %v715 = vpop.f32.mrb[0].mxu0
        %v716 = vadd.f32 %v483, %v715
        %v717 = vpop.f32.mrb[0].mxu0
        %718 = vmatprep.mubr.bf16.mxu0 0
        %719 = vmatmul.mubr.bf16.gmra.mrb[0].mxu0 %v629
        %v720 = vpop.f32.mrb[0].mxu0
        %v721 = vadd.f32 %v488, %v720
        %v722 = vpop.f32.mrb[0].mxu0
        %v723 = vpop.f32.mrb[0].mxu0
        %v724 = vadd.f32 %v491, %v723
        %v725 = vpop.f32.mrb[0].mxu0
        %726 = vmatprep.mubr.bf16.mxu0 0
        %727 = vmatmul.mubr.bf16.gmra.mrb[0].mxu0 %v632
        %v728 = vpop.f32.mrb[0].mxu0
        %v729 = vadd.f32 %v496, %v728
        %v730 = vpop.f32.mrb[0].mxu0
        %v731 = vpop.f32.mrb[0].mxu0
        %v732 = vadd.f32 %v499, %v731
        %v733 = vpop.f32.mrb[0].mxu0
        %734 = vmatprep.mubr.bf16.mxu0 0
        %735 = vmatmul.mubr.bf16.gmra.mrb[0].mxu0 %v635
        %v736 = vpop.f32.mrb[0].mxu0
        %v737 = vadd.f32 %v504, %v736
        %v738 = vpop.f32.mrb[0].mxu0
        %v739 = vpop.f32.mrb[0].mxu0
        %v740 = vadd.f32 %v507, %v739
        %v741 = vpop.f32.mrb[0].mxu0
        %742 = vmatprep.mubr.bf16.mxu0 0
        %743 = vmatmul.mubr.bf16.gmra.mrb[0].mxu0 %v638
        %v744 = vpop.f32.mrb[0].mxu0
        %v745 = vadd.f32 %v512, %v744
        %v746 = vpop.f32.mrb[0].mxu0
        %v747 = vpop.f32.mrb[0].mxu0
        %v748 = vadd.f32 %v515, %v747
        %v749 = vpop.f32.mrb[0].mxu0
        %750 = vmatprep.mubr.bf16.mxu0 0
        %751 = vmatmul.mubr.bf16.gmra.mrb[0].mxu0 %v641
        %v752 = vpop.f32.mrb[0].mxu0
        %v753 = vadd.f32 %v520, %v752
        %v754 = vpop.f32.mrb[0].mxu0
        %v755 = vpop.f32.mrb[0].mxu0
        %v756 = vadd.f32 %v523, %v755
        %v757 = vpop.f32.mrb[0].mxu0
        %758 = vmatprep.mubr.bf16.mxu0 0
        %759 = vmatmul.mubr.bf16.gmra.mrb[0].mxu0 %v644
        %v760 = vpop.f32.mrb[0].mxu0
        %v761 = vadd.f32 %v528, %v760
        %v762 = vpop.f32.mrb[0].mxu0
        %v763 = vpop.f32.mrb[0].mxu0
        %v764 = vadd.f32 %v531, %v763
        %v765 = vpop.f32.mrb[0].mxu0
        %766 = vmatprep.mubr.bf16.mxu0 0
        %767 = vmatmul.mubr.bf16.gmra.mrb[0].mxu0 %v647
        %v768 = vpop.f32.mrb[0].mxu0
        %v769 = vadd.f32 %v536, %v768
        %v770 = vpop.f32.mrb[0].mxu0
        %v771 = vpop.f32.mrb[0].mxu0
        %v772 = vadd.f32 %v539, %v771
        %v773 = vpop.f32.mrb[0].mxu0
        %774 = vmatprep.mubr.bf16.mxu0 0
        %775 = vmatmul.mubr.bf16.gmra.mrb[0].mxu0 %v650
        %v776 = vpop.f32.mrb[0].mxu0
        %v777 = vadd.f32 %v544, %v776
        %v778 = vpop.f32.mrb[0].mxu0
        %v779 = vpop.f32.mrb[0].mxu0
        %v780 = vadd.f32 %v547, %v779
        %v781 = vpop.f32.mrb[0].mxu0
        %782 = vmatprep.mubr.bf16.mxu0 0
        %783 = vmatmul.mubr.bf16.gmra.mrb[0].mxu0 %v653
        %v784 = vpop.f32.mrb[0].mxu0
        %v785 = vadd.f32 %v552, %v784
        %v786 = vpop.f32.mrb[0].mxu0
        %v787 = vpop.f32.mrb[0].mxu0
        %v788 = vadd.f32 %v555, %v787
        %v789 = vpop.f32.mrb[0].mxu0
        %790 = vmatprep.mubr.bf16.mxu0 0
        %791 = vmatmul.mubr.bf16.gmra.mrb[0].mxu0 %v656
        %v792 = vpop.f32.mrb[0].mxu0
        %v793 = vadd.f32 %v560, %v792
        %v794 = vpop.f32.mrb[0].mxu0
        %v795 = vpop.f32.mrb[0].mxu0
        %v796 = vadd.f32 %v563, %v795
        %v797 = vpop.f32.mrb[0].mxu0
        %798 = vmatprep.mubr.bf16.mxu0 0
        %799 = vmatmul.mubr.bf16.gmra.mrb[0].mxu0 %v659
        %v800 = vpop.f32.mrb[0].mxu0
        %v801 = vadd.f32 %v568, %v800
        %v802 = vpop.f32.mrb[0].mxu0
        %v803 = vpop.f32.mrb[0].mxu0
        %v804 = vadd.f32 %v571, %v803
        %v805 = vpop.f32.mrb[0].mxu0
        %806 = vmatprep.mubr.bf16.mxu0 0
        %807 = vmatmul.mubr.bf16.gmra.mrb[0].mxu0 %v662
        %v808 = vpop.f32.mrb[0].mxu0
        %v809 = vadd.f32 %v576, %v808
        %v810 = vpop.f32.mrb[0].mxu0
        %v811 = vpop.f32.mrb[0].mxu0
        %v812 = vadd.f32 %v579, %v811
        %v813 = vpop.f32.mrb[0].mxu0
        %814 = vmatprep.mubr.bf16.mxu0 0
        %815 = vmatmul.mubr.bf16.gmra.mrb[0].mxu0 %v665
        %v816 = vpop.f32.mrb[0].mxu0
        %v817 = vadd.f32 %v584, %v816
        %v818 = vpop.f32.mrb[0].mxu0
        %v819 = vpop.f32.mrb[0].mxu0
        %v820 = vadd.f32 %v587, %v819
        %v821 = vpop.f32.mrb[0].mxu0
        %822 = vmatprep.mubr.bf16.mxu0 0
        %823 = vmatmul.mubr.bf16.gmra.mrb[0].mxu0 %v668
        %v824 = vpop.f32.mrb[0].mxu0
        %v825 = vadd.f32 %v592, %v824
        %v826 = vpop.f32.mrb[0].mxu0
        %v827 = vpop.f32.mrb[0].mxu0
        %v828 = vadd.f32 %v595, %v827
        %v829 = vpop.f32.mrb[0].mxu0
        %830 = vdwg.mxu0
        %v831 = vld [vmem:[%s249 + $0x2] sm:$0xff]
        %v832 = vld [vmem:[%s249 + $0xa] sm:$0xff]
        %v833 = vld [vmem:[%s249 + $0x1a] sm:$0xff]
        %v834 = vld [vmem:[%s249 + $0x22] sm:$0xff]
        %v835 = vld [vmem:[%s249 + $0x32] sm:$0xff]
        %v836 = vld [vmem:[%s249 + $0x3a] sm:$0xff]
        %v837 = vld [vmem:[%s249 + $0x4a] sm:$0xff]
        %v838 = vld [vmem:[%s249 + $0x52] sm:$0xff]
        %v839 = vld [vmem:[%s249 + $0x62] sm:$0xff]
        %v840 = vld [vmem:[%s249 + $0x6a] sm:$0xff]
        %v841 = vld [vmem:[%s249 + $0x7a] sm:$0xff]
        %v842 = vld [vmem:[%s249 + $0x82] sm:$0xff]
        %v843 = vld [vmem:[%s249 + $0x92] sm:$0xff]
        %v844 = vld [vmem:[%s249 + $0x9a] sm:$0xff]
        %v845 = vld [vmem:[%s249 + $0xaa] sm:$0xff]
        %v846 = vld [vmem:[%s249 + $0xb2] sm:$0xff]
        %v847 = vld [vmem:[%s249 + $0xc2] sm:$0xff]
        %v848 = vld [vmem:[%s249 + $0xca] sm:$0xff]
        %v849 = vld [vmem:[%s249 + $0xda] sm:$0xff]
        %v850 = vld [vmem:[%s249 + $0xe2] sm:$0xff]
        %v851 = vld [vmem:[%s249 + $0xf2] sm:$0xff]
        %v852 = vld [vmem:[%s249 + $0xfa] sm:$0xff]
        %v853 = vld [vmem:[%s249 + $0x10a] sm:$0xff]
        %v854 = vld [vmem:[%s249 + $0x112] sm:$0xff]
        %v855 = vld [vmem:[%s249 + $0x122] sm:$0xff]
        %v856 = vld [vmem:[%s249 + $0x12a] sm:$0xff]
        %v857 = vld [vmem:[%s249 + $0x13a] sm:$0xff]
        %v858 = vld [vmem:[%s249 + $0x142] sm:$0xff]
        %v859 = vld [vmem:[%s249 + $0x152] sm:$0xff]
        %v860 = vld [vmem:[%s249 + $0x15a] sm:$0xff]
        %v861 = vld [vmem:[%s249 + $0x16a] sm:$0xff]
        %v862 = vld [vmem:[%s249 + $0x172] sm:$0xff]
        %v863 = vpack.c.bf16 %v832, %v831
        %v864 = vpack.c.bf16 %v834, %v833
        %v865 = vpack.c.bf16 %v836, %v835
        %v866 = vpack.c.bf16 %v838, %v837
        %v867 = vpack.c.bf16 %v840, %v839
        %v868 = vpack.c.bf16 %v842, %v841
        %v869 = vpack.c.bf16 %v844, %v843
        %v870 = vpack.c.bf16 %v846, %v845
        %v871 = vpack.c.bf16 %v848, %v847
        %v872 = vpack.c.bf16 %v850, %v849
        %v873 = vpack.c.bf16 %v852, %v851
        %v874 = vpack.c.bf16 %v854, %v853
        %v875 = vpack.c.bf16 %v856, %v855
        %v876 = vpack.c.bf16 %v858, %v857
        %v877 = vpack.c.bf16 %v860, %v859
        %v878 = vpack.c.bf16 %v862, %v861
        %s879 = scalar_lea.vmem %s1, 64
        %v880 = vld [vmem:[%s879] sm:$0xf]
        %v881 = vld [vmem:[%s879 + $0x4] sm:$0xf]
        %v882 = vld [vmem:[%s879 + $0x8] sm:$0xf]
        %v883 = vld [vmem:[%s879 + $0xc] sm:$0xf]
        %v884 = vld [vmem:[%s879 + $0x10] sm:$0xf]
        %v885 = vld [vmem:[%s879 + $0x14] sm:$0xf]
        %v886 = vld [vmem:[%s879 + $0x18] sm:$0xf]
        %v887 = vld [vmem:[%s879 + $0x1c] sm:$0xf]
        %v896 = vunpack.c.l.b16 %v880
        %v897 = vunpack.c.l.b16 %v881
        %v898 = vunpack.c.l.b16 %v882
        %v899 = vunpack.c.l.b16 %v883
        %v900 = vunpack.c.l.b16 %v884
        %v901 = vunpack.c.l.b16 %v885
        %v902 = vunpack.c.l.b16 %v886
        %v903 = vunpack.c.l.b16 %v887
        %v904 = vpack.c.b16 %v897, %v896
        %v905 = vpack.c.b16 %v899, %v898
        %v906 = vpack.c.b16 %v901, %v900
        %v907 = vpack.c.b16 %v903, %v902
        %v913 = vsel %vm388, %v863, 0
        %v916 = vsel %vm388, %v864, 0
        %v919 = vsel %vm388, %v865, 0
        %v922 = vsel %vm388, %v866, 0
        %v925 = vsel %vm388, %v867, 0
        %v928 = vsel %vm388, %v868, 0
        %v931 = vsel %vm388, %v869, 0
        %v934 = vsel %vm388, %v870, 0
        %v937 = vsel %vm388, %v871, 0
        %v940 = vsel %vm388, %v872, 0
        %v943 = vsel %vm388, %v873, 0
        %v946 = vsel %vm388, %v874, 0
        %v949 = vsel %vm388, %v875, 0
        %v952 = vsel %vm388, %v876, 0
        %v955 = vsel %vm388, %v877, 0
        %v958 = vsel %vm388, %v878, 0
        %960 = vmatprep.subr.bf16.mxu0 0
        %961 = vmatpush1.bf16.msra.mxu0 %v904
        %962 = vmatprep.subr.bf16.mxu0 0
        %963 = vmatpush1.bf16.msra.mxu0 %v905
        %964 = vmatprep.subr.bf16.mxu0 0
        %965 = vmatpush1.bf16.msra.mxu0 %v906
        %966 = vmatprep.subr.bf16.mxu0 0
        %967 = vmatpush1.bf16.msra.mxu0 %v907
        %968 = vmatprep.subr.bf16.mxu0 0
        %969 = vmatpush1.bf16.msra.mxu0 0
        %970 = vmatprep.subr.bf16.mxu0 0
        %971 = vmatpush1.bf16.msra.mxu0 0
        %972 = vmatprep.subr.bf16.mxu0 0
        %973 = vmatpush1.bf16.msra.mxu0 0
        %974 = vmatprep.subr.bf16.mxu0 0
        %975 = vmatpush1.bf16.msra.mxu0 0
        %976 = vmatprep.subr.bf16.mxu0 0
        %977 = vmatpush1.bf16.msra.mxu0 0
        %978 = vmatprep.subr.bf16.mxu0 0
        %979 = vmatpush1.bf16.msra.mxu0 0
        %980 = vmatprep.subr.bf16.mxu0 0
        %981 = vmatpush1.bf16.msra.mxu0 0
        %982 = vmatprep.subr.bf16.mxu0 0
        %983 = vmatpush1.bf16.msra.mxu0 0
        %984 = vmatprep.subr.bf16.mxu0 0
        %985 = vmatpush1.bf16.msra.mxu0 0
        %986 = vmatprep.subr.bf16.mxu0 0
        %987 = vmatpush1.bf16.msra.mxu0 0
        %988 = vmatprep.subr.bf16.mxu0 0
        %989 = vmatpush1.bf16.msra.mxu0 0
        %990 = vmatprep.subr.bf16.mxu0 0
        %991 = vmatpush1.bf16.msra.mxu0 0
        %992 = vmatprep.mubr.bf16.mxu0 0
        %993 = vmatmul.mubr.bf16.gmra.mrb[0].mxu0 %v913
        %v994 = vpop.f32.mrb[0].mxu0
        %v995 = vadd.f32 0.0, %v994
        %v996 = vpop.f32.mrb[0].mxu0
        %v997 = vpop.f32.mrb[0].mxu0
        %v998 = vadd.f32 0.0, %v997
        %v999 = vpop.f32.mrb[0].mxu0
        %1000 = vmatprep.mubr.bf16.mxu0 0
        %1001 = vmatmul.mubr.bf16.gmra.mrb[0].mxu0 %v916
        %v1002 = vpop.f32.mrb[0].mxu0
        %v1003 = vadd.f32 0.0, %v1002
        %v1004 = vpop.f32.mrb[0].mxu0
        %v1005 = vpop.f32.mrb[0].mxu0
        %v1006 = vadd.f32 0.0, %v1005
        %v1007 = vpop.f32.mrb[0].mxu0
        %1008 = vmatprep.mubr.bf16.mxu0 0
        %1009 = vmatmul.mubr.bf16.gmra.mrb[0].mxu0 %v919
        %v1010 = vpop.f32.mrb[0].mxu0
        %v1011 = vadd.f32 0.0, %v1010
        %v1012 = vpop.f32.mrb[0].mxu0
        %v1013 = vpop.f32.mrb[0].mxu0
        %v1014 = vadd.f32 0.0, %v1013
        %v1015 = vpop.f32.mrb[0].mxu0
        %1016 = vmatprep.mubr.bf16.mxu0 0
        %1017 = vmatmul.mubr.bf16.gmra.mrb[0].mxu0 %v922
        %v1018 = vpop.f32.mrb[0].mxu0
        %v1019 = vadd.f32 0.0, %v1018
        %v1020 = vpop.f32.mrb[0].mxu0
        %v1021 = vpop.f32.mrb[0].mxu0
        %v1022 = vadd.f32 0.0, %v1021
        %v1023 = vpop.f32.mrb[0].mxu0
        %1024 = vmatprep.mubr.bf16.mxu0 0
        %1025 = vmatmul.mubr.bf16.gmra.mrb[0].mxu0 %v925
        %v1026 = vpop.f32.mrb[0].mxu0
        %v1027 = vadd.f32 0.0, %v1026
        %v1028 = vpop.f32.mrb[0].mxu0
        %v1029 = vpop.f32.mrb[0].mxu0
        %v1030 = vadd.f32 0.0, %v1029
        %v1031 = vpop.f32.mrb[0].mxu0
        %1032 = vmatprep.mubr.bf16.mxu0 0
        %1033 = vmatmul.mubr.bf16.gmra.mrb[0].mxu0 %v928
        %v1034 = vpop.f32.mrb[0].mxu0
        %v1035 = vadd.f32 0.0, %v1034
        %v1036 = vpop.f32.mrb[0].mxu0
        %v1037 = vpop.f32.mrb[0].mxu0
        %v1038 = vadd.f32 0.0, %v1037
        %v1039 = vpop.f32.mrb[0].mxu0
        %1040 = vmatprep.mubr.bf16.mxu0 0
        %1041 = vmatmul.mubr.bf16.gmra.mrb[0].mxu0 %v931
        %v1042 = vpop.f32.mrb[0].mxu0
        %v1043 = vadd.f32 0.0, %v1042
        %v1044 = vpop.f32.mrb[0].mxu0
        %v1045 = vpop.f32.mrb[0].mxu0
        %v1046 = vadd.f32 0.0, %v1045
        %v1047 = vpop.f32.mrb[0].mxu0
        %1048 = vmatprep.mubr.bf16.mxu0 0
        %1049 = vmatmul.mubr.bf16.gmra.mrb[0].mxu0 %v934
        %v1050 = vpop.f32.mrb[0].mxu0
        %v1051 = vadd.f32 0.0, %v1050
        %v1052 = vpop.f32.mrb[0].mxu0
        %v1053 = vpop.f32.mrb[0].mxu0
        %v1054 = vadd.f32 0.0, %v1053
        %v1055 = vpop.f32.mrb[0].mxu0
        %1056 = vmatprep.mubr.bf16.mxu0 0
        %1057 = vmatmul.mubr.bf16.gmra.mrb[0].mxu0 %v937
        %v1058 = vpop.f32.mrb[0].mxu0
        %v1059 = vadd.f32 0.0, %v1058
        %v1060 = vpop.f32.mrb[0].mxu0
        %v1061 = vpop.f32.mrb[0].mxu0
        %v1062 = vadd.f32 0.0, %v1061
        %v1063 = vpop.f32.mrb[0].mxu0
        %1064 = vmatprep.mubr.bf16.mxu0 0
        %1065 = vmatmul.mubr.bf16.gmra.mrb[0].mxu0 %v940
        %v1066 = vpop.f32.mrb[0].mxu0
        %v1067 = vadd.f32 0.0, %v1066
        %v1068 = vpop.f32.mrb[0].mxu0
        %v1069 = vpop.f32.mrb[0].mxu0
        %v1070 = vadd.f32 0.0, %v1069
        %v1071 = vpop.f32.mrb[0].mxu0
        %1072 = vmatprep.mubr.bf16.mxu0 0
        %1073 = vmatmul.mubr.bf16.gmra.mrb[0].mxu0 %v943
        %v1074 = vpop.f32.mrb[0].mxu0
        %v1075 = vadd.f32 0.0, %v1074
        %v1076 = vpop.f32.mrb[0].mxu0
        %v1077 = vpop.f32.mrb[0].mxu0
        %v1078 = vadd.f32 0.0, %v1077
        %v1079 = vpop.f32.mrb[0].mxu0
        %1080 = vmatprep.mubr.bf16.mxu0 0
        %1081 = vmatmul.mubr.bf16.gmra.mrb[0].mxu0 %v946
        %v1082 = vpop.f32.mrb[0].mxu0
        %v1083 = vadd.f32 0.0, %v1082
        %v1084 = vpop.f32.mrb[0].mxu0
        %v1085 = vpop.f32.mrb[0].mxu0
        %v1086 = vadd.f32 0.0, %v1085
        %v1087 = vpop.f32.mrb[0].mxu0
        %1088 = vmatprep.mubr.bf16.mxu0 0
        %1089 = vmatmul.mubr.bf16.gmra.mrb[0].mxu0 %v949
        %v1090 = vpop.f32.mrb[0].mxu0
        %v1091 = vadd.f32 0.0, %v1090
        %v1092 = vpop.f32.mrb[0].mxu0
        %v1093 = vpop.f32.mrb[0].mxu0
        %v1094 = vadd.f32 0.0, %v1093
        %v1095 = vpop.f32.mrb[0].mxu0
        %1096 = vmatprep.mubr.bf16.mxu0 0
        %1097 = vmatmul.mubr.bf16.gmra.mrb[0].mxu0 %v952
        %v1098 = vpop.f32.mrb[0].mxu0
        %v1099 = vadd.f32 0.0, %v1098
        %v1100 = vpop.f32.mrb[0].mxu0
        %v1101 = vpop.f32.mrb[0].mxu0
        %v1102 = vadd.f32 0.0, %v1101
        %v1103 = vpop.f32.mrb[0].mxu0
        %1104 = vmatprep.mubr.bf16.mxu0 0
        %1105 = vmatmul.mubr.bf16.gmra.mrb[0].mxu0 %v955
        %v1106 = vpop.f32.mrb[0].mxu0
        %v1107 = vadd.f32 0.0, %v1106
        %v1108 = vpop.f32.mrb[0].mxu0
        %v1109 = vpop.f32.mrb[0].mxu0
        %v1110 = vadd.f32 0.0, %v1109
        %v1111 = vpop.f32.mrb[0].mxu0
        %1112 = vmatprep.mubr.bf16.mxu0 0
        %1113 = vmatmul.mubr.bf16.gmra.mrb[0].mxu0 %v958
        %v1114 = vpop.f32.mrb[0].mxu0
        %v1115 = vadd.f32 0.0, %v1114
        %v1116 = vpop.f32.mrb[0].mxu0
        %v1117 = vpop.f32.mrb[0].mxu0
        %v1118 = vadd.f32 0.0, %v1117
        %v1119 = vpop.f32.mrb[0].mxu0
        %1120 = vdwg.mxu0
        %v1121 = vadd.f32 %v705, %v995
        %v1122 = vadd.f32 %v708, %v998
        %v1123 = vadd.f32 %v713, %v1003
        %v1124 = vadd.f32 %v716, %v1006
        %v1125 = vadd.f32 %v721, %v1011
        %v1126 = vadd.f32 %v724, %v1014
        %v1127 = vadd.f32 %v729, %v1019
        %v1128 = vadd.f32 %v732, %v1022
        %v1129 = vadd.f32 %v737, %v1027
        %v1130 = vadd.f32 %v740, %v1030
        %v1131 = vadd.f32 %v745, %v1035
        %v1132 = vadd.f32 %v748, %v1038
        %v1133 = vadd.f32 %v753, %v1043
        %v1134 = vadd.f32 %v756, %v1046
        %v1135 = vadd.f32 %v761, %v1051
        %v1136 = vadd.f32 %v764, %v1054
        %v1137 = vadd.f32 %v769, %v1059
        %v1138 = vadd.f32 %v772, %v1062
        %v1139 = vadd.f32 %v777, %v1067
        %v1140 = vadd.f32 %v780, %v1070
        %v1141 = vadd.f32 %v785, %v1075
        %v1142 = vadd.f32 %v788, %v1078
        %v1143 = vadd.f32 %v793, %v1083
        %v1144 = vadd.f32 %v796, %v1086
        %v1145 = vadd.f32 %v801, %v1091
        %v1146 = vadd.f32 %v804, %v1094
        %v1147 = vadd.f32 %v809, %v1099
        %v1148 = vadd.f32 %v812, %v1102
        %v1149 = vadd.f32 %v817, %v1107
        %v1150 = vadd.f32 %v820, %v1110
        %v1151 = vadd.f32 %v825, %v1115
        %v1152 = vadd.f32 %v828, %v1118
        %s1153 = scalar_lea.vmem %s249, 24
        %v1154 = vld [vmem:[%s1153] sm:$0xff]
        %v1155 = vld [vmem:[%s1153 + $0x8] sm:$0xff]
        %v1156 = vld [vmem:[%s1153 + $0x18] sm:$0xff]
        %v1157 = vld [vmem:[%s1153 + $0x20] sm:$0xff]
        %v1158 = vld [vmem:[%s1153 + $0x30] sm:$0xff]
        %v1159 = vld [vmem:[%s1153 + $0x38] sm:$0xff]
        %v1160 = vld [vmem:[%s1153 + $0x48] sm:$0xff]
        %v1161 = vld [vmem:[%s1153 + $0x50] sm:$0xff]
        %v1162 = vld [vmem:[%s1153 + $0x60] sm:$0xff]
        %v1163 = vld [vmem:[%s1153 + $0x68] sm:$0xff]
        %v1164 = vld [vmem:[%s1153 + $0x78] sm:$0xff]
        %v1165 = vld [vmem:[%s1153 + $0x80] sm:$0xff]
        %v1166 = vld [vmem:[%s1153 + $0x90] sm:$0xff]
        %v1167 = vld [vmem:[%s1153 + $0x98] sm:$0xff]
        %v1168 = vld [vmem:[%s1153 + $0xa8] sm:$0xff]
        %v1169 = vld [vmem:[%s1153 + $0xb0] sm:$0xff]
        %v1170 = vld [vmem:[%s1153 + $0xc0] sm:$0xff]
        %v1171 = vld [vmem:[%s1153 + $0xc8] sm:$0xff]
        %v1172 = vld [vmem:[%s1153 + $0xd8] sm:$0xff]
        %v1173 = vld [vmem:[%s1153 + $0xe0] sm:$0xff]
        %v1174 = vld [vmem:[%s1153 + $0xf0] sm:$0xff]
        %v1175 = vld [vmem:[%s1153 + $0xf8] sm:$0xff]
        %v1176 = vld [vmem:[%s1153 + $0x108] sm:$0xff]
        %v1177 = vld [vmem:[%s1153 + $0x110] sm:$0xff]
        %v1178 = vld [vmem:[%s1153 + $0x120] sm:$0xff]
        %v1179 = vld [vmem:[%s1153 + $0x128] sm:$0xff]
        %v1180 = vld [vmem:[%s1153 + $0x138] sm:$0xff]
        %v1181 = vld [vmem:[%s1153 + $0x140] sm:$0xff]
        %v1182 = vld [vmem:[%s1153 + $0x150] sm:$0xff]
        %v1183 = vld [vmem:[%s1153 + $0x158] sm:$0xff]
        %v1184 = vld [vmem:[%s1153 + $0x168] sm:$0xff]
        %v1185 = vld [vmem:[%s1153 + $0x170] sm:$0xff]
        %v1186 = vpack.c.bf16 %v1155, %v1154
        %v1187 = vpack.c.bf16 %v1157, %v1156
        %v1188 = vpack.c.bf16 %v1159, %v1158
        %v1189 = vpack.c.bf16 %v1161, %v1160
        %v1190 = vpack.c.bf16 %v1163, %v1162
        %v1191 = vpack.c.bf16 %v1165, %v1164
        %v1192 = vpack.c.bf16 %v1167, %v1166
        %v1193 = vpack.c.bf16 %v1169, %v1168
        %v1194 = vpack.c.bf16 %v1171, %v1170
        %v1195 = vpack.c.bf16 %v1173, %v1172
        %v1196 = vpack.c.bf16 %v1175, %v1174
        %v1197 = vpack.c.bf16 %v1177, %v1176
        %v1198 = vpack.c.bf16 %v1179, %v1178
        %v1199 = vpack.c.bf16 %v1181, %v1180
        %v1200 = vpack.c.bf16 %v1183, %v1182
        %v1201 = vpack.c.bf16 %v1185, %v1184
        %s1202 = scalar_lea.vmem %s1, 96
        %v1203 = vld [vmem:[%s1202] sm:$0xf]
        %v1204 = vld [vmem:[%s1202 + $0x4] sm:$0xf]
        %v1205 = vld [vmem:[%s1202 + $0x8] sm:$0xf]
        %v1206 = vld [vmem:[%s1202 + $0xc] sm:$0xf]
        %v1207 = vld [vmem:[%s1202 + $0x10] sm:$0xf]
        %v1208 = vld [vmem:[%s1202 + $0x14] sm:$0xf]
        %v1209 = vld [vmem:[%s1202 + $0x18] sm:$0xf]
        %v1210 = vld [vmem:[%s1202 + $0x1c] sm:$0xf]
        %v1219 = vunpack.c.l.b16 %v1203
        %v1220 = vunpack.c.l.b16 %v1204
        %v1221 = vunpack.c.l.b16 %v1205
        %v1222 = vunpack.c.l.b16 %v1206
        %v1223 = vunpack.c.l.b16 %v1207
        %v1224 = vunpack.c.l.b16 %v1208
        %v1225 = vunpack.c.l.b16 %v1209
        %v1226 = vunpack.c.l.b16 %v1210
        %v1227 = vpack.c.b16 %v1220, %v1219
        %v1228 = vpack.c.b16 %v1222, %v1221
        %v1229 = vpack.c.b16 %v1224, %v1223
        %v1230 = vpack.c.b16 %v1226, %v1225
        %v1236 = vsel %vm388, %v1186, 0
        %v1239 = vsel %vm388, %v1187, 0
        %v1242 = vsel %vm388, %v1188, 0
        %v1245 = vsel %vm388, %v1189, 0
        %v1248 = vsel %vm388, %v1190, 0
        %v1251 = vsel %vm388, %v1191, 0
        %v1254 = vsel %vm388, %v1192, 0
        %v1257 = vsel %vm388, %v1193, 0
        %v1260 = vsel %vm388, %v1194, 0
        %v1263 = vsel %vm388, %v1195, 0
        %v1266 = vsel %vm388, %v1196, 0
        %v1269 = vsel %vm388, %v1197, 0
        %v1272 = vsel %vm388, %v1198, 0
        %v1275 = vsel %vm388, %v1199, 0
        %v1278 = vsel %vm388, %v1200, 0
        %v1281 = vsel %vm388, %v1201, 0
        %1283 = vmatprep.subr.bf16.mxu0 0
        %1284 = vmatpush1.bf16.msra.mxu0 %v1227
        %1285 = vmatprep.subr.bf16.mxu0 0
        %1286 = vmatpush1.bf16.msra.mxu0 %v1228
        %1287 = vmatprep.subr.bf16.mxu0 0
        %1288 = vmatpush1.bf16.msra.mxu0 %v1229
        %1289 = vmatprep.subr.bf16.mxu0 0
        %1290 = vmatpush1.bf16.msra.mxu0 %v1230
        %1291 = vmatprep.subr.bf16.mxu0 0
        %1292 = vmatpush1.bf16.msra.mxu0 0
        %1293 = vmatprep.subr.bf16.mxu0 0
        %1294 = vmatpush1.bf16.msra.mxu0 0
        %1295 = vmatprep.subr.bf16.mxu0 0
        %1296 = vmatpush1.bf16.msra.mxu0 0
        %1297 = vmatprep.subr.bf16.mxu0 0
        %1298 = vmatpush1.bf16.msra.mxu0 0
        %1299 = vmatprep.subr.bf16.mxu0 0
        %1300 = vmatpush1.bf16.msra.mxu0 0
        %1301 = vmatprep.subr.bf16.mxu0 0
        %1302 = vmatpush1.bf16.msra.mxu0 0
        %1303 = vmatprep.subr.bf16.mxu0 0
        %1304 = vmatpush1.bf16.msra.mxu0 0
        %1305 = vmatprep.subr.bf16.mxu0 0
        %1306 = vmatpush1.bf16.msra.mxu0 0
        %1307 = vmatprep.subr.bf16.mxu0 0
        %1308 = vmatpush1.bf16.msra.mxu0 0
        %1309 = vmatprep.subr.bf16.mxu0 0
        %1310 = vmatpush1.bf16.msra.mxu0 0
        %1311 = vmatprep.subr.bf16.mxu0 0
        %1312 = vmatpush1.bf16.msra.mxu0 0
        %1313 = vmatprep.subr.bf16.mxu0 0
        %1314 = vmatpush1.bf16.msra.mxu0 0
        %1315 = vmatprep.mubr.bf16.mxu0 0
        %1316 = vmatmul.mubr.bf16.gmra.mrb[0].mxu0 %v1236
        %v1317 = vpop.f32.mrb[0].mxu0
        %v1318 = vadd.f32 0.0, %v1317
        %v1319 = vpop.f32.mrb[0].mxu0
        %v1320 = vpop.f32.mrb[0].mxu0
        %v1321 = vadd.f32 0.0, %v1320
        %v1322 = vpop.f32.mrb[0].mxu0
        %1323 = vmatprep.mubr.bf16.mxu0 0
        %1324 = vmatmul.mubr.bf16.gmra.mrb[0].mxu0 %v1239
        %v1325 = vpop.f32.mrb[0].mxu0
        %v1326 = vadd.f32 0.0, %v1325
        %v1327 = vpop.f32.mrb[0].mxu0
        %v1328 = vpop.f32.mrb[0].mxu0
        %v1329 = vadd.f32 0.0, %v1328
        %v1330 = vpop.f32.mrb[0].mxu0
        %1331 = vmatprep.mubr.bf16.mxu0 0
        %1332 = vmatmul.mubr.bf16.gmra.mrb[0].mxu0 %v1242
        %v1333 = vpop.f32.mrb[0].mxu0
        %v1334 = vadd.f32 0.0, %v1333
        %v1335 = vpop.f32.mrb[0].mxu0
        %v1336 = vpop.f32.mrb[0].mxu0
        %v1337 = vadd.f32 0.0, %v1336
        %v1338 = vpop.f32.mrb[0].mxu0
        %1339 = vmatprep.mubr.bf16.mxu0 0
        %1340 = vmatmul.mubr.bf16.gmra.mrb[0].mxu0 %v1245
        %v1341 = vpop.f32.mrb[0].mxu0
        %v1342 = vadd.f32 0.0, %v1341
        %v1343 = vpop.f32.mrb[0].mxu0
        %v1344 = vpop.f32.mrb[0].mxu0
        %v1345 = vadd.f32 0.0, %v1344
        %v1346 = vpop.f32.mrb[0].mxu0
        %1347 = vmatprep.mubr.bf16.mxu0 0
        %1348 = vmatmul.mubr.bf16.gmra.mrb[0].mxu0 %v1248
        %v1349 = vpop.f32.mrb[0].mxu0
        %v1350 = vadd.f32 0.0, %v1349
        %v1351 = vpop.f32.mrb[0].mxu0
        %v1352 = vpop.f32.mrb[0].mxu0
        %v1353 = vadd.f32 0.0, %v1352
        %v1354 = vpop.f32.mrb[0].mxu0
        %1355 = vmatprep.mubr.bf16.mxu0 0
        %1356 = vmatmul.mubr.bf16.gmra.mrb[0].mxu0 %v1251
        %v1357 = vpop.f32.mrb[0].mxu0
        %v1358 = vadd.f32 0.0, %v1357
        %v1359 = vpop.f32.mrb[0].mxu0
        %v1360 = vpop.f32.mrb[0].mxu0
        %v1361 = vadd.f32 0.0, %v1360
        %v1362 = vpop.f32.mrb[0].mxu0
        %1363 = vmatprep.mubr.bf16.mxu0 0
        %1364 = vmatmul.mubr.bf16.gmra.mrb[0].mxu0 %v1254
        %v1365 = vpop.f32.mrb[0].mxu0
        %v1366 = vadd.f32 0.0, %v1365
        %v1367 = vpop.f32.mrb[0].mxu0
        %v1368 = vpop.f32.mrb[0].mxu0
        %v1369 = vadd.f32 0.0, %v1368
        %v1370 = vpop.f32.mrb[0].mxu0
        %1371 = vmatprep.mubr.bf16.mxu0 0
        %1372 = vmatmul.mubr.bf16.gmra.mrb[0].mxu0 %v1257
        %v1373 = vpop.f32.mrb[0].mxu0
        %v1374 = vadd.f32 0.0, %v1373
        %v1375 = vpop.f32.mrb[0].mxu0
        %v1376 = vpop.f32.mrb[0].mxu0
        %v1377 = vadd.f32 0.0, %v1376
        %v1378 = vpop.f32.mrb[0].mxu0
        %1379 = vmatprep.mubr.bf16.mxu0 0
        %1380 = vmatmul.mubr.bf16.gmra.mrb[0].mxu0 %v1260
        %v1381 = vpop.f32.mrb[0].mxu0
        %v1382 = vadd.f32 0.0, %v1381
        %v1383 = vpop.f32.mrb[0].mxu0
        %v1384 = vpop.f32.mrb[0].mxu0
        %v1385 = vadd.f32 0.0, %v1384
        %v1386 = vpop.f32.mrb[0].mxu0
        %1387 = vmatprep.mubr.bf16.mxu0 0
        %1388 = vmatmul.mubr.bf16.gmra.mrb[0].mxu0 %v1263
        %v1389 = vpop.f32.mrb[0].mxu0
        %v1390 = vadd.f32 0.0, %v1389
        %v1391 = vpop.f32.mrb[0].mxu0
        %v1392 = vpop.f32.mrb[0].mxu0
        %v1393 = vadd.f32 0.0, %v1392
        %v1394 = vpop.f32.mrb[0].mxu0
        %1395 = vmatprep.mubr.bf16.mxu0 0
        %1396 = vmatmul.mubr.bf16.gmra.mrb[0].mxu0 %v1266
        %v1397 = vpop.f32.mrb[0].mxu0
        %v1398 = vadd.f32 0.0, %v1397
        %v1399 = vpop.f32.mrb[0].mxu0
        %v1400 = vpop.f32.mrb[0].mxu0
        %v1401 = vadd.f32 0.0, %v1400
        %v1402 = vpop.f32.mrb[0].mxu0
        %1403 = vmatprep.mubr.bf16.mxu0 0
        %1404 = vmatmul.mubr.bf16.gmra.mrb[0].mxu0 %v1269
        %v1405 = vpop.f32.mrb[0].mxu0
        %v1406 = vadd.f32 0.0, %v1405
        %v1407 = vpop.f32.mrb[0].mxu0
        %v1408 = vpop.f32.mrb[0].mxu0
        %v1409 = vadd.f32 0.0, %v1408
        %v1410 = vpop.f32.mrb[0].mxu0
        %1411 = vmatprep.mubr.bf16.mxu0 0
        %1412 = vmatmul.mubr.bf16.gmra.mrb[0].mxu0 %v1272
        %v1413 = vpop.f32.mrb[0].mxu0
        %v1414 = vadd.f32 0.0, %v1413
        %v1415 = vpop.f32.mrb[0].mxu0
        %v1416 = vpop.f32.mrb[0].mxu0
        %v1417 = vadd.f32 0.0, %v1416
        %v1418 = vpop.f32.mrb[0].mxu0
        %1419 = vmatprep.mubr.bf16.mxu0 0
        %1420 = vmatmul.mubr.bf16.gmra.mrb[0].mxu0 %v1275
        %v1421 = vpop.f32.mrb[0].mxu0
        %v1422 = vadd.f32 0.0, %v1421
        %v1423 = vpop.f32.mrb[0].mxu0
        %v1424 = vpop.f32.mrb[0].mxu0
        %v1425 = vadd.f32 0.0, %v1424
        %v1426 = vpop.f32.mrb[0].mxu0
        %1427 = vmatprep.mubr.bf16.mxu0 0
        %1428 = vmatmul.mubr.bf16.gmra.mrb[0].mxu0 %v1278
        %v1429 = vpop.f32.mrb[0].mxu0
        %v1430 = vadd.f32 0.0, %v1429
        %v1431 = vpop.f32.mrb[0].mxu0
        %v1432 = vpop.f32.mrb[0].mxu0
        %v1433 = vadd.f32 0.0, %v1432
        %v1434 = vpop.f32.mrb[0].mxu0
        %1435 = vmatprep.mubr.bf16.mxu0 0
        %1436 = vmatmul.mubr.bf16.gmra.mrb[0].mxu0 %v1281
        %v1437 = vpop.f32.mrb[0].mxu0
        %v1438 = vadd.f32 0.0, %v1437
        %v1439 = vpop.f32.mrb[0].mxu0
        %v1440 = vpop.f32.mrb[0].mxu0
        %v1441 = vadd.f32 0.0, %v1440
        %v1442 = vpop.f32.mrb[0].mxu0
        %1443 = vdwg.mxu0
        %v1444 = vadd.f32 %v1121, %v1318
        %v1445 = vadd.f32 %v1122, %v1321
        %v1446 = vadd.f32 %v1123, %v1326
        %v1447 = vadd.f32 %v1124, %v1329
        %v1448 = vadd.f32 %v1125, %v1334
        %v1449 = vadd.f32 %v1126, %v1337
        %v1450 = vadd.f32 %v1127, %v1342
        %v1451 = vadd.f32 %v1128, %v1345
        %v1452 = vadd.f32 %v1129, %v1350
        %v1453 = vadd.f32 %v1130, %v1353
        %v1454 = vadd.f32 %v1131, %v1358
        %v1455 = vadd.f32 %v1132, %v1361
        %v1456 = vadd.f32 %v1133, %v1366
        %v1457 = vadd.f32 %v1134, %v1369
        %v1458 = vadd.f32 %v1135, %v1374
        %v1459 = vadd.f32 %v1136, %v1377
        %v1460 = vadd.f32 %v1137, %v1382
        %v1461 = vadd.f32 %v1138, %v1385
        %v1462 = vadd.f32 %v1139, %v1390
        %v1463 = vadd.f32 %v1140, %v1393
        %v1464 = vadd.f32 %v1141, %v1398
        %v1465 = vadd.f32 %v1142, %v1401
        %v1466 = vadd.f32 %v1143, %v1406
        %v1467 = vadd.f32 %v1144, %v1409
        %v1468 = vadd.f32 %v1145, %v1414
        %v1469 = vadd.f32 %v1146, %v1417
        %v1470 = vadd.f32 %v1147, %v1422
        %v1471 = vadd.f32 %v1148, %v1425
        %v1472 = vadd.f32 %v1149, %v1430
        %v1473 = vadd.f32 %v1150, %v1433
        %v1474 = vadd.f32 %v1151, %v1438
        %v1475 = vadd.f32 %v1152, %v1441
        %v1476 = vld [vmem:[%s1153 + $0x1] sm:$0xff]
        %v1477 = vld [vmem:[%s1153 + $0x9] sm:$0xff]
        %v1478 = vld [vmem:[%s1153 + $0x19] sm:$0xff]
        %v1479 = vld [vmem:[%s1153 + $0x21] sm:$0xff]
        %v1480 = vld [vmem:[%s1153 + $0x31] sm:$0xff]
        %v1481 = vld [vmem:[%s1153 + $0x39] sm:$0xff]
        %v1482 = vld [vmem:[%s1153 + $0x49] sm:$0xff]
        %v1483 = vld [vmem:[%s1153 + $0x51] sm:$0xff]
        %v1484 = vld [vmem:[%s1153 + $0x61] sm:$0xff]
        %v1485 = vld [vmem:[%s1153 + $0x69] sm:$0xff]
        %v1486 = vld [vmem:[%s1153 + $0x79] sm:$0xff]
        %v1487 = vld [vmem:[%s1153 + $0x81] sm:$0xff]
        %v1488 = vld [vmem:[%s1153 + $0x91] sm:$0xff]
        %v1489 = vld [vmem:[%s1153 + $0x99] sm:$0xff]
        %v1490 = vld [vmem:[%s1153 + $0xa9] sm:$0xff]
        %v1491 = vld [vmem:[%s1153 + $0xb1] sm:$0xff]
        %v1492 = vld [vmem:[%s1153 + $0xc1] sm:$0xff]
        %v1493 = vld [vmem:[%s1153 + $0xc9] sm:$0xff]
        %v1494 = vld [vmem:[%s1153 + $0xd9] sm:$0xff]
        %v1495 = vld [vmem:[%s1153 + $0xe1] sm:$0xff]
        %v1496 = vld [vmem:[%s1153 + $0xf1] sm:$0xff]
        %v1497 = vld [vmem:[%s1153 + $0xf9] sm:$0xff]
        %v1498 = vld [vmem:[%s1153 + $0x109] sm:$0xff]
        %v1499 = vld [vmem:[%s1153 + $0x111] sm:$0xff]
        %v1500 = vld [vmem:[%s1153 + $0x121] sm:$0xff]
        %v1501 = vld [vmem:[%s1153 + $0x129] sm:$0xff]
        %v1502 = vld [vmem:[%s1153 + $0x139] sm:$0xff]
        %v1503 = vld [vmem:[%s1153 + $0x141] sm:$0xff]
        %v1504 = vld [vmem:[%s1153 + $0x151] sm:$0xff]
        %v1505 = vld [vmem:[%s1153 + $0x159] sm:$0xff]
        %v1506 = vld [vmem:[%s1153 + $0x169] sm:$0xff]
        %v1507 = vld [vmem:[%s1153 + $0x171] sm:$0xff]
        %v1508 = vpack.c.bf16 %v1477, %v1476
        %v1509 = vpack.c.bf16 %v1479, %v1478
        %v1510 = vpack.c.bf16 %v1481, %v1480
        %v1511 = vpack.c.bf16 %v1483, %v1482
        %v1512 = vpack.c.bf16 %v1485, %v1484
        %v1513 = vpack.c.bf16 %v1487, %v1486
        %v1514 = vpack.c.bf16 %v1489, %v1488
        %v1515 = vpack.c.bf16 %v1491, %v1490
        %v1516 = vpack.c.bf16 %v1493, %v1492
        %v1517 = vpack.c.bf16 %v1495, %v1494
        %v1518 = vpack.c.bf16 %v1497, %v1496
        %v1519 = vpack.c.bf16 %v1499, %v1498
        %v1520 = vpack.c.bf16 %v1501, %v1500
        %v1521 = vpack.c.bf16 %v1503, %v1502
        %v1522 = vpack.c.bf16 %v1505, %v1504
        %v1523 = vpack.c.bf16 %v1507, %v1506
        %s1524 = scalar_lea.vmem %s1, 128
        %v1525 = vld [vmem:[%s1524] sm:$0xf]
        %v1526 = vld [vmem:[%s1524 + $0x4] sm:$0xf]
        %v1527 = vld [vmem:[%s1524 + $0x8] sm:$0xf]
        %v1528 = vld [vmem:[%s1524 + $0xc] sm:$0xf]
        %v1529 = vld [vmem:[%s1524 + $0x10] sm:$0xf]
        %v1530 = vld [vmem:[%s1524 + $0x14] sm:$0xf]
        %v1531 = vld [vmem:[%s1524 + $0x18] sm:$0xf]
        %v1532 = vld [vmem:[%s1524 + $0x1c] sm:$0xf]
        %v1541 = vunpack.c.l.b16 %v1525
        %v1542 = vunpack.c.l.b16 %v1526
        %v1543 = vunpack.c.l.b16 %v1527
        %v1544 = vunpack.c.l.b16 %v1528
        %v1545 = vunpack.c.l.b16 %v1529
        %v1546 = vunpack.c.l.b16 %v1530
        %v1547 = vunpack.c.l.b16 %v1531
        %v1548 = vunpack.c.l.b16 %v1532
        %v1549 = vpack.c.b16 %v1542, %v1541
        %v1550 = vpack.c.b16 %v1544, %v1543
        %v1551 = vpack.c.b16 %v1546, %v1545
        %v1552 = vpack.c.b16 %v1548, %v1547
        %v1558 = vsel %vm388, %v1508, 0
        %v1561 = vsel %vm388, %v1509, 0
        %v1564 = vsel %vm388, %v1510, 0
        %v1567 = vsel %vm388, %v1511, 0
        %v1570 = vsel %vm388, %v1512, 0
        %v1573 = vsel %vm388, %v1513, 0
        %v1576 = vsel %vm388, %v1514, 0
        %v1579 = vsel %vm388, %v1515, 0
        %v1582 = vsel %vm388, %v1516, 0
        %v1585 = vsel %vm388, %v1517, 0
        %v1588 = vsel %vm388, %v1518, 0
        %v1591 = vsel %vm388, %v1519, 0
        %v1594 = vsel %vm388, %v1520, 0
        %v1597 = vsel %vm388, %v1521, 0
        %v1600 = vsel %vm388, %v1522, 0
        %v1603 = vsel %vm388, %v1523, 0
        %1605 = vmatprep.subr.bf16.mxu0 0
        %1606 = vmatpush1.bf16.msra.mxu0 %v1549
        %1607 = vmatprep.subr.bf16.mxu0 0
        %1608 = vmatpush1.bf16.msra.mxu0 %v1550
        %1609 = vmatprep.subr.bf16.mxu0 0
        %1610 = vmatpush1.bf16.msra.mxu0 %v1551
        %1611 = vmatprep.subr.bf16.mxu0 0
        %1612 = vmatpush1.bf16.msra.mxu0 %v1552
        %1613 = vmatprep.subr.bf16.mxu0 0
        %1614 = vmatpush1.bf16.msra.mxu0 0
        %1615 = vmatprep.subr.bf16.mxu0 0
        %1616 = vmatpush1.bf16.msra.mxu0 0
        %1617 = vmatprep.subr.bf16.mxu0 0
        %1618 = vmatpush1.bf16.msra.mxu0 0
        %1619 = vmatprep.subr.bf16.mxu0 0
        %1620 = vmatpush1.bf16.msra.mxu0 0
        %1621 = vmatprep.subr.bf16.mxu0 0
        %1622 = vmatpush1.bf16.msra.mxu0 0
        %1623 = vmatprep.subr.bf16.mxu0 0
        %1624 = vmatpush1.bf16.msra.mxu0 0
        %1625 = vmatprep.subr.bf16.mxu0 0
        %1626 = vmatpush1.bf16.msra.mxu0 0
        %1627 = vmatprep.subr.bf16.mxu0 0
        %1628 = vmatpush1.bf16.msra.mxu0 0
        %1629 = vmatprep.subr.bf16.mxu0 0
        %1630 = vmatpush1.bf16.msra.mxu0 0
        %1631 = vmatprep.subr.bf16.mxu0 0
        %1632 = vmatpush1.bf16.msra.mxu0 0
        %1633 = vmatprep.subr.bf16.mxu0 0
        %1634 = vmatpush1.bf16.msra.mxu0 0
        %1635 = vmatprep.subr.bf16.mxu0 0
        %1636 = vmatpush1.bf16.msra.mxu0 0
        %1637 = vmatprep.mubr.bf16.mxu0 0
        %1638 = vmatmul.mubr.bf16.gmra.mrb[0].mxu0 %v1558
        %v1639 = vpop.f32.mrb[0].mxu0
        %v1640 = vadd.f32 0.0, %v1639
        %v1641 = vpop.f32.mrb[0].mxu0
        %v1642 = vpop.f32.mrb[0].mxu0
        %v1643 = vadd.f32 0.0, %v1642
        %v1644 = vpop.f32.mrb[0].mxu0
        %1645 = vmatprep.mubr.bf16.mxu0 0
        %1646 = vmatmul.mubr.bf16.gmra.mrb[0].mxu0 %v1561
        %v1647 = vpop.f32.mrb[0].mxu0
        %v1648 = vadd.f32 0.0, %v1647
        %v1649 = vpop.f32.mrb[0].mxu0
        %v1650 = vpop.f32.mrb[0].mxu0
        %v1651 = vadd.f32 0.0, %v1650
        %v1652 = vpop.f32.mrb[0].mxu0
        %1653 = vmatprep.mubr.bf16.mxu0 0
        %1654 = vmatmul.mubr.bf16.gmra.mrb[0].mxu0 %v1564
        %v1655 = vpop.f32.mrb[0].mxu0
        %v1656 = vadd.f32 0.0, %v1655
        %v1657 = vpop.f32.mrb[0].mxu0
        %v1658 = vpop.f32.mrb[0].mxu0
        %v1659 = vadd.f32 0.0, %v1658
        %v1660 = vpop.f32.mrb[0].mxu0
        %1661 = vmatprep.mubr.bf16.mxu0 0
        %1662 = vmatmul.mubr.bf16.gmra.mrb[0].mxu0 %v1567
        %v1663 = vpop.f32.mrb[0].mxu0
        %v1664 = vadd.f32 0.0, %v1663
        %v1665 = vpop.f32.mrb[0].mxu0
        %v1666 = vpop.f32.mrb[0].mxu0
        %v1667 = vadd.f32 0.0, %v1666
        %v1668 = vpop.f32.mrb[0].mxu0
        %1669 = vmatprep.mubr.bf16.mxu0 0
        %1670 = vmatmul.mubr.bf16.gmra.mrb[0].mxu0 %v1570
        %v1671 = vpop.f32.mrb[0].mxu0
        %v1672 = vadd.f32 0.0, %v1671
        %v1673 = vpop.f32.mrb[0].mxu0
        %v1674 = vpop.f32.mrb[0].mxu0
        %v1675 = vadd.f32 0.0, %v1674
        %v1676 = vpop.f32.mrb[0].mxu0
        %1677 = vmatprep.mubr.bf16.mxu0 0
        %1678 = vmatmul.mubr.bf16.gmra.mrb[0].mxu0 %v1573
        %v1679 = vpop.f32.mrb[0].mxu0
        %v1680 = vadd.f32 0.0, %v1679
        %v1681 = vpop.f32.mrb[0].mxu0
        %v1682 = vpop.f32.mrb[0].mxu0
        %v1683 = vadd.f32 0.0, %v1682
        %v1684 = vpop.f32.mrb[0].mxu0
        %1685 = vmatprep.mubr.bf16.mxu0 0
        %1686 = vmatmul.mubr.bf16.gmra.mrb[0].mxu0 %v1576
        %v1687 = vpop.f32.mrb[0].mxu0
        %v1688 = vadd.f32 0.0, %v1687
        %v1689 = vpop.f32.mrb[0].mxu0
        %v1690 = vpop.f32.mrb[0].mxu0
        %v1691 = vadd.f32 0.0, %v1690
        %v1692 = vpop.f32.mrb[0].mxu0
        %1693 = vmatprep.mubr.bf16.mxu0 0
        %1694 = vmatmul.mubr.bf16.gmra.mrb[0].mxu0 %v1579
        %v1695 = vpop.f32.mrb[0].mxu0
        %v1696 = vadd.f32 0.0, %v1695
        %v1697 = vpop.f32.mrb[0].mxu0
        %v1698 = vpop.f32.mrb[0].mxu0
        %v1699 = vadd.f32 0.0, %v1698
        %v1700 = vpop.f32.mrb[0].mxu0
        %1701 = vmatprep.mubr.bf16.mxu0 0
        %1702 = vmatmul.mubr.bf16.gmra.mrb[0].mxu0 %v1582
        %v1703 = vpop.f32.mrb[0].mxu0
        %v1704 = vadd.f32 0.0, %v1703
        %v1705 = vpop.f32.mrb[0].mxu0
        %v1706 = vpop.f32.mrb[0].mxu0
        %v1707 = vadd.f32 0.0, %v1706
        %v1708 = vpop.f32.mrb[0].mxu0
        %1709 = vmatprep.mubr.bf16.mxu0 0
        %1710 = vmatmul.mubr.bf16.gmra.mrb[0].mxu0 %v1585
        %v1711 = vpop.f32.mrb[0].mxu0
        %v1712 = vadd.f32 0.0, %v1711
        %v1713 = vpop.f32.mrb[0].mxu0
        %v1714 = vpop.f32.mrb[0].mxu0
        %v1715 = vadd.f32 0.0, %v1714
        %v1716 = vpop.f32.mrb[0].mxu0
        %1717 = vmatprep.mubr.bf16.mxu0 0
        %1718 = vmatmul.mubr.bf16.gmra.mrb[0].mxu0 %v1588
        %v1719 = vpop.f32.mrb[0].mxu0
        %v1720 = vadd.f32 0.0, %v1719
        %v1721 = vpop.f32.mrb[0].mxu0
        %v1722 = vpop.f32.mrb[0].mxu0
        %v1723 = vadd.f32 0.0, %v1722
        %v1724 = vpop.f32.mrb[0].mxu0
        %1725 = vmatprep.mubr.bf16.mxu0 0
        %1726 = vmatmul.mubr.bf16.gmra.mrb[0].mxu0 %v1591
        %v1727 = vpop.f32.mrb[0].mxu0
        %v1728 = vadd.f32 0.0, %v1727
        %v1729 = vpop.f32.mrb[0].mxu0
        %v1730 = vpop.f32.mrb[0].mxu0
        %v1731 = vadd.f32 0.0, %v1730
        %v1732 = vpop.f32.mrb[0].mxu0
        %1733 = vmatprep.mubr.bf16.mxu0 0
        %1734 = vmatmul.mubr.bf16.gmra.mrb[0].mxu0 %v1594
        %v1735 = vpop.f32.mrb[0].mxu0
        %v1736 = vadd.f32 0.0, %v1735
        %v1737 = vpop.f32.mrb[0].mxu0
        %v1738 = vpop.f32.mrb[0].mxu0
        %v1739 = vadd.f32 0.0, %v1738
        %v1740 = vpop.f32.mrb[0].mxu0
        %1741 = vmatprep.mubr.bf16.mxu0 0
        %1742 = vmatmul.mubr.bf16.gmra.mrb[0].mxu0 %v1597
        %v1743 = vpop.f32.mrb[0].mxu0
        %v1744 = vadd.f32 0.0, %v1743
        %v1745 = vpop.f32.mrb[0].mxu0
        %v1746 = vpop.f32.mrb[0].mxu0
        %v1747 = vadd.f32 0.0, %v1746
        %v1748 = vpop.f32.mrb[0].mxu0
        %1749 = vmatprep.mubr.bf16.mxu0 0
        %1750 = vmatmul.mubr.bf16.gmra.mrb[0].mxu0 %v1600
        %v1751 = vpop.f32.mrb[0].mxu0
        %v1752 = vadd.f32 0.0, %v1751
        %v1753 = vpop.f32.mrb[0].mxu0
        %v1754 = vpop.f32.mrb[0].mxu0
        %v1755 = vadd.f32 0.0, %v1754
        %v1756 = vpop.f32.mrb[0].mxu0
        %1757 = vmatprep.mubr.bf16.mxu0 0
        %1758 = vmatmul.mubr.bf16.gmra.mrb[0].mxu0 %v1603
        %v1759 = vpop.f32.mrb[0].mxu0
        %v1760 = vadd.f32 0.0, %v1759
        %v1761 = vpop.f32.mrb[0].mxu0
        %v1762 = vpop.f32.mrb[0].mxu0
        %v1763 = vadd.f32 0.0, %v1762
        %v1764 = vpop.f32.mrb[0].mxu0
        %1765 = vdwg.mxu0
        %v1766 = vadd.f32 %v1444, %v1640
        %v1767 = vadd.f32 %v1445, %v1643
        %v1768 = vadd.f32 %v1446, %v1648
        %v1769 = vadd.f32 %v1447, %v1651
        %v1770 = vadd.f32 %v1448, %v1656
        %v1771 = vadd.f32 %v1449, %v1659
        %v1772 = vadd.f32 %v1450, %v1664
        %v1773 = vadd.f32 %v1451, %v1667
        %v1774 = vadd.f32 %v1452, %v1672
        %v1775 = vadd.f32 %v1453, %v1675
        %v1776 = vadd.f32 %v1454, %v1680
        %v1777 = vadd.f32 %v1455, %v1683
        %v1778 = vadd.f32 %v1456, %v1688
        %v1779 = vadd.f32 %v1457, %v1691
        %v1780 = vadd.f32 %v1458, %v1696
        %v1781 = vadd.f32 %v1459, %v1699
        %v1782 = vadd.f32 %v1460, %v1704
        %v1783 = vadd.f32 %v1461, %v1707
        %v1784 = vadd.f32 %v1462, %v1712
        %v1785 = vadd.f32 %v1463, %v1715
        %v1786 = vadd.f32 %v1464, %v1720
        %v1787 = vadd.f32 %v1465, %v1723
        %v1788 = vadd.f32 %v1466, %v1728
        %v1789 = vadd.f32 %v1467, %v1731
        %v1790 = vadd.f32 %v1468, %v1736
        %v1791 = vadd.f32 %v1469, %v1739
        %v1792 = vadd.f32 %v1470, %v1744
        %v1793 = vadd.f32 %v1471, %v1747
        %v1794 = vadd.f32 %v1472, %v1752
        %v1795 = vadd.f32 %v1473, %v1755
        %v1796 = vadd.f32 %v1474, %v1760
        %v1797 = vadd.f32 %v1475, %v1763
        %v1798 = vld [vmem:[%s1153 + $0x2] sm:$0xff]
        %v1799 = vld [vmem:[%s1153 + $0xa] sm:$0xff]
        %v1800 = vld [vmem:[%s1153 + $0x1a] sm:$0xff]
        %v1801 = vld [vmem:[%s1153 + $0x22] sm:$0xff]
        %v1802 = vld [vmem:[%s1153 + $0x32] sm:$0xff]
        %v1803 = vld [vmem:[%s1153 + $0x3a] sm:$0xff]
        %v1804 = vld [vmem:[%s1153 + $0x4a] sm:$0xff]
        %v1805 = vld [vmem:[%s1153 + $0x52] sm:$0xff]
        %v1806 = vld [vmem:[%s1153 + $0x62] sm:$0xff]
        %v1807 = vld [vmem:[%s1153 + $0x6a] sm:$0xff]
        %v1808 = vld [vmem:[%s1153 + $0x7a] sm:$0xff]
        %v1809 = vld [vmem:[%s1153 + $0x82] sm:$0xff]
        %v1810 = vld [vmem:[%s1153 + $0x92] sm:$0xff]
        %v1811 = vld [vmem:[%s1153 + $0x9a] sm:$0xff]
        %v1812 = vld [vmem:[%s1153 + $0xaa] sm:$0xff]
        %v1813 = vld [vmem:[%s1153 + $0xb2] sm:$0xff]
        %v1814 = vld [vmem:[%s1153 + $0xc2] sm:$0xff]
        %v1815 = vld [vmem:[%s1153 + $0xca] sm:$0xff]
        %v1816 = vld [vmem:[%s1153 + $0xda] sm:$0xff]
        %v1817 = vld [vmem:[%s1153 + $0xe2] sm:$0xff]
        %v1818 = vld [vmem:[%s1153 + $0xf2] sm:$0xff]
        %v1819 = vld [vmem:[%s1153 + $0xfa] sm:$0xff]
        %v1820 = vld [vmem:[%s1153 + $0x10a] sm:$0xff]
        %v1821 = vld [vmem:[%s1153 + $0x112] sm:$0xff]
        %v1822 = vld [vmem:[%s1153 + $0x122] sm:$0xff]
        %v1823 = vld [vmem:[%s1153 + $0x12a] sm:$0xff]
        %v1824 = vld [vmem:[%s1153 + $0x13a] sm:$0xff]
        %v1825 = vld [vmem:[%s1153 + $0x142] sm:$0xff]
        %v1826 = vld [vmem:[%s1153 + $0x152] sm:$0xff]
        %v1827 = vld [vmem:[%s1153 + $0x15a] sm:$0xff]
        %v1828 = vld [vmem:[%s1153 + $0x16a] sm:$0xff]
        %v1829 = vld [vmem:[%s1153 + $0x172] sm:$0xff]
        %v1830 = vpack.c.bf16 %v1799, %v1798
        %v1831 = vpack.c.bf16 %v1801, %v1800
        %v1832 = vpack.c.bf16 %v1803, %v1802
        %v1833 = vpack.c.bf16 %v1805, %v1804
        %v1834 = vpack.c.bf16 %v1807, %v1806
        %v1835 = vpack.c.bf16 %v1809, %v1808
        %v1836 = vpack.c.bf16 %v1811, %v1810
        %v1837 = vpack.c.bf16 %v1813, %v1812
        %v1838 = vpack.c.bf16 %v1815, %v1814
        %v1839 = vpack.c.bf16 %v1817, %v1816
        %v1840 = vpack.c.bf16 %v1819, %v1818
        %v1841 = vpack.c.bf16 %v1821, %v1820
        %v1842 = vpack.c.bf16 %v1823, %v1822
        %v1843 = vpack.c.bf16 %v1825, %v1824
        %v1844 = vpack.c.bf16 %v1827, %v1826
        %v1845 = vpack.c.bf16 %v1829, %v1828
        %s1846 = scalar_lea.vmem %s1, 160
        %v1847 = vld [vmem:[%s1846] sm:$0xf]
        %v1848 = vld [vmem:[%s1846 + $0x4] sm:$0xf]
        %v1849 = vld [vmem:[%s1846 + $0x8] sm:$0xf]
        %v1850 = vld [vmem:[%s1846 + $0xc] sm:$0xf]
        %v1851 = vld [vmem:[%s1846 + $0x10] sm:$0xf]
        %v1852 = vld [vmem:[%s1846 + $0x14] sm:$0xf]
        %v1853 = vld [vmem:[%s1846 + $0x18] sm:$0xf]
        %v1854 = vld [vmem:[%s1846 + $0x1c] sm:$0xf]
        %v1863 = vunpack.c.l.b16 %v1847
        %v1864 = vunpack.c.l.b16 %v1848
        %v1865 = vunpack.c.l.b16 %v1849
        %v1866 = vunpack.c.l.b16 %v1850
        %v1867 = vunpack.c.l.b16 %v1851
        %v1868 = vunpack.c.l.b16 %v1852
        %v1869 = vunpack.c.l.b16 %v1853
        %v1870 = vunpack.c.l.b16 %v1854
        %v1871 = vpack.c.b16 %v1864, %v1863
        %v1872 = vpack.c.b16 %v1866, %v1865
        %v1873 = vpack.c.b16 %v1868, %v1867
        %v1874 = vpack.c.b16 %v1870, %v1869
        %v1880 = vsel %vm388, %v1830, 0
        %v1883 = vsel %vm388, %v1831, 0
        %v1886 = vsel %vm388, %v1832, 0
        %v1889 = vsel %vm388, %v1833, 0
        %v1892 = vsel %vm388, %v1834, 0
        %v1895 = vsel %vm388, %v1835, 0
        %v1898 = vsel %vm388, %v1836, 0
        %v1901 = vsel %vm388, %v1837, 0
        %v1904 = vsel %vm388, %v1838, 0
        %v1907 = vsel %vm388, %v1839, 0
        %v1910 = vsel %vm388, %v1840, 0
        %v1913 = vsel %vm388, %v1841, 0
        %v1916 = vsel %vm388, %v1842, 0
        %v1919 = vsel %vm388, %v1843, 0
        %v1922 = vsel %vm388, %v1844, 0
        %v1925 = vsel %vm388, %v1845, 0
        %1927 = vmatprep.subr.bf16.mxu0 0
        %1928 = vmatpush1.bf16.msra.mxu0 %v1871
        %1929 = vmatprep.subr.bf16.mxu0 0
        %1930 = vmatpush1.bf16.msra.mxu0 %v1872
        %1931 = vmatprep.subr.bf16.mxu0 0
        %1932 = vmatpush1.bf16.msra.mxu0 %v1873
        %1933 = vmatprep.subr.bf16.mxu0 0
        %1934 = vmatpush1.bf16.msra.mxu0 %v1874
        %1935 = vmatprep.subr.bf16.mxu0 0
        %1936 = vmatpush1.bf16.msra.mxu0 0
        %1937 = vmatprep.subr.bf16.mxu0 0
        %1938 = vmatpush1.bf16.msra.mxu0 0
        %1939 = vmatprep.subr.bf16.mxu0 0
        %1940 = vmatpush1.bf16.msra.mxu0 0
        %1941 = vmatprep.subr.bf16.mxu0 0
        %1942 = vmatpush1.bf16.msra.mxu0 0
        %1943 = vmatprep.subr.bf16.mxu0 0
        %1944 = vmatpush1.bf16.msra.mxu0 0
        %1945 = vmatprep.subr.bf16.mxu0 0
        %1946 = vmatpush1.bf16.msra.mxu0 0
        %1947 = vmatprep.subr.bf16.mxu0 0
        %1948 = vmatpush1.bf16.msra.mxu0 0
        %1949 = vmatprep.subr.bf16.mxu0 0
        %1950 = vmatpush1.bf16.msra.mxu0 0
        %1951 = vmatprep.subr.bf16.mxu0 0
        %1952 = vmatpush1.bf16.msra.mxu0 0
        %1953 = vmatprep.subr.bf16.mxu0 0
        %1954 = vmatpush1.bf16.msra.mxu0 0
        %1955 = vmatprep.subr.bf16.mxu0 0
        %1956 = vmatpush1.bf16.msra.mxu0 0
        %1957 = vmatprep.subr.bf16.mxu0 0
        %1958 = vmatpush1.bf16.msra.mxu0 0
        %1959 = vmatprep.mubr.bf16.mxu0 0
        %1960 = vmatmul.mubr.bf16.gmra.mrb[0].mxu0 %v1880
        %v1961 = vpop.f32.mrb[0].mxu0
        %v1962 = vadd.f32 0.0, %v1961
        %v1963 = vpop.f32.mrb[0].mxu0
        %v1964 = vpop.f32.mrb[0].mxu0
        %v1965 = vadd.f32 0.0, %v1964
        %v1966 = vpop.f32.mrb[0].mxu0
        %1967 = vmatprep.mubr.bf16.mxu0 0
        %1968 = vmatmul.mubr.bf16.gmra.mrb[0].mxu0 %v1883
        %v1969 = vpop.f32.mrb[0].mxu0
        %v1970 = vadd.f32 0.0, %v1969
        %v1971 = vpop.f32.mrb[0].mxu0
        %v1972 = vpop.f32.mrb[0].mxu0
        %v1973 = vadd.f32 0.0, %v1972
        %v1974 = vpop.f32.mrb[0].mxu0
        %1975 = vmatprep.mubr.bf16.mxu0 0
        %1976 = vmatmul.mubr.bf16.gmra.mrb[0].mxu0 %v1886
        %v1977 = vpop.f32.mrb[0].mxu0
        %v1978 = vadd.f32 0.0, %v1977
        %v1979 = vpop.f32.mrb[0].mxu0
        %v1980 = vpop.f32.mrb[0].mxu0
        %v1981 = vadd.f32 0.0, %v1980
        %v1982 = vpop.f32.mrb[0].mxu0
        %1983 = vmatprep.mubr.bf16.mxu0 0
        %1984 = vmatmul.mubr.bf16.gmra.mrb[0].mxu0 %v1889
        %v1985 = vpop.f32.mrb[0].mxu0
        %v1986 = vadd.f32 0.0, %v1985
        %v1987 = vpop.f32.mrb[0].mxu0
        %v1988 = vpop.f32.mrb[0].mxu0
        %v1989 = vadd.f32 0.0, %v1988
        %v1990 = vpop.f32.mrb[0].mxu0
        %1991 = vmatprep.mubr.bf16.mxu0 0
        %1992 = vmatmul.mubr.bf16.gmra.mrb[0].mxu0 %v1892
        %v1993 = vpop.f32.mrb[0].mxu0
        %v1994 = vadd.f32 0.0, %v1993
        %v1995 = vpop.f32.mrb[0].mxu0
        %v1996 = vpop.f32.mrb[0].mxu0
        %v1997 = vadd.f32 0.0, %v1996
        %v1998 = vpop.f32.mrb[0].mxu0
        %1999 = vmatprep.mubr.bf16.mxu0 0
        %2000 = vmatmul.mubr.bf16.gmra.mrb[0].mxu0 %v1895
        %v2001 = vpop.f32.mrb[0].mxu0
        %v2002 = vadd.f32 0.0, %v2001
        %v2003 = vpop.f32.mrb[0].mxu0
        %v2004 = vpop.f32.mrb[0].mxu0
        %v2005 = vadd.f32 0.0, %v2004
        %v2006 = vpop.f32.mrb[0].mxu0
        %2007 = vmatprep.mubr.bf16.mxu0 0
        %2008 = vmatmul.mubr.bf16.gmra.mrb[0].mxu0 %v1898
        %v2009 = vpop.f32.mrb[0].mxu0
        %v2010 = vadd.f32 0.0, %v2009
        %v2011 = vpop.f32.mrb[0].mxu0
        %v2012 = vpop.f32.mrb[0].mxu0
        %v2013 = vadd.f32 0.0, %v2012
        %v2014 = vpop.f32.mrb[0].mxu0
        %2015 = vmatprep.mubr.bf16.mxu0 0
        %2016 = vmatmul.mubr.bf16.gmra.mrb[0].mxu0 %v1901
        %v2017 = vpop.f32.mrb[0].mxu0
        %v2018 = vadd.f32 0.0, %v2017
        %v2019 = vpop.f32.mrb[0].mxu0
        %v2020 = vpop.f32.mrb[0].mxu0
        %v2021 = vadd.f32 0.0, %v2020
        %v2022 = vpop.f32.mrb[0].mxu0
        %2023 = vmatprep.mubr.bf16.mxu0 0
        %2024 = vmatmul.mubr.bf16.gmra.mrb[0].mxu0 %v1904
        %v2025 = vpop.f32.mrb[0].mxu0
        %v2026 = vadd.f32 0.0, %v2025
        %v2027 = vpop.f32.mrb[0].mxu0
        %v2028 = vpop.f32.mrb[0].mxu0
        %v2029 = vadd.f32 0.0, %v2028
        %v2030 = vpop.f32.mrb[0].mxu0
        %2031 = vmatprep.mubr.bf16.mxu0 0
        %2032 = vmatmul.mubr.bf16.gmra.mrb[0].mxu0 %v1907
        %v2033 = vpop.f32.mrb[0].mxu0
        %v2034 = vadd.f32 0.0, %v2033
        %v2035 = vpop.f32.mrb[0].mxu0
        %v2036 = vpop.f32.mrb[0].mxu0
        %v2037 = vadd.f32 0.0, %v2036
        %v2038 = vpop.f32.mrb[0].mxu0
        %2039 = vmatprep.mubr.bf16.mxu0 0
        %2040 = vmatmul.mubr.bf16.gmra.mrb[0].mxu0 %v1910
        %v2041 = vpop.f32.mrb[0].mxu0
        %v2042 = vadd.f32 0.0, %v2041
        %v2043 = vpop.f32.mrb[0].mxu0
        %v2044 = vpop.f32.mrb[0].mxu0
        %v2045 = vadd.f32 0.0, %v2044
        %v2046 = vpop.f32.mrb[0].mxu0
        %2047 = vmatprep.mubr.bf16.mxu0 0
        %2048 = vmatmul.mubr.bf16.gmra.mrb[0].mxu0 %v1913
        %v2049 = vpop.f32.mrb[0].mxu0
        %v2050 = vadd.f32 0.0, %v2049
        %v2051 = vpop.f32.mrb[0].mxu0
        %v2052 = vpop.f32.mrb[0].mxu0
        %v2053 = vadd.f32 0.0, %v2052
        %v2054 = vpop.f32.mrb[0].mxu0
        %2055 = vmatprep.mubr.bf16.mxu0 0
        %2056 = vmatmul.mubr.bf16.gmra.mrb[0].mxu0 %v1916
        %v2057 = vpop.f32.mrb[0].mxu0
        %v2058 = vadd.f32 0.0, %v2057
        %v2059 = vpop.f32.mrb[0].mxu0
        %v2060 = vpop.f32.mrb[0].mxu0
        %v2061 = vadd.f32 0.0, %v2060
        %v2062 = vpop.f32.mrb[0].mxu0
        %2063 = vmatprep.mubr.bf16.mxu0 0
        %2064 = vmatmul.mubr.bf16.gmra.mrb[0].mxu0 %v1919
        %v2065 = vpop.f32.mrb[0].mxu0
        %v2066 = vadd.f32 0.0, %v2065
        %v2067 = vpop.f32.mrb[0].mxu0
        %v2068 = vpop.f32.mrb[0].mxu0
        %v2069 = vadd.f32 0.0, %v2068
        %v2070 = vpop.f32.mrb[0].mxu0
        %2071 = vmatprep.mubr.bf16.mxu0 0
        %2072 = vmatmul.mubr.bf16.gmra.mrb[0].mxu0 %v1922
        %v2073 = vpop.f32.mrb[0].mxu0
        %v2074 = vadd.f32 0.0, %v2073
        %v2075 = vpop.f32.mrb[0].mxu0
        %v2076 = vpop.f32.mrb[0].mxu0
        %v2077 = vadd.f32 0.0, %v2076
        %v2078 = vpop.f32.mrb[0].mxu0
        %2079 = vmatprep.mubr.bf16.mxu0 0
        %2080 = vmatmul.mubr.bf16.gmra.mrb[0].mxu0 %v1925
        %v2081 = vpop.f32.mrb[0].mxu0
        %v2082 = vadd.f32 0.0, %v2081
        %v2083 = vpop.f32.mrb[0].mxu0
        %v2084 = vpop.f32.mrb[0].mxu0
        %v2085 = vadd.f32 0.0, %v2084
        %v2086 = vpop.f32.mrb[0].mxu0
        %2087 = vdwg.mxu0
        %v2088 = vadd.f32 %v1766, %v1962
        %v2089 = vadd.f32 %v1767, %v1965
        %v2090 = vadd.f32 %v1768, %v1970
        %v2091 = vadd.f32 %v1769, %v1973
        %v2092 = vadd.f32 %v1770, %v1978
        %v2093 = vadd.f32 %v1771, %v1981
        %v2094 = vadd.f32 %v1772, %v1986
        %v2095 = vadd.f32 %v1773, %v1989
        %v2096 = vadd.f32 %v1774, %v1994
        %v2097 = vadd.f32 %v1775, %v1997
        %v2098 = vadd.f32 %v1776, %v2002
        %v2099 = vadd.f32 %v1777, %v2005
        %v2100 = vadd.f32 %v1778, %v2010
        %v2101 = vadd.f32 %v1779, %v2013
        %v2102 = vadd.f32 %v1780, %v2018
        %v2103 = vadd.f32 %v1781, %v2021
        %v2104 = vadd.f32 %v1782, %v2026
        %v2105 = vadd.f32 %v1783, %v2029
        %v2106 = vadd.f32 %v1784, %v2034
        %v2107 = vadd.f32 %v1785, %v2037
        %v2108 = vadd.f32 %v1786, %v2042
        %v2109 = vadd.f32 %v1787, %v2045
        %v2110 = vadd.f32 %v1788, %v2050
        %v2111 = vadd.f32 %v1789, %v2053
        %v2112 = vadd.f32 %v1790, %v2058
        %v2113 = vadd.f32 %v1791, %v2061
        %v2114 = vadd.f32 %v1792, %v2066
        %v2115 = vadd.f32 %v1793, %v2069
        %v2116 = vadd.f32 %v1794, %v2074
        %v2117 = vadd.f32 %v1795, %v2077
        %v2118 = vadd.f32 %v1796, %v2082
        %v2119 = vadd.f32 %v1797, %v2085
        %s2120 = scalar_lea.vmem %s249, 48
        %v2121 = vld [vmem:[%s2120] sm:$0xff]
        %v2122 = vld [vmem:[%s2120 + $0x8] sm:$0xff]
        %v2123 = vld [vmem:[%s2120 + $0x18] sm:$0xff]
        %v2124 = vld [vmem:[%s2120 + $0x20] sm:$0xff]
        %v2125 = vld [vmem:[%s2120 + $0x30] sm:$0xff]
        %v2126 = vld [vmem:[%s2120 + $0x38] sm:$0xff]
        %v2127 = vld [vmem:[%s2120 + $0x48] sm:$0xff]
        %v2128 = vld [vmem:[%s2120 + $0x50] sm:$0xff]
        %v2129 = vld [vmem:[%s2120 + $0x60] sm:$0xff]
        %v2130 = vld [vmem:[%s2120 + $0x68] sm:$0xff]
        %v2131 = vld [vmem:[%s2120 + $0x78] sm:$0xff]
        %v2132 = vld [vmem:[%s2120 + $0x80] sm:$0xff]
        %v2133 = vld [vmem:[%s2120 + $0x90] sm:$0xff]
        %v2134 = vld [vmem:[%s2120 + $0x98] sm:$0xff]
        %v2135 = vld [vmem:[%s2120 + $0xa8] sm:$0xff]
        %v2136 = vld [vmem:[%s2120 + $0xb0] sm:$0xff]
        %v2137 = vld [vmem:[%s2120 + $0xc0] sm:$0xff]
        %v2138 = vld [vmem:[%s2120 + $0xc8] sm:$0xff]
        %v2139 = vld [vmem:[%s2120 + $0xd8] sm:$0xff]
        %v2140 = vld [vmem:[%s2120 + $0xe0] sm:$0xff]
        %v2141 = vld [vmem:[%s2120 + $0xf0] sm:$0xff]
        %v2142 = vld [vmem:[%s2120 + $0xf8] sm:$0xff]
        %v2143 = vld [vmem:[%s2120 + $0x108] sm:$0xff]
        %v2144 = vld [vmem:[%s2120 + $0x110] sm:$0xff]
        %v2145 = vld [vmem:[%s2120 + $0x120] sm:$0xff]
        %v2146 = vld [vmem:[%s2120 + $0x128] sm:$0xff]
        %v2147 = vld [vmem:[%s2120 + $0x138] sm:$0xff]
        %v2148 = vld [vmem:[%s2120 + $0x140] sm:$0xff]
        %v2149 = vld [vmem:[%s2120 + $0x150] sm:$0xff]
        %v2150 = vld [vmem:[%s2120 + $0x158] sm:$0xff]
        %v2151 = vld [vmem:[%s2120 + $0x168] sm:$0xff]
        %v2152 = vld [vmem:[%s2120 + $0x170] sm:$0xff]
        %v2153 = vpack.c.bf16 %v2122, %v2121
        %v2154 = vpack.c.bf16 %v2124, %v2123
        %v2155 = vpack.c.bf16 %v2126, %v2125
        %v2156 = vpack.c.bf16 %v2128, %v2127
        %v2157 = vpack.c.bf16 %v2130, %v2129
        %v2158 = vpack.c.bf16 %v2132, %v2131
        %v2159 = vpack.c.bf16 %v2134, %v2133
        %v2160 = vpack.c.bf16 %v2136, %v2135
        %v2161 = vpack.c.bf16 %v2138, %v2137
        %v2162 = vpack.c.bf16 %v2140, %v2139
        %v2163 = vpack.c.bf16 %v2142, %v2141
        %v2164 = vpack.c.bf16 %v2144, %v2143
        %v2165 = vpack.c.bf16 %v2146, %v2145
        %v2166 = vpack.c.bf16 %v2148, %v2147
        %v2167 = vpack.c.bf16 %v2150, %v2149
        %v2168 = vpack.c.bf16 %v2152, %v2151
        %s2169 = scalar_lea.vmem %s1, 192
        %v2170 = vld [vmem:[%s2169] sm:$0xf]
        %v2171 = vld [vmem:[%s2169 + $0x4] sm:$0xf]
        %v2172 = vld [vmem:[%s2169 + $0x8] sm:$0xf]
        %v2173 = vld [vmem:[%s2169 + $0xc] sm:$0xf]
        %v2174 = vld [vmem:[%s2169 + $0x10] sm:$0xf]
        %v2175 = vld [vmem:[%s2169 + $0x14] sm:$0xf]
        %v2176 = vld [vmem:[%s2169 + $0x18] sm:$0xf]
        %v2177 = vld [vmem:[%s2169 + $0x1c] sm:$0xf]
        %v2186 = vunpack.c.l.b16 %v2170
        %v2187 = vunpack.c.l.b16 %v2171
        %v2188 = vunpack.c.l.b16 %v2172
        %v2189 = vunpack.c.l.b16 %v2173
        %v2190 = vunpack.c.l.b16 %v2174
        %v2191 = vunpack.c.l.b16 %v2175
        %v2192 = vunpack.c.l.b16 %v2176
        %v2193 = vunpack.c.l.b16 %v2177
        %v2194 = vpack.c.b16 %v2187, %v2186
        %v2195 = vpack.c.b16 %v2189, %v2188
        %v2196 = vpack.c.b16 %v2191, %v2190
        %v2197 = vpack.c.b16 %v2193, %v2192
        %v2203 = vsel %vm388, %v2153, 0
        %v2206 = vsel %vm388, %v2154, 0
        %v2209 = vsel %vm388, %v2155, 0
        %v2212 = vsel %vm388, %v2156, 0
        %v2215 = vsel %vm388, %v2157, 0
        %v2218 = vsel %vm388, %v2158, 0
        %v2221 = vsel %vm388, %v2159, 0
        %v2224 = vsel %vm388, %v2160, 0
        %v2227 = vsel %vm388, %v2161, 0
        %v2230 = vsel %vm388, %v2162, 0
        %v2233 = vsel %vm388, %v2163, 0
        %v2236 = vsel %vm388, %v2164, 0
        %v2239 = vsel %vm388, %v2165, 0
        %v2242 = vsel %vm388, %v2166, 0
        %v2245 = vsel %vm388, %v2167, 0
        %v2248 = vsel %vm388, %v2168, 0
        %2250 = vmatprep.subr.bf16.mxu0 0
        %2251 = vmatpush1.bf16.msra.mxu0 %v2194
        %2252 = vmatprep.subr.bf16.mxu0 0
        %2253 = vmatpush1.bf16.msra.mxu0 %v2195
        %2254 = vmatprep.subr.bf16.mxu0 0
        %2255 = vmatpush1.bf16.msra.mxu0 %v2196
        %2256 = vmatprep.subr.bf16.mxu0 0
        %2257 = vmatpush1.bf16.msra.mxu0 %v2197
        %2258 = vmatprep.subr.bf16.mxu0 0
        %2259 = vmatpush1.bf16.msra.mxu0 0
        %2260 = vmatprep.subr.bf16.mxu0 0
        %2261 = vmatpush1.bf16.msra.mxu0 0
        %2262 = vmatprep.subr.bf16.mxu0 0
        %2263 = vmatpush1.bf16.msra.mxu0 0
        %2264 = vmatprep.subr.bf16.mxu0 0
        %2265 = vmatpush1.bf16.msra.mxu0 0
        %2266 = vmatprep.subr.bf16.mxu0 0
        %2267 = vmatpush1.bf16.msra.mxu0 0
        %2268 = vmatprep.subr.bf16.mxu0 0
        %2269 = vmatpush1.bf16.msra.mxu0 0
        %2270 = vmatprep.subr.bf16.mxu0 0
        %2271 = vmatpush1.bf16.msra.mxu0 0
        %2272 = vmatprep.subr.bf16.mxu0 0
        %2273 = vmatpush1.bf16.msra.mxu0 0
        %2274 = vmatprep.subr.bf16.mxu0 0
        %2275 = vmatpush1.bf16.msra.mxu0 0
        %2276 = vmatprep.subr.bf16.mxu0 0
        %2277 = vmatpush1.bf16.msra.mxu0 0
        %2278 = vmatprep.subr.bf16.mxu0 0
        %2279 = vmatpush1.bf16.msra.mxu0 0
        %2280 = vmatprep.subr.bf16.mxu0 0
        %2281 = vmatpush1.bf16.msra.mxu0 0
        %2282 = vmatprep.mubr.bf16.mxu0 0
        %2283 = vmatmul.mubr.bf16.gmra.mrb[0].mxu0 %v2203
        %v2284 = vpop.f32.mrb[0].mxu0
        %v2285 = vadd.f32 0.0, %v2284
        %v2286 = vpop.f32.mrb[0].mxu0
        %v2287 = vpop.f32.mrb[0].mxu0
        %v2288 = vadd.f32 0.0, %v2287
        %v2289 = vpop.f32.mrb[0].mxu0
        %2290 = vmatprep.mubr.bf16.mxu0 0
        %2291 = vmatmul.mubr.bf16.gmra.mrb[0].mxu0 %v2206
        %v2292 = vpop.f32.mrb[0].mxu0
        %v2293 = vadd.f32 0.0, %v2292
        %v2294 = vpop.f32.mrb[0].mxu0
        %v2295 = vpop.f32.mrb[0].mxu0
        %v2296 = vadd.f32 0.0, %v2295
        %v2297 = vpop.f32.mrb[0].mxu0
        %2298 = vmatprep.mubr.bf16.mxu0 0
        %2299 = vmatmul.mubr.bf16.gmra.mrb[0].mxu0 %v2209
        %v2300 = vpop.f32.mrb[0].mxu0
        %v2301 = vadd.f32 0.0, %v2300
        %v2302 = vpop.f32.mrb[0].mxu0
        %v2303 = vpop.f32.mrb[0].mxu0
        %v2304 = vadd.f32 0.0, %v2303
        %v2305 = vpop.f32.mrb[0].mxu0
        %2306 = vmatprep.mubr.bf16.mxu0 0
        %2307 = vmatmul.mubr.bf16.gmra.mrb[0].mxu0 %v2212
        %v2308 = vpop.f32.mrb[0].mxu0
        %v2309 = vadd.f32 0.0, %v2308
        %v2310 = vpop.f32.mrb[0].mxu0
        %v2311 = vpop.f32.mrb[0].mxu0
        %v2312 = vadd.f32 0.0, %v2311
        %v2313 = vpop.f32.mrb[0].mxu0
        %2314 = vmatprep.mubr.bf16.mxu0 0
        %2315 = vmatmul.mubr.bf16.gmra.mrb[0].mxu0 %v2215
        %v2316 = vpop.f32.mrb[0].mxu0
        %v2317 = vadd.f32 0.0, %v2316
        %v2318 = vpop.f32.mrb[0].mxu0
        %v2319 = vpop.f32.mrb[0].mxu0
        %v2320 = vadd.f32 0.0, %v2319
        %v2321 = vpop.f32.mrb[0].mxu0
        %2322 = vmatprep.mubr.bf16.mxu0 0
        %2323 = vmatmul.mubr.bf16.gmra.mrb[0].mxu0 %v2218
        %v2324 = vpop.f32.mrb[0].mxu0
        %v2325 = vadd.f32 0.0, %v2324
        %v2326 = vpop.f32.mrb[0].mxu0
        %v2327 = vpop.f32.mrb[0].mxu0
        %v2328 = vadd.f32 0.0, %v2327
        %v2329 = vpop.f32.mrb[0].mxu0
        %2330 = vmatprep.mubr.bf16.mxu0 0
        %2331 = vmatmul.mubr.bf16.gmra.mrb[0].mxu0 %v2221
        %v2332 = vpop.f32.mrb[0].mxu0
        %v2333 = vadd.f32 0.0, %v2332
        %v2334 = vpop.f32.mrb[0].mxu0
        %v2335 = vpop.f32.mrb[0].mxu0
        %v2336 = vadd.f32 0.0, %v2335
        %v2337 = vpop.f32.mrb[0].mxu0
        %2338 = vmatprep.mubr.bf16.mxu0 0
        %2339 = vmatmul.mubr.bf16.gmra.mrb[0].mxu0 %v2224
        %v2340 = vpop.f32.mrb[0].mxu0
        %v2341 = vadd.f32 0.0, %v2340
        %v2342 = vpop.f32.mrb[0].mxu0
        %v2343 = vpop.f32.mrb[0].mxu0
        %v2344 = vadd.f32 0.0, %v2343
        %v2345 = vpop.f32.mrb[0].mxu0
        %2346 = vmatprep.mubr.bf16.mxu0 0
        %2347 = vmatmul.mubr.bf16.gmra.mrb[0].mxu0 %v2227
        %v2348 = vpop.f32.mrb[0].mxu0
        %v2349 = vadd.f32 0.0, %v2348
        %v2350 = vpop.f32.mrb[0].mxu0
        %v2351 = vpop.f32.mrb[0].mxu0
        %v2352 = vadd.f32 0.0, %v2351
        %v2353 = vpop.f32.mrb[0].mxu0
        %2354 = vmatprep.mubr.bf16.mxu0 0
        %2355 = vmatmul.mubr.bf16.gmra.mrb[0].mxu0 %v2230
        %v2356 = vpop.f32.mrb[0].mxu0
        %v2357 = vadd.f32 0.0, %v2356
        %v2358 = vpop.f32.mrb[0].mxu0
        %v2359 = vpop.f32.mrb[0].mxu0
        %v2360 = vadd.f32 0.0, %v2359
        %v2361 = vpop.f32.mrb[0].mxu0
        %2362 = vmatprep.mubr.bf16.mxu0 0
        %2363 = vmatmul.mubr.bf16.gmra.mrb[0].mxu0 %v2233
        %v2364 = vpop.f32.mrb[0].mxu0
        %v2365 = vadd.f32 0.0, %v2364
        %v2366 = vpop.f32.mrb[0].mxu0
        %v2367 = vpop.f32.mrb[0].mxu0
        %v2368 = vadd.f32 0.0, %v2367
        %v2369 = vpop.f32.mrb[0].mxu0
        %2370 = vmatprep.mubr.bf16.mxu0 0
        %2371 = vmatmul.mubr.bf16.gmra.mrb[0].mxu0 %v2236
        %v2372 = vpop.f32.mrb[0].mxu0
        %v2373 = vadd.f32 0.0, %v2372
        %v2374 = vpop.f32.mrb[0].mxu0
        %v2375 = vpop.f32.mrb[0].mxu0
        %v2376 = vadd.f32 0.0, %v2375
        %v2377 = vpop.f32.mrb[0].mxu0
        %2378 = vmatprep.mubr.bf16.mxu0 0
        %2379 = vmatmul.mubr.bf16.gmra.mrb[0].mxu0 %v2239
        %v2380 = vpop.f32.mrb[0].mxu0
        %v2381 = vadd.f32 0.0, %v2380
        %v2382 = vpop.f32.mrb[0].mxu0
        %v2383 = vpop.f32.mrb[0].mxu0
        %v2384 = vadd.f32 0.0, %v2383
        %v2385 = vpop.f32.mrb[0].mxu0
        %2386 = vmatprep.mubr.bf16.mxu0 0
        %2387 = vmatmul.mubr.bf16.gmra.mrb[0].mxu0 %v2242
        %v2388 = vpop.f32.mrb[0].mxu0
        %v2389 = vadd.f32 0.0, %v2388
        %v2390 = vpop.f32.mrb[0].mxu0
        %v2391 = vpop.f32.mrb[0].mxu0
        %v2392 = vadd.f32 0.0, %v2391
        %v2393 = vpop.f32.mrb[0].mxu0
        %2394 = vmatprep.mubr.bf16.mxu0 0
        %2395 = vmatmul.mubr.bf16.gmra.mrb[0].mxu0 %v2245
        %v2396 = vpop.f32.mrb[0].mxu0
        %v2397 = vadd.f32 0.0, %v2396
        %v2398 = vpop.f32.mrb[0].mxu0
        %v2399 = vpop.f32.mrb[0].mxu0
        %v2400 = vadd.f32 0.0, %v2399
        %v2401 = vpop.f32.mrb[0].mxu0
        %2402 = vmatprep.mubr.bf16.mxu0 0
        %2403 = vmatmul.mubr.bf16.gmra.mrb[0].mxu0 %v2248
        %v2404 = vpop.f32.mrb[0].mxu0
        %v2405 = vadd.f32 0.0, %v2404
        %v2406 = vpop.f32.mrb[0].mxu0
        %v2407 = vpop.f32.mrb[0].mxu0
        %v2408 = vadd.f32 0.0, %v2407
        %v2409 = vpop.f32.mrb[0].mxu0
        %2410 = vdwg.mxu0
        %v2411 = vadd.f32 %v2088, %v2285
        %v2412 = vadd.f32 %v2089, %v2288
        %v2413 = vadd.f32 %v2090, %v2293
        %v2414 = vadd.f32 %v2091, %v2296
        %v2415 = vadd.f32 %v2092, %v2301
        %v2416 = vadd.f32 %v2093, %v2304
        %v2417 = vadd.f32 %v2094, %v2309
        %v2418 = vadd.f32 %v2095, %v2312
        %v2419 = vadd.f32 %v2096, %v2317
        %v2420 = vadd.f32 %v2097, %v2320
        %v2421 = vadd.f32 %v2098, %v2325
        %v2422 = vadd.f32 %v2099, %v2328
        %v2423 = vadd.f32 %v2100, %v2333
        %v2424 = vadd.f32 %v2101, %v2336
        %v2425 = vadd.f32 %v2102, %v2341
        %v2426 = vadd.f32 %v2103, %v2344
        %v2427 = vadd.f32 %v2104, %v2349
        %v2428 = vadd.f32 %v2105, %v2352
        %v2429 = vadd.f32 %v2106, %v2357
        %v2430 = vadd.f32 %v2107, %v2360
        %v2431 = vadd.f32 %v2108, %v2365
        %v2432 = vadd.f32 %v2109, %v2368
        %v2433 = vadd.f32 %v2110, %v2373
        %v2434 = vadd.f32 %v2111, %v2376
        %v2435 = vadd.f32 %v2112, %v2381
        %v2436 = vadd.f32 %v2113, %v2384
        %v2437 = vadd.f32 %v2114, %v2389
        %v2438 = vadd.f32 %v2115, %v2392
        %v2439 = vadd.f32 %v2116, %v2397
        %v2440 = vadd.f32 %v2117, %v2400
        %v2441 = vadd.f32 %v2118, %v2405
        %v2442 = vadd.f32 %v2119, %v2408
        %v2443 = vld [vmem:[%s2120 + $0x1] sm:$0xff]
        %v2444 = vld [vmem:[%s2120 + $0x9] sm:$0xff]
        %v2445 = vld [vmem:[%s2120 + $0x19] sm:$0xff]
        %v2446 = vld [vmem:[%s2120 + $0x21] sm:$0xff]
        %v2447 = vld [vmem:[%s2120 + $0x31] sm:$0xff]
        %v2448 = vld [vmem:[%s2120 + $0x39] sm:$0xff]
        %v2449 = vld [vmem:[%s2120 + $0x49] sm:$0xff]
        %v2450 = vld [vmem:[%s2120 + $0x51] sm:$0xff]
        %v2451 = vld [vmem:[%s2120 + $0x61] sm:$0xff]
        %v2452 = vld [vmem:[%s2120 + $0x69] sm:$0xff]
        %v2453 = vld [vmem:[%s2120 + $0x79] sm:$0xff]
        %v2454 = vld [vmem:[%s2120 + $0x81] sm:$0xff]
        %v2455 = vld [vmem:[%s2120 + $0x91] sm:$0xff]
        %v2456 = vld [vmem:[%s2120 + $0x99] sm:$0xff]
        %v2457 = vld [vmem:[%s2120 + $0xa9] sm:$0xff]
        %v2458 = vld [vmem:[%s2120 + $0xb1] sm:$0xff]
        %v2459 = vld [vmem:[%s2120 + $0xc1] sm:$0xff]
        %v2460 = vld [vmem:[%s2120 + $0xc9] sm:$0xff]
        %v2461 = vld [vmem:[%s2120 + $0xd9] sm:$0xff]
        %v2462 = vld [vmem:[%s2120 + $0xe1] sm:$0xff]
        %v2463 = vld [vmem:[%s2120 + $0xf1] sm:$0xff]
        %v2464 = vld [vmem:[%s2120 + $0xf9] sm:$0xff]
        %v2465 = vld [vmem:[%s2120 + $0x109] sm:$0xff]
        %v2466 = vld [vmem:[%s2120 + $0x111] sm:$0xff]
        %v2467 = vld [vmem:[%s2120 + $0x121] sm:$0xff]
        %v2468 = vld [vmem:[%s2120 + $0x129] sm:$0xff]
        %v2469 = vld [vmem:[%s2120 + $0x139] sm:$0xff]
        %v2470 = vld [vmem:[%s2120 + $0x141] sm:$0xff]
        %v2471 = vld [vmem:[%s2120 + $0x151] sm:$0xff]
        %v2472 = vld [vmem:[%s2120 + $0x159] sm:$0xff]
        %v2473 = vld [vmem:[%s2120 + $0x169] sm:$0xff]
        %v2474 = vld [vmem:[%s2120 + $0x171] sm:$0xff]
        %v2475 = vpack.c.bf16 %v2444, %v2443
        %v2476 = vpack.c.bf16 %v2446, %v2445
        %v2477 = vpack.c.bf16 %v2448, %v2447
        %v2478 = vpack.c.bf16 %v2450, %v2449
        %v2479 = vpack.c.bf16 %v2452, %v2451
        %v2480 = vpack.c.bf16 %v2454, %v2453
        %v2481 = vpack.c.bf16 %v2456, %v2455
        %v2482 = vpack.c.bf16 %v2458, %v2457
        %v2483 = vpack.c.bf16 %v2460, %v2459
        %v2484 = vpack.c.bf16 %v2462, %v2461
        %v2485 = vpack.c.bf16 %v2464, %v2463
        %v2486 = vpack.c.bf16 %v2466, %v2465
        %v2487 = vpack.c.bf16 %v2468, %v2467
        %v2488 = vpack.c.bf16 %v2470, %v2469
        %v2489 = vpack.c.bf16 %v2472, %v2471
        %v2490 = vpack.c.bf16 %v2474, %v2473
        %s2491 = scalar_lea.vmem %s1, 224
        %v2492 = vld [vmem:[%s2491] sm:$0xf]
        %v2493 = vld [vmem:[%s2491 + $0x4] sm:$0xf]
        %v2494 = vld [vmem:[%s2491 + $0x8] sm:$0xf]
        %v2495 = vld [vmem:[%s2491 + $0xc] sm:$0xf]
        %v2496 = vld [vmem:[%s2491 + $0x10] sm:$0xf]
        %v2497 = vld [vmem:[%s2491 + $0x14] sm:$0xf]
        %v2498 = vld [vmem:[%s2491 + $0x18] sm:$0xf]
        %v2499 = vld [vmem:[%s2491 + $0x1c] sm:$0xf]
        %v2508 = vunpack.c.l.b16 %v2492
        %v2509 = vunpack.c.l.b16 %v2493
        %v2510 = vunpack.c.l.b16 %v2494
        %v2511 = vunpack.c.l.b16 %v2495
        %v2512 = vunpack.c.l.b16 %v2496
        %v2513 = vunpack.c.l.b16 %v2497
        %v2514 = vunpack.c.l.b16 %v2498
        %v2515 = vunpack.c.l.b16 %v2499
        %v2516 = vpack.c.b16 %v2509, %v2508
        %v2517 = vpack.c.b16 %v2511, %v2510
        %v2518 = vpack.c.b16 %v2513, %v2512
        %v2519 = vpack.c.b16 %v2515, %v2514
        %v2525 = vsel %vm388, %v2475, 0
        %v2528 = vsel %vm388, %v2476, 0
        %v2531 = vsel %vm388, %v2477, 0
        %v2534 = vsel %vm388, %v2478, 0
        %v2537 = vsel %vm388, %v2479, 0
        %v2540 = vsel %vm388, %v2480, 0
        %v2543 = vsel %vm388, %v2481, 0
        %v2546 = vsel %vm388, %v2482, 0
        %v2549 = vsel %vm388, %v2483, 0
        %v2552 = vsel %vm388, %v2484, 0
        %v2555 = vsel %vm388, %v2485, 0
        %v2558 = vsel %vm388, %v2486, 0
        %v2561 = vsel %vm388, %v2487, 0
        %v2564 = vsel %vm388, %v2488, 0
        %v2567 = vsel %vm388, %v2489, 0
        %v2570 = vsel %vm388, %v2490, 0
        %2572 = vmatprep.subr.bf16.mxu0 0
        %2573 = vmatpush1.bf16.msra.mxu0 %v2516
        %2574 = vmatprep.subr.bf16.mxu0 0
        %2575 = vmatpush1.bf16.msra.mxu0 %v2517
        %2576 = vmatprep.subr.bf16.mxu0 0
        %2577 = vmatpush1.bf16.msra.mxu0 %v2518
        %2578 = vmatprep.subr.bf16.mxu0 0
        %2579 = vmatpush1.bf16.msra.mxu0 %v2519
        %2580 = vmatprep.subr.bf16.mxu0 0
        %2581 = vmatpush1.bf16.msra.mxu0 0
        %2582 = vmatprep.subr.bf16.mxu0 0
        %2583 = vmatpush1.bf16.msra.mxu0 0
        %2584 = vmatprep.subr.bf16.mxu0 0
        %2585 = vmatpush1.bf16.msra.mxu0 0
        %2586 = vmatprep.subr.bf16.mxu0 0
        %2587 = vmatpush1.bf16.msra.mxu0 0
        %2588 = vmatprep.subr.bf16.mxu0 0
        %2589 = vmatpush1.bf16.msra.mxu0 0
        %2590 = vmatprep.subr.bf16.mxu0 0
        %2591 = vmatpush1.bf16.msra.mxu0 0
        %2592 = vmatprep.subr.bf16.mxu0 0
        %2593 = vmatpush1.bf16.msra.mxu0 0
        %2594 = vmatprep.subr.bf16.mxu0 0
        %2595 = vmatpush1.bf16.msra.mxu0 0
        %2596 = vmatprep.subr.bf16.mxu0 0
        %2597 = vmatpush1.bf16.msra.mxu0 0
        %2598 = vmatprep.subr.bf16.mxu0 0
        %2599 = vmatpush1.bf16.msra.mxu0 0
        %2600 = vmatprep.subr.bf16.mxu0 0
        %2601 = vmatpush1.bf16.msra.mxu0 0
        %2602 = vmatprep.subr.bf16.mxu0 0
        %2603 = vmatpush1.bf16.msra.mxu0 0
        %2604 = vmatprep.mubr.bf16.mxu0 0
        %2605 = vmatmul.mubr.bf16.gmra.mrb[0].mxu0 %v2525
        %v2606 = vpop.f32.mrb[0].mxu0
        %v2607 = vadd.f32 0.0, %v2606
        %v2608 = vpop.f32.mrb[0].mxu0
        %v2609 = vpop.f32.mrb[0].mxu0
        %v2610 = vadd.f32 0.0, %v2609
        %v2611 = vpop.f32.mrb[0].mxu0
        %2612 = vmatprep.mubr.bf16.mxu0 0
        %2613 = vmatmul.mubr.bf16.gmra.mrb[0].mxu0 %v2528
        %v2614 = vpop.f32.mrb[0].mxu0
        %v2615 = vadd.f32 0.0, %v2614
        %v2616 = vpop.f32.mrb[0].mxu0
        %v2617 = vpop.f32.mrb[0].mxu0
        %v2618 = vadd.f32 0.0, %v2617
        %v2619 = vpop.f32.mrb[0].mxu0
        %2620 = vmatprep.mubr.bf16.mxu0 0
        %2621 = vmatmul.mubr.bf16.gmra.mrb[0].mxu0 %v2531
        %v2622 = vpop.f32.mrb[0].mxu0
        %v2623 = vadd.f32 0.0, %v2622
        %v2624 = vpop.f32.mrb[0].mxu0
        %v2625 = vpop.f32.mrb[0].mxu0
        %v2626 = vadd.f32 0.0, %v2625
        %v2627 = vpop.f32.mrb[0].mxu0
        %2628 = vmatprep.mubr.bf16.mxu0 0
        %2629 = vmatmul.mubr.bf16.gmra.mrb[0].mxu0 %v2534
        %v2630 = vpop.f32.mrb[0].mxu0
        %v2631 = vadd.f32 0.0, %v2630
        %v2632 = vpop.f32.mrb[0].mxu0
        %v2633 = vpop.f32.mrb[0].mxu0
        %v2634 = vadd.f32 0.0, %v2633
        %v2635 = vpop.f32.mrb[0].mxu0
        %2636 = vmatprep.mubr.bf16.mxu0 0
        %2637 = vmatmul.mubr.bf16.gmra.mrb[0].mxu0 %v2537
        %v2638 = vpop.f32.mrb[0].mxu0
        %v2639 = vadd.f32 0.0, %v2638
        %v2640 = vpop.f32.mrb[0].mxu0
        %v2641 = vpop.f32.mrb[0].mxu0
        %v2642 = vadd.f32 0.0, %v2641
        %v2643 = vpop.f32.mrb[0].mxu0
        %2644 = vmatprep.mubr.bf16.mxu0 0
        %2645 = vmatmul.mubr.bf16.gmra.mrb[0].mxu0 %v2540
        %v2646 = vpop.f32.mrb[0].mxu0
        %v2647 = vadd.f32 0.0, %v2646
        %v2648 = vpop.f32.mrb[0].mxu0
        %v2649 = vpop.f32.mrb[0].mxu0
        %v2650 = vadd.f32 0.0, %v2649
        %v2651 = vpop.f32.mrb[0].mxu0
        %2652 = vmatprep.mubr.bf16.mxu0 0
        %2653 = vmatmul.mubr.bf16.gmra.mrb[0].mxu0 %v2543
        %v2654 = vpop.f32.mrb[0].mxu0
        %v2655 = vadd.f32 0.0, %v2654
        %v2656 = vpop.f32.mrb[0].mxu0
        %v2657 = vpop.f32.mrb[0].mxu0
        %v2658 = vadd.f32 0.0, %v2657
        %v2659 = vpop.f32.mrb[0].mxu0
        %2660 = vmatprep.mubr.bf16.mxu0 0
        %2661 = vmatmul.mubr.bf16.gmra.mrb[0].mxu0 %v2546
        %v2662 = vpop.f32.mrb[0].mxu0
        %v2663 = vadd.f32 0.0, %v2662
        %v2664 = vpop.f32.mrb[0].mxu0
        %v2665 = vpop.f32.mrb[0].mxu0
        %v2666 = vadd.f32 0.0, %v2665
        %v2667 = vpop.f32.mrb[0].mxu0
        %2668 = vmatprep.mubr.bf16.mxu0 0
        %2669 = vmatmul.mubr.bf16.gmra.mrb[0].mxu0 %v2549
        %v2670 = vpop.f32.mrb[0].mxu0
        %v2671 = vadd.f32 0.0, %v2670
        %v2672 = vpop.f32.mrb[0].mxu0
        %v2673 = vpop.f32.mrb[0].mxu0
        %v2674 = vadd.f32 0.0, %v2673
        %v2675 = vpop.f32.mrb[0].mxu0
        %2676 = vmatprep.mubr.bf16.mxu0 0
        %2677 = vmatmul.mubr.bf16.gmra.mrb[0].mxu0 %v2552
        %v2678 = vpop.f32.mrb[0].mxu0
        %v2679 = vadd.f32 0.0, %v2678
        %v2680 = vpop.f32.mrb[0].mxu0
        %v2681 = vpop.f32.mrb[0].mxu0
        %v2682 = vadd.f32 0.0, %v2681
        %v2683 = vpop.f32.mrb[0].mxu0
        %2684 = vmatprep.mubr.bf16.mxu0 0
        %2685 = vmatmul.mubr.bf16.gmra.mrb[0].mxu0 %v2555
        %v2686 = vpop.f32.mrb[0].mxu0
        %v2687 = vadd.f32 0.0, %v2686
        %v2688 = vpop.f32.mrb[0].mxu0
        %v2689 = vpop.f32.mrb[0].mxu0
        %v2690 = vadd.f32 0.0, %v2689
        %v2691 = vpop.f32.mrb[0].mxu0
        %2692 = vmatprep.mubr.bf16.mxu0 0
        %2693 = vmatmul.mubr.bf16.gmra.mrb[0].mxu0 %v2558
        %v2694 = vpop.f32.mrb[0].mxu0
        %v2695 = vadd.f32 0.0, %v2694
        %v2696 = vpop.f32.mrb[0].mxu0
        %v2697 = vpop.f32.mrb[0].mxu0
        %v2698 = vadd.f32 0.0, %v2697
        %v2699 = vpop.f32.mrb[0].mxu0
        %2700 = vmatprep.mubr.bf16.mxu0 0
        %2701 = vmatmul.mubr.bf16.gmra.mrb[0].mxu0 %v2561
        %v2702 = vpop.f32.mrb[0].mxu0
        %v2703 = vadd.f32 0.0, %v2702
        %v2704 = vpop.f32.mrb[0].mxu0
        %v2705 = vpop.f32.mrb[0].mxu0
        %v2706 = vadd.f32 0.0, %v2705
        %v2707 = vpop.f32.mrb[0].mxu0
        %2708 = vmatprep.mubr.bf16.mxu0 0
        %2709 = vmatmul.mubr.bf16.gmra.mrb[0].mxu0 %v2564
        %v2710 = vpop.f32.mrb[0].mxu0
        %v2711 = vadd.f32 0.0, %v2710
        %v2712 = vpop.f32.mrb[0].mxu0
        %v2713 = vpop.f32.mrb[0].mxu0
        %v2714 = vadd.f32 0.0, %v2713
        %v2715 = vpop.f32.mrb[0].mxu0
        %2716 = vmatprep.mubr.bf16.mxu0 0
        %2717 = vmatmul.mubr.bf16.gmra.mrb[0].mxu0 %v2567
        %v2718 = vpop.f32.mrb[0].mxu0
        %v2719 = vadd.f32 0.0, %v2718
        %v2720 = vpop.f32.mrb[0].mxu0
        %v2721 = vpop.f32.mrb[0].mxu0
        %v2722 = vadd.f32 0.0, %v2721
        %v2723 = vpop.f32.mrb[0].mxu0
        %2724 = vmatprep.mubr.bf16.mxu0 0
        %2725 = vmatmul.mubr.bf16.gmra.mrb[0].mxu0 %v2570
        %v2726 = vpop.f32.mrb[0].mxu0
        %v2727 = vadd.f32 0.0, %v2726
        %v2728 = vpop.f32.mrb[0].mxu0
        %v2729 = vpop.f32.mrb[0].mxu0
        %v2730 = vadd.f32 0.0, %v2729
        %v2731 = vpop.f32.mrb[0].mxu0
        %2732 = vdwg.mxu0
        %v2733 = vadd.f32 %v2411, %v2607
        %v2734 = vadd.f32 %v2412, %v2610
        %v2735 = vadd.f32 %v2413, %v2615
        %v2736 = vadd.f32 %v2414, %v2618
        %v2737 = vadd.f32 %v2415, %v2623
        %v2738 = vadd.f32 %v2416, %v2626
        %v2739 = vadd.f32 %v2417, %v2631
        %v2740 = vadd.f32 %v2418, %v2634
        %v2741 = vadd.f32 %v2419, %v2639
        %v2742 = vadd.f32 %v2420, %v2642
        %v2743 = vadd.f32 %v2421, %v2647
        %v2744 = vadd.f32 %v2422, %v2650
        %v2745 = vadd.f32 %v2423, %v2655
        %v2746 = vadd.f32 %v2424, %v2658
        %v2747 = vadd.f32 %v2425, %v2663
        %v2748 = vadd.f32 %v2426, %v2666
        %v2749 = vadd.f32 %v2427, %v2671
        %v2750 = vadd.f32 %v2428, %v2674
        %v2751 = vadd.f32 %v2429, %v2679
        %v2752 = vadd.f32 %v2430, %v2682
        %v2753 = vadd.f32 %v2431, %v2687
        %v2754 = vadd.f32 %v2432, %v2690
        %v2755 = vadd.f32 %v2433, %v2695
        %v2756 = vadd.f32 %v2434, %v2698
        %v2757 = vadd.f32 %v2435, %v2703
        %v2758 = vadd.f32 %v2436, %v2706
        %v2759 = vadd.f32 %v2437, %v2711
        %v2760 = vadd.f32 %v2438, %v2714
        %v2761 = vadd.f32 %v2439, %v2719
        %v2762 = vadd.f32 %v2440, %v2722
        %v2763 = vadd.f32 %v2441, %v2727
        %v2764 = vadd.f32 %v2442, %v2730
        %v2765 = vld [vmem:[%s2120 + $0x2] sm:$0xff]
        %v2766 = vld [vmem:[%s2120 + $0xa] sm:$0xff]
        %v2767 = vld [vmem:[%s2120 + $0x1a] sm:$0xff]
        %v2768 = vld [vmem:[%s2120 + $0x22] sm:$0xff]
        %v2769 = vld [vmem:[%s2120 + $0x32] sm:$0xff]
        %v2770 = vld [vmem:[%s2120 + $0x3a] sm:$0xff]
        %v2771 = vld [vmem:[%s2120 + $0x4a] sm:$0xff]
        %v2772 = vld [vmem:[%s2120 + $0x52] sm:$0xff]
        %v2773 = vld [vmem:[%s2120 + $0x62] sm:$0xff]
        %v2774 = vld [vmem:[%s2120 + $0x6a] sm:$0xff]
        %v2775 = vld [vmem:[%s2120 + $0x7a] sm:$0xff]
        %v2776 = vld [vmem:[%s2120 + $0x82] sm:$0xff]
        %v2777 = vld [vmem:[%s2120 + $0x92] sm:$0xff]
        %v2778 = vld [vmem:[%s2120 + $0x9a] sm:$0xff]
        %v2779 = vld [vmem:[%s2120 + $0xaa] sm:$0xff]
        %v2780 = vld [vmem:[%s2120 + $0xb2] sm:$0xff]
        %v2781 = vld [vmem:[%s2120 + $0xc2] sm:$0xff]
        %v2782 = vld [vmem:[%s2120 + $0xca] sm:$0xff]
        %v2783 = vld [vmem:[%s2120 + $0xda] sm:$0xff]
        %v2784 = vld [vmem:[%s2120 + $0xe2] sm:$0xff]
        %v2785 = vld [vmem:[%s2120 + $0xf2] sm:$0xff]
        %v2786 = vld [vmem:[%s2120 + $0xfa] sm:$0xff]
        %v2787 = vld [vmem:[%s2120 + $0x10a] sm:$0xff]
        %v2788 = vld [vmem:[%s2120 + $0x112] sm:$0xff]
        %v2789 = vld [vmem:[%s2120 + $0x122] sm:$0xff]
        %v2790 = vld [vmem:[%s2120 + $0x12a] sm:$0xff]
        %v2791 = vld [vmem:[%s2120 + $0x13a] sm:$0xff]
        %v2792 = vld [vmem:[%s2120 + $0x142] sm:$0xff]
        %v2793 = vld [vmem:[%s2120 + $0x152] sm:$0xff]
        %v2794 = vld [vmem:[%s2120 + $0x15a] sm:$0xff]
        %v2795 = vld [vmem:[%s2120 + $0x16a] sm:$0xff]
        %v2796 = vld [vmem:[%s2120 + $0x172] sm:$0xff]
        %v2797 = vpack.c.bf16 %v2766, %v2765
        %v2798 = vpack.c.bf16 %v2768, %v2767
        %v2799 = vpack.c.bf16 %v2770, %v2769
        %v2800 = vpack.c.bf16 %v2772, %v2771
        %v2801 = vpack.c.bf16 %v2774, %v2773
        %v2802 = vpack.c.bf16 %v2776, %v2775
        %v2803 = vpack.c.bf16 %v2778, %v2777
        %v2804 = vpack.c.bf16 %v2780, %v2779
        %v2805 = vpack.c.bf16 %v2782, %v2781
        %v2806 = vpack.c.bf16 %v2784, %v2783
        %v2807 = vpack.c.bf16 %v2786, %v2785
        %v2808 = vpack.c.bf16 %v2788, %v2787
        %v2809 = vpack.c.bf16 %v2790, %v2789
        %v2810 = vpack.c.bf16 %v2792, %v2791
        %v2811 = vpack.c.bf16 %v2794, %v2793
        %v2812 = vpack.c.bf16 %v2796, %v2795
        %s2813 = scalar_lea.vmem %s1, 256
        %v2814 = vld [vmem:[%s2813] sm:$0xf]
        %v2815 = vld [vmem:[%s2813 + $0x4] sm:$0xf]
        %v2816 = vld [vmem:[%s2813 + $0x8] sm:$0xf]
        %v2817 = vld [vmem:[%s2813 + $0xc] sm:$0xf]
        %v2818 = vld [vmem:[%s2813 + $0x10] sm:$0xf]
        %v2819 = vld [vmem:[%s2813 + $0x14] sm:$0xf]
        %v2820 = vld [vmem:[%s2813 + $0x18] sm:$0xf]
        %v2821 = vld [vmem:[%s2813 + $0x1c] sm:$0xf]
        %v2830 = vunpack.c.l.b16 %v2814
        %v2831 = vunpack.c.l.b16 %v2815
        %v2832 = vunpack.c.l.b16 %v2816
        %v2833 = vunpack.c.l.b16 %v2817
        %v2834 = vunpack.c.l.b16 %v2818
        %v2835 = vunpack.c.l.b16 %v2819
        %v2836 = vunpack.c.l.b16 %v2820
        %v2837 = vunpack.c.l.b16 %v2821
        %v2838 = vpack.c.b16 %v2831, %v2830
        %v2839 = vpack.c.b16 %v2833, %v2832
        %v2840 = vpack.c.b16 %v2835, %v2834
        %v2841 = vpack.c.b16 %v2837, %v2836
        %v2847 = vsel %vm388, %v2797, 0
        %v2850 = vsel %vm388, %v2798, 0
        %v2853 = vsel %vm388, %v2799, 0
        %v2856 = vsel %vm388, %v2800, 0
        %v2859 = vsel %vm388, %v2801, 0
        %v2862 = vsel %vm388, %v2802, 0
        %v2865 = vsel %vm388, %v2803, 0
        %v2868 = vsel %vm388, %v2804, 0
        %v2871 = vsel %vm388, %v2805, 0
        %v2874 = vsel %vm388, %v2806, 0
        %v2877 = vsel %vm388, %v2807, 0
        %v2880 = vsel %vm388, %v2808, 0
        %v2883 = vsel %vm388, %v2809, 0
        %v2886 = vsel %vm388, %v2810, 0
        %v2889 = vsel %vm388, %v2811, 0
        %v2892 = vsel %vm388, %v2812, 0
        %2894 = vmatprep.subr.bf16.mxu0 0
        %2895 = vmatpush1.bf16.msra.mxu0 %v2838
        %2896 = vmatprep.subr.bf16.mxu0 0
        %2897 = vmatpush1.bf16.msra.mxu0 %v2839
        %2898 = vmatprep.subr.bf16.mxu0 0
        %2899 = vmatpush1.bf16.msra.mxu0 %v2840
        %2900 = vmatprep.subr.bf16.mxu0 0
        %2901 = vmatpush1.bf16.msra.mxu0 %v2841
        %2902 = vmatprep.subr.bf16.mxu0 0
        %2903 = vmatpush1.bf16.msra.mxu0 0
        %2904 = vmatprep.subr.bf16.mxu0 0
        %2905 = vmatpush1.bf16.msra.mxu0 0
        %2906 = vmatprep.subr.bf16.mxu0 0
        %2907 = vmatpush1.bf16.msra.mxu0 0
        %2908 = vmatprep.subr.bf16.mxu0 0
        %2909 = vmatpush1.bf16.msra.mxu0 0
        %2910 = vmatprep.subr.bf16.mxu0 0
        %2911 = vmatpush1.bf16.msra.mxu0 0
        %2912 = vmatprep.subr.bf16.mxu0 0
        %2913 = vmatpush1.bf16.msra.mxu0 0
        %2914 = vmatprep.subr.bf16.mxu0 0
        %2915 = vmatpush1.bf16.msra.mxu0 0
        %2916 = vmatprep.subr.bf16.mxu0 0
        %2917 = vmatpush1.bf16.msra.mxu0 0
        %2918 = vmatprep.subr.bf16.mxu0 0
        %2919 = vmatpush1.bf16.msra.mxu0 0
        %2920 = vmatprep.subr.bf16.mxu0 0
        %2921 = vmatpush1.bf16.msra.mxu0 0
        %2922 = vmatprep.subr.bf16.mxu0 0
        %2923 = vmatpush1.bf16.msra.mxu0 0
        %2924 = vmatprep.subr.bf16.mxu0 0
        %2925 = vmatpush1.bf16.msra.mxu0 0
        %2926 = vmatprep.mubr.bf16.mxu0 0
        %2927 = vmatmul.mubr.bf16.gmra.mrb[0].mxu0 %v2847
        %v2928 = vpop.f32.mrb[0].mxu0
        %v2929 = vadd.f32 0.0, %v2928
        %v2930 = vpop.f32.mrb[0].mxu0
        %v2931 = vpop.f32.mrb[0].mxu0
        %v2932 = vadd.f32 0.0, %v2931
        %v2933 = vpop.f32.mrb[0].mxu0
        %2934 = vmatprep.mubr.bf16.mxu0 0
        %2935 = vmatmul.mubr.bf16.gmra.mrb[0].mxu0 %v2850
        %v2936 = vpop.f32.mrb[0].mxu0
        %v2937 = vadd.f32 0.0, %v2936
        %v2938 = vpop.f32.mrb[0].mxu0
        %v2939 = vpop.f32.mrb[0].mxu0
        %v2940 = vadd.f32 0.0, %v2939
        %v2941 = vpop.f32.mrb[0].mxu0
        %2942 = vmatprep.mubr.bf16.mxu0 0
        %2943 = vmatmul.mubr.bf16.gmra.mrb[0].mxu0 %v2853
        %v2944 = vpop.f32.mrb[0].mxu0
        %v2945 = vadd.f32 0.0, %v2944
        %v2946 = vpop.f32.mrb[0].mxu0
        %v2947 = vpop.f32.mrb[0].mxu0
        %v2948 = vadd.f32 0.0, %v2947
        %v2949 = vpop.f32.mrb[0].mxu0
        %2950 = vmatprep.mubr.bf16.mxu0 0
        %2951 = vmatmul.mubr.bf16.gmra.mrb[0].mxu0 %v2856
        %v2952 = vpop.f32.mrb[0].mxu0
        %v2953 = vadd.f32 0.0, %v2952
        %v2954 = vpop.f32.mrb[0].mxu0
        %v2955 = vpop.f32.mrb[0].mxu0
        %v2956 = vadd.f32 0.0, %v2955
        %v2957 = vpop.f32.mrb[0].mxu0
        %2958 = vmatprep.mubr.bf16.mxu0 0
        %2959 = vmatmul.mubr.bf16.gmra.mrb[0].mxu0 %v2859
        %v2960 = vpop.f32.mrb[0].mxu0
        %v2961 = vadd.f32 0.0, %v2960
        %v2962 = vpop.f32.mrb[0].mxu0
        %v2963 = vpop.f32.mrb[0].mxu0
        %v2964 = vadd.f32 0.0, %v2963
        %v2965 = vpop.f32.mrb[0].mxu0
        %2966 = vmatprep.mubr.bf16.mxu0 0
        %2967 = vmatmul.mubr.bf16.gmra.mrb[0].mxu0 %v2862
        %v2968 = vpop.f32.mrb[0].mxu0
        %v2969 = vadd.f32 0.0, %v2968
        %v2970 = vpop.f32.mrb[0].mxu0
        %v2971 = vpop.f32.mrb[0].mxu0
        %v2972 = vadd.f32 0.0, %v2971
        %v2973 = vpop.f32.mrb[0].mxu0
        %2974 = vmatprep.mubr.bf16.mxu0 0
        %2975 = vmatmul.mubr.bf16.gmra.mrb[0].mxu0 %v2865
        %v2976 = vpop.f32.mrb[0].mxu0
        %v2977 = vadd.f32 0.0, %v2976
        %v2978 = vpop.f32.mrb[0].mxu0
        %v2979 = vpop.f32.mrb[0].mxu0
        %v2980 = vadd.f32 0.0, %v2979
        %v2981 = vpop.f32.mrb[0].mxu0
        %2982 = vmatprep.mubr.bf16.mxu0 0
        %2983 = vmatmul.mubr.bf16.gmra.mrb[0].mxu0 %v2868
        %v2984 = vpop.f32.mrb[0].mxu0
        %v2985 = vadd.f32 0.0, %v2984
        %v2986 = vpop.f32.mrb[0].mxu0
        %v2987 = vpop.f32.mrb[0].mxu0
        %v2988 = vadd.f32 0.0, %v2987
        %v2989 = vpop.f32.mrb[0].mxu0
        %2990 = vmatprep.mubr.bf16.mxu0 0
        %2991 = vmatmul.mubr.bf16.gmra.mrb[0].mxu0 %v2871
        %v2992 = vpop.f32.mrb[0].mxu0
        %v2993 = vadd.f32 0.0, %v2992
        %v2994 = vpop.f32.mrb[0].mxu0
        %v2995 = vpop.f32.mrb[0].mxu0
        %v2996 = vadd.f32 0.0, %v2995
        %v2997 = vpop.f32.mrb[0].mxu0
        %2998 = vmatprep.mubr.bf16.mxu0 0
        %2999 = vmatmul.mubr.bf16.gmra.mrb[0].mxu0 %v2874
        %v3000 = vpop.f32.mrb[0].mxu0
        %v3001 = vadd.f32 0.0, %v3000
        %v3002 = vpop.f32.mrb[0].mxu0
        %v3003 = vpop.f32.mrb[0].mxu0
        %v3004 = vadd.f32 0.0, %v3003
        %v3005 = vpop.f32.mrb[0].mxu0
        %3006 = vmatprep.mubr.bf16.mxu0 0
        %3007 = vmatmul.mubr.bf16.gmra.mrb[0].mxu0 %v2877
        %v3008 = vpop.f32.mrb[0].mxu0
        %v3009 = vadd.f32 0.0, %v3008
        %v3010 = vpop.f32.mrb[0].mxu0
        %v3011 = vpop.f32.mrb[0].mxu0
        %v3012 = vadd.f32 0.0, %v3011
        %v3013 = vpop.f32.mrb[0].mxu0
        %3014 = vmatprep.mubr.bf16.mxu0 0
        %3015 = vmatmul.mubr.bf16.gmra.mrb[0].mxu0 %v2880
        %v3016 = vpop.f32.mrb[0].mxu0
        %v3017 = vadd.f32 0.0, %v3016
        %v3018 = vpop.f32.mrb[0].mxu0
        %v3019 = vpop.f32.mrb[0].mxu0
        %v3020 = vadd.f32 0.0, %v3019
        %v3021 = vpop.f32.mrb[0].mxu0
        %3022 = vmatprep.mubr.bf16.mxu0 0
        %3023 = vmatmul.mubr.bf16.gmra.mrb[0].mxu0 %v2883
        %v3024 = vpop.f32.mrb[0].mxu0
        %v3025 = vadd.f32 0.0, %v3024
        %v3026 = vpop.f32.mrb[0].mxu0
        %v3027 = vpop.f32.mrb[0].mxu0
        %v3028 = vadd.f32 0.0, %v3027
        %v3029 = vpop.f32.mrb[0].mxu0
        %3030 = vmatprep.mubr.bf16.mxu0 0
        %3031 = vmatmul.mubr.bf16.gmra.mrb[0].mxu0 %v2886
        %v3032 = vpop.f32.mrb[0].mxu0
        %v3033 = vadd.f32 0.0, %v3032
        %v3034 = vpop.f32.mrb[0].mxu0
        %v3035 = vpop.f32.mrb[0].mxu0
        %v3036 = vadd.f32 0.0, %v3035
        %v3037 = vpop.f32.mrb[0].mxu0
        %3038 = vmatprep.mubr.bf16.mxu0 0
        %3039 = vmatmul.mubr.bf16.gmra.mrb[0].mxu0 %v2889
        %v3040 = vpop.f32.mrb[0].mxu0
        %v3041 = vadd.f32 0.0, %v3040
        %v3042 = vpop.f32.mrb[0].mxu0
        %v3043 = vpop.f32.mrb[0].mxu0
        %v3044 = vadd.f32 0.0, %v3043
        %v3045 = vpop.f32.mrb[0].mxu0
        %3046 = vmatprep.mubr.bf16.mxu0 0
        %3047 = vmatmul.mubr.bf16.gmra.mrb[0].mxu0 %v2892
        %v3048 = vpop.f32.mrb[0].mxu0
        %v3049 = vadd.f32 0.0, %v3048
        %v3050 = vpop.f32.mrb[0].mxu0
        %v3051 = vpop.f32.mrb[0].mxu0
        %v3052 = vadd.f32 0.0, %v3051
        %v3053 = vpop.f32.mrb[0].mxu0
        %3054 = vdwg.mxu0
        %v3055 = vadd.f32 %v2733, %v2929
        %v3056 = vadd.f32 %v2734, %v2932
        %v3057 = vadd.f32 %v2735, %v2937
        %v3058 = vadd.f32 %v2736, %v2940
        %v3059 = vadd.f32 %v2737, %v2945
        %v3060 = vadd.f32 %v2738, %v2948
        %v3061 = vadd.f32 %v2739, %v2953
        %v3062 = vadd.f32 %v2740, %v2956
        %v3063 = vadd.f32 %v2741, %v2961
        %v3064 = vadd.f32 %v2742, %v2964
        %v3065 = vadd.f32 %v2743, %v2969
        %v3066 = vadd.f32 %v2744, %v2972
        %v3067 = vadd.f32 %v2745, %v2977
        %v3068 = vadd.f32 %v2746, %v2980
        %v3069 = vadd.f32 %v2747, %v2985
        %v3070 = vadd.f32 %v2748, %v2988
        %v3071 = vadd.f32 %v2749, %v2993
        %v3072 = vadd.f32 %v2750, %v2996
        %v3073 = vadd.f32 %v2751, %v3001
        %v3074 = vadd.f32 %v2752, %v3004
        %v3075 = vadd.f32 %v2753, %v3009
        %v3076 = vadd.f32 %v2754, %v3012
        %v3077 = vadd.f32 %v2755, %v3017
        %v3078 = vadd.f32 %v2756, %v3020
        %v3079 = vadd.f32 %v2757, %v3025
        %v3080 = vadd.f32 %v2758, %v3028
        %v3081 = vadd.f32 %v2759, %v3033
        %v3082 = vadd.f32 %v2760, %v3036
        %v3083 = vadd.f32 %v2761, %v3041
        %v3084 = vadd.f32 %v2762, %v3044
        %v3085 = vadd.f32 %v2763, %v3049
        %v3086 = vadd.f32 %v2764, %v3052
        %v3087 = vld [vmem:[%s2] sm:$0x1]
        %v3088 = vlaneseq
        %v3089 = vshrl.u32 %v3088, 7
        %v3090 = vsub.s32 0, %v3089
        %v3091 = vrot.slane %v3087, %v3090
        %v3092 = vmul.f32 %v3055, %v3091
        %v3093 = vmul.f32 %v3056, %v3091
        %v3094 = vmul.f32 %v3057, %v3091
        %v3095 = vmul.f32 %v3058, %v3091
        %v3096 = vmul.f32 %v3059, %v3091
        %v3097 = vmul.f32 %v3060, %v3091
        %v3098 = vmul.f32 %v3061, %v3091
        %v3099 = vmul.f32 %v3062, %v3091
        %v3100 = vmul.f32 %v3063, %v3091
        %v3101 = vmul.f32 %v3064, %v3091
        %v3102 = vmul.f32 %v3065, %v3091
        %v3103 = vmul.f32 %v3066, %v3091
        %v3104 = vmul.f32 %v3067, %v3091
        %v3105 = vmul.f32 %v3068, %v3091
        %v3106 = vmul.f32 %v3069, %v3091
        %v3107 = vmul.f32 %v3070, %v3091
        %v3108 = vmul.f32 %v3071, %v3091
        %v3109 = vmul.f32 %v3072, %v3091
        %v3110 = vmul.f32 %v3073, %v3091
        %v3111 = vmul.f32 %v3074, %v3091
        %v3112 = vmul.f32 %v3075, %v3091
        %v3113 = vmul.f32 %v3076, %v3091
        %v3114 = vmul.f32 %v3077, %v3091
        %v3115 = vmul.f32 %v3078, %v3091
        %v3116 = vmul.f32 %v3079, %v3091
        %v3117 = vmul.f32 %v3080, %v3091
        %v3118 = vmul.f32 %v3081, %v3091
        %v3119 = vmul.f32 %v3082, %v3091
        %v3120 = vmul.f32 %v3083, %v3091
        %v3121 = vmul.f32 %v3084, %v3091
        %v3122 = vmul.f32 %v3085, %v3091
        %v3123 = vmul.f32 %v3086, %v3091
        %v3124 = vld [vmem:[%s2 + $0x1] sm:$0x1]
        %v3125 = vlaneseq
        %v3126 = vshrl.u32 %v3125, 7
        %v3127 = vsub.s32 0, %v3126
        %v3128 = vrot.slane %v3124, %v3127
        %v3129 = vadd.f32 %v3092, %v3128
        %v3130 = vadd.f32 %v3093, %v3128
        %v3131 = vadd.f32 %v3094, %v3128
        %v3132 = vadd.f32 %v3095, %v3128
        %v3133 = vadd.f32 %v3096, %v3128
        %v3134 = vadd.f32 %v3097, %v3128
        %v3135 = vadd.f32 %v3098, %v3128
        %v3136 = vadd.f32 %v3099, %v3128
        %v3137 = vadd.f32 %v3100, %v3128
        %v3138 = vadd.f32 %v3101, %v3128
        %v3139 = vadd.f32 %v3102, %v3128
        %v3140 = vadd.f32 %v3103, %v3128
        %v3141 = vadd.f32 %v3104, %v3128
        %v3142 = vadd.f32 %v3105, %v3128
        %v3143 = vadd.f32 %v3106, %v3128
        %v3144 = vadd.f32 %v3107, %v3128
        %v3145 = vadd.f32 %v3108, %v3128
        %v3146 = vadd.f32 %v3109, %v3128
        %v3147 = vadd.f32 %v3110, %v3128
        %v3148 = vadd.f32 %v3111, %v3128
        %v3149 = vadd.f32 %v3112, %v3128
        %v3150 = vadd.f32 %v3113, %v3128
        %v3151 = vadd.f32 %v3114, %v3128
        %v3152 = vadd.f32 %v3115, %v3128
        %v3153 = vadd.f32 %v3116, %v3128
        %v3154 = vadd.f32 %v3117, %v3128
        %v3155 = vadd.f32 %v3118, %v3128
        %v3156 = vadd.f32 %v3119, %v3128
        %v3157 = vadd.f32 %v3120, %v3128
        %v3158 = vadd.f32 %v3121, %v3128
        %v3159 = vadd.f32 %v3122, %v3128
        %v3160 = vadd.f32 %v3123, %v3128
        %v3161 = vmax.f32 %v3129, 0.0
        %v3162 = vmax.f32 %v3130, 0.0
        %v3163 = vmax.f32 %v3131, 0.0
        %v3164 = vmax.f32 %v3132, 0.0
        %v3165 = vmax.f32 %v3133, 0.0
        %v3166 = vmax.f32 %v3134, 0.0
        %v3167 = vmax.f32 %v3135, 0.0
        %v3168 = vmax.f32 %v3136, 0.0
        %v3169 = vmax.f32 %v3137, 0.0
        %v3170 = vmax.f32 %v3138, 0.0
        %v3171 = vmax.f32 %v3139, 0.0
        %v3172 = vmax.f32 %v3140, 0.0
        %v3173 = vmax.f32 %v3141, 0.0
        %v3174 = vmax.f32 %v3142, 0.0
        %v3175 = vmax.f32 %v3143, 0.0
        %v3176 = vmax.f32 %v3144, 0.0
        %v3177 = vmax.f32 %v3145, 0.0
        %v3178 = vmax.f32 %v3146, 0.0
        %v3179 = vmax.f32 %v3147, 0.0
        %v3180 = vmax.f32 %v3148, 0.0
        %v3181 = vmax.f32 %v3149, 0.0
        %v3182 = vmax.f32 %v3150, 0.0
        %v3183 = vmax.f32 %v3151, 0.0
        %v3184 = vmax.f32 %v3152, 0.0
        %v3185 = vmax.f32 %v3153, 0.0
        %v3186 = vmax.f32 %v3154, 0.0
        %v3187 = vmax.f32 %v3155, 0.0
        %v3188 = vmax.f32 %v3156, 0.0
        %v3189 = vmax.f32 %v3157, 0.0
        %v3190 = vmax.f32 %v3158, 0.0
        %v3191 = vmax.f32 %v3159, 0.0
        %v3192 = vmax.f32 %v3160, 0.0
        %3193 = vst.msk [vmem:[#allocation2] sm:$0xff] %vm388, 0.0
        %3194 = vst.msk [vmem:[#allocation2 + $0x8] sm:$0xff] %vm388, 0.0
        %vm3195 = vcmask 517120
        %3196 = vst.msk [vmem:[#allocation2 + $0x10] sm:$0x3] %vm3195, 0.0
        %3197 = vst.msk [vmem:[#allocation2 + $0x18] sm:$0xff] %vm388, 0.0
        %3198 = vst.msk [vmem:[#allocation2 + $0x20] sm:$0xff] %vm388, 0.0
        %3199 = vst.msk [vmem:[#allocation2 + $0x28] sm:$0x3] %vm3195, 0.0
        %3200 = vst.msk [vmem:[#allocation2 + $0x30] sm:$0xff] %vm388, 0.0
        %3201 = vst.msk [vmem:[#allocation2 + $0x38] sm:$0xff] %vm388, 0.0
        %3202 = vst.msk [vmem:[#allocation2 + $0x40] sm:$0x3] %vm3195, 0.0
        %3203 = vst.msk [vmem:[#allocation2 + $0x48] sm:$0xff] %vm388, 0.0
        %3204 = vst.msk [vmem:[#allocation2 + $0x50] sm:$0xff] %vm388, 0.0
        %3205 = vst.msk [vmem:[#allocation2 + $0x58] sm:$0x3] %vm3195, 0.0
        %3206 = vst.msk [vmem:[#allocation2 + $0x60] sm:$0xff] %vm388, 0.0
        %3207 = vst.msk [vmem:[#allocation2 + $0x68] sm:$0xff] %vm388, 0.0
        %3208 = vst.msk [vmem:[#allocation2 + $0x70] sm:$0x3] %vm3195, 0.0
        %3209 = vst.msk [vmem:[#allocation2 + $0x78] sm:$0xff] %vm388, 0.0
        %3210 = vst.msk [vmem:[#allocation2 + $0x80] sm:$0xff] %vm388, 0.0
        %3211 = vst.msk [vmem:[#allocation2 + $0x88] sm:$0x3] %vm3195, 0.0
        %3212 = vst.msk [vmem:[#allocation2 + $0x90] sm:$0xff] %vm388, 0.0
        %3213 = vst.msk [vmem:[#allocation2 + $0x98] sm:$0xff] %vm388, 0.0
        %3214 = vst.msk [vmem:[#allocation2 + $0xa0] sm:$0x3] %vm3195, 0.0
        %3215 = vst.msk [vmem:[#allocation2 + $0xa8] sm:$0xff] %vm388, 0.0
        %3216 = vst.msk [vmem:[#allocation2 + $0xb0] sm:$0xff] %vm388, 0.0
        %3217 = vst.msk [vmem:[#allocation2 + $0xb8] sm:$0x3] %vm3195, 0.0
        %3218 = vst.msk [vmem:[#allocation2 + $0xc0] sm:$0xff] %vm388, 0.0
        %3219 = vst.msk [vmem:[#allocation2 + $0xc8] sm:$0xff] %vm388, 0.0
        %3220 = vst.msk [vmem:[#allocation2 + $0xd0] sm:$0x3] %vm3195, 0.0
        %3221 = vst.msk [vmem:[#allocation2 + $0xd8] sm:$0xff] %vm388, 0.0
        %3222 = vst.msk [vmem:[#allocation2 + $0xe0] sm:$0xff] %vm388, 0.0
        %3223 = vst.msk [vmem:[#allocation2 + $0xe8] sm:$0x3] %vm3195, 0.0
        %3224 = vst.msk [vmem:[#allocation2 + $0xf0] sm:$0xff] %vm388, 0.0
        %3225 = vst.msk [vmem:[#allocation2 + $0xf8] sm:$0xff] %vm388, 0.0
        %3226 = vst.msk [vmem:[#allocation2 + $0x100] sm:$0x3] %vm3195, 0.0
        %3227 = vst.msk [vmem:[#allocation2 + $0x108] sm:$0xff] %vm388, 0.0
        %3228 = vst.msk [vmem:[#allocation2 + $0x110] sm:$0xff] %vm388, 0.0
        %3229 = vst.msk [vmem:[#allocation2 + $0x118] sm:$0x3] %vm3195, 0.0
        %3230 = vst.msk [vmem:[#allocation2 + $0x120] sm:$0xff] %vm388, 0.0
        %3231 = vst.msk [vmem:[#allocation2 + $0x128] sm:$0xff] %vm388, 0.0
        %3232 = vst.msk [vmem:[#allocation2 + $0x130] sm:$0x3] %vm3195, 0.0
        %3233 = vst.msk [vmem:[#allocation2 + $0x138] sm:$0xff] %vm388, 0.0
        %3234 = vst.msk [vmem:[#allocation2 + $0x140] sm:$0xff] %vm388, 0.0
        %3235 = vst.msk [vmem:[#allocation2 + $0x148] sm:$0x3] %vm3195, 0.0
        %3236 = vst.msk [vmem:[#allocation2 + $0x150] sm:$0xff] %vm388, 0.0
        %3237 = vst.msk [vmem:[#allocation2 + $0x158] sm:$0xff] %vm388, 0.0
        %3238 = vst.msk [vmem:[#allocation2 + $0x160] sm:$0x3] %vm3195, 0.0
        %3239 = vst.msk [vmem:[#allocation2 + $0x168] sm:$0xff] %vm388, 0.0
        %3240 = vst.msk [vmem:[#allocation2 + $0x170] sm:$0xff] %vm388, 0.0
        %3241 = vst.msk [vmem:[#allocation2 + $0x178] sm:$0x3] %vm3195, 0.0
        %3242 = vst.msk [vmem:[#allocation2 + $0x180] sm:$0xff] %vm388, 0.0
        %3243 = vst.msk [vmem:[#allocation2 + $0x188] sm:$0xff] %vm388, 0.0
        %3244 = vst.msk [vmem:[#allocation2 + $0x190] sm:$0x3] %vm3195, 0.0
        %3245 = vst.msk [vmem:[#allocation2 + $0x198] sm:$0xff] %vm388, 0.0
        %3246 = vst.msk [vmem:[#allocation2 + $0x1a0] sm:$0xff] %vm388, 0.0
        %3247 = vst.msk [vmem:[#allocation2 + $0x1a8] sm:$0x3] %vm3195, 0.0
        %s3248 = scalar_lea.vmem [#allocation2], 24
        %3249 = vst.msk [vmem:[%s3248 + $0x1] sm:$0xff] %vm388, %v3161
        %3250 = vst.msk [vmem:[%s3248 + $0x9] sm:$0xff] %vm388, %v3162
        %3251 = vst.msk [vmem:[%s3248 + $0x19] sm:$0xff] %vm388, %v3163
        %3252 = vst.msk [vmem:[%s3248 + $0x21] sm:$0xff] %vm388, %v3164
        %3253 = vst.msk [vmem:[%s3248 + $0x31] sm:$0xff] %vm388, %v3165
        %3254 = vst.msk [vmem:[%s3248 + $0x39] sm:$0xff] %vm388, %v3166
        %3255 = vst.msk [vmem:[%s3248 + $0x49] sm:$0xff] %vm388, %v3167
        %3256 = vst.msk [vmem:[%s3248 + $0x51] sm:$0xff] %vm388, %v3168
        %3257 = vst.msk [vmem:[%s3248 + $0x61] sm:$0xff] %vm388, %v3169
        %3258 = vst.msk [vmem:[%s3248 + $0x69] sm:$0xff] %vm388, %v3170
        %3259 = vst.msk [vmem:[%s3248 + $0x79] sm:$0xff] %vm388, %v3171
        %3260 = vst.msk [vmem:[%s3248 + $0x81] sm:$0xff] %vm388, %v3172
        %3261 = vst.msk [vmem:[%s3248 + $0x91] sm:$0xff] %vm388, %v3173
        %3262 = vst.msk [vmem:[%s3248 + $0x99] sm:$0xff] %vm388, %v3174
        %3263 = vst.msk [vmem:[%s3248 + $0xa9] sm:$0xff] %vm388, %v3175
        %3264 = vst.msk [vmem:[%s3248 + $0xb1] sm:$0xff] %vm388, %v3176
        %3265 = vst.msk [vmem:[%s3248 + $0xc1] sm:$0xff] %vm388, %v3177
        %3266 = vst.msk [vmem:[%s3248 + $0xc9] sm:$0xff] %vm388, %v3178
        %3267 = vst.msk [vmem:[%s3248 + $0xd9] sm:$0xff] %vm388, %v3179
        %3268 = vst.msk [vmem:[%s3248 + $0xe1] sm:$0xff] %vm388, %v3180
        %3269 = vst.msk [vmem:[%s3248 + $0xf1] sm:$0xff] %vm388, %v3181
        %3270 = vst.msk [vmem:[%s3248 + $0xf9] sm:$0xff] %vm388, %v3182
        %3271 = vst.msk [vmem:[%s3248 + $0x109] sm:$0xff] %vm388, %v3183
        %3272 = vst.msk [vmem:[%s3248 + $0x111] sm:$0xff] %vm388, %v3184
        %3273 = vst.msk [vmem:[%s3248 + $0x121] sm:$0xff] %vm388, %v3185
        %3274 = vst.msk [vmem:[%s3248 + $0x129] sm:$0xff] %vm388, %v3186
        %3275 = vst.msk [vmem:[%s3248 + $0x139] sm:$0xff] %vm388, %v3187
        %3276 = vst.msk [vmem:[%s3248 + $0x141] sm:$0xff] %vm388, %v3188
        %3277 = vst.msk [vmem:[%s3248 + $0x151] sm:$0xff] %vm388, %v3189
        %3278 = vst.msk [vmem:[%s3248 + $0x159] sm:$0xff] %vm388, %v3190
        %3279 = vst.msk [vmem:[%s3248 + $0x169] sm:$0xff] %vm388, %v3191
        %3280 = vst.msk [vmem:[%s3248 + $0x171] sm:$0xff] %vm388, %v3192
        %v3281 = vld [vmem:[#allocation2] sm:$0xff]
        %v3282 = vld [vmem:[#allocation2 + $0x8] sm:$0xff]
        %v3283 = vld [vmem:[#allocation2 + $0x18] sm:$0xff]
        %v3284 = vld [vmem:[#allocation2 + $0x20] sm:$0xff]
        %v3285 = vld [vmem:[#allocation2 + $0x30] sm:$0xff]
        %v3286 = vld [vmem:[#allocation2 + $0x38] sm:$0xff]
        %v3287 = vld [vmem:[#allocation2 + $0x48] sm:$0xff]
        %v3288 = vld [vmem:[#allocation2 + $0x50] sm:$0xff]
        %v3289 = vld [vmem:[#allocation2 + $0x60] sm:$0xff]
        %v3290 = vld [vmem:[#allocation2 + $0x68] sm:$0xff]
        %v3291 = vld [vmem:[#allocation2 + $0x78] sm:$0xff]
        %v3292 = vld [vmem:[#allocation2 + $0x80] sm:$0xff]
        %v3293 = vld [vmem:[#allocation2 + $0x90] sm:$0xff]
        %v3294 = vld [vmem:[#allocation2 + $0x98] sm:$0xff]
        %v3295 = vld [vmem:[#allocation2 + $0xa8] sm:$0xff]
        %v3296 = vld [vmem:[#allocation2 + $0xb0] sm:$0xff]
        %v3297 = vld [vmem:[#allocation2 + $0xc0] sm:$0xff]
        %v3298 = vld [vmem:[#allocation2 + $0xc8] sm:$0xff]
        %v3299 = vld [vmem:[#allocation2 + $0xd8] sm:$0xff]
        %v3300 = vld [vmem:[#allocation2 + $0xe0] sm:$0xff]
        %v3301 = vld [vmem:[#allocation2 + $0xf0] sm:$0xff]
        %v3302 = vld [vmem:[#allocation2 + $0xf8] sm:$0xff]
        %v3303 = vld [vmem:[#allocation2 + $0x108] sm:$0xff]
        %v3304 = vld [vmem:[#allocation2 + $0x110] sm:$0xff]
        %v3305 = vld [vmem:[#allocation2 + $0x120] sm:$0xff]
        %v3306 = vld [vmem:[#allocation2 + $0x128] sm:$0xff]
        %v3307 = vld [vmem:[#allocation2 + $0x138] sm:$0xff]
        %v3308 = vld [vmem:[#allocation2 + $0x140] sm:$0xff]
        %v3309 = vld [vmem:[#allocation2 + $0x150] sm:$0xff]
        %v3310 = vld [vmem:[#allocation2 + $0x158] sm:$0xff]
        %v3311 = vld [vmem:[#allocation2 + $0x168] sm:$0xff]
        %v3312 = vld [vmem:[#allocation2 + $0x170] sm:$0xff]
        %v3313 = vpack.c.bf16 %v3282, %v3281
        %v3314 = vpack.c.bf16 %v3284, %v3283
        %v3315 = vpack.c.bf16 %v3286, %v3285
        %v3316 = vpack.c.bf16 %v3288, %v3287
        %v3317 = vpack.c.bf16 %v3290, %v3289
        %v3318 = vpack.c.bf16 %v3292, %v3291
        %v3319 = vpack.c.bf16 %v3294, %v3293
        %v3320 = vpack.c.bf16 %v3296, %v3295
        %v3321 = vpack.c.bf16 %v3298, %v3297
        %v3322 = vpack.c.bf16 %v3300, %v3299
        %v3323 = vpack.c.bf16 %v3302, %v3301
        %v3324 = vpack.c.bf16 %v3304, %v3303
        %v3325 = vpack.c.bf16 %v3306, %v3305
        %v3326 = vpack.c.bf16 %v3308, %v3307
        %v3327 = vpack.c.bf16 %v3310, %v3309
        %v3328 = vpack.c.bf16 %v3312, %v3311
        %v3329 = vld [vmem:[%s3] sm:$0xf]
        %v3330 = vld [vmem:[%s3 + $0x4] sm:$0xf]
        %v3331 = vld [vmem:[%s3 + $0x8] sm:$0xf]
        %v3332 = vld [vmem:[%s3 + $0xc] sm:$0xf]
        %v3333 = vld [vmem:[%s3 + $0x10] sm:$0xf]
        %v3334 = vld [vmem:[%s3 + $0x14] sm:$0xf]
        %v3335 = vld [vmem:[%s3 + $0x18] sm:$0xf]
        %v3336 = vld [vmem:[%s3 + $0x1c] sm:$0xf]
        %v3337 = vld [vmem:[#allocation2 + $0x1] sm:$0xff]
        %v3338 = vld [vmem:[#allocation2 + $0x9] sm:$0xff]
        %v3339 = vld [vmem:[#allocation2 + $0x19] sm:$0xff]
        %v3340 = vld [vmem:[#allocation2 + $0x21] sm:$0xff]
        %v3341 = vld [vmem:[#allocation2 + $0x31] sm:$0xff]
        %v3342 = vld [vmem:[#allocation2 + $0x39] sm:$0xff]
        %v3343 = vld [vmem:[#allocation2 + $0x49] sm:$0xff]
        %v3344 = vld [vmem:[#allocation2 + $0x51] sm:$0xff]
        %v3345 = vld [vmem:[#allocation2 + $0x61] sm:$0xff]
        %v3346 = vld [vmem:[#allocation2 + $0x69] sm:$0xff]
        %v3347 = vld [vmem:[#allocation2 + $0x79] sm:$0xff]
        %v3348 = vld [vmem:[#allocation2 + $0x81] sm:$0xff]
        %v3349 = vld [vmem:[#allocation2 + $0x91] sm:$0xff]
        %v3350 = vld [vmem:[#allocation2 + $0x99] sm:$0xff]
        %v3351 = vld [vmem:[#allocation2 + $0xa9] sm:$0xff]
        %v3352 = vld [vmem:[#allocation2 + $0xb1] sm:$0xff]
        %v3353 = vld [vmem:[#allocation2 + $0xc1] sm:$0xff]
        %v3354 = vld [vmem:[#allocation2 + $0xc9] sm:$0xff]
        %v3355 = vld [vmem:[#allocation2 + $0xd9] sm:$0xff]
        %v3356 = vld [vmem:[#allocation2 + $0xe1] sm:$0xff]
        %v3357 = vld [vmem:[#allocation2 + $0xf1] sm:$0xff]
        %v3358 = vld [vmem:[#allocation2 + $0xf9] sm:$0xff]
        %v3359 = vld [vmem:[#allocation2 + $0x109] sm:$0xff]
        %v3360 = vld [vmem:[#allocation2 + $0x111] sm:$0xff]
        %v3361 = vld [vmem:[#allocation2 + $0x121] sm:$0xff]
        %v3362 = vld [vmem:[#allocation2 + $0x129] sm:$0xff]
        %v3363 = vld [vmem:[#allocation2 + $0x139] sm:$0xff]
        %v3364 = vld [vmem:[#allocation2 + $0x141] sm:$0xff]
        %v3365 = vld [vmem:[#allocation2 + $0x151] sm:$0xff]
        %v3366 = vld [vmem:[#allocation2 + $0x159] sm:$0xff]
        %v3367 = vld [vmem:[#allocation2 + $0x169] sm:$0xff]
        %v3368 = vld [vmem:[#allocation2 + $0x171] sm:$0xff]
        %v3369 = vpack.c.bf16 %v3338, %v3337
        %v3370 = vpack.c.bf16 %v3340, %v3339
        %v3371 = vpack.c.bf16 %v3342, %v3341
        %v3372 = vpack.c.bf16 %v3344, %v3343
        %v3373 = vpack.c.bf16 %v3346, %v3345
        %v3374 = vpack.c.bf16 %v3348, %v3347
        %v3375 = vpack.c.bf16 %v3350, %v3349
        %v3376 = vpack.c.bf16 %v3352, %v3351
        %v3377 = vpack.c.bf16 %v3354, %v3353
        %v3378 = vpack.c.bf16 %v3356, %v3355
        %v3379 = vpack.c.bf16 %v3358, %v3357
        %v3380 = vpack.c.bf16 %v3360, %v3359
        %v3381 = vpack.c.bf16 %v3362, %v3361
        %v3382 = vpack.c.bf16 %v3364, %v3363
        %v3383 = vpack.c.bf16 %v3366, %v3365
        %v3384 = vpack.c.bf16 %v3368, %v3367
        %s3385 = scalar_lea.vmem %s3, 32
        %v3386 = vld [vmem:[%s3385] sm:$0xf]
        %v3387 = vld [vmem:[%s3385 + $0x4] sm:$0xf]
        %v3388 = vld [vmem:[%s3385 + $0x8] sm:$0xf]
        %v3389 = vld [vmem:[%s3385 + $0xc] sm:$0xf]
        %v3390 = vld [vmem:[%s3385 + $0x10] sm:$0xf]
        %v3391 = vld [vmem:[%s3385 + $0x14] sm:$0xf]
        %v3392 = vld [vmem:[%s3385 + $0x18] sm:$0xf]
        %v3393 = vld [vmem:[%s3385 + $0x1c] sm:$0xf]
        %v3402 = vunpack.c.l.b16 %v3386
        %v3403 = vunpack.c.l.b16 %v3387
        %v3404 = vunpack.c.l.b16 %v3388
        %v3405 = vunpack.c.l.b16 %v3389
        %v3406 = vunpack.c.l.b16 %v3390
        %v3407 = vunpack.c.l.b16 %v3391
        %v3408 = vunpack.c.l.b16 %v3392
        %v3409 = vunpack.c.l.b16 %v3393
        %v3410 = vpack.c.b16 %v3403, %v3402
        %v3411 = vpack.c.b16 %v3405, %v3404
        %v3412 = vpack.c.b16 %v3407, %v3406
        %v3413 = vpack.c.b16 %v3409, %v3408
        %v3419 = vsel %vm388, %v3369, 0
        %v3422 = vsel %vm388, %v3370, 0
        %v3425 = vsel %vm388, %v3371, 0
        %v3428 = vsel %vm388, %v3372, 0
        %v3431 = vsel %vm388, %v3373, 0
        %v3434 = vsel %vm388, %v3374, 0
        %v3437 = vsel %vm388, %v3375, 0
        %v3440 = vsel %vm388, %v3376, 0
        %v3443 = vsel %vm388, %v3377, 0
        %v3446 = vsel %vm388, %v3378, 0
        %v3449 = vsel %vm388, %v3379, 0
        %v3452 = vsel %vm388, %v3380, 0
        %v3455 = vsel %vm388, %v3381, 0
        %v3458 = vsel %vm388, %v3382, 0
        %v3461 = vsel %vm388, %v3383, 0
        %v3464 = vsel %vm388, %v3384, 0
        %3466 = vmatprep.subr.bf16.mxu0 0
        %3467 = vmatpush1.bf16.msra.mxu0 %v3410
        %3468 = vmatprep.subr.bf16.mxu0 0
        %3469 = vmatpush1.bf16.msra.mxu0 %v3411
        %3470 = vmatprep.subr.bf16.mxu0 0
        %3471 = vmatpush1.bf16.msra.mxu0 %v3412
        %3472 = vmatprep.subr.bf16.mxu0 0
        %3473 = vmatpush1.bf16.msra.mxu0 %v3413
        %3474 = vmatprep.subr.bf16.mxu0 0
        %3475 = vmatpush1.bf16.msra.mxu0 0
        %3476 = vmatprep.subr.bf16.mxu0 0
        %3477 = vmatpush1.bf16.msra.mxu0 0
        %3478 = vmatprep.subr.bf16.mxu0 0
        %3479 = vmatpush1.bf16.msra.mxu0 0
        %3480 = vmatprep.subr.bf16.mxu0 0
        %3481 = vmatpush1.bf16.msra.mxu0 0
        %3482 = vmatprep.subr.bf16.mxu0 0
        %3483 = vmatpush1.bf16.msra.mxu0 0
        %3484 = vmatprep.subr.bf16.mxu0 0
        %3485 = vmatpush1.bf16.msra.mxu0 0
        %3486 = vmatprep.subr.bf16.mxu0 0
        %3487 = vmatpush1.bf16.msra.mxu0 0
        %3488 = vmatprep.subr.bf16.mxu0 0
        %3489 = vmatpush1.bf16.msra.mxu0 0
        %3490 = vmatprep.subr.bf16.mxu0 0
        %3491 = vmatpush1.bf16.msra.mxu0 0
        %3492 = vmatprep.subr.bf16.mxu0 0
        %3493 = vmatpush1.bf16.msra.mxu0 0
        %3494 = vmatprep.subr.bf16.mxu0 0
        %3495 = vmatpush1.bf16.msra.mxu0 0
        %3496 = vmatprep.subr.bf16.mxu0 0
        %3497 = vmatpush1.bf16.msra.mxu0 0
        %3498 = vmatprep.mubr.bf16.mxu0 0
        %3499 = vmatmul.mubr.bf16.gmra.mrb[0].mxu0 %v3419
        %v3500 = vpop.f32.mrb[0].mxu0
        %v3501 = vadd.f32 0.0, %v3500
        %v3502 = vpop.f32.mrb[0].mxu0
        %v3503 = vpop.f32.mrb[0].mxu0
        %v3504 = vadd.f32 0.0, %v3503
        %v3505 = vpop.f32.mrb[0].mxu0
        %3506 = vmatprep.mubr.bf16.mxu0 0
        %3507 = vmatmul.mubr.bf16.gmra.mrb[0].mxu0 %v3422
        %v3508 = vpop.f32.mrb[0].mxu0
        %v3509 = vadd.f32 0.0, %v3508
        %v3510 = vpop.f32.mrb[0].mxu0
        %v3511 = vpop.f32.mrb[0].mxu0
        %v3512 = vadd.f32 0.0, %v3511
        %v3513 = vpop.f32.mrb[0].mxu0
        %3514 = vmatprep.mubr.bf16.mxu0 0
        %3515 = vmatmul.mubr.bf16.gmra.mrb[0].mxu0 %v3425
        %v3516 = vpop.f32.mrb[0].mxu0
        %v3517 = vadd.f32 0.0, %v3516
        %v3518 = vpop.f32.mrb[0].mxu0
        %v3519 = vpop.f32.mrb[0].mxu0
        %v3520 = vadd.f32 0.0, %v3519
        %v3521 = vpop.f32.mrb[0].mxu0
        %3522 = vmatprep.mubr.bf16.mxu0 0
        %3523 = vmatmul.mubr.bf16.gmra.mrb[0].mxu0 %v3428
        %v3524 = vpop.f32.mrb[0].mxu0
        %v3525 = vadd.f32 0.0, %v3524
        %v3526 = vpop.f32.mrb[0].mxu0
        %v3527 = vpop.f32.mrb[0].mxu0
        %v3528 = vadd.f32 0.0, %v3527
        %v3529 = vpop.f32.mrb[0].mxu0
        %3530 = vmatprep.mubr.bf16.mxu0 0
        %3531 = vmatmul.mubr.bf16.gmra.mrb[0].mxu0 %v3431
        %v3532 = vpop.f32.mrb[0].mxu0
        %v3533 = vadd.f32 0.0, %v3532
        %v3534 = vpop.f32.mrb[0].mxu0
        %v3535 = vpop.f32.mrb[0].mxu0
        %v3536 = vadd.f32 0.0, %v3535
        %v3537 = vpop.f32.mrb[0].mxu0
        %3538 = vmatprep.mubr.bf16.mxu0 0
        %3539 = vmatmul.mubr.bf16.gmra.mrb[0].mxu0 %v3434
        %v3540 = vpop.f32.mrb[0].mxu0
        %v3541 = vadd.f32 0.0, %v3540
        %v3542 = vpop.f32.mrb[0].mxu0
        %v3543 = vpop.f32.mrb[0].mxu0
        %v3544 = vadd.f32 0.0, %v3543
        %v3545 = vpop.f32.mrb[0].mxu0
        %3546 = vmatprep.mubr.bf16.mxu0 0
        %3547 = vmatmul.mubr.bf16.gmra.mrb[0].mxu0 %v3437
        %v3548 = vpop.f32.mrb[0].mxu0
        %v3549 = vadd.f32 0.0, %v3548
        %v3550 = vpop.f32.mrb[0].mxu0
        %v3551 = vpop.f32.mrb[0].mxu0
        %v3552 = vadd.f32 0.0, %v3551
        %v3553 = vpop.f32.mrb[0].mxu0
        %3554 = vmatprep.mubr.bf16.mxu0 0
        %3555 = vmatmul.mubr.bf16.gmra.mrb[0].mxu0 %v3440
        %v3556 = vpop.f32.mrb[0].mxu0
        %v3557 = vadd.f32 0.0, %v3556
        %v3558 = vpop.f32.mrb[0].mxu0
        %v3559 = vpop.f32.mrb[0].mxu0
        %v3560 = vadd.f32 0.0, %v3559
        %v3561 = vpop.f32.mrb[0].mxu0
        %3562 = vmatprep.mubr.bf16.mxu0 0
        %3563 = vmatmul.mubr.bf16.gmra.mrb[0].mxu0 %v3443
        %v3564 = vpop.f32.mrb[0].mxu0
        %v3565 = vadd.f32 0.0, %v3564
        %v3566 = vpop.f32.mrb[0].mxu0
        %v3567 = vpop.f32.mrb[0].mxu0
        %v3568 = vadd.f32 0.0, %v3567
        %v3569 = vpop.f32.mrb[0].mxu0
        %3570 = vmatprep.mubr.bf16.mxu0 0
        %3571 = vmatmul.mubr.bf16.gmra.mrb[0].mxu0 %v3446
        %v3572 = vpop.f32.mrb[0].mxu0
        %v3573 = vadd.f32 0.0, %v3572
        %v3574 = vpop.f32.mrb[0].mxu0
        %v3575 = vpop.f32.mrb[0].mxu0
        %v3576 = vadd.f32 0.0, %v3575
        %v3577 = vpop.f32.mrb[0].mxu0
        %3578 = vmatprep.mubr.bf16.mxu0 0
        %3579 = vmatmul.mubr.bf16.gmra.mrb[0].mxu0 %v3449
        %v3580 = vpop.f32.mrb[0].mxu0
        %v3581 = vadd.f32 0.0, %v3580
        %v3582 = vpop.f32.mrb[0].mxu0
        %v3583 = vpop.f32.mrb[0].mxu0
        %v3584 = vadd.f32 0.0, %v3583
        %v3585 = vpop.f32.mrb[0].mxu0
        %3586 = vmatprep.mubr.bf16.mxu0 0
        %3587 = vmatmul.mubr.bf16.gmra.mrb[0].mxu0 %v3452
        %v3588 = vpop.f32.mrb[0].mxu0
        %v3589 = vadd.f32 0.0, %v3588
        %v3590 = vpop.f32.mrb[0].mxu0
        %v3591 = vpop.f32.mrb[0].mxu0
        %v3592 = vadd.f32 0.0, %v3591
        %v3593 = vpop.f32.mrb[0].mxu0
        %3594 = vmatprep.mubr.bf16.mxu0 0
        %3595 = vmatmul.mubr.bf16.gmra.mrb[0].mxu0 %v3455
        %v3596 = vpop.f32.mrb[0].mxu0
        %v3597 = vadd.f32 0.0, %v3596
        %v3598 = vpop.f32.mrb[0].mxu0
        %v3599 = vpop.f32.mrb[0].mxu0
        %v3600 = vadd.f32 0.0, %v3599
        %v3601 = vpop.f32.mrb[0].mxu0
        %3602 = vmatprep.mubr.bf16.mxu0 0
        %3603 = vmatmul.mubr.bf16.gmra.mrb[0].mxu0 %v3458
        %v3604 = vpop.f32.mrb[0].mxu0
        %v3605 = vadd.f32 0.0, %v3604
        %v3606 = vpop.f32.mrb[0].mxu0
        %v3607 = vpop.f32.mrb[0].mxu0
        %v3608 = vadd.f32 0.0, %v3607
        %v3609 = vpop.f32.mrb[0].mxu0
        %3610 = vmatprep.mubr.bf16.mxu0 0
        %3611 = vmatmul.mubr.bf16.gmra.mrb[0].mxu0 %v3461
        %v3612 = vpop.f32.mrb[0].mxu0
        %v3613 = vadd.f32 0.0, %v3612
        %v3614 = vpop.f32.mrb[0].mxu0
        %v3615 = vpop.f32.mrb[0].mxu0
        %v3616 = vadd.f32 0.0, %v3615
        %v3617 = vpop.f32.mrb[0].mxu0
        %3618 = vmatprep.mubr.bf16.mxu0 0
        %3619 = vmatmul.mubr.bf16.gmra.mrb[0].mxu0 %v3464
        %v3620 = vpop.f32.mrb[0].mxu0
        %v3621 = vadd.f32 0.0, %v3620
        %v3622 = vpop.f32.mrb[0].mxu0
        %v3623 = vpop.f32.mrb[0].mxu0
        %v3624 = vadd.f32 0.0, %v3623
        %v3625 = vpop.f32.mrb[0].mxu0
        %3626 = vdwg.mxu0
        %v3635 = vunpack.c.l.b16 %v3329
        %v3636 = vunpack.c.l.b16 %v3330
        %v3637 = vunpack.c.l.b16 %v3331
        %v3638 = vunpack.c.l.b16 %v3332
        %v3639 = vunpack.c.l.b16 %v3333
        %v3640 = vunpack.c.l.b16 %v3334
        %v3641 = vunpack.c.l.b16 %v3335
        %v3642 = vunpack.c.l.b16 %v3336
        %v3643 = vpack.c.b16 %v3636, %v3635
        %v3644 = vpack.c.b16 %v3638, %v3637
        %v3645 = vpack.c.b16 %v3640, %v3639
        %v3646 = vpack.c.b16 %v3642, %v3641
        %v3652 = vsel %vm388, %v3313, 0
        %v3655 = vsel %vm388, %v3314, 0
        %v3658 = vsel %vm388, %v3315, 0
        %v3661 = vsel %vm388, %v3316, 0
        %v3664 = vsel %vm388, %v3317, 0
        %v3667 = vsel %vm388, %v3318, 0
        %v3670 = vsel %vm388, %v3319, 0
        %v3673 = vsel %vm388, %v3320, 0
        %v3676 = vsel %vm388, %v3321, 0
        %v3679 = vsel %vm388, %v3322, 0
        %v3682 = vsel %vm388, %v3323, 0
        %v3685 = vsel %vm388, %v3324, 0
        %v3688 = vsel %vm388, %v3325, 0
        %v3691 = vsel %vm388, %v3326, 0
        %v3694 = vsel %vm388, %v3327, 0
        %v3697 = vsel %vm388, %v3328, 0
        %3699 = vmatprep.subr.bf16.mxu0 0
        %3700 = vmatpush1.bf16.msra.mxu0 %v3643
        %3701 = vmatprep.subr.bf16.mxu0 0
        %3702 = vmatpush1.bf16.msra.mxu0 %v3644
        %3703 = vmatprep.subr.bf16.mxu0 0
        %3704 = vmatpush1.bf16.msra.mxu0 %v3645
        %3705 = vmatprep.subr.bf16.mxu0 0
        %3706 = vmatpush1.bf16.msra.mxu0 %v3646
        %3707 = vmatprep.subr.bf16.mxu0 0
        %3708 = vmatpush1.bf16.msra.mxu0 0
        %3709 = vmatprep.subr.bf16.mxu0 0
        %3710 = vmatpush1.bf16.msra.mxu0 0
        %3711 = vmatprep.subr.bf16.mxu0 0
        %3712 = vmatpush1.bf16.msra.mxu0 0
        %3713 = vmatprep.subr.bf16.mxu0 0
        %3714 = vmatpush1.bf16.msra.mxu0 0
        %3715 = vmatprep.subr.bf16.mxu0 0
        %3716 = vmatpush1.bf16.msra.mxu0 0
        %3717 = vmatprep.subr.bf16.mxu0 0
        %3718 = vmatpush1.bf16.msra.mxu0 0
        %3719 = vmatprep.subr.bf16.mxu0 0
        %3720 = vmatpush1.bf16.msra.mxu0 0
        %3721 = vmatprep.subr.bf16.mxu0 0
        %3722 = vmatpush1.bf16.msra.mxu0 0
        %3723 = vmatprep.subr.bf16.mxu0 0
        %3724 = vmatpush1.bf16.msra.mxu0 0
        %3725 = vmatprep.subr.bf16.mxu0 0
        %3726 = vmatpush1.bf16.msra.mxu0 0
        %3727 = vmatprep.subr.bf16.mxu0 0
        %3728 = vmatpush1.bf16.msra.mxu0 0
        %3729 = vmatprep.subr.bf16.mxu0 0
        %3730 = vmatpush1.bf16.msra.mxu0 0
        %3731 = vmatprep.mubr.bf16.mxu0 0
        %3732 = vmatmul.mubr.bf16.gmra.mrb[0].mxu0 %v3652
        %v3733 = vpop.f32.mrb[0].mxu0
        %v3734 = vadd.f32 %v3501, %v3733
        %v3735 = vpop.f32.mrb[0].mxu0
        %v3736 = vpop.f32.mrb[0].mxu0
        %v3737 = vadd.f32 %v3504, %v3736
        %v3738 = vpop.f32.mrb[0].mxu0
        %3739 = vmatprep.mubr.bf16.mxu0 0
        %3740 = vmatmul.mubr.bf16.gmra.mrb[0].mxu0 %v3655
        %v3741 = vpop.f32.mrb[0].mxu0
        %v3742 = vadd.f32 %v3509, %v3741
        %v3743 = vpop.f32.mrb[0].mxu0
        %v3744 = vpop.f32.mrb[0].mxu0
        %v3745 = vadd.f32 %v3512, %v3744
        %v3746 = vpop.f32.mrb[0].mxu0
        %3747 = vmatprep.mubr.bf16.mxu0 0
        %3748 = vmatmul.mubr.bf16.gmra.mrb[0].mxu0 %v3658
        %v3749 = vpop.f32.mrb[0].mxu0
        %v3750 = vadd.f32 %v3517, %v3749
        %v3751 = vpop.f32.mrb[0].mxu0
        %v3752 = vpop.f32.mrb[0].mxu0
        %v3753 = vadd.f32 %v3520, %v3752
        %v3754 = vpop.f32.mrb[0].mxu0
        %3755 = vmatprep.mubr.bf16.mxu0 0
        %3756 = vmatmul.mubr.bf16.gmra.mrb[0].mxu0 %v3661
        %v3757 = vpop.f32.mrb[0].mxu0
        %v3758 = vadd.f32 %v3525, %v3757
        %v3759 = vpop.f32.mrb[0].mxu0
        %v3760 = vpop.f32.mrb[0].mxu0
        %v3761 = vadd.f32 %v3528, %v3760
        %v3762 = vpop.f32.mrb[0].mxu0
        %3763 = vmatprep.mubr.bf16.mxu0 0
        %3764 = vmatmul.mubr.bf16.gmra.mrb[0].mxu0 %v3664
        %v3765 = vpop.f32.mrb[0].mxu0
        %v3766 = vadd.f32 %v3533, %v3765
        %v3767 = vpop.f32.mrb[0].mxu0
        %v3768 = vpop.f32.mrb[0].mxu0
        %v3769 = vadd.f32 %v3536, %v3768
        %v3770 = vpop.f32.mrb[0].mxu0
        %3771 = vmatprep.mubr.bf16.mxu0 0
        %3772 = vmatmul.mubr.bf16.gmra.mrb[0].mxu0 %v3667
        %v3773 = vpop.f32.mrb[0].mxu0
        %v3774 = vadd.f32 %v3541, %v3773
        %v3775 = vpop.f32.mrb[0].mxu0
        %v3776 = vpop.f32.mrb[0].mxu0
        %v3777 = vadd.f32 %v3544, %v3776
        %v3778 = vpop.f32.mrb[0].mxu0
        %3779 = vmatprep.mubr.bf16.mxu0 0
        %3780 = vmatmul.mubr.bf16.gmra.mrb[0].mxu0 %v3670
        %v3781 = vpop.f32.mrb[0].mxu0
        %v3782 = vadd.f32 %v3549, %v3781
        %v3783 = vpop.f32.mrb[0].mxu0
        %v3784 = vpop.f32.mrb[0].mxu0
        %v3785 = vadd.f32 %v3552, %v3784
        %v3786 = vpop.f32.mrb[0].mxu0
        %3787 = vmatprep.mubr.bf16.mxu0 0
        %3788 = vmatmul.mubr.bf16.gmra.mrb[0].mxu0 %v3673
        %v3789 = vpop.f32.mrb[0].mxu0
        %v3790 = vadd.f32 %v3557, %v3789
        %v3791 = vpop.f32.mrb[0].mxu0
        %v3792 = vpop.f32.mrb[0].mxu0
        %v3793 = vadd.f32 %v3560, %v3792
        %v3794 = vpop.f32.mrb[0].mxu0
        %3795 = vmatprep.mubr.bf16.mxu0 0
        %3796 = vmatmul.mubr.bf16.gmra.mrb[0].mxu0 %v3676
        %v3797 = vpop.f32.mrb[0].mxu0
        %v3798 = vadd.f32 %v3565, %v3797
        %v3799 = vpop.f32.mrb[0].mxu0
        %v3800 = vpop.f32.mrb[0].mxu0
        %v3801 = vadd.f32 %v3568, %v3800
        %v3802 = vpop.f32.mrb[0].mxu0
        %3803 = vmatprep.mubr.bf16.mxu0 0
        %3804 = vmatmul.mubr.bf16.gmra.mrb[0].mxu0 %v3679
        %v3805 = vpop.f32.mrb[0].mxu0
        %v3806 = vadd.f32 %v3573, %v3805
        %v3807 = vpop.f32.mrb[0].mxu0
        %v3808 = vpop.f32.mrb[0].mxu0
        %v3809 = vadd.f32 %v3576, %v3808
        %v3810 = vpop.f32.mrb[0].mxu0
        %3811 = vmatprep.mubr.bf16.mxu0 0
        %3812 = vmatmul.mubr.bf16.gmra.mrb[0].mxu0 %v3682
        %v3813 = vpop.f32.mrb[0].mxu0
        %v3814 = vadd.f32 %v3581, %v3813
        %v3815 = vpop.f32.mrb[0].mxu0
        %v3816 = vpop.f32.mrb[0].mxu0
        %v3817 = vadd.f32 %v3584, %v3816
        %v3818 = vpop.f32.mrb[0].mxu0
        %3819 = vmatprep.mubr.bf16.mxu0 0
        %3820 = vmatmul.mubr.bf16.gmra.mrb[0].mxu0 %v3685
        %v3821 = vpop.f32.mrb[0].mxu0
        %v3822 = vadd.f32 %v3589, %v3821
        %v3823 = vpop.f32.mrb[0].mxu0
        %v3824 = vpop.f32.mrb[0].mxu0
        %v3825 = vadd.f32 %v3592, %v3824
        %v3826 = vpop.f32.mrb[0].mxu0
        %3827 = vmatprep.mubr.bf16.mxu0 0
        %3828 = vmatmul.mubr.bf16.gmra.mrb[0].mxu0 %v3688
        %v3829 = vpop.f32.mrb[0].mxu0
        %v3830 = vadd.f32 %v3597, %v3829
        %v3831 = vpop.f32.mrb[0].mxu0
        %v3832 = vpop.f32.mrb[0].mxu0
        %v3833 = vadd.f32 %v3600, %v3832
        %v3834 = vpop.f32.mrb[0].mxu0
        %3835 = vmatprep.mubr.bf16.mxu0 0
        %3836 = vmatmul.mubr.bf16.gmra.mrb[0].mxu0 %v3691
        %v3837 = vpop.f32.mrb[0].mxu0
        %v3838 = vadd.f32 %v3605, %v3837
        %v3839 = vpop.f32.mrb[0].mxu0
        %v3840 = vpop.f32.mrb[0].mxu0
        %v3841 = vadd.f32 %v3608, %v3840
        %v3842 = vpop.f32.mrb[0].mxu0
        %3843 = vmatprep.mubr.bf16.mxu0 0
        %3844 = vmatmul.mubr.bf16.gmra.mrb[0].mxu0 %v3694
        %v3845 = vpop.f32.mrb[0].mxu0
        %v3846 = vadd.f32 %v3613, %v3845
        %v3847 = vpop.f32.mrb[0].mxu0
        %v3848 = vpop.f32.mrb[0].mxu0
        %v3849 = vadd.f32 %v3616, %v3848
        %v3850 = vpop.f32.mrb[0].mxu0
        %3851 = vmatprep.mubr.bf16.mxu0 0
        %3852 = vmatmul.mubr.bf16.gmra.mrb[0].mxu0 %v3697
        %v3853 = vpop.f32.mrb[0].mxu0
        %v3854 = vadd.f32 %v3621, %v3853
        %v3855 = vpop.f32.mrb[0].mxu0
        %v3856 = vpop.f32.mrb[0].mxu0
        %v3857 = vadd.f32 %v3624, %v3856
        %v3858 = vpop.f32.mrb[0].mxu0
        %3859 = vdwg.mxu0
        %v3860 = vld [vmem:[#allocation2 + $0x2] sm:$0xff]
        %v3861 = vld [vmem:[#allocation2 + $0xa] sm:$0xff]
        %v3862 = vld [vmem:[#allocation2 + $0x1a] sm:$0xff]
        %v3863 = vld [vmem:[#allocation2 + $0x22] sm:$0xff]
        %v3864 = vld [vmem:[#allocation2 + $0x32] sm:$0xff]
        %v3865 = vld [vmem:[#allocation2 + $0x3a] sm:$0xff]
        %v3866 = vld [vmem:[#allocation2 + $0x4a] sm:$0xff]
        %v3867 = vld [vmem:[#allocation2 + $0x52] sm:$0xff]
        %v3868 = vld [vmem:[#allocation2 + $0x62] sm:$0xff]
        %v3869 = vld [vmem:[#allocation2 + $0x6a] sm:$0xff]
        %v3870 = vld [vmem:[#allocation2 + $0x7a] sm:$0xff]
        %v3871 = vld [vmem:[#allocation2 + $0x82] sm:$0xff]
        %v3872 = vld [vmem:[#allocation2 + $0x92] sm:$0xff]
        %v3873 = vld [vmem:[#allocation2 + $0x9a] sm:$0xff]
        %v3874 = vld [vmem:[#allocation2 + $0xaa] sm:$0xff]
        %v3875 = vld [vmem:[#allocation2 + $0xb2] sm:$0xff]
        %v3876 = vld [vmem:[#allocation2 + $0xc2] sm:$0xff]
        %v3877 = vld [vmem:[#allocation2 + $0xca] sm:$0xff]
        %v3878 = vld [vmem:[#allocation2 + $0xda] sm:$0xff]
        %v3879 = vld [vmem:[#allocation2 + $0xe2] sm:$0xff]
        %v3880 = vld [vmem:[#allocation2 + $0xf2] sm:$0xff]
        %v3881 = vld [vmem:[#allocation2 + $0xfa] sm:$0xff]
        %v3882 = vld [vmem:[#allocation2 + $0x10a] sm:$0xff]
        %v3883 = vld [vmem:[#allocation2 + $0x112] sm:$0xff]
        %v3884 = vld [vmem:[#allocation2 + $0x122] sm:$0xff]
        %v3885 = vld [vmem:[#allocation2 + $0x12a] sm:$0xff]
        %v3886 = vld [vmem:[#allocation2 + $0x13a] sm:$0xff]
        %v3887 = vld [vmem:[#allocation2 + $0x142] sm:$0xff]
        %v3888 = vld [vmem:[#allocation2 + $0x152] sm:$0xff]
        %v3889 = vld [vmem:[#allocation2 + $0x15a] sm:$0xff]
        %v3890 = vld [vmem:[#allocation2 + $0x16a] sm:$0xff]
        %v3891 = vld [vmem:[#allocation2 + $0x172] sm:$0xff]
        %v3892 = vpack.c.bf16 %v3861, %v3860
        %v3893 = vpack.c.bf16 %v3863, %v3862
        %v3894 = vpack.c.bf16 %v3865, %v3864
        %v3895 = vpack.c.bf16 %v3867, %v3866
        %v3896 = vpack.c.bf16 %v3869, %v3868
        %v3897 = vpack.c.bf16 %v3871, %v3870
        %v3898 = vpack.c.bf16 %v3873, %v3872
        %v3899 = vpack.c.bf16 %v3875, %v3874
        %v3900 = vpack.c.bf16 %v3877, %v3876
        %v3901 = vpack.c.bf16 %v3879, %v3878
        %v3902 = vpack.c.bf16 %v3881, %v3880
        %v3903 = vpack.c.bf16 %v3883, %v3882
        %v3904 = vpack.c.bf16 %v3885, %v3884
        %v3905 = vpack.c.bf16 %v3887, %v3886
        %v3906 = vpack.c.bf16 %v3889, %v3888
        %v3907 = vpack.c.bf16 %v3891, %v3890
        %s3908 = scalar_lea.vmem %s3, 64
        %v3909 = vld [vmem:[%s3908] sm:$0xf]
        %v3910 = vld [vmem:[%s3908 + $0x4] sm:$0xf]
        %v3911 = vld [vmem:[%s3908 + $0x8] sm:$0xf]
        %v3912 = vld [vmem:[%s3908 + $0xc] sm:$0xf]
        %v3913 = vld [vmem:[%s3908 + $0x10] sm:$0xf]
        %v3914 = vld [vmem:[%s3908 + $0x14] sm:$0xf]
        %v3915 = vld [vmem:[%s3908 + $0x18] sm:$0xf]
        %v3916 = vld [vmem:[%s3908 + $0x1c] sm:$0xf]
        %v3925 = vunpack.c.l.b16 %v3909
        %v3926 = vunpack.c.l.b16 %v3910
        %v3927 = vunpack.c.l.b16 %v3911
        %v3928 = vunpack.c.l.b16 %v3912
        %v3929 = vunpack.c.l.b16 %v3913
        %v3930 = vunpack.c.l.b16 %v3914
        %v3931 = vunpack.c.l.b16 %v3915
        %v3932 = vunpack.c.l.b16 %v3916
        %v3933 = vpack.c.b16 %v3926, %v3925
        %v3934 = vpack.c.b16 %v3928, %v3927
        %v3935 = vpack.c.b16 %v3930, %v3929
        %v3936 = vpack.c.b16 %v3932, %v3931
        %v3942 = vsel %vm388, %v3892, 0
        %v3945 = vsel %vm388, %v3893, 0
        %v3948 = vsel %vm388, %v3894, 0
        %v3951 = vsel %vm388, %v3895, 0
        %v3954 = vsel %vm388, %v3896, 0
        %v3957 = vsel %vm388, %v3897, 0
        %v3960 = vsel %vm388, %v3898, 0
        %v3963 = vsel %vm388, %v3899, 0
        %v3966 = vsel %vm388, %v3900, 0
        %v3969 = vsel %vm388, %v3901, 0
        %v3972 = vsel %vm388, %v3902, 0
        %v3975 = vsel %vm388, %v3903, 0
        %v3978 = vsel %vm388, %v3904, 0
        %v3981 = vsel %vm388, %v3905, 0
        %v3984 = vsel %vm388, %v3906, 0
        %v3987 = vsel %vm388, %v3907, 0
        %3989 = vmatprep.subr.bf16.mxu0 0
        %3990 = vmatpush1.bf16.msra.mxu0 %v3933
        %3991 = vmatprep.subr.bf16.mxu0 0
        %3992 = vmatpush1.bf16.msra.mxu0 %v3934
        %3993 = vmatprep.subr.bf16.mxu0 0
        %3994 = vmatpush1.bf16.msra.mxu0 %v3935
        %3995 = vmatprep.subr.bf16.mxu0 0
        %3996 = vmatpush1.bf16.msra.mxu0 %v3936
        %3997 = vmatprep.subr.bf16.mxu0 0
        %3998 = vmatpush1.bf16.msra.mxu0 0
        %3999 = vmatprep.subr.bf16.mxu0 0
        %4000 = vmatpush1.bf16.msra.mxu0 0
        %4001 = vmatprep.subr.bf16.mxu0 0
        %4002 = vmatpush1.bf16.msra.mxu0 0
        %4003 = vmatprep.subr.bf16.mxu0 0
        %4004 = vmatpush1.bf16.msra.mxu0 0
        %4005 = vmatprep.subr.bf16.mxu0 0
        %4006 = vmatpush1.bf16.msra.mxu0 0
        %4007 = vmatprep.subr.bf16.mxu0 0
        %4008 = vmatpush1.bf16.msra.mxu0 0
        %4009 = vmatprep.subr.bf16.mxu0 0
        %4010 = vmatpush1.bf16.msra.mxu0 0
        %4011 = vmatprep.subr.bf16.mxu0 0
        %4012 = vmatpush1.bf16.msra.mxu0 0
        %4013 = vmatprep.subr.bf16.mxu0 0
        %4014 = vmatpush1.bf16.msra.mxu0 0
        %4015 = vmatprep.subr.bf16.mxu0 0
        %4016 = vmatpush1.bf16.msra.mxu0 0
        %4017 = vmatprep.subr.bf16.mxu0 0
        %4018 = vmatpush1.bf16.msra.mxu0 0
        %4019 = vmatprep.subr.bf16.mxu0 0
        %4020 = vmatpush1.bf16.msra.mxu0 0
        %4021 = vmatprep.mubr.bf16.mxu0 0
        %4022 = vmatmul.mubr.bf16.gmra.mrb[0].mxu0 %v3942
        %v4023 = vpop.f32.mrb[0].mxu0
        %v4024 = vadd.f32 0.0, %v4023
        %v4025 = vpop.f32.mrb[0].mxu0
        %v4026 = vpop.f32.mrb[0].mxu0
        %v4027 = vadd.f32 0.0, %v4026
        %v4028 = vpop.f32.mrb[0].mxu0
        %4029 = vmatprep.mubr.bf16.mxu0 0
        %4030 = vmatmul.mubr.bf16.gmra.mrb[0].mxu0 %v3945
        %v4031 = vpop.f32.mrb[0].mxu0
        %v4032 = vadd.f32 0.0, %v4031
        %v4033 = vpop.f32.mrb[0].mxu0
        %v4034 = vpop.f32.mrb[0].mxu0
        %v4035 = vadd.f32 0.0, %v4034
        %v4036 = vpop.f32.mrb[0].mxu0
        %4037 = vmatprep.mubr.bf16.mxu0 0
        %4038 = vmatmul.mubr.bf16.gmra.mrb[0].mxu0 %v3948
        %v4039 = vpop.f32.mrb[0].mxu0
        %v4040 = vadd.f32 0.0, %v4039
        %v4041 = vpop.f32.mrb[0].mxu0
        %v4042 = vpop.f32.mrb[0].mxu0
        %v4043 = vadd.f32 0.0, %v4042
        %v4044 = vpop.f32.mrb[0].mxu0
        %4045 = vmatprep.mubr.bf16.mxu0 0
        %4046 = vmatmul.mubr.bf16.gmra.mrb[0].mxu0 %v3951
        %v4047 = vpop.f32.mrb[0].mxu0
        %v4048 = vadd.f32 0.0, %v4047
        %v4049 = vpop.f32.mrb[0].mxu0
        %v4050 = vpop.f32.mrb[0].mxu0
        %v4051 = vadd.f32 0.0, %v4050
        %v4052 = vpop.f32.mrb[0].mxu0
        %4053 = vmatprep.mubr.bf16.mxu0 0
        %4054 = vmatmul.mubr.bf16.gmra.mrb[0].mxu0 %v3954
        %v4055 = vpop.f32.mrb[0].mxu0
        %v4056 = vadd.f32 0.0, %v4055
        %v4057 = vpop.f32.mrb[0].mxu0
        %v4058 = vpop.f32.mrb[0].mxu0
        %v4059 = vadd.f32 0.0, %v4058
        %v4060 = vpop.f32.mrb[0].mxu0
        %4061 = vmatprep.mubr.bf16.mxu0 0
        %4062 = vmatmul.mubr.bf16.gmra.mrb[0].mxu0 %v3957
        %v4063 = vpop.f32.mrb[0].mxu0
        %v4064 = vadd.f32 0.0, %v4063
        %v4065 = vpop.f32.mrb[0].mxu0
        %v4066 = vpop.f32.mrb[0].mxu0
        %v4067 = vadd.f32 0.0, %v4066
        %v4068 = vpop.f32.mrb[0].mxu0
        %4069 = vmatprep.mubr.bf16.mxu0 0
        %4070 = vmatmul.mubr.bf16.gmra.mrb[0].mxu0 %v3960
        %v4071 = vpop.f32.mrb[0].mxu0
        %v4072 = vadd.f32 0.0, %v4071
        %v4073 = vpop.f32.mrb[0].mxu0
        %v4074 = vpop.f32.mrb[0].mxu0
        %v4075 = vadd.f32 0.0, %v4074
        %v4076 = vpop.f32.mrb[0].mxu0
        %4077 = vmatprep.mubr.bf16.mxu0 0
        %4078 = vmatmul.mubr.bf16.gmra.mrb[0].mxu0 %v3963
        %v4079 = vpop.f32.mrb[0].mxu0
        %v4080 = vadd.f32 0.0, %v4079
        %v4081 = vpop.f32.mrb[0].mxu0
        %v4082 = vpop.f32.mrb[0].mxu0
        %v4083 = vadd.f32 0.0, %v4082
        %v4084 = vpop.f32.mrb[0].mxu0
        %4085 = vmatprep.mubr.bf16.mxu0 0
        %4086 = vmatmul.mubr.bf16.gmra.mrb[0].mxu0 %v3966
        %v4087 = vpop.f32.mrb[0].mxu0
        %v4088 = vadd.f32 0.0, %v4087
        %v4089 = vpop.f32.mrb[0].mxu0
        %v4090 = vpop.f32.mrb[0].mxu0
        %v4091 = vadd.f32 0.0, %v4090
        %v4092 = vpop.f32.mrb[0].mxu0
        %4093 = vmatprep.mubr.bf16.mxu0 0
        %4094 = vmatmul.mubr.bf16.gmra.mrb[0].mxu0 %v3969
        %v4095 = vpop.f32.mrb[0].mxu0
        %v4096 = vadd.f32 0.0, %v4095
        %v4097 = vpop.f32.mrb[0].mxu0
        %v4098 = vpop.f32.mrb[0].mxu0
        %v4099 = vadd.f32 0.0, %v4098
        %v4100 = vpop.f32.mrb[0].mxu0
        %4101 = vmatprep.mubr.bf16.mxu0 0
        %4102 = vmatmul.mubr.bf16.gmra.mrb[0].mxu0 %v3972
        %v4103 = vpop.f32.mrb[0].mxu0
        %v4104 = vadd.f32 0.0, %v4103
        %v4105 = vpop.f32.mrb[0].mxu0
        %v4106 = vpop.f32.mrb[0].mxu0
        %v4107 = vadd.f32 0.0, %v4106
        %v4108 = vpop.f32.mrb[0].mxu0
        %4109 = vmatprep.mubr.bf16.mxu0 0
        %4110 = vmatmul.mubr.bf16.gmra.mrb[0].mxu0 %v3975
        %v4111 = vpop.f32.mrb[0].mxu0
        %v4112 = vadd.f32 0.0, %v4111
        %v4113 = vpop.f32.mrb[0].mxu0
        %v4114 = vpop.f32.mrb[0].mxu0
        %v4115 = vadd.f32 0.0, %v4114
        %v4116 = vpop.f32.mrb[0].mxu0
        %4117 = vmatprep.mubr.bf16.mxu0 0
        %4118 = vmatmul.mubr.bf16.gmra.mrb[0].mxu0 %v3978
        %v4119 = vpop.f32.mrb[0].mxu0
        %v4120 = vadd.f32 0.0, %v4119
        %v4121 = vpop.f32.mrb[0].mxu0
        %v4122 = vpop.f32.mrb[0].mxu0
        %v4123 = vadd.f32 0.0, %v4122
        %v4124 = vpop.f32.mrb[0].mxu0
        %4125 = vmatprep.mubr.bf16.mxu0 0
        %4126 = vmatmul.mubr.bf16.gmra.mrb[0].mxu0 %v3981
        %v4127 = vpop.f32.mrb[0].mxu0
        %v4128 = vadd.f32 0.0, %v4127
        %v4129 = vpop.f32.mrb[0].mxu0
        %v4130 = vpop.f32.mrb[0].mxu0
        %v4131 = vadd.f32 0.0, %v4130
        %v4132 = vpop.f32.mrb[0].mxu0
        %4133 = vmatprep.mubr.bf16.mxu0 0
        %4134 = vmatmul.mubr.bf16.gmra.mrb[0].mxu0 %v3984
        %v4135 = vpop.f32.mrb[0].mxu0
        %v4136 = vadd.f32 0.0, %v4135
        %v4137 = vpop.f32.mrb[0].mxu0
        %v4138 = vpop.f32.mrb[0].mxu0
        %v4139 = vadd.f32 0.0, %v4138
        %v4140 = vpop.f32.mrb[0].mxu0
        %4141 = vmatprep.mubr.bf16.mxu0 0
        %4142 = vmatmul.mubr.bf16.gmra.mrb[0].mxu0 %v3987
        %v4143 = vpop.f32.mrb[0].mxu0
        %v4144 = vadd.f32 0.0, %v4143
        %v4145 = vpop.f32.mrb[0].mxu0
        %v4146 = vpop.f32.mrb[0].mxu0
        %v4147 = vadd.f32 0.0, %v4146
        %v4148 = vpop.f32.mrb[0].mxu0
        %4149 = vdwg.mxu0
        %v4150 = vadd.f32 %v3734, %v4024
        %v4151 = vadd.f32 %v3737, %v4027
        %v4152 = vadd.f32 %v3742, %v4032
        %v4153 = vadd.f32 %v3745, %v4035
        %v4154 = vadd.f32 %v3750, %v4040
        %v4155 = vadd.f32 %v3753, %v4043
        %v4156 = vadd.f32 %v3758, %v4048
        %v4157 = vadd.f32 %v3761, %v4051
        %v4158 = vadd.f32 %v3766, %v4056
        %v4159 = vadd.f32 %v3769, %v4059
        %v4160 = vadd.f32 %v3774, %v4064
        %v4161 = vadd.f32 %v3777, %v4067
        %v4162 = vadd.f32 %v3782, %v4072
        %v4163 = vadd.f32 %v3785, %v4075
        %v4164 = vadd.f32 %v3790, %v4080
        %v4165 = vadd.f32 %v3793, %v4083
        %v4166 = vadd.f32 %v3798, %v4088
        %v4167 = vadd.f32 %v3801, %v4091
        %v4168 = vadd.f32 %v3806, %v4096
        %v4169 = vadd.f32 %v3809, %v4099
        %v4170 = vadd.f32 %v3814, %v4104
        %v4171 = vadd.f32 %v3817, %v4107
        %v4172 = vadd.f32 %v3822, %v4112
        %v4173 = vadd.f32 %v3825, %v4115
        %v4174 = vadd.f32 %v3830, %v4120
        %v4175 = vadd.f32 %v3833, %v4123
        %v4176 = vadd.f32 %v3838, %v4128
        %v4177 = vadd.f32 %v3841, %v4131
        %v4178 = vadd.f32 %v3846, %v4136
        %v4179 = vadd.f32 %v3849, %v4139
        %v4180 = vadd.f32 %v3854, %v4144
        %v4181 = vadd.f32 %v3857, %v4147
        %v4182 = vld [vmem:[%s3248] sm:$0xff]
        %v4183 = vld [vmem:[%s3248 + $0x8] sm:$0xff]
        %v4184 = vld [vmem:[%s3248 + $0x18] sm:$0xff]
        %v4185 = vld [vmem:[%s3248 + $0x20] sm:$0xff]
        %v4186 = vld [vmem:[%s3248 + $0x30] sm:$0xff]
        %v4187 = vld [vmem:[%s3248 + $0x38] sm:$0xff]
        %v4188 = vld [vmem:[%s3248 + $0x48] sm:$0xff]
        %v4189 = vld [vmem:[%s3248 + $0x50] sm:$0xff]
        %v4190 = vld [vmem:[%s3248 + $0x60] sm:$0xff]
        %v4191 = vld [vmem:[%s3248 + $0x68] sm:$0xff]
        %v4192 = vld [vmem:[%s3248 + $0x78] sm:$0xff]
        %v4193 = vld [vmem:[%s3248 + $0x80] sm:$0xff]
        %v4194 = vld [vmem:[%s3248 + $0x90] sm:$0xff]
        %v4195 = vld [vmem:[%s3248 + $0x98] sm:$0xff]
        %v4196 = vld [vmem:[%s3248 + $0xa8] sm:$0xff]
        %v4197 = vld [vmem:[%s3248 + $0xb0] sm:$0xff]
        %v4198 = vld [vmem:[%s3248 + $0xc0] sm:$0xff]
        %v4199 = vld [vmem:[%s3248 + $0xc8] sm:$0xff]
        %v4200 = vld [vmem:[%s3248 + $0xd8] sm:$0xff]
        %v4201 = vld [vmem:[%s3248 + $0xe0] sm:$0xff]
        %v4202 = vld [vmem:[%s3248 + $0xf0] sm:$0xff]
        %v4203 = vld [vmem:[%s3248 + $0xf8] sm:$0xff]
        %v4204 = vld [vmem:[%s3248 + $0x108] sm:$0xff]
        %v4205 = vld [vmem:[%s3248 + $0x110] sm:$0xff]
        %v4206 = vld [vmem:[%s3248 + $0x120] sm:$0xff]
        %v4207 = vld [vmem:[%s3248 + $0x128] sm:$0xff]
        %v4208 = vld [vmem:[%s3248 + $0x138] sm:$0xff]
        %v4209 = vld [vmem:[%s3248 + $0x140] sm:$0xff]
        %v4210 = vld [vmem:[%s3248 + $0x150] sm:$0xff]
        %v4211 = vld [vmem:[%s3248 + $0x158] sm:$0xff]
        %v4212 = vld [vmem:[%s3248 + $0x168] sm:$0xff]
        %v4213 = vld [vmem:[%s3248 + $0x170] sm:$0xff]
        %v4214 = vpack.c.bf16 %v4183, %v4182
        %v4215 = vpack.c.bf16 %v4185, %v4184
        %v4216 = vpack.c.bf16 %v4187, %v4186
        %v4217 = vpack.c.bf16 %v4189, %v4188
        %v4218 = vpack.c.bf16 %v4191, %v4190
        %v4219 = vpack.c.bf16 %v4193, %v4192
        %v4220 = vpack.c.bf16 %v4195, %v4194
        %v4221 = vpack.c.bf16 %v4197, %v4196
        %v4222 = vpack.c.bf16 %v4199, %v4198
        %v4223 = vpack.c.bf16 %v4201, %v4200
        %v4224 = vpack.c.bf16 %v4203, %v4202
        %v4225 = vpack.c.bf16 %v4205, %v4204
        %v4226 = vpack.c.bf16 %v4207, %v4206
        %v4227 = vpack.c.bf16 %v4209, %v4208
        %v4228 = vpack.c.bf16 %v4211, %v4210
        %v4229 = vpack.c.bf16 %v4213, %v4212
        %s4230 = scalar_lea.vmem %s3, 96
        %v4231 = vld [vmem:[%s4230] sm:$0xf]
        %v4232 = vld [vmem:[%s4230 + $0x4] sm:$0xf]
        %v4233 = vld [vmem:[%s4230 + $0x8] sm:$0xf]
        %v4234 = vld [vmem:[%s4230 + $0xc] sm:$0xf]
        %v4235 = vld [vmem:[%s4230 + $0x10] sm:$0xf]
        %v4236 = vld [vmem:[%s4230 + $0x14] sm:$0xf]
        %v4237 = vld [vmem:[%s4230 + $0x18] sm:$0xf]
        %v4238 = vld [vmem:[%s4230 + $0x1c] sm:$0xf]
        %v4247 = vunpack.c.l.b16 %v4231
        %v4248 = vunpack.c.l.b16 %v4232
        %v4249 = vunpack.c.l.b16 %v4233
        %v4250 = vunpack.c.l.b16 %v4234
        %v4251 = vunpack.c.l.b16 %v4235
        %v4252 = vunpack.c.l.b16 %v4236
        %v4253 = vunpack.c.l.b16 %v4237
        %v4254 = vunpack.c.l.b16 %v4238
        %v4255 = vpack.c.b16 %v4248, %v4247
        %v4256 = vpack.c.b16 %v4250, %v4249
        %v4257 = vpack.c.b16 %v4252, %v4251
        %v4258 = vpack.c.b16 %v4254, %v4253
        %v4264 = vsel %vm388, %v4214, 0
        %v4267 = vsel %vm388, %v4215, 0
        %v4270 = vsel %vm388, %v4216, 0
        %v4273 = vsel %vm388, %v4217, 0
        %v4276 = vsel %vm388, %v4218, 0
        %v4279 = vsel %vm388, %v4219, 0
        %v4282 = vsel %vm388, %v4220, 0
        %v4285 = vsel %vm388, %v4221, 0
        %v4288 = vsel %vm388, %v4222, 0
        %v4291 = vsel %vm388, %v4223, 0
        %v4294 = vsel %vm388, %v4224, 0
        %v4297 = vsel %vm388, %v4225, 0
        %v4300 = vsel %vm388, %v4226, 0
        %v4303 = vsel %vm388, %v4227, 0
        %v4306 = vsel %vm388, %v4228, 0
        %v4309 = vsel %vm388, %v4229, 0
        %4311 = vmatprep.subr.bf16.mxu0 0
        %4312 = vmatpush1.bf16.msra.mxu0 %v4255
        %4313 = vmatprep.subr.bf16.mxu0 0
        %4314 = vmatpush1.bf16.msra.mxu0 %v4256
        %4315 = vmatprep.subr.bf16.mxu0 0
        %4316 = vmatpush1.bf16.msra.mxu0 %v4257
        %4317 = vmatprep.subr.bf16.mxu0 0
        %4318 = vmatpush1.bf16.msra.mxu0 %v4258
        %4319 = vmatprep.subr.bf16.mxu0 0
        %4320 = vmatpush1.bf16.msra.mxu0 0
        %4321 = vmatprep.subr.bf16.mxu0 0
        %4322 = vmatpush1.bf16.msra.mxu0 0
        %4323 = vmatprep.subr.bf16.mxu0 0
        %4324 = vmatpush1.bf16.msra.mxu0 0
        %4325 = vmatprep.subr.bf16.mxu0 0
        %4326 = vmatpush1.bf16.msra.mxu0 0
        %4327 = vmatprep.subr.bf16.mxu0 0
        %4328 = vmatpush1.bf16.msra.mxu0 0
        %4329 = vmatprep.subr.bf16.mxu0 0
        %4330 = vmatpush1.bf16.msra.mxu0 0
        %4331 = vmatprep.subr.bf16.mxu0 0
        %4332 = vmatpush1.bf16.msra.mxu0 0
        %4333 = vmatprep.subr.bf16.mxu0 0
        %4334 = vmatpush1.bf16.msra.mxu0 0
        %4335 = vmatprep.subr.bf16.mxu0 0
        %4336 = vmatpush1.bf16.msra.mxu0 0
        %4337 = vmatprep.subr.bf16.mxu0 0
        %4338 = vmatpush1.bf16.msra.mxu0 0
        %4339 = vmatprep.subr.bf16.mxu0 0
        %4340 = vmatpush1.bf16.msra.mxu0 0
        %4341 = vmatprep.subr.bf16.mxu0 0
        %4342 = vmatpush1.bf16.msra.mxu0 0
        %4343 = vmatprep.mubr.bf16.mxu0 0
        %4344 = vmatmul.mubr.bf16.gmra.mrb[0].mxu0 %v4264
        %v4345 = vpop.f32.mrb[0].mxu0
        %v4346 = vadd.f32 0.0, %v4345
        %v4347 = vpop.f32.mrb[0].mxu0
        %v4348 = vpop.f32.mrb[0].mxu0
        %v4349 = vadd.f32 0.0, %v4348
        %v4350 = vpop.f32.mrb[0].mxu0
        %4351 = vmatprep.mubr.bf16.mxu0 0
        %4352 = vmatmul.mubr.bf16.gmra.mrb[0].mxu0 %v4267
        %v4353 = vpop.f32.mrb[0].mxu0
        %v4354 = vadd.f32 0.0, %v4353
        %v4355 = vpop.f32.mrb[0].mxu0
        %v4356 = vpop.f32.mrb[0].mxu0
        %v4357 = vadd.f32 0.0, %v4356
        %v4358 = vpop.f32.mrb[0].mxu0
        %4359 = vmatprep.mubr.bf16.mxu0 0
        %4360 = vmatmul.mubr.bf16.gmra.mrb[0].mxu0 %v4270
        %v4361 = vpop.f32.mrb[0].mxu0
        %v4362 = vadd.f32 0.0, %v4361
        %v4363 = vpop.f32.mrb[0].mxu0
        %v4364 = vpop.f32.mrb[0].mxu0
        %v4365 = vadd.f32 0.0, %v4364
        %v4366 = vpop.f32.mrb[0].mxu0
        %4367 = vmatprep.mubr.bf16.mxu0 0
        %4368 = vmatmul.mubr.bf16.gmra.mrb[0].mxu0 %v4273
        %v4369 = vpop.f32.mrb[0].mxu0
        %v4370 = vadd.f32 0.0, %v4369
        %v4371 = vpop.f32.mrb[0].mxu0
        %v4372 = vpop.f32.mrb[0].mxu0
        %v4373 = vadd.f32 0.0, %v4372
        %v4374 = vpop.f32.mrb[0].mxu0
        %4375 = vmatprep.mubr.bf16.mxu0 0
        %4376 = vmatmul.mubr.bf16.gmra.mrb[0].mxu0 %v4276
        %v4377 = vpop.f32.mrb[0].mxu0
        %v4378 = vadd.f32 0.0, %v4377
        %v4379 = vpop.f32.mrb[0].mxu0
        %v4380 = vpop.f32.mrb[0].mxu0
        %v4381 = vadd.f32 0.0, %v4380
        %v4382 = vpop.f32.mrb[0].mxu0
        %4383 = vmatprep.mubr.bf16.mxu0 0
        %4384 = vmatmul.mubr.bf16.gmra.mrb[0].mxu0 %v4279
        %v4385 = vpop.f32.mrb[0].mxu0
        %v4386 = vadd.f32 0.0, %v4385
        %v4387 = vpop.f32.mrb[0].mxu0
        %v4388 = vpop.f32.mrb[0].mxu0
        %v4389 = vadd.f32 0.0, %v4388
        %v4390 = vpop.f32.mrb[0].mxu0
        %4391 = vmatprep.mubr.bf16.mxu0 0
        %4392 = vmatmul.mubr.bf16.gmra.mrb[0].mxu0 %v4282
        %v4393 = vpop.f32.mrb[0].mxu0
        %v4394 = vadd.f32 0.0, %v4393
        %v4395 = vpop.f32.mrb[0].mxu0
        %v4396 = vpop.f32.mrb[0].mxu0
        %v4397 = vadd.f32 0.0, %v4396
        %v4398 = vpop.f32.mrb[0].mxu0
        %4399 = vmatprep.mubr.bf16.mxu0 0
        %4400 = vmatmul.mubr.bf16.gmra.mrb[0].mxu0 %v4285
        %v4401 = vpop.f32.mrb[0].mxu0
        %v4402 = vadd.f32 0.0, %v4401
        %v4403 = vpop.f32.mrb[0].mxu0
        %v4404 = vpop.f32.mrb[0].mxu0
        %v4405 = vadd.f32 0.0, %v4404
        %v4406 = vpop.f32.mrb[0].mxu0
        %4407 = vmatprep.mubr.bf16.mxu0 0
        %4408 = vmatmul.mubr.bf16.gmra.mrb[0].mxu0 %v4288
        %v4409 = vpop.f32.mrb[0].mxu0
        %v4410 = vadd.f32 0.0, %v4409
        %v4411 = vpop.f32.mrb[0].mxu0
        %v4412 = vpop.f32.mrb[0].mxu0
        %v4413 = vadd.f32 0.0, %v4412
        %v4414 = vpop.f32.mrb[0].mxu0
        %4415 = vmatprep.mubr.bf16.mxu0 0
        %4416 = vmatmul.mubr.bf16.gmra.mrb[0].mxu0 %v4291
        %v4417 = vpop.f32.mrb[0].mxu0
        %v4418 = vadd.f32 0.0, %v4417
        %v4419 = vpop.f32.mrb[0].mxu0
        %v4420 = vpop.f32.mrb[0].mxu0
        %v4421 = vadd.f32 0.0, %v4420
        %v4422 = vpop.f32.mrb[0].mxu0
        %4423 = vmatprep.mubr.bf16.mxu0 0
        %4424 = vmatmul.mubr.bf16.gmra.mrb[0].mxu0 %v4294
        %v4425 = vpop.f32.mrb[0].mxu0
        %v4426 = vadd.f32 0.0, %v4425
        %v4427 = vpop.f32.mrb[0].mxu0
        %v4428 = vpop.f32.mrb[0].mxu0
        %v4429 = vadd.f32 0.0, %v4428
        %v4430 = vpop.f32.mrb[0].mxu0
        %4431 = vmatprep.mubr.bf16.mxu0 0
        %4432 = vmatmul.mubr.bf16.gmra.mrb[0].mxu0 %v4297
        %v4433 = vpop.f32.mrb[0].mxu0
        %v4434 = vadd.f32 0.0, %v4433
        %v4435 = vpop.f32.mrb[0].mxu0
        %v4436 = vpop.f32.mrb[0].mxu0
        %v4437 = vadd.f32 0.0, %v4436
        %v4438 = vpop.f32.mrb[0].mxu0
        %4439 = vmatprep.mubr.bf16.mxu0 0
        %4440 = vmatmul.mubr.bf16.gmra.mrb[0].mxu0 %v4300
        %v4441 = vpop.f32.mrb[0].mxu0
        %v4442 = vadd.f32 0.0, %v4441
        %v4443 = vpop.f32.mrb[0].mxu0
        %v4444 = vpop.f32.mrb[0].mxu0
        %v4445 = vadd.f32 0.0, %v4444
        %v4446 = vpop.f32.mrb[0].mxu0
        %4447 = vmatprep.mubr.bf16.mxu0 0
        %4448 = vmatmul.mubr.bf16.gmra.mrb[0].mxu0 %v4303
        %v4449 = vpop.f32.mrb[0].mxu0
        %v4450 = vadd.f32 0.0, %v4449
        %v4451 = vpop.f32.mrb[0].mxu0
        %v4452 = vpop.f32.mrb[0].mxu0
        %v4453 = vadd.f32 0.0, %v4452
        %v4454 = vpop.f32.mrb[0].mxu0
        %4455 = vmatprep.mubr.bf16.mxu0 0
        %4456 = vmatmul.mubr.bf16.gmra.mrb[0].mxu0 %v4306
        %v4457 = vpop.f32.mrb[0].mxu0
        %v4458 = vadd.f32 0.0, %v4457
        %v4459 = vpop.f32.mrb[0].mxu0
        %v4460 = vpop.f32.mrb[0].mxu0
        %v4461 = vadd.f32 0.0, %v4460
        %v4462 = vpop.f32.mrb[0].mxu0
        %4463 = vmatprep.mubr.bf16.mxu0 0
        %4464 = vmatmul.mubr.bf16.gmra.mrb[0].mxu0 %v4309
        %v4465 = vpop.f32.mrb[0].mxu0
        %v4466 = vadd.f32 0.0, %v4465
        %v4467 = vpop.f32.mrb[0].mxu0
        %v4468 = vpop.f32.mrb[0].mxu0
        %v4469 = vadd.f32 0.0, %v4468
        %v4470 = vpop.f32.mrb[0].mxu0
        %4471 = vdwg.mxu0
        %v4472 = vadd.f32 %v4150, %v4346
        %v4473 = vadd.f32 %v4151, %v4349
        %v4474 = vadd.f32 %v4152, %v4354
        %v4475 = vadd.f32 %v4153, %v4357
        %v4476 = vadd.f32 %v4154, %v4362
        %v4477 = vadd.f32 %v4155, %v4365
        %v4478 = vadd.f32 %v4156, %v4370
        %v4479 = vadd.f32 %v4157, %v4373
        %v4480 = vadd.f32 %v4158, %v4378
        %v4481 = vadd.f32 %v4159, %v4381
        %v4482 = vadd.f32 %v4160, %v4386
        %v4483 = vadd.f32 %v4161, %v4389
        %v4484 = vadd.f32 %v4162, %v4394
        %v4485 = vadd.f32 %v4163, %v4397
        %v4486 = vadd.f32 %v4164, %v4402
        %v4487 = vadd.f32 %v4165, %v4405
        %v4488 = vadd.f32 %v4166, %v4410
        %v4489 = vadd.f32 %v4167, %v4413
        %v4490 = vadd.f32 %v4168, %v4418
        %v4491 = vadd.f32 %v4169, %v4421
        %v4492 = vadd.f32 %v4170, %v4426
        %v4493 = vadd.f32 %v4171, %v4429
        %v4494 = vadd.f32 %v4172, %v4434
        %v4495 = vadd.f32 %v4173, %v4437
        %v4496 = vadd.f32 %v4174, %v4442
        %v4497 = vadd.f32 %v4175, %v4445
        %v4498 = vadd.f32 %v4176, %v4450
        %v4499 = vadd.f32 %v4177, %v4453
        %v4500 = vadd.f32 %v4178, %v4458
        %v4501 = vadd.f32 %v4179, %v4461
        %v4502 = vadd.f32 %v4180, %v4466
        %v4503 = vadd.f32 %v4181, %v4469
        %v4504 = vld [vmem:[%s3248 + $0x1] sm:$0xff]
        %v4505 = vld [vmem:[%s3248 + $0x9] sm:$0xff]
        %v4506 = vld [vmem:[%s3248 + $0x19] sm:$0xff]
        %v4507 = vld [vmem:[%s3248 + $0x21] sm:$0xff]
        %v4508 = vld [vmem:[%s3248 + $0x31] sm:$0xff]
        %v4509 = vld [vmem:[%s3248 + $0x39] sm:$0xff]
        %v4510 = vld [vmem:[%s3248 + $0x49] sm:$0xff]
        %v4511 = vld [vmem:[%s3248 + $0x51] sm:$0xff]
        %v4512 = vld [vmem:[%s3248 + $0x61] sm:$0xff]
        %v4513 = vld [vmem:[%s3248 + $0x69] sm:$0xff]
        %v4514 = vld [vmem:[%s3248 + $0x79] sm:$0xff]
        %v4515 = vld [vmem:[%s3248 + $0x81] sm:$0xff]
        %v4516 = vld [vmem:[%s3248 + $0x91] sm:$0xff]
        %v4517 = vld [vmem:[%s3248 + $0x99] sm:$0xff]
        %v4518 = vld [vmem:[%s3248 + $0xa9] sm:$0xff]
        %v4519 = vld [vmem:[%s3248 + $0xb1] sm:$0xff]
        %v4520 = vld [vmem:[%s3248 + $0xc1] sm:$0xff]
        %v4521 = vld [vmem:[%s3248 + $0xc9] sm:$0xff]
        %v4522 = vld [vmem:[%s3248 + $0xd9] sm:$0xff]
        %v4523 = vld [vmem:[%s3248 + $0xe1] sm:$0xff]
        %v4524 = vld [vmem:[%s3248 + $0xf1] sm:$0xff]
        %v4525 = vld [vmem:[%s3248 + $0xf9] sm:$0xff]
        %v4526 = vld [vmem:[%s3248 + $0x109] sm:$0xff]
        %v4527 = vld [vmem:[%s3248 + $0x111] sm:$0xff]
        %v4528 = vld [vmem:[%s3248 + $0x121] sm:$0xff]
        %v4529 = vld [vmem:[%s3248 + $0x129] sm:$0xff]
        %v4530 = vld [vmem:[%s3248 + $0x139] sm:$0xff]
        %v4531 = vld [vmem:[%s3248 + $0x141] sm:$0xff]
        %v4532 = vld [vmem:[%s3248 + $0x151] sm:$0xff]
        %v4533 = vld [vmem:[%s3248 + $0x159] sm:$0xff]
        %v4534 = vld [vmem:[%s3248 + $0x169] sm:$0xff]
        %v4535 = vld [vmem:[%s3248 + $0x171] sm:$0xff]
        %v4536 = vpack.c.bf16 %v4505, %v4504
        %v4537 = vpack.c.bf16 %v4507, %v4506
        %v4538 = vpack.c.bf16 %v4509, %v4508
        %v4539 = vpack.c.bf16 %v4511, %v4510
        %v4540 = vpack.c.bf16 %v4513, %v4512
        %v4541 = vpack.c.bf16 %v4515, %v4514
        %v4542 = vpack.c.bf16 %v4517, %v4516
        %v4543 = vpack.c.bf16 %v4519, %v4518
        %v4544 = vpack.c.bf16 %v4521, %v4520
        %v4545 = vpack.c.bf16 %v4523, %v4522
        %v4546 = vpack.c.bf16 %v4525, %v4524
        %v4547 = vpack.c.bf16 %v4527, %v4526
        %v4548 = vpack.c.bf16 %v4529, %v4528
        %v4549 = vpack.c.bf16 %v4531, %v4530
        %v4550 = vpack.c.bf16 %v4533, %v4532
        %v4551 = vpack.c.bf16 %v4535, %v4534
        %s4552 = scalar_lea.vmem %s3, 128
        %v4553 = vld [vmem:[%s4552] sm:$0xf]
        %v4554 = vld [vmem:[%s4552 + $0x4] sm:$0xf]
        %v4555 = vld [vmem:[%s4552 + $0x8] sm:$0xf]
        %v4556 = vld [vmem:[%s4552 + $0xc] sm:$0xf]
        %v4557 = vld [vmem:[%s4552 + $0x10] sm:$0xf]
        %v4558 = vld [vmem:[%s4552 + $0x14] sm:$0xf]
        %v4559 = vld [vmem:[%s4552 + $0x18] sm:$0xf]
        %v4560 = vld [vmem:[%s4552 + $0x1c] sm:$0xf]
        %v4569 = vunpack.c.l.b16 %v4553
        %v4570 = vunpack.c.l.b16 %v4554
        %v4571 = vunpack.c.l.b16 %v4555
        %v4572 = vunpack.c.l.b16 %v4556
        %v4573 = vunpack.c.l.b16 %v4557
        %v4574 = vunpack.c.l.b16 %v4558
        %v4575 = vunpack.c.l.b16 %v4559
        %v4576 = vunpack.c.l.b16 %v4560
        %v4577 = vpack.c.b16 %v4570, %v4569
        %v4578 = vpack.c.b16 %v4572, %v4571
        %v4579 = vpack.c.b16 %v4574, %v4573
        %v4580 = vpack.c.b16 %v4576, %v4575
        %v4586 = vsel %vm388, %v4536, 0
        %v4589 = vsel %vm388, %v4537, 0
        %v4592 = vsel %vm388, %v4538, 0
        %v4595 = vsel %vm388, %v4539, 0
        %v4598 = vsel %vm388, %v4540, 0
        %v4601 = vsel %vm388, %v4541, 0
        %v4604 = vsel %vm388, %v4542, 0
        %v4607 = vsel %vm388, %v4543, 0
        %v4610 = vsel %vm388, %v4544, 0
        %v4613 = vsel %vm388, %v4545, 0
        %v4616 = vsel %vm388, %v4546, 0
        %v4619 = vsel %vm388, %v4547, 0
        %v4622 = vsel %vm388, %v4548, 0
        %v4625 = vsel %vm388, %v4549, 0
        %v4628 = vsel %vm388, %v4550, 0
        %v4631 = vsel %vm388, %v4551, 0
        %4633 = vmatprep.subr.bf16.mxu0 0
        %4634 = vmatpush1.bf16.msra.mxu0 %v4577
        %4635 = vmatprep.subr.bf16.mxu0 0
        %4636 = vmatpush1.bf16.msra.mxu0 %v4578
        %4637 = vmatprep.subr.bf16.mxu0 0
        %4638 = vmatpush1.bf16.msra.mxu0 %v4579
        %4639 = vmatprep.subr.bf16.mxu0 0
        %4640 = vmatpush1.bf16.msra.mxu0 %v4580
        %4641 = vmatprep.subr.bf16.mxu0 0
        %4642 = vmatpush1.bf16.msra.mxu0 0
        %4643 = vmatprep.subr.bf16.mxu0 0
        %4644 = vmatpush1.bf16.msra.mxu0 0
        %4645 = vmatprep.subr.bf16.mxu0 0
        %4646 = vmatpush1.bf16.msra.mxu0 0
        %4647 = vmatprep.subr.bf16.mxu0 0
        %4648 = vmatpush1.bf16.msra.mxu0 0
        %4649 = vmatprep.subr.bf16.mxu0 0
        %4650 = vmatpush1.bf16.msra.mxu0 0
        %4651 = vmatprep.subr.bf16.mxu0 0
        %4652 = vmatpush1.bf16.msra.mxu0 0
        %4653 = vmatprep.subr.bf16.mxu0 0
        %4654 = vmatpush1.bf16.msra.mxu0 0
        %4655 = vmatprep.subr.bf16.mxu0 0
        %4656 = vmatpush1.bf16.msra.mxu0 0
        %4657 = vmatprep.subr.bf16.mxu0 0
        %4658 = vmatpush1.bf16.msra.mxu0 0
        %4659 = vmatprep.subr.bf16.mxu0 0
        %4660 = vmatpush1.bf16.msra.mxu0 0
        %4661 = vmatprep.subr.bf16.mxu0 0
        %4662 = vmatpush1.bf16.msra.mxu0 0
        %4663 = vmatprep.subr.bf16.mxu0 0
        %4664 = vmatpush1.bf16.msra.mxu0 0
        %4665 = vmatprep.mubr.bf16.mxu0 0
        %4666 = vmatmul.mubr.bf16.gmra.mrb[0].mxu0 %v4586
        %v4667 = vpop.f32.mrb[0].mxu0
        %v4668 = vadd.f32 0.0, %v4667
        %v4669 = vpop.f32.mrb[0].mxu0
        %v4670 = vpop.f32.mrb[0].mxu0
        %v4671 = vadd.f32 0.0, %v4670
        %v4672 = vpop.f32.mrb[0].mxu0
        %4673 = vmatprep.mubr.bf16.mxu0 0
        %4674 = vmatmul.mubr.bf16.gmra.mrb[0].mxu0 %v4589
        %v4675 = vpop.f32.mrb[0].mxu0
        %v4676 = vadd.f32 0.0, %v4675
        %v4677 = vpop.f32.mrb[0].mxu0
        %v4678 = vpop.f32.mrb[0].mxu0
        %v4679 = vadd.f32 0.0, %v4678
        %v4680 = vpop.f32.mrb[0].mxu0
        %4681 = vmatprep.mubr.bf16.mxu0 0
        %4682 = vmatmul.mubr.bf16.gmra.mrb[0].mxu0 %v4592
        %v4683 = vpop.f32.mrb[0].mxu0
        %v4684 = vadd.f32 0.0, %v4683
        %v4685 = vpop.f32.mrb[0].mxu0
        %v4686 = vpop.f32.mrb[0].mxu0
        %v4687 = vadd.f32 0.0, %v4686
        %v4688 = vpop.f32.mrb[0].mxu0
        %4689 = vmatprep.mubr.bf16.mxu0 0
        %4690 = vmatmul.mubr.bf16.gmra.mrb[0].mxu0 %v4595
        %v4691 = vpop.f32.mrb[0].mxu0
        %v4692 = vadd.f32 0.0, %v4691
        %v4693 = vpop.f32.mrb[0].mxu0
        %v4694 = vpop.f32.mrb[0].mxu0
        %v4695 = vadd.f32 0.0, %v4694
        %v4696 = vpop.f32.mrb[0].mxu0
        %4697 = vmatprep.mubr.bf16.mxu0 0
        %4698 = vmatmul.mubr.bf16.gmra.mrb[0].mxu0 %v4598
        %v4699 = vpop.f32.mrb[0].mxu0
        %v4700 = vadd.f32 0.0, %v4699
        %v4701 = vpop.f32.mrb[0].mxu0
        %v4702 = vpop.f32.mrb[0].mxu0
        %v4703 = vadd.f32 0.0, %v4702
        %v4704 = vpop.f32.mrb[0].mxu0
        %4705 = vmatprep.mubr.bf16.mxu0 0
        %4706 = vmatmul.mubr.bf16.gmra.mrb[0].mxu0 %v4601
        %v4707 = vpop.f32.mrb[0].mxu0
        %v4708 = vadd.f32 0.0, %v4707
        %v4709 = vpop.f32.mrb[0].mxu0
        %v4710 = vpop.f32.mrb[0].mxu0
        %v4711 = vadd.f32 0.0, %v4710
        %v4712 = vpop.f32.mrb[0].mxu0
        %4713 = vmatprep.mubr.bf16.mxu0 0
        %4714 = vmatmul.mubr.bf16.gmra.mrb[0].mxu0 %v4604
        %v4715 = vpop.f32.mrb[0].mxu0
        %v4716 = vadd.f32 0.0, %v4715
        %v4717 = vpop.f32.mrb[0].mxu0
        %v4718 = vpop.f32.mrb[0].mxu0
        %v4719 = vadd.f32 0.0, %v4718
        %v4720 = vpop.f32.mrb[0].mxu0
        %4721 = vmatprep.mubr.bf16.mxu0 0
        %4722 = vmatmul.mubr.bf16.gmra.mrb[0].mxu0 %v4607
        %v4723 = vpop.f32.mrb[0].mxu0
        %v4724 = vadd.f32 0.0, %v4723
        %v4725 = vpop.f32.mrb[0].mxu0
        %v4726 = vpop.f32.mrb[0].mxu0
        %v4727 = vadd.f32 0.0, %v4726
        %v4728 = vpop.f32.mrb[0].mxu0
        %4729 = vmatprep.mubr.bf16.mxu0 0
        %4730 = vmatmul.mubr.bf16.gmra.mrb[0].mxu0 %v4610
        %v4731 = vpop.f32.mrb[0].mxu0
        %v4732 = vadd.f32 0.0, %v4731
        %v4733 = vpop.f32.mrb[0].mxu0
        %v4734 = vpop.f32.mrb[0].mxu0
        %v4735 = vadd.f32 0.0, %v4734
        %v4736 = vpop.f32.mrb[0].mxu0
        %4737 = vmatprep.mubr.bf16.mxu0 0
        %4738 = vmatmul.mubr.bf16.gmra.mrb[0].mxu0 %v4613
        %v4739 = vpop.f32.mrb[0].mxu0
        %v4740 = vadd.f32 0.0, %v4739
        %v4741 = vpop.f32.mrb[0].mxu0
        %v4742 = vpop.f32.mrb[0].mxu0
        %v4743 = vadd.f32 0.0, %v4742
        %v4744 = vpop.f32.mrb[0].mxu0
        %4745 = vmatprep.mubr.bf16.mxu0 0
        %4746 = vmatmul.mubr.bf16.gmra.mrb[0].mxu0 %v4616
        %v4747 = vpop.f32.mrb[0].mxu0
        %v4748 = vadd.f32 0.0, %v4747
        %v4749 = vpop.f32.mrb[0].mxu0
        %v4750 = vpop.f32.mrb[0].mxu0
        %v4751 = vadd.f32 0.0, %v4750
        %v4752 = vpop.f32.mrb[0].mxu0
        %4753 = vmatprep.mubr.bf16.mxu0 0
        %4754 = vmatmul.mubr.bf16.gmra.mrb[0].mxu0 %v4619
        %v4755 = vpop.f32.mrb[0].mxu0
        %v4756 = vadd.f32 0.0, %v4755
        %v4757 = vpop.f32.mrb[0].mxu0
        %v4758 = vpop.f32.mrb[0].mxu0
        %v4759 = vadd.f32 0.0, %v4758
        %v4760 = vpop.f32.mrb[0].mxu0
        %4761 = vmatprep.mubr.bf16.mxu0 0
        %4762 = vmatmul.mubr.bf16.gmra.mrb[0].mxu0 %v4622
        %v4763 = vpop.f32.mrb[0].mxu0
        %v4764 = vadd.f32 0.0, %v4763
        %v4765 = vpop.f32.mrb[0].mxu0
        %v4766 = vpop.f32.mrb[0].mxu0
        %v4767 = vadd.f32 0.0, %v4766
        %v4768 = vpop.f32.mrb[0].mxu0
        %4769 = vmatprep.mubr.bf16.mxu0 0
        %4770 = vmatmul.mubr.bf16.gmra.mrb[0].mxu0 %v4625
        %v4771 = vpop.f32.mrb[0].mxu0
        %v4772 = vadd.f32 0.0, %v4771
        %v4773 = vpop.f32.mrb[0].mxu0
        %v4774 = vpop.f32.mrb[0].mxu0
        %v4775 = vadd.f32 0.0, %v4774
        %v4776 = vpop.f32.mrb[0].mxu0
        %4777 = vmatprep.mubr.bf16.mxu0 0
        %4778 = vmatmul.mubr.bf16.gmra.mrb[0].mxu0 %v4628
        %v4779 = vpop.f32.mrb[0].mxu0
        %v4780 = vadd.f32 0.0, %v4779
        %v4781 = vpop.f32.mrb[0].mxu0
        %v4782 = vpop.f32.mrb[0].mxu0
        %v4783 = vadd.f32 0.0, %v4782
        %v4784 = vpop.f32.mrb[0].mxu0
        %4785 = vmatprep.mubr.bf16.mxu0 0
        %4786 = vmatmul.mubr.bf16.gmra.mrb[0].mxu0 %v4631
        %v4787 = vpop.f32.mrb[0].mxu0
        %v4788 = vadd.f32 0.0, %v4787
        %v4789 = vpop.f32.mrb[0].mxu0
        %v4790 = vpop.f32.mrb[0].mxu0
        %v4791 = vadd.f32 0.0, %v4790
        %v4792 = vpop.f32.mrb[0].mxu0
        %4793 = vdwg.mxu0
        %v4794 = vadd.f32 %v4472, %v4668
        %v4795 = vadd.f32 %v4473, %v4671
        %v4796 = vadd.f32 %v4474, %v4676
        %v4797 = vadd.f32 %v4475, %v4679
        %v4798 = vadd.f32 %v4476, %v4684
        %v4799 = vadd.f32 %v4477, %v4687
        %v4800 = vadd.f32 %v4478, %v4692
        %v4801 = vadd.f32 %v4479, %v4695
        %v4802 = vadd.f32 %v4480, %v4700
        %v4803 = vadd.f32 %v4481, %v4703
        %v4804 = vadd.f32 %v4482, %v4708
        %v4805 = vadd.f32 %v4483, %v4711
        %v4806 = vadd.f32 %v4484, %v4716
        %v4807 = vadd.f32 %v4485, %v4719
        %v4808 = vadd.f32 %v4486, %v4724
        %v4809 = vadd.f32 %v4487, %v4727
        %v4810 = vadd.f32 %v4488, %v4732
        %v4811 = vadd.f32 %v4489, %v4735
        %v4812 = vadd.f32 %v4490, %v4740
        %v4813 = vadd.f32 %v4491, %v4743
        %v4814 = vadd.f32 %v4492, %v4748
        %v4815 = vadd.f32 %v4493, %v4751
        %v4816 = vadd.f32 %v4494, %v4756
        %v4817 = vadd.f32 %v4495, %v4759
        %v4818 = vadd.f32 %v4496, %v4764
        %v4819 = vadd.f32 %v4497, %v4767
        %v4820 = vadd.f32 %v4498, %v4772
        %v4821 = vadd.f32 %v4499, %v4775
        %v4822 = vadd.f32 %v4500, %v4780
        %v4823 = vadd.f32 %v4501, %v4783
        %v4824 = vadd.f32 %v4502, %v4788
        %v4825 = vadd.f32 %v4503, %v4791
        %v4826 = vld [vmem:[%s3248 + $0x2] sm:$0xff]
        %v4827 = vld [vmem:[%s3248 + $0xa] sm:$0xff]
        %v4828 = vld [vmem:[%s3248 + $0x1a] sm:$0xff]
        %v4829 = vld [vmem:[%s3248 + $0x22] sm:$0xff]
        %v4830 = vld [vmem:[%s3248 + $0x32] sm:$0xff]
        %v4831 = vld [vmem:[%s3248 + $0x3a] sm:$0xff]
        %v4832 = vld [vmem:[%s3248 + $0x4a] sm:$0xff]
        %v4833 = vld [vmem:[%s3248 + $0x52] sm:$0xff]
        %v4834 = vld [vmem:[%s3248 + $0x62] sm:$0xff]
        %v4835 = vld [vmem:[%s3248 + $0x6a] sm:$0xff]
        %v4836 = vld [vmem:[%s3248 + $0x7a] sm:$0xff]
        %v4837 = vld [vmem:[%s3248 + $0x82] sm:$0xff]
        %v4838 = vld [vmem:[%s3248 + $0x92] sm:$0xff]
        %v4839 = vld [vmem:[%s3248 + $0x9a] sm:$0xff]
        %v4840 = vld [vmem:[%s3248 + $0xaa] sm:$0xff]
        %v4841 = vld [vmem:[%s3248 + $0xb2] sm:$0xff]
        %v4842 = vld [vmem:[%s3248 + $0xc2] sm:$0xff]
        %v4843 = vld [vmem:[%s3248 + $0xca] sm:$0xff]
        %v4844 = vld [vmem:[%s3248 + $0xda] sm:$0xff]
        %v4845 = vld [vmem:[%s3248 + $0xe2] sm:$0xff]
        %v4846 = vld [vmem:[%s3248 + $0xf2] sm:$0xff]
        %v4847 = vld [vmem:[%s3248 + $0xfa] sm:$0xff]
        %v4848 = vld [vmem:[%s3248 + $0x10a] sm:$0xff]
        %v4849 = vld [vmem:[%s3248 + $0x112] sm:$0xff]
        %v4850 = vld [vmem:[%s3248 + $0x122] sm:$0xff]
        %v4851 = vld [vmem:[%s3248 + $0x12a] sm:$0xff]
        %v4852 = vld [vmem:[%s3248 + $0x13a] sm:$0xff]
        %v4853 = vld [vmem:[%s3248 + $0x142] sm:$0xff]
        %v4854 = vld [vmem:[%s3248 + $0x152] sm:$0xff]
        %v4855 = vld [vmem:[%s3248 + $0x15a] sm:$0xff]
        %v4856 = vld [vmem:[%s3248 + $0x16a] sm:$0xff]
        %v4857 = vld [vmem:[%s3248 + $0x172] sm:$0xff]
        %v4858 = vpack.c.bf16 %v4827, %v4826
        %v4859 = vpack.c.bf16 %v4829, %v4828
        %v4860 = vpack.c.bf16 %v4831, %v4830
        %v4861 = vpack.c.bf16 %v4833, %v4832
        %v4862 = vpack.c.bf16 %v4835, %v4834
        %v4863 = vpack.c.bf16 %v4837, %v4836
        %v4864 = vpack.c.bf16 %v4839, %v4838
        %v4865 = vpack.c.bf16 %v4841, %v4840
        %v4866 = vpack.c.bf16 %v4843, %v4842
        %v4867 = vpack.c.bf16 %v4845, %v4844
        %v4868 = vpack.c.bf16 %v4847, %v4846
        %v4869 = vpack.c.bf16 %v4849, %v4848
        %v4870 = vpack.c.bf16 %v4851, %v4850
        %v4871 = vpack.c.bf16 %v4853, %v4852
        %v4872 = vpack.c.bf16 %v4855, %v4854
        %v4873 = vpack.c.bf16 %v4857, %v4856
        %s4874 = scalar_lea.vmem %s3, 160
        %v4875 = vld [vmem:[%s4874] sm:$0xf]
        %v4876 = vld [vmem:[%s4874 + $0x4] sm:$0xf]
        %v4877 = vld [vmem:[%s4874 + $0x8] sm:$0xf]
        %v4878 = vld [vmem:[%s4874 + $0xc] sm:$0xf]
        %v4879 = vld [vmem:[%s4874 + $0x10] sm:$0xf]
        %v4880 = vld [vmem:[%s4874 + $0x14] sm:$0xf]
        %v4881 = vld [vmem:[%s4874 + $0x18] sm:$0xf]
        %v4882 = vld [vmem:[%s4874 + $0x1c] sm:$0xf]
        %v4891 = vunpack.c.l.b16 %v4875
        %v4892 = vunpack.c.l.b16 %v4876
        %v4893 = vunpack.c.l.b16 %v4877
        %v4894 = vunpack.c.l.b16 %v4878
        %v4895 = vunpack.c.l.b16 %v4879
        %v4896 = vunpack.c.l.b16 %v4880
        %v4897 = vunpack.c.l.b16 %v4881
        %v4898 = vunpack.c.l.b16 %v4882
        %v4899 = vpack.c.b16 %v4892, %v4891
        %v4900 = vpack.c.b16 %v4894, %v4893
        %v4901 = vpack.c.b16 %v4896, %v4895
        %v4902 = vpack.c.b16 %v4898, %v4897
        %v4908 = vsel %vm388, %v4858, 0
        %v4911 = vsel %vm388, %v4859, 0
        %v4914 = vsel %vm388, %v4860, 0
        %v4917 = vsel %vm388, %v4861, 0
        %v4920 = vsel %vm388, %v4862, 0
        %v4923 = vsel %vm388, %v4863, 0
        %v4926 = vsel %vm388, %v4864, 0
        %v4929 = vsel %vm388, %v4865, 0
        %v4932 = vsel %vm388, %v4866, 0
        %v4935 = vsel %vm388, %v4867, 0
        %v4938 = vsel %vm388, %v4868, 0
        %v4941 = vsel %vm388, %v4869, 0
        %v4944 = vsel %vm388, %v4870, 0
        %v4947 = vsel %vm388, %v4871, 0
        %v4950 = vsel %vm388, %v4872, 0
        %v4953 = vsel %vm388, %v4873, 0
        %4955 = vmatprep.subr.bf16.mxu0 0
        %4956 = vmatpush1.bf16.msra.mxu0 %v4899
        %4957 = vmatprep.subr.bf16.mxu0 0
        %4958 = vmatpush1.bf16.msra.mxu0 %v4900
        %4959 = vmatprep.subr.bf16.mxu0 0
        %4960 = vmatpush1.bf16.msra.mxu0 %v4901
        %4961 = vmatprep.subr.bf16.mxu0 0
        %4962 = vmatpush1.bf16.msra.mxu0 %v4902
        %4963 = vmatprep.subr.bf16.mxu0 0
        %4964 = vmatpush1.bf16.msra.mxu0 0
        %4965 = vmatprep.subr.bf16.mxu0 0
        %4966 = vmatpush1.bf16.msra.mxu0 0
        %4967 = vmatprep.subr.bf16.mxu0 0
        %4968 = vmatpush1.bf16.msra.mxu0 0
        %4969 = vmatprep.subr.bf16.mxu0 0
        %4970 = vmatpush1.bf16.msra.mxu0 0
        %4971 = vmatprep.subr.bf16.mxu0 0
        %4972 = vmatpush1.bf16.msra.mxu0 0
        %4973 = vmatprep.subr.bf16.mxu0 0
        %4974 = vmatpush1.bf16.msra.mxu0 0
        %4975 = vmatprep.subr.bf16.mxu0 0
        %4976 = vmatpush1.bf16.msra.mxu0 0
        %4977 = vmatprep.subr.bf16.mxu0 0
        %4978 = vmatpush1.bf16.msra.mxu0 0
        %4979 = vmatprep.subr.bf16.mxu0 0
        %4980 = vmatpush1.bf16.msra.mxu0 0
        %4981 = vmatprep.subr.bf16.mxu0 0
        %4982 = vmatpush1.bf16.msra.mxu0 0
        %4983 = vmatprep.subr.bf16.mxu0 0
        %4984 = vmatpush1.bf16.msra.mxu0 0
        %4985 = vmatprep.subr.bf16.mxu0 0
        %4986 = vmatpush1.bf16.msra.mxu0 0
        %4987 = vmatprep.mubr.bf16.mxu0 0
        %4988 = vmatmul.mubr.bf16.gmra.mrb[0].mxu0 %v4908
        %v4989 = vpop.f32.mrb[0].mxu0
        %v4990 = vadd.f32 0.0, %v4989
        %v4991 = vpop.f32.mrb[0].mxu0
        %v4992 = vpop.f32.mrb[0].mxu0
        %v4993 = vadd.f32 0.0, %v4992
        %v4994 = vpop.f32.mrb[0].mxu0
        %4995 = vmatprep.mubr.bf16.mxu0 0
        %4996 = vmatmul.mubr.bf16.gmra.mrb[0].mxu0 %v4911
        %v4997 = vpop.f32.mrb[0].mxu0
        %v4998 = vadd.f32 0.0, %v4997
        %v4999 = vpop.f32.mrb[0].mxu0
        %v5000 = vpop.f32.mrb[0].mxu0
        %v5001 = vadd.f32 0.0, %v5000
        %v5002 = vpop.f32.mrb[0].mxu0
        %5003 = vmatprep.mubr.bf16.mxu0 0
        %5004 = vmatmul.mubr.bf16.gmra.mrb[0].mxu0 %v4914
        %v5005 = vpop.f32.mrb[0].mxu0
        %v5006 = vadd.f32 0.0, %v5005
        %v5007 = vpop.f32.mrb[0].mxu0
        %v5008 = vpop.f32.mrb[0].mxu0
        %v5009 = vadd.f32 0.0, %v5008
        %v5010 = vpop.f32.mrb[0].mxu0
        %5011 = vmatprep.mubr.bf16.mxu0 0
        %5012 = vmatmul.mubr.bf16.gmra.mrb[0].mxu0 %v4917
        %v5013 = vpop.f32.mrb[0].mxu0
        %v5014 = vadd.f32 0.0, %v5013
        %v5015 = vpop.f32.mrb[0].mxu0
        %v5016 = vpop.f32.mrb[0].mxu0
        %v5017 = vadd.f32 0.0, %v5016
        %v5018 = vpop.f32.mrb[0].mxu0
        %5019 = vmatprep.mubr.bf16.mxu0 0
        %5020 = vmatmul.mubr.bf16.gmra.mrb[0].mxu0 %v4920
        %v5021 = vpop.f32.mrb[0].mxu0
        %v5022 = vadd.f32 0.0, %v5021
        %v5023 = vpop.f32.mrb[0].mxu0
        %v5024 = vpop.f32.mrb[0].mxu0
        %v5025 = vadd.f32 0.0, %v5024
        %v5026 = vpop.f32.mrb[0].mxu0
        %5027 = vmatprep.mubr.bf16.mxu0 0
        %5028 = vmatmul.mubr.bf16.gmra.mrb[0].mxu0 %v4923
        %v5029 = vpop.f32.mrb[0].mxu0
        %v5030 = vadd.f32 0.0, %v5029
        %v5031 = vpop.f32.mrb[0].mxu0
        %v5032 = vpop.f32.mrb[0].mxu0
        %v5033 = vadd.f32 0.0, %v5032
        %v5034 = vpop.f32.mrb[0].mxu0
        %5035 = vmatprep.mubr.bf16.mxu0 0
        %5036 = vmatmul.mubr.bf16.gmra.mrb[0].mxu0 %v4926
        %v5037 = vpop.f32.mrb[0].mxu0
        %v5038 = vadd.f32 0.0, %v5037
        %v5039 = vpop.f32.mrb[0].mxu0
        %v5040 = vpop.f32.mrb[0].mxu0
        %v5041 = vadd.f32 0.0, %v5040
        %v5042 = vpop.f32.mrb[0].mxu0
        %5043 = vmatprep.mubr.bf16.mxu0 0
        %5044 = vmatmul.mubr.bf16.gmra.mrb[0].mxu0 %v4929
        %v5045 = vpop.f32.mrb[0].mxu0
        %v5046 = vadd.f32 0.0, %v5045
        %v5047 = vpop.f32.mrb[0].mxu0
        %v5048 = vpop.f32.mrb[0].mxu0
        %v5049 = vadd.f32 0.0, %v5048
        %v5050 = vpop.f32.mrb[0].mxu0
        %5051 = vmatprep.mubr.bf16.mxu0 0
        %5052 = vmatmul.mubr.bf16.gmra.mrb[0].mxu0 %v4932
        %v5053 = vpop.f32.mrb[0].mxu0
        %v5054 = vadd.f32 0.0, %v5053
        %v5055 = vpop.f32.mrb[0].mxu0
        %v5056 = vpop.f32.mrb[0].mxu0
        %v5057 = vadd.f32 0.0, %v5056
        %v5058 = vpop.f32.mrb[0].mxu0
        %5059 = vmatprep.mubr.bf16.mxu0 0
        %5060 = vmatmul.mubr.bf16.gmra.mrb[0].mxu0 %v4935
        %v5061 = vpop.f32.mrb[0].mxu0
        %v5062 = vadd.f32 0.0, %v5061
        %v5063 = vpop.f32.mrb[0].mxu0
        %v5064 = vpop.f32.mrb[0].mxu0
        %v5065 = vadd.f32 0.0, %v5064
        %v5066 = vpop.f32.mrb[0].mxu0
        %5067 = vmatprep.mubr.bf16.mxu0 0
        %5068 = vmatmul.mubr.bf16.gmra.mrb[0].mxu0 %v4938
        %v5069 = vpop.f32.mrb[0].mxu0
        %v5070 = vadd.f32 0.0, %v5069
        %v5071 = vpop.f32.mrb[0].mxu0
        %v5072 = vpop.f32.mrb[0].mxu0
        %v5073 = vadd.f32 0.0, %v5072
        %v5074 = vpop.f32.mrb[0].mxu0
        %5075 = vmatprep.mubr.bf16.mxu0 0
        %5076 = vmatmul.mubr.bf16.gmra.mrb[0].mxu0 %v4941
        %v5077 = vpop.f32.mrb[0].mxu0
        %v5078 = vadd.f32 0.0, %v5077
        %v5079 = vpop.f32.mrb[0].mxu0
        %v5080 = vpop.f32.mrb[0].mxu0
        %v5081 = vadd.f32 0.0, %v5080
        %v5082 = vpop.f32.mrb[0].mxu0
        %5083 = vmatprep.mubr.bf16.mxu0 0
        %5084 = vmatmul.mubr.bf16.gmra.mrb[0].mxu0 %v4944
        %v5085 = vpop.f32.mrb[0].mxu0
        %v5086 = vadd.f32 0.0, %v5085
        %v5087 = vpop.f32.mrb[0].mxu0
        %v5088 = vpop.f32.mrb[0].mxu0
        %v5089 = vadd.f32 0.0, %v5088
        %v5090 = vpop.f32.mrb[0].mxu0
        %5091 = vmatprep.mubr.bf16.mxu0 0
        %5092 = vmatmul.mubr.bf16.gmra.mrb[0].mxu0 %v4947
        %v5093 = vpop.f32.mrb[0].mxu0
        %v5094 = vadd.f32 0.0, %v5093
        %v5095 = vpop.f32.mrb[0].mxu0
        %v5096 = vpop.f32.mrb[0].mxu0
        %v5097 = vadd.f32 0.0, %v5096
        %v5098 = vpop.f32.mrb[0].mxu0
        %5099 = vmatprep.mubr.bf16.mxu0 0
        %5100 = vmatmul.mubr.bf16.gmra.mrb[0].mxu0 %v4950
        %v5101 = vpop.f32.mrb[0].mxu0
        %v5102 = vadd.f32 0.0, %v5101
        %v5103 = vpop.f32.mrb[0].mxu0
        %v5104 = vpop.f32.mrb[0].mxu0
        %v5105 = vadd.f32 0.0, %v5104
        %v5106 = vpop.f32.mrb[0].mxu0
        %5107 = vmatprep.mubr.bf16.mxu0 0
        %5108 = vmatmul.mubr.bf16.gmra.mrb[0].mxu0 %v4953
        %v5109 = vpop.f32.mrb[0].mxu0
        %v5110 = vadd.f32 0.0, %v5109
        %v5111 = vpop.f32.mrb[0].mxu0
        %v5112 = vpop.f32.mrb[0].mxu0
        %v5113 = vadd.f32 0.0, %v5112
        %v5114 = vpop.f32.mrb[0].mxu0
        %5115 = vdwg.mxu0
        %v5116 = vadd.f32 %v4794, %v4990
        %v5117 = vadd.f32 %v4795, %v4993
        %v5118 = vadd.f32 %v4796, %v4998
        %v5119 = vadd.f32 %v4797, %v5001
        %v5120 = vadd.f32 %v4798, %v5006
        %v5121 = vadd.f32 %v4799, %v5009
        %v5122 = vadd.f32 %v4800, %v5014
        %v5123 = vadd.f32 %v4801, %v5017
        %v5124 = vadd.f32 %v4802, %v5022
        %v5125 = vadd.f32 %v4803, %v5025
        %v5126 = vadd.f32 %v4804, %v5030
        %v5127 = vadd.f32 %v4805, %v5033
        %v5128 = vadd.f32 %v4806, %v5038
        %v5129 = vadd.f32 %v4807, %v5041
        %v5130 = vadd.f32 %v4808, %v5046
        %v5131 = vadd.f32 %v4809, %v5049
        %v5132 = vadd.f32 %v4810, %v5054
        %v5133 = vadd.f32 %v4811, %v5057
        %v5134 = vadd.f32 %v4812, %v5062
        %v5135 = vadd.f32 %v4813, %v5065
        %v5136 = vadd.f32 %v4814, %v5070
        %v5137 = vadd.f32 %v4815, %v5073
        %v5138 = vadd.f32 %v4816, %v5078
        %v5139 = vadd.f32 %v4817, %v5081
        %v5140 = vadd.f32 %v4818, %v5086
        %v5141 = vadd.f32 %v4819, %v5089
        %v5142 = vadd.f32 %v4820, %v5094
        %v5143 = vadd.f32 %v4821, %v5097
        %v5144 = vadd.f32 %v4822, %v5102
        %v5145 = vadd.f32 %v4823, %v5105
        %v5146 = vadd.f32 %v4824, %v5110
        %v5147 = vadd.f32 %v4825, %v5113
        %s5148 = scalar_lea.vmem [#allocation2], 48
        %v5149 = vld [vmem:[%s5148] sm:$0xff]
        %v5150 = vld [vmem:[%s5148 + $0x8] sm:$0xff]
        %v5151 = vld [vmem:[%s5148 + $0x18] sm:$0xff]
        %v5152 = vld [vmem:[%s5148 + $0x20] sm:$0xff]
        %v5153 = vld [vmem:[%s5148 + $0x30] sm:$0xff]
        %v5154 = vld [vmem:[%s5148 + $0x38] sm:$0xff]
        %v5155 = vld [vmem:[%s5148 + $0x48] sm:$0xff]
        %v5156 = vld [vmem:[%s5148 + $0x50] sm:$0xff]
        %v5157 = vld [vmem:[%s5148 + $0x60] sm:$0xff]
        %v5158 = vld [vmem:[%s5148 + $0x68] sm:$0xff]
        %v5159 = vld [vmem:[%s5148 + $0x78] sm:$0xff]
        %v5160 = vld [vmem:[%s5148 + $0x80] sm:$0xff]
        %v5161 = vld [vmem:[%s5148 + $0x90] sm:$0xff]
        %v5162 = vld [vmem:[%s5148 + $0x98] sm:$0xff]
        %v5163 = vld [vmem:[%s5148 + $0xa8] sm:$0xff]
        %v5164 = vld [vmem:[%s5148 + $0xb0] sm:$0xff]
        %v5165 = vld [vmem:[%s5148 + $0xc0] sm:$0xff]
        %v5166 = vld [vmem:[%s5148 + $0xc8] sm:$0xff]
        %v5167 = vld [vmem:[%s5148 + $0xd8] sm:$0xff]
        %v5168 = vld [vmem:[%s5148 + $0xe0] sm:$0xff]
        %v5169 = vld [vmem:[%s5148 + $0xf0] sm:$0xff]
        %v5170 = vld [vmem:[%s5148 + $0xf8] sm:$0xff]
        %v5171 = vld [vmem:[%s5148 + $0x108] sm:$0xff]
        %v5172 = vld [vmem:[%s5148 + $0x110] sm:$0xff]
        %v5173 = vld [vmem:[%s5148 + $0x120] sm:$0xff]
        %v5174 = vld [vmem:[%s5148 + $0x128] sm:$0xff]
        %v5175 = vld [vmem:[%s5148 + $0x138] sm:$0xff]
        %v5176 = vld [vmem:[%s5148 + $0x140] sm:$0xff]
        %v5177 = vld [vmem:[%s5148 + $0x150] sm:$0xff]
        %v5178 = vld [vmem:[%s5148 + $0x158] sm:$0xff]
        %v5179 = vld [vmem:[%s5148 + $0x168] sm:$0xff]
        %v5180 = vld [vmem:[%s5148 + $0x170] sm:$0xff]
        %v5181 = vpack.c.bf16 %v5150, %v5149
        %v5182 = vpack.c.bf16 %v5152, %v5151
        %v5183 = vpack.c.bf16 %v5154, %v5153
        %v5184 = vpack.c.bf16 %v5156, %v5155
        %v5185 = vpack.c.bf16 %v5158, %v5157
        %v5186 = vpack.c.bf16 %v5160, %v5159
        %v5187 = vpack.c.bf16 %v5162, %v5161
        %v5188 = vpack.c.bf16 %v5164, %v5163
        %v5189 = vpack.c.bf16 %v5166, %v5165
        %v5190 = vpack.c.bf16 %v5168, %v5167
        %v5191 = vpack.c.bf16 %v5170, %v5169
        %v5192 = vpack.c.bf16 %v5172, %v5171
        %v5193 = vpack.c.bf16 %v5174, %v5173
        %v5194 = vpack.c.bf16 %v5176, %v5175
        %v5195 = vpack.c.bf16 %v5178, %v5177
        %v5196 = vpack.c.bf16 %v5180, %v5179
        %s5197 = scalar_lea.vmem %s3, 192
        %v5198 = vld [vmem:[%s5197] sm:$0xf]
        %v5199 = vld [vmem:[%s5197 + $0x4] sm:$0xf]
        %v5200 = vld [vmem:[%s5197 + $0x8] sm:$0xf]
        %v5201 = vld [vmem:[%s5197 + $0xc] sm:$0xf]
        %v5202 = vld [vmem:[%s5197 + $0x10] sm:$0xf]
        %v5203 = vld [vmem:[%s5197 + $0x14] sm:$0xf]
        %v5204 = vld [vmem:[%s5197 + $0x18] sm:$0xf]
        %v5205 = vld [vmem:[%s5197 + $0x1c] sm:$0xf]
        %v5214 = vunpack.c.l.b16 %v5198
        %v5215 = vunpack.c.l.b16 %v5199
        %v5216 = vunpack.c.l.b16 %v5200
        %v5217 = vunpack.c.l.b16 %v5201
        %v5218 = vunpack.c.l.b16 %v5202
        %v5219 = vunpack.c.l.b16 %v5203
        %v5220 = vunpack.c.l.b16 %v5204
        %v5221 = vunpack.c.l.b16 %v5205
        %v5222 = vpack.c.b16 %v5215, %v5214
        %v5223 = vpack.c.b16 %v5217, %v5216
        %v5224 = vpack.c.b16 %v5219, %v5218
        %v5225 = vpack.c.b16 %v5221, %v5220
        %v5231 = vsel %vm388, %v5181, 0
        %v5234 = vsel %vm388, %v5182, 0
        %v5237 = vsel %vm388, %v5183, 0
        %v5240 = vsel %vm388, %v5184, 0
        %v5243 = vsel %vm388, %v5185, 0
        %v5246 = vsel %vm388, %v5186, 0
        %v5249 = vsel %vm388, %v5187, 0
        %v5252 = vsel %vm388, %v5188, 0
        %v5255 = vsel %vm388, %v5189, 0
        %v5258 = vsel %vm388, %v5190, 0
        %v5261 = vsel %vm388, %v5191, 0
        %v5264 = vsel %vm388, %v5192, 0
        %v5267 = vsel %vm388, %v5193, 0
        %v5270 = vsel %vm388, %v5194, 0
        %v5273 = vsel %vm388, %v5195, 0
        %v5276 = vsel %vm388, %v5196, 0
        %5278 = vmatprep.subr.bf16.mxu0 0
        %5279 = vmatpush1.bf16.msra.mxu0 %v5222
        %5280 = vmatprep.subr.bf16.mxu0 0
        %5281 = vmatpush1.bf16.msra.mxu0 %v5223
        %5282 = vmatprep.subr.bf16.mxu0 0
        %5283 = vmatpush1.bf16.msra.mxu0 %v5224
        %5284 = vmatprep.subr.bf16.mxu0 0
        %5285 = vmatpush1.bf16.msra.mxu0 %v5225
        %5286 = vmatprep.subr.bf16.mxu0 0
        %5287 = vmatpush1.bf16.msra.mxu0 0
        %5288 = vmatprep.subr.bf16.mxu0 0
        %5289 = vmatpush1.bf16.msra.mxu0 0
        %5290 = vmatprep.subr.bf16.mxu0 0
        %5291 = vmatpush1.bf16.msra.mxu0 0
        %5292 = vmatprep.subr.bf16.mxu0 0
        %5293 = vmatpush1.bf16.msra.mxu0 0
        %5294 = vmatprep.subr.bf16.mxu0 0
        %5295 = vmatpush1.bf16.msra.mxu0 0
        %5296 = vmatprep.subr.bf16.mxu0 0
        %5297 = vmatpush1.bf16.msra.mxu0 0
        %5298 = vmatprep.subr.bf16.mxu0 0
        %5299 = vmatpush1.bf16.msra.mxu0 0
        %5300 = vmatprep.subr.bf16.mxu0 0
        %5301 = vmatpush1.bf16.msra.mxu0 0
        %5302 = vmatprep.subr.bf16.mxu0 0
        %5303 = vmatpush1.bf16.msra.mxu0 0
        %5304 = vmatprep.subr.bf16.mxu0 0
        %5305 = vmatpush1.bf16.msra.mxu0 0
        %5306 = vmatprep.subr.bf16.mxu0 0
        %5307 = vmatpush1.bf16.msra.mxu0 0
        %5308 = vmatprep.subr.bf16.mxu0 0
        %5309 = vmatpush1.bf16.msra.mxu0 0
        %5310 = vmatprep.mubr.bf16.mxu0 0
        %5311 = vmatmul.mubr.bf16.gmra.mrb[0].mxu0 %v5231
        %v5312 = vpop.f32.mrb[0].mxu0
        %v5313 = vadd.f32 0.0, %v5312
        %v5314 = vpop.f32.mrb[0].mxu0
        %v5315 = vpop.f32.mrb[0].mxu0
        %v5316 = vadd.f32 0.0, %v5315
        %v5317 = vpop.f32.mrb[0].mxu0
        %5318 = vmatprep.mubr.bf16.mxu0 0
        %5319 = vmatmul.mubr.bf16.gmra.mrb[0].mxu0 %v5234
        %v5320 = vpop.f32.mrb[0].mxu0
        %v5321 = vadd.f32 0.0, %v5320
        %v5322 = vpop.f32.mrb[0].mxu0
        %v5323 = vpop.f32.mrb[0].mxu0
        %v5324 = vadd.f32 0.0, %v5323
        %v5325 = vpop.f32.mrb[0].mxu0
        %5326 = vmatprep.mubr.bf16.mxu0 0
        %5327 = vmatmul.mubr.bf16.gmra.mrb[0].mxu0 %v5237
        %v5328 = vpop.f32.mrb[0].mxu0
        %v5329 = vadd.f32 0.0, %v5328
        %v5330 = vpop.f32.mrb[0].mxu0
        %v5331 = vpop.f32.mrb[0].mxu0
        %v5332 = vadd.f32 0.0, %v5331
        %v5333 = vpop.f32.mrb[0].mxu0
        %5334 = vmatprep.mubr.bf16.mxu0 0
        %5335 = vmatmul.mubr.bf16.gmra.mrb[0].mxu0 %v5240
        %v5336 = vpop.f32.mrb[0].mxu0
        %v5337 = vadd.f32 0.0, %v5336
        %v5338 = vpop.f32.mrb[0].mxu0
        %v5339 = vpop.f32.mrb[0].mxu0
        %v5340 = vadd.f32 0.0, %v5339
        %v5341 = vpop.f32.mrb[0].mxu0
        %5342 = vmatprep.mubr.bf16.mxu0 0
        %5343 = vmatmul.mubr.bf16.gmra.mrb[0].mxu0 %v5243
        %v5344 = vpop.f32.mrb[0].mxu0
        %v5345 = vadd.f32 0.0, %v5344
        %v5346 = vpop.f32.mrb[0].mxu0
        %v5347 = vpop.f32.mrb[0].mxu0
        %v5348 = vadd.f32 0.0, %v5347
        %v5349 = vpop.f32.mrb[0].mxu0
        %5350 = vmatprep.mubr.bf16.mxu0 0
        %5351 = vmatmul.mubr.bf16.gmra.mrb[0].mxu0 %v5246
        %v5352 = vpop.f32.mrb[0].mxu0
        %v5353 = vadd.f32 0.0, %v5352
        %v5354 = vpop.f32.mrb[0].mxu0
        %v5355 = vpop.f32.mrb[0].mxu0
        %v5356 = vadd.f32 0.0, %v5355
        %v5357 = vpop.f32.mrb[0].mxu0
        %5358 = vmatprep.mubr.bf16.mxu0 0
        %5359 = vmatmul.mubr.bf16.gmra.mrb[0].mxu0 %v5249
        %v5360 = vpop.f32.mrb[0].mxu0
        %v5361 = vadd.f32 0.0, %v5360
        %v5362 = vpop.f32.mrb[0].mxu0
        %v5363 = vpop.f32.mrb[0].mxu0
        %v5364 = vadd.f32 0.0, %v5363
        %v5365 = vpop.f32.mrb[0].mxu0
        %5366 = vmatprep.mubr.bf16.mxu0 0
        %5367 = vmatmul.mubr.bf16.gmra.mrb[0].mxu0 %v5252
        %v5368 = vpop.f32.mrb[0].mxu0
        %v5369 = vadd.f32 0.0, %v5368
        %v5370 = vpop.f32.mrb[0].mxu0
        %v5371 = vpop.f32.mrb[0].mxu0
        %v5372 = vadd.f32 0.0, %v5371
        %v5373 = vpop.f32.mrb[0].mxu0
        %5374 = vmatprep.mubr.bf16.mxu0 0
        %5375 = vmatmul.mubr.bf16.gmra.mrb[0].mxu0 %v5255
        %v5376 = vpop.f32.mrb[0].mxu0
        %v5377 = vadd.f32 0.0, %v5376
        %v5378 = vpop.f32.mrb[0].mxu0
        %v5379 = vpop.f32.mrb[0].mxu0
        %v5380 = vadd.f32 0.0, %v5379
        %v5381 = vpop.f32.mrb[0].mxu0
        %5382 = vmatprep.mubr.bf16.mxu0 0
        %5383 = vmatmul.mubr.bf16.gmra.mrb[0].mxu0 %v5258
        %v5384 = vpop.f32.mrb[0].mxu0
        %v5385 = vadd.f32 0.0, %v5384
        %v5386 = vpop.f32.mrb[0].mxu0
        %v5387 = vpop.f32.mrb[0].mxu0
        %v5388 = vadd.f32 0.0, %v5387
        %v5389 = vpop.f32.mrb[0].mxu0
        %5390 = vmatprep.mubr.bf16.mxu0 0
        %5391 = vmatmul.mubr.bf16.gmra.mrb[0].mxu0 %v5261
        %v5392 = vpop.f32.mrb[0].mxu0
        %v5393 = vadd.f32 0.0, %v5392
        %v5394 = vpop.f32.mrb[0].mxu0
        %v5395 = vpop.f32.mrb[0].mxu0
        %v5396 = vadd.f32 0.0, %v5395
        %v5397 = vpop.f32.mrb[0].mxu0
        %5398 = vmatprep.mubr.bf16.mxu0 0
        %5399 = vmatmul.mubr.bf16.gmra.mrb[0].mxu0 %v5264
        %v5400 = vpop.f32.mrb[0].mxu0
        %v5401 = vadd.f32 0.0, %v5400
        %v5402 = vpop.f32.mrb[0].mxu0
        %v5403 = vpop.f32.mrb[0].mxu0
        %v5404 = vadd.f32 0.0, %v5403
        %v5405 = vpop.f32.mrb[0].mxu0
        %5406 = vmatprep.mubr.bf16.mxu0 0
        %5407 = vmatmul.mubr.bf16.gmra.mrb[0].mxu0 %v5267
        %v5408 = vpop.f32.mrb[0].mxu0
        %v5409 = vadd.f32 0.0, %v5408
        %v5410 = vpop.f32.mrb[0].mxu0
        %v5411 = vpop.f32.mrb[0].mxu0
        %v5412 = vadd.f32 0.0, %v5411
        %v5413 = vpop.f32.mrb[0].mxu0
        %5414 = vmatprep.mubr.bf16.mxu0 0
        %5415 = vmatmul.mubr.bf16.gmra.mrb[0].mxu0 %v5270
        %v5416 = vpop.f32.mrb[0].mxu0
        %v5417 = vadd.f32 0.0, %v5416
        %v5418 = vpop.f32.mrb[0].mxu0
        %v5419 = vpop.f32.mrb[0].mxu0
        %v5420 = vadd.f32 0.0, %v5419
        %v5421 = vpop.f32.mrb[0].mxu0
        %5422 = vmatprep.mubr.bf16.mxu0 0
        %5423 = vmatmul.mubr.bf16.gmra.mrb[0].mxu0 %v5273
        %v5424 = vpop.f32.mrb[0].mxu0
        %v5425 = vadd.f32 0.0, %v5424
        %v5426 = vpop.f32.mrb[0].mxu0
        %v5427 = vpop.f32.mrb[0].mxu0
        %v5428 = vadd.f32 0.0, %v5427
        %v5429 = vpop.f32.mrb[0].mxu0
        %5430 = vmatprep.mubr.bf16.mxu0 0
        %5431 = vmatmul.mubr.bf16.gmra.mrb[0].mxu0 %v5276
        %v5432 = vpop.f32.mrb[0].mxu0
        %v5433 = vadd.f32 0.0, %v5432
        %v5434 = vpop.f32.mrb[0].mxu0
        %v5435 = vpop.f32.mrb[0].mxu0
        %v5436 = vadd.f32 0.0, %v5435
        %v5437 = vpop.f32.mrb[0].mxu0
        %5438 = vdwg.mxu0
        %v5439 = vadd.f32 %v5116, %v5313
        %v5440 = vadd.f32 %v5117, %v5316
        %v5441 = vadd.f32 %v5118, %v5321
        %v5442 = vadd.f32 %v5119, %v5324
        %v5443 = vadd.f32 %v5120, %v5329
        %v5444 = vadd.f32 %v5121, %v5332
        %v5445 = vadd.f32 %v5122, %v5337
        %v5446 = vadd.f32 %v5123, %v5340
        %v5447 = vadd.f32 %v5124, %v5345
        %v5448 = vadd.f32 %v5125, %v5348
        %v5449 = vadd.f32 %v5126, %v5353
        %v5450 = vadd.f32 %v5127, %v5356
        %v5451 = vadd.f32 %v5128, %v5361
        %v5452 = vadd.f32 %v5129, %v5364
        %v5453 = vadd.f32 %v5130, %v5369
        %v5454 = vadd.f32 %v5131, %v5372
        %v5455 = vadd.f32 %v5132, %v5377
        %v5456 = vadd.f32 %v5133, %v5380
        %v5457 = vadd.f32 %v5134, %v5385
        %v5458 = vadd.f32 %v5135, %v5388
        %v5459 = vadd.f32 %v5136, %v5393
        %v5460 = vadd.f32 %v5137, %v5396
        %v5461 = vadd.f32 %v5138, %v5401
        %v5462 = vadd.f32 %v5139, %v5404
        %v5463 = vadd.f32 %v5140, %v5409
        %v5464 = vadd.f32 %v5141, %v5412
        %v5465 = vadd.f32 %v5142, %v5417
        %v5466 = vadd.f32 %v5143, %v5420
        %v5467 = vadd.f32 %v5144, %v5425
        %v5468 = vadd.f32 %v5145, %v5428
        %v5469 = vadd.f32 %v5146, %v5433
        %v5470 = vadd.f32 %v5147, %v5436
        %v5471 = vld [vmem:[%s5148 + $0x1] sm:$0xff]
        %v5472 = vld [vmem:[%s5148 + $0x9] sm:$0xff]
        %v5473 = vld [vmem:[%s5148 + $0x19] sm:$0xff]
        %v5474 = vld [vmem:[%s5148 + $0x21] sm:$0xff]
        %v5475 = vld [vmem:[%s5148 + $0x31] sm:$0xff]
        %v5476 = vld [vmem:[%s5148 + $0x39] sm:$0xff]
        %v5477 = vld [vmem:[%s5148 + $0x49] sm:$0xff]
        %v5478 = vld [vmem:[%s5148 + $0x51] sm:$0xff]
        %v5479 = vld [vmem:[%s5148 + $0x61] sm:$0xff]
        %v5480 = vld [vmem:[%s5148 + $0x69] sm:$0xff]
        %v5481 = vld [vmem:[%s5148 + $0x79] sm:$0xff]
        %v5482 = vld [vmem:[%s5148 + $0x81] sm:$0xff]
        %v5483 = vld [vmem:[%s5148 + $0x91] sm:$0xff]
        %v5484 = vld [vmem:[%s5148 + $0x99] sm:$0xff]
        %v5485 = vld [vmem:[%s5148 + $0xa9] sm:$0xff]
        %v5486 = vld [vmem:[%s5148 + $0xb1] sm:$0xff]
        %v5487 = vld [vmem:[%s5148 + $0xc1] sm:$0xff]
        %v5488 = vld [vmem:[%s5148 + $0xc9] sm:$0xff]
        %v5489 = vld [vmem:[%s5148 + $0xd9] sm:$0xff]
        %v5490 = vld [vmem:[%s5148 + $0xe1] sm:$0xff]
        %v5491 = vld [vmem:[%s5148 + $0xf1] sm:$0xff]
        %v5492 = vld [vmem:[%s5148 + $0xf9] sm:$0xff]
        %v5493 = vld [vmem:[%s5148 + $0x109] sm:$0xff]
        %v5494 = vld [vmem:[%s5148 + $0x111] sm:$0xff]
        %v5495 = vld [vmem:[%s5148 + $0x121] sm:$0xff]
        %v5496 = vld [vmem:[%s5148 + $0x129] sm:$0xff]
        %v5497 = vld [vmem:[%s5148 + $0x139] sm:$0xff]
        %v5498 = vld [vmem:[%s5148 + $0x141] sm:$0xff]
        %v5499 = vld [vmem:[%s5148 + $0x151] sm:$0xff]
        %v5500 = vld [vmem:[%s5148 + $0x159] sm:$0xff]
        %v5501 = vld [vmem:[%s5148 + $0x169] sm:$0xff]
        %v5502 = vld [vmem:[%s5148 + $0x171] sm:$0xff]
        %v5503 = vpack.c.bf16 %v5472, %v5471
        %v5504 = vpack.c.bf16 %v5474, %v5473
        %v5505 = vpack.c.bf16 %v5476, %v5475
        %v5506 = vpack.c.bf16 %v5478, %v5477
        %v5507 = vpack.c.bf16 %v5480, %v5479
        %v5508 = vpack.c.bf16 %v5482, %v5481
        %v5509 = vpack.c.bf16 %v5484, %v5483
        %v5510 = vpack.c.bf16 %v5486, %v5485
        %v5511 = vpack.c.bf16 %v5488, %v5487
        %v5512 = vpack.c.bf16 %v5490, %v5489
        %v5513 = vpack.c.bf16 %v5492, %v5491
        %v5514 = vpack.c.bf16 %v5494, %v5493
        %v5515 = vpack.c.bf16 %v5496, %v5495
        %v5516 = vpack.c.bf16 %v5498, %v5497
        %v5517 = vpack.c.bf16 %v5500, %v5499
        %v5518 = vpack.c.bf16 %v5502, %v5501
        %s5519 = scalar_lea.vmem %s3, 224
        %v5520 = vld [vmem:[%s5519] sm:$0xf]
        %v5521 = vld [vmem:[%s5519 + $0x4] sm:$0xf]
        %v5522 = vld [vmem:[%s5519 + $0x8] sm:$0xf]
        %v5523 = vld [vmem:[%s5519 + $0xc] sm:$0xf]
        %v5524 = vld [vmem:[%s5519 + $0x10] sm:$0xf]
        %v5525 = vld [vmem:[%s5519 + $0x14] sm:$0xf]
        %v5526 = vld [vmem:[%s5519 + $0x18] sm:$0xf]
        %v5527 = vld [vmem:[%s5519 + $0x1c] sm:$0xf]
        %v5536 = vunpack.c.l.b16 %v5520
        %v5537 = vunpack.c.l.b16 %v5521
        %v5538 = vunpack.c.l.b16 %v5522
        %v5539 = vunpack.c.l.b16 %v5523
        %v5540 = vunpack.c.l.b16 %v5524
        %v5541 = vunpack.c.l.b16 %v5525
        %v5542 = vunpack.c.l.b16 %v5526
        %v5543 = vunpack.c.l.b16 %v5527
        %v5544 = vpack.c.b16 %v5537, %v5536
        %v5545 = vpack.c.b16 %v5539, %v5538
        %v5546 = vpack.c.b16 %v5541, %v5540
        %v5547 = vpack.c.b16 %v5543, %v5542
        %v5553 = vsel %vm388, %v5503, 0
        %v5556 = vsel %vm388, %v5504, 0
        %v5559 = vsel %vm388, %v5505, 0
        %v5562 = vsel %vm388, %v5506, 0
        %v5565 = vsel %vm388, %v5507, 0
        %v5568 = vsel %vm388, %v5508, 0
        %v5571 = vsel %vm388, %v5509, 0
        %v5574 = vsel %vm388, %v5510, 0
        %v5577 = vsel %vm388, %v5511, 0
        %v5580 = vsel %vm388, %v5512, 0
        %v5583 = vsel %vm388, %v5513, 0
        %v5586 = vsel %vm388, %v5514, 0
        %v5589 = vsel %vm388, %v5515, 0
        %v5592 = vsel %vm388, %v5516, 0
        %v5595 = vsel %vm388, %v5517, 0
        %v5598 = vsel %vm388, %v5518, 0
        %5600 = vmatprep.subr.bf16.mxu0 0
        %5601 = vmatpush1.bf16.msra.mxu0 %v5544
        %5602 = vmatprep.subr.bf16.mxu0 0
        %5603 = vmatpush1.bf16.msra.mxu0 %v5545
        %5604 = vmatprep.subr.bf16.mxu0 0
        %5605 = vmatpush1.bf16.msra.mxu0 %v5546
        %5606 = vmatprep.subr.bf16.mxu0 0
        %5607 = vmatpush1.bf16.msra.mxu0 %v5547
        %5608 = vmatprep.subr.bf16.mxu0 0
        %5609 = vmatpush1.bf16.msra.mxu0 0
        %5610 = vmatprep.subr.bf16.mxu0 0
        %5611 = vmatpush1.bf16.msra.mxu0 0
        %5612 = vmatprep.subr.bf16.mxu0 0
        %5613 = vmatpush1.bf16.msra.mxu0 0
        %5614 = vmatprep.subr.bf16.mxu0 0
        %5615 = vmatpush1.bf16.msra.mxu0 0
        %5616 = vmatprep.subr.bf16.mxu0 0
        %5617 = vmatpush1.bf16.msra.mxu0 0
        %5618 = vmatprep.subr.bf16.mxu0 0
        %5619 = vmatpush1.bf16.msra.mxu0 0
        %5620 = vmatprep.subr.bf16.mxu0 0
        %5621 = vmatpush1.bf16.msra.mxu0 0
        %5622 = vmatprep.subr.bf16.mxu0 0
        %5623 = vmatpush1.bf16.msra.mxu0 0
        %5624 = vmatprep.subr.bf16.mxu0 0
        %5625 = vmatpush1.bf16.msra.mxu0 0
        %5626 = vmatprep.subr.bf16.mxu0 0
        %5627 = vmatpush1.bf16.msra.mxu0 0
        %5628 = vmatprep.subr.bf16.mxu0 0
        %5629 = vmatpush1.bf16.msra.mxu0 0
        %5630 = vmatprep.subr.bf16.mxu0 0
        %5631 = vmatpush1.bf16.msra.mxu0 0
        %5632 = vmatprep.mubr.bf16.mxu0 0
        %5633 = vmatmul.mubr.bf16.gmra.mrb[0].mxu0 %v5553
        %v5634 = vpop.f32.mrb[0].mxu0
        %v5635 = vadd.f32 0.0, %v5634
        %v5636 = vpop.f32.mrb[0].mxu0
        %v5637 = vpop.f32.mrb[0].mxu0
        %v5638 = vadd.f32 0.0, %v5637
        %v5639 = vpop.f32.mrb[0].mxu0
        %5640 = vmatprep.mubr.bf16.mxu0 0
        %5641 = vmatmul.mubr.bf16.gmra.mrb[0].mxu0 %v5556
        %v5642 = vpop.f32.mrb[0].mxu0
        %v5643 = vadd.f32 0.0, %v5642
        %v5644 = vpop.f32.mrb[0].mxu0
        %v5645 = vpop.f32.mrb[0].mxu0
        %v5646 = vadd.f32 0.0, %v5645
        %v5647 = vpop.f32.mrb[0].mxu0
        %5648 = vmatprep.mubr.bf16.mxu0 0
        %5649 = vmatmul.mubr.bf16.gmra.mrb[0].mxu0 %v5559
        %v5650 = vpop.f32.mrb[0].mxu0
        %v5651 = vadd.f32 0.0, %v5650
        %v5652 = vpop.f32.mrb[0].mxu0
        %v5653 = vpop.f32.mrb[0].mxu0
        %v5654 = vadd.f32 0.0, %v5653
        %v5655 = vpop.f32.mrb[0].mxu0
        %5656 = vmatprep.mubr.bf16.mxu0 0
        %5657 = vmatmul.mubr.bf16.gmra.mrb[0].mxu0 %v5562
        %v5658 = vpop.f32.mrb[0].mxu0
        %v5659 = vadd.f32 0.0, %v5658
        %v5660 = vpop.f32.mrb[0].mxu0
        %v5661 = vpop.f32.mrb[0].mxu0
        %v5662 = vadd.f32 0.0, %v5661
        %v5663 = vpop.f32.mrb[0].mxu0
        %5664 = vmatprep.mubr.bf16.mxu0 0
        %5665 = vmatmul.mubr.bf16.gmra.mrb[0].mxu0 %v5565
        %v5666 = vpop.f32.mrb[0].mxu0
        %v5667 = vadd.f32 0.0, %v5666
        %v5668 = vpop.f32.mrb[0].mxu0
        %v5669 = vpop.f32.mrb[0].mxu0
        %v5670 = vadd.f32 0.0, %v5669
        %v5671 = vpop.f32.mrb[0].mxu0
        %5672 = vmatprep.mubr.bf16.mxu0 0
        %5673 = vmatmul.mubr.bf16.gmra.mrb[0].mxu0 %v5568
        %v5674 = vpop.f32.mrb[0].mxu0
        %v5675 = vadd.f32 0.0, %v5674
        %v5676 = vpop.f32.mrb[0].mxu0
        %v5677 = vpop.f32.mrb[0].mxu0
        %v5678 = vadd.f32 0.0, %v5677
        %v5679 = vpop.f32.mrb[0].mxu0
        %5680 = vmatprep.mubr.bf16.mxu0 0
        %5681 = vmatmul.mubr.bf16.gmra.mrb[0].mxu0 %v5571
        %v5682 = vpop.f32.mrb[0].mxu0
        %v5683 = vadd.f32 0.0, %v5682
        %v5684 = vpop.f32.mrb[0].mxu0
        %v5685 = vpop.f32.mrb[0].mxu0
        %v5686 = vadd.f32 0.0, %v5685
        %v5687 = vpop.f32.mrb[0].mxu0
        %5688 = vmatprep.mubr.bf16.mxu0 0
        %5689 = vmatmul.mubr.bf16.gmra.mrb[0].mxu0 %v5574
        %v5690 = vpop.f32.mrb[0].mxu0
        %v5691 = vadd.f32 0.0, %v5690
        %v5692 = vpop.f32.mrb[0].mxu0
        %v5693 = vpop.f32.mrb[0].mxu0
        %v5694 = vadd.f32 0.0, %v5693
        %v5695 = vpop.f32.mrb[0].mxu0
        %5696 = vmatprep.mubr.bf16.mxu0 0
        %5697 = vmatmul.mubr.bf16.gmra.mrb[0].mxu0 %v5577
        %v5698 = vpop.f32.mrb[0].mxu0
        %v5699 = vadd.f32 0.0, %v5698
        %v5700 = vpop.f32.mrb[0].mxu0
        %v5701 = vpop.f32.mrb[0].mxu0
        %v5702 = vadd.f32 0.0, %v5701
        %v5703 = vpop.f32.mrb[0].mxu0
        %5704 = vmatprep.mubr.bf16.mxu0 0
        %5705 = vmatmul.mubr.bf16.gmra.mrb[0].mxu0 %v5580
        %v5706 = vpop.f32.mrb[0].mxu0
        %v5707 = vadd.f32 0.0, %v5706
        %v5708 = vpop.f32.mrb[0].mxu0
        %v5709 = vpop.f32.mrb[0].mxu0
        %v5710 = vadd.f32 0.0, %v5709
        %v5711 = vpop.f32.mrb[0].mxu0
        %5712 = vmatprep.mubr.bf16.mxu0 0
        %5713 = vmatmul.mubr.bf16.gmra.mrb[0].mxu0 %v5583
        %v5714 = vpop.f32.mrb[0].mxu0
        %v5715 = vadd.f32 0.0, %v5714
        %v5716 = vpop.f32.mrb[0].mxu0
        %v5717 = vpop.f32.mrb[0].mxu0
        %v5718 = vadd.f32 0.0, %v5717
        %v5719 = vpop.f32.mrb[0].mxu0
        %5720 = vmatprep.mubr.bf16.mxu0 0
        %5721 = vmatmul.mubr.bf16.gmra.mrb[0].mxu0 %v5586
        %v5722 = vpop.f32.mrb[0].mxu0
        %v5723 = vadd.f32 0.0, %v5722
        %v5724 = vpop.f32.mrb[0].mxu0
        %v5725 = vpop.f32.mrb[0].mxu0
        %v5726 = vadd.f32 0.0, %v5725
        %v5727 = vpop.f32.mrb[0].mxu0
        %5728 = vmatprep.mubr.bf16.mxu0 0
        %5729 = vmatmul.mubr.bf16.gmra.mrb[0].mxu0 %v5589
        %v5730 = vpop.f32.mrb[0].mxu0
        %v5731 = vadd.f32 0.0, %v5730
        %v5732 = vpop.f32.mrb[0].mxu0
        %v5733 = vpop.f32.mrb[0].mxu0
        %v5734 = vadd.f32 0.0, %v5733
        %v5735 = vpop.f32.mrb[0].mxu0
        %5736 = vmatprep.mubr.bf16.mxu0 0
        %5737 = vmatmul.mubr.bf16.gmra.mrb[0].mxu0 %v5592
        %v5738 = vpop.f32.mrb[0].mxu0
        %v5739 = vadd.f32 0.0, %v5738
        %v5740 = vpop.f32.mrb[0].mxu0
        %v5741 = vpop.f32.mrb[0].mxu0
        %v5742 = vadd.f32 0.0, %v5741
        %v5743 = vpop.f32.mrb[0].mxu0
        %5744 = vmatprep.mubr.bf16.mxu0 0
        %5745 = vmatmul.mubr.bf16.gmra.mrb[0].mxu0 %v5595
        %v5746 = vpop.f32.mrb[0].mxu0
        %v5747 = vadd.f32 0.0, %v5746
        %v5748 = vpop.f32.mrb[0].mxu0
        %v5749 = vpop.f32.mrb[0].mxu0
        %v5750 = vadd.f32 0.0, %v5749
        %v5751 = vpop.f32.mrb[0].mxu0
        %5752 = vmatprep.mubr.bf16.mxu0 0
        %5753 = vmatmul.mubr.bf16.gmra.mrb[0].mxu0 %v5598
        %v5754 = vpop.f32.mrb[0].mxu0
        %v5755 = vadd.f32 0.0, %v5754
        %v5756 = vpop.f32.mrb[0].mxu0
        %v5757 = vpop.f32.mrb[0].mxu0
        %v5758 = vadd.f32 0.0, %v5757
        %v5759 = vpop.f32.mrb[0].mxu0
        %5760 = vdwg.mxu0
        %v5761 = vadd.f32 %v5439, %v5635
        %v5762 = vadd.f32 %v5440, %v5638
        %v5763 = vadd.f32 %v5441, %v5643
        %v5764 = vadd.f32 %v5442, %v5646
        %v5765 = vadd.f32 %v5443, %v5651
        %v5766 = vadd.f32 %v5444, %v5654
        %v5767 = vadd.f32 %v5445, %v5659
        %v5768 = vadd.f32 %v5446, %v5662
        %v5769 = vadd.f32 %v5447, %v5667
        %v5770 = vadd.f32 %v5448, %v5670
        %v5771 = vadd.f32 %v5449, %v5675
        %v5772 = vadd.f32 %v5450, %v5678
        %v5773 = vadd.f32 %v5451, %v5683
        %v5774 = vadd.f32 %v5452, %v5686
        %v5775 = vadd.f32 %v5453, %v5691
        %v5776 = vadd.f32 %v5454, %v5694
        %v5777 = vadd.f32 %v5455, %v5699
        %v5778 = vadd.f32 %v5456, %v5702
        %v5779 = vadd.f32 %v5457, %v5707
        %v5780 = vadd.f32 %v5458, %v5710
        %v5781 = vadd.f32 %v5459, %v5715
        %v5782 = vadd.f32 %v5460, %v5718
        %v5783 = vadd.f32 %v5461, %v5723
        %v5784 = vadd.f32 %v5462, %v5726
        %v5785 = vadd.f32 %v5463, %v5731
        %v5786 = vadd.f32 %v5464, %v5734
        %v5787 = vadd.f32 %v5465, %v5739
        %v5788 = vadd.f32 %v5466, %v5742
        %v5789 = vadd.f32 %v5467, %v5747
        %v5790 = vadd.f32 %v5468, %v5750
        %v5791 = vadd.f32 %v5469, %v5755
        %v5792 = vadd.f32 %v5470, %v5758
        %v5793 = vld [vmem:[%s5148 + $0x2] sm:$0xff]
        %v5794 = vld [vmem:[%s5148 + $0xa] sm:$0xff]
        %v5795 = vld [vmem:[%s5148 + $0x1a] sm:$0xff]
        %v5796 = vld [vmem:[%s5148 + $0x22] sm:$0xff]
        %v5797 = vld [vmem:[%s5148 + $0x32] sm:$0xff]
        %v5798 = vld [vmem:[%s5148 + $0x3a] sm:$0xff]
        %v5799 = vld [vmem:[%s5148 + $0x4a] sm:$0xff]
        %v5800 = vld [vmem:[%s5148 + $0x52] sm:$0xff]
        %v5801 = vld [vmem:[%s5148 + $0x62] sm:$0xff]
        %v5802 = vld [vmem:[%s5148 + $0x6a] sm:$0xff]
        %v5803 = vld [vmem:[%s5148 + $0x7a] sm:$0xff]
        %v5804 = vld [vmem:[%s5148 + $0x82] sm:$0xff]
        %v5805 = vld [vmem:[%s5148 + $0x92] sm:$0xff]
        %v5806 = vld [vmem:[%s5148 + $0x9a] sm:$0xff]
        %v5807 = vld [vmem:[%s5148 + $0xaa] sm:$0xff]
        %v5808 = vld [vmem:[%s5148 + $0xb2] sm:$0xff]
        %v5809 = vld [vmem:[%s5148 + $0xc2] sm:$0xff]
        %v5810 = vld [vmem:[%s5148 + $0xca] sm:$0xff]
        %v5811 = vld [vmem:[%s5148 + $0xda] sm:$0xff]
        %v5812 = vld [vmem:[%s5148 + $0xe2] sm:$0xff]
        %v5813 = vld [vmem:[%s5148 + $0xf2] sm:$0xff]
        %v5814 = vld [vmem:[%s5148 + $0xfa] sm:$0xff]
        %v5815 = vld [vmem:[%s5148 + $0x10a] sm:$0xff]
        %v5816 = vld [vmem:[%s5148 + $0x112] sm:$0xff]
        %v5817 = vld [vmem:[%s5148 + $0x122] sm:$0xff]
        %v5818 = vld [vmem:[%s5148 + $0x12a] sm:$0xff]
        %v5819 = vld [vmem:[%s5148 + $0x13a] sm:$0xff]
        %v5820 = vld [vmem:[%s5148 + $0x142] sm:$0xff]
        %v5821 = vld [vmem:[%s5148 + $0x152] sm:$0xff]
        %v5822 = vld [vmem:[%s5148 + $0x15a] sm:$0xff]
        %v5823 = vld [vmem:[%s5148 + $0x16a] sm:$0xff]
        %v5824 = vld [vmem:[%s5148 + $0x172] sm:$0xff]
        %v5825 = vpack.c.bf16 %v5794, %v5793
        %v5826 = vpack.c.bf16 %v5796, %v5795
        %v5827 = vpack.c.bf16 %v5798, %v5797
        %v5828 = vpack.c.bf16 %v5800, %v5799
        %v5829 = vpack.c.bf16 %v5802, %v5801
        %v5830 = vpack.c.bf16 %v5804, %v5803
        %v5831 = vpack.c.bf16 %v5806, %v5805
        %v5832 = vpack.c.bf16 %v5808, %v5807
        %v5833 = vpack.c.bf16 %v5810, %v5809
        %v5834 = vpack.c.bf16 %v5812, %v5811
        %v5835 = vpack.c.bf16 %v5814, %v5813
        %v5836 = vpack.c.bf16 %v5816, %v5815
        %v5837 = vpack.c.bf16 %v5818, %v5817
        %v5838 = vpack.c.bf16 %v5820, %v5819
        %v5839 = vpack.c.bf16 %v5822, %v5821
        %v5840 = vpack.c.bf16 %v5824, %v5823
        %s5841 = scalar_lea.vmem %s3, 256
        %v5842 = vld [vmem:[%s5841] sm:$0xf]
        %v5843 = vld [vmem:[%s5841 + $0x4] sm:$0xf]
        %v5844 = vld [vmem:[%s5841 + $0x8] sm:$0xf]
        %v5845 = vld [vmem:[%s5841 + $0xc] sm:$0xf]
        %v5846 = vld [vmem:[%s5841 + $0x10] sm:$0xf]
        %v5847 = vld [vmem:[%s5841 + $0x14] sm:$0xf]
        %v5848 = vld [vmem:[%s5841 + $0x18] sm:$0xf]
        %v5849 = vld [vmem:[%s5841 + $0x1c] sm:$0xf]
        %v5858 = vunpack.c.l.b16 %v5842
        %v5859 = vunpack.c.l.b16 %v5843
        %v5860 = vunpack.c.l.b16 %v5844
        %v5861 = vunpack.c.l.b16 %v5845
        %v5862 = vunpack.c.l.b16 %v5846
        %v5863 = vunpack.c.l.b16 %v5847
        %v5864 = vunpack.c.l.b16 %v5848
        %v5865 = vunpack.c.l.b16 %v5849
        %v5866 = vpack.c.b16 %v5859, %v5858
        %v5867 = vpack.c.b16 %v5861, %v5860
        %v5868 = vpack.c.b16 %v5863, %v5862
        %v5869 = vpack.c.b16 %v5865, %v5864
        %v5875 = vsel %vm388, %v5825, 0
        %v5878 = vsel %vm388, %v5826, 0
        %v5881 = vsel %vm388, %v5827, 0
        %v5884 = vsel %vm388, %v5828, 0
        %v5887 = vsel %vm388, %v5829, 0
        %v5890 = vsel %vm388, %v5830, 0
        %v5893 = vsel %vm388, %v5831, 0
        %v5896 = vsel %vm388, %v5832, 0
        %v5899 = vsel %vm388, %v5833, 0
        %v5902 = vsel %vm388, %v5834, 0
        %v5905 = vsel %vm388, %v5835, 0
        %v5908 = vsel %vm388, %v5836, 0
        %v5911 = vsel %vm388, %v5837, 0
        %v5914 = vsel %vm388, %v5838, 0
        %v5917 = vsel %vm388, %v5839, 0
        %v5920 = vsel %vm388, %v5840, 0
        %5922 = vmatprep.subr.bf16.mxu0 0
        %5923 = vmatpush1.bf16.msra.mxu0 %v5866
        %5924 = vmatprep.subr.bf16.mxu0 0
        %5925 = vmatpush1.bf16.msra.mxu0 %v5867
        %5926 = vmatprep.subr.bf16.mxu0 0
        %5927 = vmatpush1.bf16.msra.mxu0 %v5868
        %5928 = vmatprep.subr.bf16.mxu0 0
        %5929 = vmatpush1.bf16.msra.mxu0 %v5869
        %5930 = vmatprep.subr.bf16.mxu0 0
        %5931 = vmatpush1.bf16.msra.mxu0 0
        %5932 = vmatprep.subr.bf16.mxu0 0
        %5933 = vmatpush1.bf16.msra.mxu0 0
        %5934 = vmatprep.subr.bf16.mxu0 0
        %5935 = vmatpush1.bf16.msra.mxu0 0
        %5936 = vmatprep.subr.bf16.mxu0 0
        %5937 = vmatpush1.bf16.msra.mxu0 0
        %5938 = vmatprep.subr.bf16.mxu0 0
        %5939 = vmatpush1.bf16.msra.mxu0 0
        %5940 = vmatprep.subr.bf16.mxu0 0
        %5941 = vmatpush1.bf16.msra.mxu0 0
        %5942 = vmatprep.subr.bf16.mxu0 0
        %5943 = vmatpush1.bf16.msra.mxu0 0
        %5944 = vmatprep.subr.bf16.mxu0 0
        %5945 = vmatpush1.bf16.msra.mxu0 0
        %5946 = vmatprep.subr.bf16.mxu0 0
        %5947 = vmatpush1.bf16.msra.mxu0 0
        %5948 = vmatprep.subr.bf16.mxu0 0
        %5949 = vmatpush1.bf16.msra.mxu0 0
        %5950 = vmatprep.subr.bf16.mxu0 0
        %5951 = vmatpush1.bf16.msra.mxu0 0
        %5952 = vmatprep.subr.bf16.mxu0 0
        %5953 = vmatpush1.bf16.msra.mxu0 0
        %5954 = vmatprep.mubr.bf16.mxu0 0
        %5955 = vmatmul.mubr.bf16.gmra.mrb[0].mxu0 %v5875
        %v5956 = vpop.f32.mrb[0].mxu0
        %v5957 = vadd.f32 0.0, %v5956
        %v5958 = vpop.f32.mrb[0].mxu0
        %v5959 = vpop.f32.mrb[0].mxu0
        %v5960 = vadd.f32 0.0, %v5959
        %v5961 = vpop.f32.mrb[0].mxu0
        %5962 = vmatprep.mubr.bf16.mxu0 0
        %5963 = vmatmul.mubr.bf16.gmra.mrb[0].mxu0 %v5878
        %v5964 = vpop.f32.mrb[0].mxu0
        %v5965 = vadd.f32 0.0, %v5964
        %v5966 = vpop.f32.mrb[0].mxu0
        %v5967 = vpop.f32.mrb[0].mxu0
        %v5968 = vadd.f32 0.0, %v5967
        %v5969 = vpop.f32.mrb[0].mxu0
        %5970 = vmatprep.mubr.bf16.mxu0 0
        %5971 = vmatmul.mubr.bf16.gmra.mrb[0].mxu0 %v5881
        %v5972 = vpop.f32.mrb[0].mxu0
        %v5973 = vadd.f32 0.0, %v5972
        %v5974 = vpop.f32.mrb[0].mxu0
        %v5975 = vpop.f32.mrb[0].mxu0
        %v5976 = vadd.f32 0.0, %v5975
        %v5977 = vpop.f32.mrb[0].mxu0
        %5978 = vmatprep.mubr.bf16.mxu0 0
        %5979 = vmatmul.mubr.bf16.gmra.mrb[0].mxu0 %v5884
        %v5980 = vpop.f32.mrb[0].mxu0
        %v5981 = vadd.f32 0.0, %v5980
        %v5982 = vpop.f32.mrb[0].mxu0
        %v5983 = vpop.f32.mrb[0].mxu0
        %v5984 = vadd.f32 0.0, %v5983
        %v5985 = vpop.f32.mrb[0].mxu0
        %5986 = vmatprep.mubr.bf16.mxu0 0
        %5987 = vmatmul.mubr.bf16.gmra.mrb[0].mxu0 %v5887
        %v5988 = vpop.f32.mrb[0].mxu0
        %v5989 = vadd.f32 0.0, %v5988
        %v5990 = vpop.f32.mrb[0].mxu0
        %v5991 = vpop.f32.mrb[0].mxu0
        %v5992 = vadd.f32 0.0, %v5991
        %v5993 = vpop.f32.mrb[0].mxu0
        %5994 = vmatprep.mubr.bf16.mxu0 0
        %5995 = vmatmul.mubr.bf16.gmra.mrb[0].mxu0 %v5890
        %v5996 = vpop.f32.mrb[0].mxu0
        %v5997 = vadd.f32 0.0, %v5996
        %v5998 = vpop.f32.mrb[0].mxu0
        %v5999 = vpop.f32.mrb[0].mxu0
        %v6000 = vadd.f32 0.0, %v5999
        %v6001 = vpop.f32.mrb[0].mxu0
        %6002 = vmatprep.mubr.bf16.mxu0 0
        %6003 = vmatmul.mubr.bf16.gmra.mrb[0].mxu0 %v5893
        %v6004 = vpop.f32.mrb[0].mxu0
        %v6005 = vadd.f32 0.0, %v6004
        %v6006 = vpop.f32.mrb[0].mxu0
        %v6007 = vpop.f32.mrb[0].mxu0
        %v6008 = vadd.f32 0.0, %v6007
        %v6009 = vpop.f32.mrb[0].mxu0
        %6010 = vmatprep.mubr.bf16.mxu0 0
        %6011 = vmatmul.mubr.bf16.gmra.mrb[0].mxu0 %v5896
        %v6012 = vpop.f32.mrb[0].mxu0
        %v6013 = vadd.f32 0.0, %v6012
        %v6014 = vpop.f32.mrb[0].mxu0
        %v6015 = vpop.f32.mrb[0].mxu0
        %v6016 = vadd.f32 0.0, %v6015
        %v6017 = vpop.f32.mrb[0].mxu0
        %6018 = vmatprep.mubr.bf16.mxu0 0
        %6019 = vmatmul.mubr.bf16.gmra.mrb[0].mxu0 %v5899
        %v6020 = vpop.f32.mrb[0].mxu0
        %v6021 = vadd.f32 0.0, %v6020
        %v6022 = vpop.f32.mrb[0].mxu0
        %v6023 = vpop.f32.mrb[0].mxu0
        %v6024 = vadd.f32 0.0, %v6023
        %v6025 = vpop.f32.mrb[0].mxu0
        %6026 = vmatprep.mubr.bf16.mxu0 0
        %6027 = vmatmul.mubr.bf16.gmra.mrb[0].mxu0 %v5902
        %v6028 = vpop.f32.mrb[0].mxu0
        %v6029 = vadd.f32 0.0, %v6028
        %v6030 = vpop.f32.mrb[0].mxu0
        %v6031 = vpop.f32.mrb[0].mxu0
        %v6032 = vadd.f32 0.0, %v6031
        %v6033 = vpop.f32.mrb[0].mxu0
        %6034 = vmatprep.mubr.bf16.mxu0 0
        %6035 = vmatmul.mubr.bf16.gmra.mrb[0].mxu0 %v5905
        %v6036 = vpop.f32.mrb[0].mxu0
        %v6037 = vadd.f32 0.0, %v6036
        %v6038 = vpop.f32.mrb[0].mxu0
        %v6039 = vpop.f32.mrb[0].mxu0
        %v6040 = vadd.f32 0.0, %v6039
        %v6041 = vpop.f32.mrb[0].mxu0
        %6042 = vmatprep.mubr.bf16.mxu0 0
        %6043 = vmatmul.mubr.bf16.gmra.mrb[0].mxu0 %v5908
        %v6044 = vpop.f32.mrb[0].mxu0
        %v6045 = vadd.f32 0.0, %v6044
        %v6046 = vpop.f32.mrb[0].mxu0
        %v6047 = vpop.f32.mrb[0].mxu0
        %v6048 = vadd.f32 0.0, %v6047
        %v6049 = vpop.f32.mrb[0].mxu0
        %6050 = vmatprep.mubr.bf16.mxu0 0
        %6051 = vmatmul.mubr.bf16.gmra.mrb[0].mxu0 %v5911
        %v6052 = vpop.f32.mrb[0].mxu0
        %v6053 = vadd.f32 0.0, %v6052
        %v6054 = vpop.f32.mrb[0].mxu0
        %v6055 = vpop.f32.mrb[0].mxu0
        %v6056 = vadd.f32 0.0, %v6055
        %v6057 = vpop.f32.mrb[0].mxu0
        %6058 = vmatprep.mubr.bf16.mxu0 0
        %6059 = vmatmul.mubr.bf16.gmra.mrb[0].mxu0 %v5914
        %v6060 = vpop.f32.mrb[0].mxu0
        %v6061 = vadd.f32 0.0, %v6060
        %v6062 = vpop.f32.mrb[0].mxu0
        %v6063 = vpop.f32.mrb[0].mxu0
        %v6064 = vadd.f32 0.0, %v6063
        %v6065 = vpop.f32.mrb[0].mxu0
        %6066 = vmatprep.mubr.bf16.mxu0 0
        %6067 = vmatmul.mubr.bf16.gmra.mrb[0].mxu0 %v5917
        %v6068 = vpop.f32.mrb[0].mxu0
        %v6069 = vadd.f32 0.0, %v6068
        %v6070 = vpop.f32.mrb[0].mxu0
        %v6071 = vpop.f32.mrb[0].mxu0
        %v6072 = vadd.f32 0.0, %v6071
        %v6073 = vpop.f32.mrb[0].mxu0
        %6074 = vmatprep.mubr.bf16.mxu0 0
        %6075 = vmatmul.mubr.bf16.gmra.mrb[0].mxu0 %v5920
        %v6076 = vpop.f32.mrb[0].mxu0
        %v6077 = vadd.f32 0.0, %v6076
        %v6078 = vpop.f32.mrb[0].mxu0
        %v6079 = vpop.f32.mrb[0].mxu0
        %v6080 = vadd.f32 0.0, %v6079
        %v6081 = vpop.f32.mrb[0].mxu0
        %6082 = vdwg.mxu0
        %v6083 = vadd.f32 %v5761, %v5957
        %v6084 = vadd.f32 %v5762, %v5960
        %v6085 = vadd.f32 %v5763, %v5965
        %v6086 = vadd.f32 %v5764, %v5968
        %v6087 = vadd.f32 %v5765, %v5973
        %v6088 = vadd.f32 %v5766, %v5976
        %v6089 = vadd.f32 %v5767, %v5981
        %v6090 = vadd.f32 %v5768, %v5984
        %v6091 = vadd.f32 %v5769, %v5989
        %v6092 = vadd.f32 %v5770, %v5992
        %v6093 = vadd.f32 %v5771, %v5997
        %v6094 = vadd.f32 %v5772, %v6000
        %v6095 = vadd.f32 %v5773, %v6005
        %v6096 = vadd.f32 %v5774, %v6008
        %v6097 = vadd.f32 %v5775, %v6013
        %v6098 = vadd.f32 %v5776, %v6016
        %v6099 = vadd.f32 %v5777, %v6021
        %v6100 = vadd.f32 %v5778, %v6024
        %v6101 = vadd.f32 %v5779, %v6029
        %v6102 = vadd.f32 %v5780, %v6032
        %v6103 = vadd.f32 %v5781, %v6037
        %v6104 = vadd.f32 %v5782, %v6040
        %v6105 = vadd.f32 %v5783, %v6045
        %v6106 = vadd.f32 %v5784, %v6048
        %v6107 = vadd.f32 %v5785, %v6053
        %v6108 = vadd.f32 %v5786, %v6056
        %v6109 = vadd.f32 %v5787, %v6061
        %v6110 = vadd.f32 %v5788, %v6064
        %v6111 = vadd.f32 %v5789, %v6069
        %v6112 = vadd.f32 %v5790, %v6072
        %v6113 = vadd.f32 %v5791, %v6077
        %v6114 = vadd.f32 %v5792, %v6080
        %v6115 = vld [vmem:[%s4] sm:$0x1]
        %v6116 = vlaneseq
        %v6117 = vshrl.u32 %v6116, 7
        %v6118 = vsub.s32 0, %v6117
        %v6119 = vrot.slane %v6115, %v6118
        %v6120 = vmul.f32 %v6083, %v6119
        %v6121 = vmul.f32 %v6084, %v6119
        %v6122 = vmul.f32 %v6085, %v6119
        %v6123 = vmul.f32 %v6086, %v6119
        %v6124 = vmul.f32 %v6087, %v6119
        %v6125 = vmul.f32 %v6088, %v6119
        %v6126 = vmul.f32 %v6089, %v6119
        %v6127 = vmul.f32 %v6090, %v6119
        %v6128 = vmul.f32 %v6091, %v6119
        %v6129 = vmul.f32 %v6092, %v6119
        %v6130 = vmul.f32 %v6093, %v6119
        %v6131 = vmul.f32 %v6094, %v6119
        %v6132 = vmul.f32 %v6095, %v6119
        %v6133 = vmul.f32 %v6096, %v6119
        %v6134 = vmul.f32 %v6097, %v6119
        %v6135 = vmul.f32 %v6098, %v6119
        %v6136 = vmul.f32 %v6099, %v6119
        %v6137 = vmul.f32 %v6100, %v6119
        %v6138 = vmul.f32 %v6101, %v6119
        %v6139 = vmul.f32 %v6102, %v6119
        %v6140 = vmul.f32 %v6103, %v6119
        %v6141 = vmul.f32 %v6104, %v6119
        %v6142 = vmul.f32 %v6105, %v6119
        %v6143 = vmul.f32 %v6106, %v6119
        %v6144 = vmul.f32 %v6107, %v6119
        %v6145 = vmul.f32 %v6108, %v6119
        %v6146 = vmul.f32 %v6109, %v6119
        %v6147 = vmul.f32 %v6110, %v6119
        %v6148 = vmul.f32 %v6111, %v6119
        %v6149 = vmul.f32 %v6112, %v6119
        %v6150 = vmul.f32 %v6113, %v6119
        %v6151 = vmul.f32 %v6114, %v6119
        %v6152 = vld [vmem:[%s4 + $0x1] sm:$0x1]
        %v6153 = vlaneseq
        %v6154 = vshrl.u32 %v6153, 7
        %v6155 = vsub.s32 0, %v6154
        %v6156 = vrot.slane %v6152, %v6155
        %v6157 = vadd.f32 %v6120, %v6156
        %v6158 = vadd.f32 %v6121, %v6156
        %v6159 = vadd.f32 %v6122, %v6156
        %v6160 = vadd.f32 %v6123, %v6156
        %v6161 = vadd.f32 %v6124, %v6156
        %v6162 = vadd.f32 %v6125, %v6156
        %v6163 = vadd.f32 %v6126, %v6156
        %v6164 = vadd.f32 %v6127, %v6156
        %v6165 = vadd.f32 %v6128, %v6156
        %v6166 = vadd.f32 %v6129, %v6156
        %v6167 = vadd.f32 %v6130, %v6156
        %v6168 = vadd.f32 %v6131, %v6156
        %v6169 = vadd.f32 %v6132, %v6156
        %v6170 = vadd.f32 %v6133, %v6156
        %v6171 = vadd.f32 %v6134, %v6156
        %v6172 = vadd.f32 %v6135, %v6156
        %v6173 = vadd.f32 %v6136, %v6156
        %v6174 = vadd.f32 %v6137, %v6156
        %v6175 = vadd.f32 %v6138, %v6156
        %v6176 = vadd.f32 %v6139, %v6156
        %v6177 = vadd.f32 %v6140, %v6156
        %v6178 = vadd.f32 %v6141, %v6156
        %v6179 = vadd.f32 %v6142, %v6156
        %v6180 = vadd.f32 %v6143, %v6156
        %v6181 = vadd.f32 %v6144, %v6156
        %v6182 = vadd.f32 %v6145, %v6156
        %v6183 = vadd.f32 %v6146, %v6156
        %v6184 = vadd.f32 %v6147, %v6156
        %v6185 = vadd.f32 %v6148, %v6156
        %v6186 = vadd.f32 %v6149, %v6156
        %v6187 = vadd.f32 %v6150, %v6156
        %v6188 = vadd.f32 %v6151, %v6156
        %v6189 = vsel %vm388, %v6157, 0.0
        %v6190 = vsel %vm388, %v6158, 0.0
        %v6191 = vadd.f32 %v6189, %v6190
        %v6192 = vsel %vm388, %v6159, 0.0
        %v6193 = vadd.f32 %v6191, %v6192
        %v6194 = vsel %vm388, %v6160, 0.0
        %v6195 = vadd.f32 %v6193, %v6194
        %v6196 = vsel %vm388, %v6161, 0.0
        %v6197 = vadd.f32 %v6195, %v6196
        %v6198 = vsel %vm388, %v6162, 0.0
        %v6199 = vadd.f32 %v6197, %v6198
        %v6200 = vsel %vm388, %v6163, 0.0
        %v6201 = vadd.f32 %v6199, %v6200
        %v6202 = vsel %vm388, %v6164, 0.0
        %v6203 = vadd.f32 %v6201, %v6202
        %v6204 = vsel %vm388, %v6165, 0.0
        %v6205 = vadd.f32 %v6203, %v6204
        %v6206 = vsel %vm388, %v6166, 0.0
        %v6207 = vadd.f32 %v6205, %v6206
        %v6208 = vsel %vm388, %v6167, 0.0
        %v6209 = vadd.f32 %v6207, %v6208
        %v6210 = vsel %vm388, %v6168, 0.0
        %v6211 = vadd.f32 %v6209, %v6210
        %v6212 = vsel %vm388, %v6169, 0.0
        %v6213 = vadd.f32 %v6211, %v6212
        %v6214 = vsel %vm388, %v6170, 0.0
        %v6215 = vadd.f32 %v6213, %v6214
        %v6216 = vsel %vm388, %v6171, 0.0
        %v6217 = vadd.f32 %v6215, %v6216
        %v6218 = vsel %vm388, %v6172, 0.0
        %v6219 = vadd.f32 %v6217, %v6218
        %v6220 = vsel %vm388, %v6173, 0.0
        %v6221 = vadd.f32 %v6219, %v6220
        %v6222 = vsel %vm388, %v6174, 0.0
        %v6223 = vadd.f32 %v6221, %v6222
        %v6224 = vsel %vm388, %v6175, 0.0
        %v6225 = vadd.f32 %v6223, %v6224
        %v6226 = vsel %vm388, %v6176, 0.0
        %v6227 = vadd.f32 %v6225, %v6226
        %v6228 = vsel %vm388, %v6177, 0.0
        %v6229 = vadd.f32 %v6227, %v6228
        %v6230 = vsel %vm388, %v6178, 0.0
        %v6231 = vadd.f32 %v6229, %v6230
        %v6232 = vsel %vm388, %v6179, 0.0
        %v6233 = vadd.f32 %v6231, %v6232
        %v6234 = vsel %vm388, %v6180, 0.0
        %v6235 = vadd.f32 %v6233, %v6234
        %v6236 = vsel %vm388, %v6181, 0.0
        %v6237 = vadd.f32 %v6235, %v6236
        %v6238 = vsel %vm388, %v6182, 0.0
        %v6239 = vadd.f32 %v6237, %v6238
        %v6240 = vsel %vm388, %v6183, 0.0
        %v6241 = vadd.f32 %v6239, %v6240
        %v6242 = vsel %vm388, %v6184, 0.0
        %v6243 = vadd.f32 %v6241, %v6242
        %v6244 = vsel %vm388, %v6185, 0.0
        %v6245 = vadd.f32 %v6243, %v6244
        %v6246 = vsel %vm388, %v6186, 0.0
        %v6247 = vadd.f32 %v6245, %v6246
        %v6248 = vsel %vm388, %v6187, 0.0
        %v6249 = vadd.f32 %v6247, %v6248
        %v6250 = vsel %vm388, %v6188, 0.0
        %v6251 = vadd.f32 %v6249, %v6250
        %v6252 = vrot.slane %v6251, 4
        %v6253 = vadd.f32 %v6251, %v6252
        %v6254 = vrot.slane %v6253, 2
        %v6255 = vadd.f32 %v6253, %v6254
        %v6256 = vrot.slane %v6255, 1
        %v6257 = vadd.f32 %v6255, %v6256
        %v6258 = vrcp.pop 256.0
        %v6259 = vmul.f32 %v6257, %v6258
        %v6260 = vld [vmem:[%s5] sm:$0xff]
        %v6261 = vld [vmem:[%s5 + $0x8] sm:$0xff]
        %v6262 = vld [vmem:[%s5 + $0x10] sm:$0xff]
        %v6263 = vld [vmem:[%s5 + $0x18] sm:$0xff]
        %v6264 = vld [vmem:[%s5 + $0x20] sm:$0xff]
        %v6265 = vld [vmem:[%s5 + $0x28] sm:$0xff]
        %v6266 = vld [vmem:[%s5 + $0x30] sm:$0xff]
        %v6267 = vld [vmem:[%s5 + $0x38] sm:$0xff]
        %v6269 = vsel %vm388, %v6259, 0
        %6271 = vmatprep.subr.mxu0 0.0
        %6272 = vmatpush1.msra.mxu0 %v6260
        %6273 = vmatprep.subr.mxu0 0.0
        %6274 = vmatpush1.msra.mxu0 %v6261
        %6275 = vmatprep.subr.mxu0 0.0
        %6276 = vmatpush1.msra.mxu0 %v6262
        %6277 = vmatprep.subr.mxu0 0.0
        %6278 = vmatpush1.msra.mxu0 %v6263
        %6279 = vmatprep.subr.mxu0 0.0
        %6280 = vmatpush1.msra.mxu0 %v6264
        %6281 = vmatprep.subr.mxu0 0.0
        %6282 = vmatpush1.msra.mxu0 %v6265
        %6283 = vmatprep.subr.mxu0 0.0
        %6284 = vmatpush1.msra.mxu0 %v6266
        %6285 = vmatprep.subr.mxu0 0.0
        %6286 = vmatpush1.msra.mxu0 %v6267
        %6287 = vmatprep.subr.mxu0 0.0
        %6288 = vmatpush1.msra.mxu0 0.0
        %6289 = vmatprep.subr.mxu0 0.0
        %6290 = vmatpush1.msra.mxu0 0.0
        %6291 = vmatprep.subr.mxu0 0.0
        %6292 = vmatpush1.msra.mxu0 0.0
        %6293 = vmatprep.subr.mxu0 0.0
        %6294 = vmatpush1.msra.mxu0 0.0
        %6295 = vmatprep.subr.mxu0 0.0
        %6296 = vmatpush1.msra.mxu0 0.0
        %6297 = vmatprep.subr.mxu0 0.0
        %6298 = vmatpush1.msra.mxu0 0.0
        %6299 = vmatprep.subr.mxu0 0.0
        %6300 = vmatpush1.msra.mxu0 0.0
        %6301 = vmatprep.subr.mxu0 0.0
        %6302 = vmatpush1.msra.mxu0 0.0
        %6303 = vmatprep.subr.mxu0 0.0
        %6304 = vmatpush1.msra.mxu0 0.0
        %6305 = vmatprep.subr.mxu0 0.0
        %6306 = vmatpush1.msra.mxu0 0.0
        %6307 = vmatprep.subr.mxu0 0.0
        %6308 = vmatpush1.msra.mxu0 0.0
        %6309 = vmatprep.subr.mxu0 0.0
        %6310 = vmatpush1.msra.mxu0 0.0
        %6311 = vmatprep.subr.mxu0 0.0
        %6312 = vmatpush1.msra.mxu0 0.0
        %6313 = vmatprep.subr.mxu0 0.0
        %6314 = vmatpush1.msra.mxu0 0.0
        %6315 = vmatprep.subr.mxu0 0.0
        %6316 = vmatpush1.msra.mxu0 0.0
        %6317 = vmatprep.subr.mxu0 0.0
        %6318 = vmatpush1.msra.mxu0 0.0
        %6319 = vmatprep.subr.mxu0 0.0
        %6320 = vmatpush1.msra.mxu0 0.0
        %6321 = vmatprep.subr.mxu0 0.0
        %6322 = vmatpush1.msra.mxu0 0.0
        %6323 = vmatprep.subr.mxu0 0.0
        %6324 = vmatpush1.msra.mxu0 0.0
        %6325 = vmatprep.subr.mxu0 0.0
        %6326 = vmatpush1.msra.mxu0 0.0
        %6327 = vmatprep.subr.mxu0 0.0
        %6328 = vmatpush1.msra.mxu0 0.0
        %6329 = vmatprep.subr.mxu0 0.0
        %6330 = vmatpush1.msra.mxu0 0.0
        %6331 = vmatprep.subr.mxu0 0.0
        %6332 = vmatpush1.msra.mxu0 0.0
        %6333 = vmatprep.subr.mxu0 0.0
        %6334 = vmatpush1.msra.mxu0 0.0
        %6335 = vmatprep.mubr.f32.mxu0 0.0
        %6336 = vmatmul.mubr.f32.gmra.mrb[0].mxu0 %v6269
        %v6337 = vpop.f32.mrb[0].mxu0
        %v6338 = vadd.f32 0.0, %v6337
        %v6339 = vpop.f32.mrb[0].mxu0
        %6340 = vdwg.mxu0
        %v6341 = vxor.u32 %v6338, 2147483648
        %v6342 = vmul.f32 %v6341, 1.442695
        %v6343 = vpow.pop %v6342
        %v6344 = vadd.f32 %v6343, 1.0
        %v6345 = vrcp.pop %v6344
        %v6346 = vmul.f32 1.0, %v6345
        %v6347 = vld [vmem:[%s1153 + $0x1] sm:$0xff]
        %v6348 = vld [vmem:[%s1153 + $0x9] sm:$0xff]
        %v6349 = vld [vmem:[%s1153 + $0x19] sm:$0xff]
        %v6350 = vld [vmem:[%s1153 + $0x21] sm:$0xff]
        %v6351 = vld [vmem:[%s1153 + $0x31] sm:$0xff]
        %v6352 = vld [vmem:[%s1153 + $0x39] sm:$0xff]
        %v6353 = vld [vmem:[%s1153 + $0x49] sm:$0xff]
        %v6354 = vld [vmem:[%s1153 + $0x51] sm:$0xff]
        %v6355 = vld [vmem:[%s1153 + $0x61] sm:$0xff]
        %v6356 = vld [vmem:[%s1153 + $0x69] sm:$0xff]
        %v6357 = vld [vmem:[%s1153 + $0x79] sm:$0xff]
        %v6358 = vld [vmem:[%s1153 + $0x81] sm:$0xff]
        %v6359 = vld [vmem:[%s1153 + $0x91] sm:$0xff]
        %v6360 = vld [vmem:[%s1153 + $0x99] sm:$0xff]
        %v6361 = vld [vmem:[%s1153 + $0xa9] sm:$0xff]
        %v6362 = vld [vmem:[%s1153 + $0xb1] sm:$0xff]
        %v6363 = vld [vmem:[%s1153 + $0xc1] sm:$0xff]
        %v6364 = vld [vmem:[%s1153 + $0xc9] sm:$0xff]
        %v6365 = vld [vmem:[%s1153 + $0xd9] sm:$0xff]
        %v6366 = vld [vmem:[%s1153 + $0xe1] sm:$0xff]
        %v6367 = vld [vmem:[%s1153 + $0xf1] sm:$0xff]
        %v6368 = vld [vmem:[%s1153 + $0xf9] sm:$0xff]
        %v6369 = vld [vmem:[%s1153 + $0x109] sm:$0xff]
        %v6370 = vld [vmem:[%s1153 + $0x111] sm:$0xff]
        %v6371 = vld [vmem:[%s1153 + $0x121] sm:$0xff]
        %v6372 = vld [vmem:[%s1153 + $0x129] sm:$0xff]
        %v6373 = vld [vmem:[%s1153 + $0x139] sm:$0xff]
        %v6374 = vld [vmem:[%s1153 + $0x141] sm:$0xff]
        %v6375 = vld [vmem:[%s1153 + $0x151] sm:$0xff]
        %v6376 = vld [vmem:[%s1153 + $0x159] sm:$0xff]
        %v6377 = vld [vmem:[%s1153 + $0x169] sm:$0xff]
        %v6378 = vld [vmem:[%s1153 + $0x171] sm:$0xff]
        %v6379 = vlaneseq
        %v6380 = vshrl.u32 %v6379, 7
        %v6381 = vsub.s32 0, %v6380
        %v6382 = vrot.slane %v6346, %v6381
        %v6383 = vmul.f32 %v6157, %v6382
        %v6384 = vmul.f32 %v6158, %v6382
        %v6385 = vmul.f32 %v6159, %v6382
        %v6386 = vmul.f32 %v6160, %v6382
        %v6387 = vmul.f32 %v6161, %v6382
        %v6388 = vmul.f32 %v6162, %v6382
        %v6389 = vmul.f32 %v6163, %v6382
        %v6390 = vmul.f32 %v6164, %v6382
        %v6391 = vmul.f32 %v6165, %v6382
        %v6392 = vmul.f32 %v6166, %v6382
        %v6393 = vmul.f32 %v6167, %v6382
        %v6394 = vmul.f32 %v6168, %v6382
        %v6395 = vmul.f32 %v6169, %v6382
        %v6396 = vmul.f32 %v6170, %v6382
        %v6397 = vmul.f32 %v6171, %v6382
        %v6398 = vmul.f32 %v6172, %v6382
        %v6399 = vmul.f32 %v6173, %v6382
        %v6400 = vmul.f32 %v6174, %v6382
        %v6401 = vmul.f32 %v6175, %v6382
        %v6402 = vmul.f32 %v6176, %v6382
        %v6403 = vmul.f32 %v6177, %v6382
        %v6404 = vmul.f32 %v6178, %v6382
        %v6405 = vmul.f32 %v6179, %v6382
        %v6406 = vmul.f32 %v6180, %v6382
        %v6407 = vmul.f32 %v6181, %v6382
        %v6408 = vmul.f32 %v6182, %v6382
        %v6409 = vmul.f32 %v6183, %v6382
        %v6410 = vmul.f32 %v6184, %v6382
        %v6411 = vmul.f32 %v6185, %v6382
        %v6412 = vmul.f32 %v6186, %v6382
        %v6413 = vmul.f32 %v6187, %v6382
        %v6414 = vmul.f32 %v6188, %v6382
        %v6415 = vadd.f32 %v6383, %v6347
        %v6416 = vadd.f32 %v6384, %v6348
        %v6417 = vadd.f32 %v6385, %v6349
        %v6418 = vadd.f32 %v6386, %v6350
        %v6419 = vadd.f32 %v6387, %v6351
        %v6420 = vadd.f32 %v6388, %v6352
        %v6421 = vadd.f32 %v6389, %v6353
        %v6422 = vadd.f32 %v6390, %v6354
        %v6423 = vadd.f32 %v6391, %v6355
        %v6424 = vadd.f32 %v6392, %v6356
        %v6425 = vadd.f32 %v6393, %v6357
        %v6426 = vadd.f32 %v6394, %v6358
        %v6427 = vadd.f32 %v6395, %v6359
        %v6428 = vadd.f32 %v6396, %v6360
        %v6429 = vadd.f32 %v6397, %v6361
        %v6430 = vadd.f32 %v6398, %v6362
        %v6431 = vadd.f32 %v6399, %v6363
        %v6432 = vadd.f32 %v6400, %v6364
        %v6433 = vadd.f32 %v6401, %v6365
        %v6434 = vadd.f32 %v6402, %v6366
        %v6435 = vadd.f32 %v6403, %v6367
        %v6436 = vadd.f32 %v6404, %v6368
        %v6437 = vadd.f32 %v6405, %v6369
        %v6438 = vadd.f32 %v6406, %v6370
        %v6439 = vadd.f32 %v6407, %v6371
        %v6440 = vadd.f32 %v6408, %v6372
        %v6441 = vadd.f32 %v6409, %v6373
        %v6442 = vadd.f32 %v6410, %v6374
        %v6443 = vadd.f32 %v6411, %v6375
        %v6444 = vadd.f32 %v6412, %v6376
        %v6445 = vadd.f32 %v6413, %v6377
        %v6446 = vadd.f32 %v6414, %v6378
        %v6447 = vmax.f32 %v6415, 0.0
        %v6448 = vmax.f32 %v6416, 0.0
        %v6449 = vmax.f32 %v6417, 0.0
        %v6450 = vmax.f32 %v6418, 0.0
        %v6451 = vmax.f32 %v6419, 0.0
        %v6452 = vmax.f32 %v6420, 0.0
        %v6453 = vmax.f32 %v6421, 0.0
        %v6454 = vmax.f32 %v6422, 0.0
        %v6455 = vmax.f32 %v6423, 0.0
        %v6456 = vmax.f32 %v6424, 0.0
        %v6457 = vmax.f32 %v6425, 0.0
        %v6458 = vmax.f32 %v6426, 0.0
        %v6459 = vmax.f32 %v6427, 0.0
        %v6460 = vmax.f32 %v6428, 0.0
        %v6461 = vmax.f32 %v6429, 0.0
        %v6462 = vmax.f32 %v6430, 0.0
        %v6463 = vmax.f32 %v6431, 0.0
        %v6464 = vmax.f32 %v6432, 0.0
        %v6465 = vmax.f32 %v6433, 0.0
        %v6466 = vmax.f32 %v6434, 0.0
        %v6467 = vmax.f32 %v6435, 0.0
        %v6468 = vmax.f32 %v6436, 0.0
        %v6469 = vmax.f32 %v6437, 0.0
        %v6470 = vmax.f32 %v6438, 0.0
        %v6471 = vmax.f32 %v6439, 0.0
        %v6472 = vmax.f32 %v6440, 0.0
        %v6473 = vmax.f32 %v6441, 0.0
        %v6474 = vmax.f32 %v6442, 0.0
        %v6475 = vmax.f32 %v6443, 0.0
        %v6476 = vmax.f32 %v6444, 0.0
        %v6477 = vmax.f32 %v6445, 0.0
        %v6478 = vmax.f32 %v6446, 0.0
        %6479 = vst.msk [vmem:[%s244] sm:$0xff] %vm388, %v6447
        %6480 = vst.msk [vmem:[%s244 + $0x8] sm:$0xff] %vm388, %v6448
        %6481 = vst.msk [vmem:[%s244 + $0x10] sm:$0xff] %vm388, %v6449
        %6482 = vst.msk [vmem:[%s244 + $0x18] sm:$0xff] %vm388, %v6450
        %6483 = vst.msk [vmem:[%s244 + $0x20] sm:$0xff] %vm388, %v6451
        %6484 = vst.msk [vmem:[%s244 + $0x28] sm:$0xff] %vm388, %v6452
        %6485 = vst.msk [vmem:[%s244 + $0x30] sm:$0xff] %vm388, %v6453
        %6486 = vst.msk [vmem:[%s244 + $0x38] sm:$0xff] %vm388, %v6454
        %6487 = vst.msk [vmem:[%s244 + $0x40] sm:$0xff] %vm388, %v6455
        %6488 = vst.msk [vmem:[%s244 + $0x48] sm:$0xff] %vm388, %v6456
        %6489 = vst.msk [vmem:[%s244 + $0x50] sm:$0xff] %vm388, %v6457
        %6490 = vst.msk [vmem:[%s244 + $0x58] sm:$0xff] %vm388, %v6458
        %6491 = vst.msk [vmem:[%s244 + $0x60] sm:$0xff] %vm388, %v6459
        %6492 = vst.msk [vmem:[%s244 + $0x68] sm:$0xff] %vm388, %v6460
        %6493 = vst.msk [vmem:[%s244 + $0x70] sm:$0xff] %vm388, %v6461
        %6494 = vst.msk [vmem:[%s244 + $0x78] sm:$0xff] %vm388, %v6462
        %6495 = vst.msk [vmem:[%s244 + $0x80] sm:$0xff] %vm388, %v6463
        %6496 = vst.msk [vmem:[%s244 + $0x88] sm:$0xff] %vm388, %v6464
        %6497 = vst.msk [vmem:[%s244 + $0x90] sm:$0xff] %vm388, %v6465
        %6498 = vst.msk [vmem:[%s244 + $0x98] sm:$0xff] %vm388, %v6466
        %6499 = vst.msk [vmem:[%s244 + $0xa0] sm:$0xff] %vm388, %v6467
        %6500 = vst.msk [vmem:[%s244 + $0xa8] sm:$0xff] %vm388, %v6468
        %6501 = vst.msk [vmem:[%s244 + $0xb0] sm:$0xff] %vm388, %v6469
        %6502 = vst.msk [vmem:[%s244 + $0xb8] sm:$0xff] %vm388, %v6470
        %6503 = vst.msk [vmem:[%s244 + $0xc0] sm:$0xff] %vm388, %v6471
        %6504 = vst.msk [vmem:[%s244 + $0xc8] sm:$0xff] %vm388, %v6472
        %6505 = vst.msk [vmem:[%s244 + $0xd0] sm:$0xff] %vm388, %v6473
        %6506 = vst.msk [vmem:[%s244 + $0xd8] sm:$0xff] %vm388, %v6474
        %6507 = vst.msk [vmem:[%s244 + $0xe0] sm:$0xff] %vm388, %v6475
        %6508 = vst.msk [vmem:[%s244 + $0xe8] sm:$0xff] %vm388, %v6476
        %6509 = vst.msk [vmem:[%s244 + $0xf0] sm:$0xff] %vm388, %v6477
        %6510 = vst.msk [vmem:[%s244 + $0xf8] sm:$0xff] %vm388, %v6478
        %s6511 = sand.u32 %s159, 1
        %s6512 = scalar_lea.sflag [#allocation4], %s6511
        %s6513 = sand.u32 %s159, 1
        %s6514 = smul.addr %s6513, 256
        %s6515 = scalar_lea.vmem [#allocation3], %s6514
        // Predicated region
        $region45: #{tpu_custom_call.1} parent=43 // pred_check
          %p6516 = pneg %p169
        $region46: #{tpu_custom_call.1} parent=43 // pred_check_branch
          %6518 = sbr.rel (%p6516) target = $region48
        $region47: #{tpu_custom_call.1} parent=43 // pred_region
          %s6520 = ssub.s32 4096, 4096
          %6521 = vsyncadd %s6512, %s6520
          %s6522 = smul.addr %s20, 32
          %s6523 = smul.addr %s6522, 128
          %s6524 = scalar_lea.hbm %s6, %s6523
          %s6525 = sshll.u32 %s6515, 4
          %s6526 = int_to_ptr.vmem [resolvable:$true] %s6525
          %6531 = dma.vmem_to_hbm [thread:$0]  %s6526, 4096, %s6524, %s6512, 128, 128, 8
        $region48: #{tpu_custom_call.1} parent=43 // pred_fallthru
          _
      $region44: #{tpu_custom_call.1} parent=5 // pred_fallthru
        _
      %p6532 = scmp.le.s32.totalorder 2, %s15
      // Predicated region
      $region49: #{tpu_custom_call.1} parent=5 // pred_check
        %p6533 = pneg %p6532
      $region50: #{tpu_custom_call.1} parent=5 // pred_check_branch
        %6535 = sbr.rel (%p6533) target = $region52
      $region51: #{tpu_custom_call.1} parent=5 // pred_region
        %s6536 = ssub.s32 %s15, 2
        // Predicated region
        $region53: #{tpu_custom_call.1} parent=51 // pred_check
          %p6537 = pneg %p175
        $region54: #{tpu_custom_call.1} parent=51 // pred_check_branch
          %6539 = sbr.rel (%p6537) target = $region56
        $region55: #{tpu_custom_call.1} parent=51 // pred_region
          %s6540 = sand.u32 %s160, 1
          %s6541 = scalar_lea.sflag [#allocation4], %s6540
          %s6542 = sand.u32 %s160, 1
          %s6543 = smul.addr %s6542, 256
          %s6544 = scalar_lea.vmem [#allocation3], %s6543
          %6545 = dma.done %s6541, 4096
        $region56: #{tpu_custom_call.1} parent=51 // pred_fallthru
          _
      $region52: #{tpu_custom_call.1} parent=5 // pred_fallthru
        _
    $region6: #{tpu_custom_call.1} parent=1 // loop_footer
      %s19 = sadd.s32 1, %s15
    $region7: #{tpu_custom_call.1} parent=1 // loop_footer_branch
      %14 = sbr.rel target = $region3
    $region8: #{tpu_custom_call.1} parent=1 // loop_exit
      _
    %6546 = vsyncpa [#allocation4], 1
    %s6547 = scalar_lea.sflag [#allocation4], 1
    %6548 = vsyncpa %s6547, 1

</llo_original>
